<compile_context>
chip_gen: v6e
topology: v6e:2x2x1
jax: 0.10.0
libtpu: 0.0.40
codegen_flags: <defaults>
</compile_context>

<pallas_src>
import functools
import math

import jax
import jax.numpy as jnp
from jax import lax
from jax.experimental import pallas as pl
from jax.experimental.pallas import tpu as pltpu

_BN_EPS = 1e-5

# Geometry implied by fc1 = Linear(6*16*24, 128):
#   x: (B, n_state, 32, 97) -> conv1 (1,3)/(1,2) -> (B,4,32,48)
#                           -> conv2 (2,2)/(2,2) -> (B,6,16,24)
_H_IN, _W_IN = 32, 97
_C1_OUT, _C2_OUT = 4, 6
_HO, _WO = 16, 24
_P = _HO * _WO            # 384 pixels per conv2 output channel (3 lane tiles)
_FLAT = _C2_OUT * _P      # 2304
_HID = 128
_NPAD = 128               # fc2 output padded to one full lane tile


# ----------------------------------------------------------------------------
# Fused kernel: one full branch (conv1+bn+relu -> conv2+bn+relu -> fc1+relu
# -> fc2) per grid step.
# ----------------------------------------------------------------------------
def _a3c_fused_kernel(x_ref, w1_ref, b1_ref, w2_ref, b2_ref,
                      fw1_hbm, fb1_ref, fw2_ref, fb2_ref,
                      out_ref, fw1_vmem, fw1_sem, *, n_state, batch):
    br = pl.program_id(0)          # 0 = policy branch, 1 = value branch
    C = n_state
    B = batch

    # ---- start streaming this branch's fc1 weights (bf16) HBM -> VMEM ----
    # The conv section below hides the DMA; we only wait right before the
    # fc1 matmuls.
    fw1_copy = pltpu.make_async_copy(fw1_hbm.at[br], fw1_vmem, fw1_sem.at[0])
    fw1_copy.start()

    # ---- conv1(+BN)+ReLU fused into conv2(+BN) accumulation --------------
    # x_ref rows [pidx*B, pidx*B+B) hold the (B, 384) plane of input pixels
    # x[b, c, 2*ho+kh, 4*wo+2*kw+t] with pidx = ((t*2+kh)*2+kw)*C + c.
    # Each conv1 tap (kh, kw, c1) is produced in vregs and immediately
    # accumulated into all 6 conv2 output-channel accumulators, so conv1
    # activations never touch VMEM.
    c2_acc = [jnp.zeros((B, _P), jnp.float32) + b2_ref[br, c2]
              for c2 in range(_C2_OUT)]
    for kh in range(2):
        for kw in range(2):
            for c1 in range(_C1_OUT):
                a = jnp.zeros((B, _P), jnp.float32) + b1_ref[br, c1]
                for c in range(C):
                    for t in range(3):
                        pidx = ((t * 2 + kh) * 2 + kw) * C + c
                        a = a + (x_ref[pidx * B:(pidx + 1) * B, :]
                                 * w1_ref[br, (c1 * C + c) * 3 + t])
                a = jnp.maximum(a, 0.0)                       # conv1 ReLU
                for c2 in range(_C2_OUT):
                    c2_acc[c2] = c2_acc[c2] + a * w2_ref[
                        br, ((c2 * _C1_OUT + c1) * 2 + kh) * 2 + kw]

    # ---- fc1 (per conv2-channel partial matmuls, f32 accumulation) -------
    fw1_copy.wait()                                           # weights landed
    h = jnp.zeros((B, _HID), jnp.float32)
    for c2 in range(_C2_OUT):
        act = jnp.maximum(c2_acc[c2], 0.0).astype(jnp.bfloat16)   # conv2 ReLU
        h = h + jnp.dot(act, fw1_vmem[c2 * _P:(c2 + 1) * _P, :],
                        preferred_element_type=jnp.float32)
    h = jnp.maximum(h + fb1_ref[0], 0.0)                      # fc1 bias + ReLU

    # ---- fc2 (bf16 weights, f32 accumulation, lane-dense padded store) ---
    o = jnp.dot(h.astype(jnp.bfloat16), fw2_ref[0],
                preferred_element_type=jnp.float32) + fb2_ref[0]
    out_ref[0, 0:B, :] = o        # pad rows/lanes are sliced away by the host


# ----------------------------------------------------------------------------
# Host-side glue
# ----------------------------------------------------------------------------
def _prep_input(x, n_state):
    """Pre-split x (B, C, 32, 97) into per-tap pixel planes (pure slicing).

    Returns (12*C*B, 384) f32 with
        row[(((t*2+kh)*2+kw)*C + c)*B + b, ho*24 + wo]
            = x[b, c, 2*ho+kh, 4*wo+2*kw+t]
    i.e. the input pixel feeding conv1 tap t / input channel c of the conv1
    output that conv2 reads at tap (kh, kw) for output pixel (ho, wo).
    """
    B = x.shape[0]
    planes = []
    for t in range(3):
        for kh in range(2):
            for kw in range(2):
                s = 2 * kw + t
                v = x[:, :, kh::2, s:s + 4 * (_WO - 1) + 1:4]      # (B, C, 16, 24)
                v = jnp.transpose(v, (1, 0, 2, 3)).reshape(n_state, B, _P)
                planes.append(v.astype(jnp.float32))
    return jnp.concatenate(planes, axis=0).reshape(12 * n_state * B, _P)


def prepare_params(p, bn=None):
    """One-time parameter prep.

    Folds BatchNorm (eval mode) into the conv weights/bias, flattens conv
    weights for SMEM scalar access, pre-transposes fc weights to (K, N),
    casts them to bf16, pads fc2 to a 128-wide lane tile, and stacks the two
    branches on a leading axis.

    bn: optional dict {"bn1"/"bn2"/"bn3"/"bn4": (gamma, beta, mean, var)} of
    trained BatchNorm eval-mode parameters; defaults are the fresh-init values
    (gamma=1, beta=0, running_mean=0, running_var=1).
    """
    def get_bn(name, ch):
        if bn is not None and name in bn:
            return bn[name]
        one = jnp.ones((ch,), jnp.float32)
        zero = jnp.zeros((ch,), jnp.float32)
        return one, zero, zero, one

    def fold(w, b, name):
        gamma, beta, mean, var = get_bn(name, w.shape[0])
        scale = gamma / jnp.sqrt(var + _BN_EPS)
        wf = (w * scale[:, None, None, None]).reshape(-1)
        bf = (b - mean) * scale + beta
        return wf, bf

    w1a, b1a = fold(p["wc1"], p["bc1"], "bn1")
    w2a, b2a = fold(p["wc2"], p["bc2"], "bn2")
    w1b, b1b = fold(p["wc3"], p["bc3"], "bn3")
    w2b, b2b = fold(p["wc4"], p["bc4"], "bn4")

    n_actions = p["fw2"].shape[0]
    assert n_actions <= _NPAD
    fw2p = jnp.zeros((2, _HID, _NPAD), jnp.float32)
    fw2p = fw2p.at[0, :, :n_actions].set(p["fw2"].T)
    fw2p = fw2p.at[1, :, :1].set(p["fw4"].T)
    fb2p = jnp.zeros((2, 1, _NPAD), jnp.float32)
    fb2p = fb2p.at[0, 0, :n_actions].set(p["fb2"])
    fb2p = fb2p.at[1, 0, :1].set(p["fb4"])

    return dict(
        w1=jnp.stack([w1a, w1b]),                        # (2, 4*C*3)  -> SMEM
        b1=jnp.stack([b1a, b1b]),                        # (2, 4)      -> SMEM
        w2=jnp.stack([w2a, w2b]),                        # (2, 96)     -> SMEM
        b2=jnp.stack([b2a, b2b]),                        # (2, 6)      -> SMEM
        fw1=jnp.stack([p["fw1"].T, p["fw3"].T]).astype(jnp.bfloat16),  # (2,2304,128)
        fb1=jnp.stack([p["fb1"], p["fb3"]])[:, None, :],               # (2,1,128) f32
        fw2=fw2p.astype(jnp.bfloat16),                                 # (2,128,128)
        fb2=fb2p,                                                      # (2,1,128) f32
    )


def a3c_forward(x, prepped, *, n_state, n_actions):
    B = x.shape[0]
    mrows = max(8, ((B + 7) // 8) * 8)        # sublane-padded output row count
    x_split = _prep_input(x, n_state)
    nrows = x_split.shape[0]                  # 12 * n_state * B

    kernel = functools.partial(_a3c_fused_kernel, n_state=n_state, batch=B)
    smem = pl.BlockSpec(memory_space=pltpu.MemorySpace.SMEM)

    out = pl.pallas_call(
        kernel,
        out_shape=jax.ShapeDtypeStruct((2, mrows, _NPAD), jnp.float32),
        grid=(2,),
        in_specs=[
            pl.BlockSpec((nrows, _P), lambda br: (0, 0)),           # shared input planes
            smem,                                                   # conv1 weights
            smem,                                                   # conv1 bias
            smem,                                                   # conv2 weights
            smem,                                                   # conv2 bias
            pl.BlockSpec(memory_space=pl.ANY),                      # fc1 W (HBM, manual DMA)
            pl.BlockSpec((1, 1, _HID), lambda br: (br, 0, 0)),      # fc1 b
            pl.BlockSpec((1, _HID, _NPAD), lambda br: (br, 0, 0)),  # fc2 W (bf16, padded)
            pl.BlockSpec((1, 1, _NPAD), lambda br: (br, 0, 0)),     # fc2 b padded
        ],
        out_specs=pl.BlockSpec((1, mrows, _NPAD), lambda br: (br, 0, 0)),
        scratch_shapes=[
            pltpu.VMEM((_FLAT, _HID), jnp.bfloat16),   # fc1 weight landing buffer
            pltpu.SemaphoreType.DMA((1,)),             # fc1 weight DMA semaphore
        ],
        compiler_params=pltpu.CompilerParams(
            dimension_semantics=("parallel",),   # v7x: one branch per TensorCore
        ),
    )(x_split, prepped["w1"], prepped["b1"], prepped["w2"], prepped["b2"],
      prepped["fw1"], prepped["fb1"], prepped["fw2"], prepped["fb2"])

    out1 = out[0, :B, :n_actions]
    out2 = out[1, :B, :1]
    return out1, out2


# ----------------------------------------------------------------------------
# Deterministic parameter init (mirrors the module's __init__)
# ----------------------------------------------------------------------------
def init_params(key, n_state, n_actions):
    ks = jax.random.split(key, 12)

    def kaiming_fan_out(k, shape):  # shape = (O, I, kh, kw)
        fan_out = shape[0] * shape[2] * shape[3]
        return jax.random.normal(k, shape, jnp.float32) * math.sqrt(2.0 / fan_out)

    def conv_bias(k, shape):
        fan_in = shape[1] * shape[2] * shape[3]
        bound = 1.0 / math.sqrt(fan_in)
        return jax.random.uniform(k, (shape[0],), jnp.float32, -bound, bound)

    return dict(
        wc1=kaiming_fan_out(ks[0], (4, n_state, 1, 3)),
        bc1=conv_bias(ks[1], (4, n_state, 1, 3)),
        wc2=kaiming_fan_out(ks[2], (6, 4, 2, 2)),
        bc2=conv_bias(ks[3], (6, 4, 2, 2)),
        fw1=jax.random.normal(ks[4], (128, _FLAT), jnp.float32) * 0.01,
        fb1=jnp.zeros((128,), jnp.float32),
        fw2=jax.random.normal(ks[5], (n_actions, 128), jnp.float32) * 0.01,
        fb2=jnp.zeros((n_actions,), jnp.float32),
        wc3=kaiming_fan_out(ks[6], (4, n_state, 1, 3)),
        bc3=conv_bias(ks[7], (4, n_state, 1, 3)),
        wc4=kaiming_fan_out(ks[8], (6, 4, 2, 2)),
        bc4=conv_bias(ks[9], (6, 4, 2, 2)),
        fw3=jax.random.normal(ks[10], (128, _FLAT), jnp.float32) * 0.01,
        fb3=jnp.zeros((128,), jnp.float32),
        fw4=jax.random.normal(ks[11], (1, 128), jnp.float32) * 0.01,
        fb4=jnp.zeros((1,), jnp.float32),
    )


# ----------------------------------------------------------------------------
# Pure-JAX reference (for correctness check)
# ----------------------------------------------------------------------------
def reference_forward(x, p):
    hp = lax.Precision.HIGHEST

    def cbr(inp, w, b, stride):
        y = lax.conv_general_dilated(
            inp, w, stride, "VALID",
            dimension_numbers=("NCHW", "OIHW", "NCHW"), precision=hp)
        y = (y + b[None, :, None, None]) / jnp.sqrt(1.0 + _BN_EPS)
        return jnp.maximum(y, 0.0)

    def br(wc1, bc1, wc2, bc2, fw1, fb1, fw2, fb2):
        a = cbr(x, wc1, bc1, (1, 2))
        a = cbr(a, wc2, bc2, (2, 2))
        f = a.reshape(a.shape[0], -1)
        h = jnp.maximum(jnp.dot(f, fw1.T, precision=hp) + fb1, 0.0)
        return jnp.dot(h, fw2.T, precision=hp) + fb2

    out1 = br(p["wc1"], p["bc1"], p["wc2"], p["bc2"],
              p["fw1"], p["fb1"], p["fw2"], p["fb2"])
    out2 = br(p["wc3"], p["bc3"], p["wc4"], p["bc4"],
              p["fw3"], p["fb3"], p["fw4"], p["fb4"])
    return out1, out2


if __name__ == "__main__":
    n_state, n_actions = 3, 4
    # Input spatial size dictated by fc1 = Linear(6*16*24, 128):
    # H=32, W=97 -> conv1 -> (32, 48) -> conv2 -> (16, 24).
    B, H, W = 2, _H_IN, _W_IN

    key = jax.random.PRNGKey(0)
    kx, kp = jax.random.split(key)
    x = jax.random.normal(kx, (B, n_state, H, W), jnp.float32)
    params = init_params(kp, n_state, n_actions)
    prepped = prepare_params(params)   # one-time: BN fold, transpose, bf16, pad, stack

    fwd = jax.jit(functools.partial(a3c_forward, n_state=n_state,
                                    n_actions=n_actions))
    out1, out2 = fwd(x, prepped)
    jax.block_until_ready((out1, out2))

    assert out1.shape == (B, n_actions) and out2.shape == (B, 1)

    # fc weights are stored in bf16 (f32 accumulation), so compare against the
    # f32 reference at a bf16-appropriate tolerance.
    r1, r2 = reference_forward(x, params)
    ok = bool(
        jnp.allclose(out1, r1, atol=2e-2, rtol=2e-2)
        and jnp.allclose(out2, r2, atol=2e-2, rtol=2e-2)
    )
    if not ok:
        raise SystemExit("Pallas output mismatches reference")

    print("KERNEL_OK")
</pallas_src>

<mosaic_0001>
module attributes {stable_mosaic.version = 11 : i64} {
  func.func @_a3c_fused_kernel(%arg0: i32, %arg1: memref<72x384xf32, #tpu.memory_space<vmem>>, %arg2: memref<2x36xf32, #tpu.memory_space<smem>>, %arg3: memref<2x4xf32, #tpu.memory_space<smem>>, %arg4: memref<2x96xf32, #tpu.memory_space<smem>>, %arg5: memref<2x6xf32, #tpu.memory_space<smem>>, %arg6: memref<2x2304x128xbf16, #tpu.memory_space<any>>, %arg7: memref<1x1x128xf32, #tpu.memory_space<vmem>>, %arg8: memref<1x128x128xbf16, #tpu.memory_space<vmem>>, %arg9: memref<1x1x128xf32, #tpu.memory_space<vmem>>, %arg10: memref<1x8x128xf32, #tpu.memory_space<vmem>>, %arg11: memref<2304x128xbf16, #tpu.memory_space<vmem>>, %arg12: memref<1x!tpu.dma_semaphore, #tpu.memory_space<semaphore_mem>>) attributes {dimension_semantics = [#tpu.dimension_semantics<parallel>], iteration_bounds = array<i64: 2>, scalar_prefetch = 0 : i64, scratch_operands = 2 : i64, tpu.core_type = #tpu.core_type<tc>, window_params = [{pipeline_mode = #tpu.pipeline_mode<synchronous>, transform_indices = @transform_0, window_bounds = array<i64: 72, 384>}, {transform_indices = @transform_1, window_bounds = array<i64: 2, 36>}, {transform_indices = @transform_2, window_bounds = array<i64: 2, 4>}, {transform_indices = @transform_3, window_bounds = array<i64: 2, 96>}, {transform_indices = @transform_4, window_bounds = array<i64: 2, 6>}, {}, {transform_indices = @transform_6, window_bounds = array<i64: 1, 1, 128>}, {transform_indices = @transform_7, window_bounds = array<i64: 1, 128, 128>}, {transform_indices = @transform_8, window_bounds = array<i64: 1, 1, 128>}, {transform_indices = @transform_9, window_bounds = array<i64: 1, 8, 128>}]} {
    %c0_i32 = arith.constant 0 : i32
    %c0_i32_0 = arith.constant 0 : i32
    %c0_i32_1 = arith.constant 0 : i32
    %0 = tpu.memref_slice %arg6[%arg0, %c0_i32_0, %c0_i32_1] : memref<2x2304x128xbf16, #tpu.memory_space<any>> -> memref<1x2304x128xbf16, #tpu.memory_space<any>>
    %1 = tpu.memref_squeeze %0 : memref<1x2304x128xbf16, #tpu.memory_space<any>> -> memref<2304x128xbf16, #tpu.memory_space<any>>
    %2 = tpu.memref_slice %arg12[%c0_i32] : memref<1x!tpu.dma_semaphore, #tpu.memory_space<semaphore_mem>> -> memref<1x!tpu.dma_semaphore, #tpu.memory_space<semaphore_mem>>
    %3 = tpu.memref_squeeze %2 : memref<1x!tpu.dma_semaphore, #tpu.memory_space<semaphore_mem>> -> memref<!tpu.dma_semaphore, #tpu.memory_space<semaphore_mem>>
    tpu.enqueue_dma source(%1 : memref<2304x128xbf16, #tpu.memory_space<any>>) target(%arg11 : memref<2304x128xbf16, #tpu.memory_space<vmem>>) target_semaphore(%3 : memref<!tpu.dma_semaphore, #tpu.memory_space<semaphore_mem>>)
    %cst = arith.constant 0.000000e+00 : f32
    %4 = vector.broadcast %cst : f32 to vector<2x384xf32>
    %5 = arith.index_cast %arg0 : i32 to index
    %c0 = arith.constant 0 : index
    %6 = memref.load %arg5[%5, %c0] : memref<2x6xf32, #tpu.memory_space<smem>>
    %7 = vector.broadcast %6 : f32 to vector<2x384xf32>
    %8 = arith.addf %4, %7 : vector<2x384xf32>
    %cst_2 = arith.constant 0.000000e+00 : f32
    %9 = vector.broadcast %cst_2 : f32 to vector<2x384xf32>
    %10 = arith.index_cast %arg0 : i32 to index
    %c1 = arith.constant 1 : index
    %11 = memref.load %arg5[%10, %c1] : memref<2x6xf32, #tpu.memory_space<smem>>
    %12 = vector.broadcast %11 : f32 to vector<2x384xf32>
    %13 = arith.addf %9, %12 : vector<2x384xf32>
    %cst_3 = arith.constant 0.000000e+00 : f32
    %14 = vector.broadcast %cst_3 : f32 to vector<2x384xf32>
    %15 = arith.index_cast %arg0 : i32 to index
    %c2 = arith.constant 2 : index
    %16 = memref.load %arg5[%15, %c2] : memref<2x6xf32, #tpu.memory_space<smem>>
    %17 = vector.broadcast %16 : f32 to vector<2x384xf32>
    %18 = arith.addf %14, %17 : vector<2x384xf32>
    %cst_4 = arith.constant 0.000000e+00 : f32
    %19 = vector.broadcast %cst_4 : f32 to vector<2x384xf32>
    %20 = arith.index_cast %arg0 : i32 to index
    %c3 = arith.constant 3 : index
    %21 = memref.load %arg5[%20, %c3] : memref<2x6xf32, #tpu.memory_space<smem>>
    %22 = vector.broadcast %21 : f32 to vector<2x384xf32>
    %23 = arith.addf %19, %22 : vector<2x384xf32>
    %cst_5 = arith.constant 0.000000e+00 : f32
    %24 = vector.broadcast %cst_5 : f32 to vector<2x384xf32>
    %25 = arith.index_cast %arg0 : i32 to index
    %c4 = arith.constant 4 : index
    %26 = memref.load %arg5[%25, %c4] : memref<2x6xf32, #tpu.memory_space<smem>>
    %27 = vector.broadcast %26 : f32 to vector<2x384xf32>
    %28 = arith.addf %24, %27 : vector<2x384xf32>
    %cst_6 = arith.constant 0.000000e+00 : f32
    %29 = vector.broadcast %cst_6 : f32 to vector<2x384xf32>
    %30 = arith.index_cast %arg0 : i32 to index
    %c5 = arith.constant 5 : index
    %31 = memref.load %arg5[%30, %c5] : memref<2x6xf32, #tpu.memory_space<smem>>
    %32 = vector.broadcast %31 : f32 to vector<2x384xf32>
    %33 = arith.addf %29, %32 : vector<2x384xf32>
    %cst_7 = arith.constant 0.000000e+00 : f32
    %34 = vector.broadcast %cst_7 : f32 to vector<2x384xf32>
    %35 = arith.index_cast %arg0 : i32 to index
    %c0_8 = arith.constant 0 : index
    %36 = memref.load %arg3[%35, %c0_8] : memref<2x4xf32, #tpu.memory_space<smem>>
    %37 = vector.broadcast %36 : f32 to vector<2x384xf32>
    %38 = arith.addf %34, %37 : vector<2x384xf32>
    %c0_9 = arith.constant 0 : index
    %c0_10 = arith.constant 0 : index
    %39 = vector.load %arg1[%c0_9, %c0_10] : memref<72x384xf32, #tpu.memory_space<vmem>>, vector<2x384xf32>
    %40 = arith.index_cast %arg0 : i32 to index
    %c0_11 = arith.constant 0 : index
    %41 = memref.load %arg2[%40, %c0_11] : memref<2x36xf32, #tpu.memory_space<smem>>
    %42 = vector.broadcast %41 : f32 to vector<2x384xf32>
    %43 = arith.mulf %39, %42 : vector<2x384xf32>
    %44 = arith.addf %38, %43 : vector<2x384xf32>
    %c24 = arith.constant 24 : index
    %c0_12 = arith.constant 0 : index
    %45 = vector.load %arg1[%c24, %c0_12] : memref<72x384xf32, #tpu.memory_space<vmem>>, vector<2x384xf32>
    %46 = arith.index_cast %arg0 : i32 to index
    %c1_13 = arith.constant 1 : index
    %47 = memref.load %arg2[%46, %c1_13] : memref<2x36xf32, #tpu.memory_space<smem>>
    %48 = vector.broadcast %47 : f32 to vector<2x384xf32>
    %49 = arith.mulf %45, %48 : vector<2x384xf32>
    %50 = arith.addf %44, %49 : vector<2x384xf32>
    %c48 = arith.constant 48 : index
    %c0_14 = arith.constant 0 : index
    %51 = vector.load %arg1[%c48, %c0_14] : memref<72x384xf32, #tpu.memory_space<vmem>>, vector<2x384xf32>
    %52 = arith.index_cast %arg0 : i32 to index
    %c2_15 = arith.constant 2 : index
    %53 = memref.load %arg2[%52, %c2_15] : memref<2x36xf32, #tpu.memory_space<smem>>
    %54 = vector.broadcast %53 : f32 to vector<2x384xf32>
    %55 = arith.mulf %51, %54 : vector<2x384xf32>
    %56 = arith.addf %50, %55 : vector<2x384xf32>
    %c2_16 = arith.constant 2 : index
    %c0_17 = arith.constant 0 : index
    %57 = vector.load %arg1[%c2_16, %c0_17] : memref<72x384xf32, #tpu.memory_space<vmem>>, vector<2x384xf32>
    %58 = arith.index_cast %arg0 : i32 to index
    %c3_18 = arith.constant 3 : index
    %59 = memref.load %arg2[%58, %c3_18] : memref<2x36xf32, #tpu.memory_space<smem>>
    %60 = vector.broadcast %59 : f32 to vector<2x384xf32>
    %61 = arith.mulf %57, %60 : vector<2x384xf32>
    %62 = arith.addf %56, %61 : vector<2x384xf32>
    %c26 = arith.constant 26 : index
    %c0_19 = arith.constant 0 : index
    %63 = vector.load %arg1[%c26, %c0_19] : memref<72x384xf32, #tpu.memory_space<vmem>>, vector<2x384xf32>
    %64 = arith.index_cast %arg0 : i32 to index
    %c4_20 = arith.constant 4 : index
    %65 = memref.load %arg2[%64, %c4_20] : memref<2x36xf32, #tpu.memory_space<smem>>
    %66 = vector.broadcast %65 : f32 to vector<2x384xf32>
    %67 = arith.mulf %63, %66 : vector<2x384xf32>
    %68 = arith.addf %62, %67 : vector<2x384xf32>
    %c50 = arith.constant 50 : index
    %c0_21 = arith.constant 0 : index
    %69 = vector.load %arg1[%c50, %c0_21] : memref<72x384xf32, #tpu.memory_space<vmem>>, vector<2x384xf32>
    %70 = arith.index_cast %arg0 : i32 to index
    %c5_22 = arith.constant 5 : index
    %71 = memref.load %arg2[%70, %c5_22] : memref<2x36xf32, #tpu.memory_space<smem>>
    %72 = vector.broadcast %71 : f32 to vector<2x384xf32>
    %73 = arith.mulf %69, %72 : vector<2x384xf32>
    %74 = arith.addf %68, %73 : vector<2x384xf32>
    %c4_23 = arith.constant 4 : index
    %c0_24 = arith.constant 0 : index
    %75 = vector.load %arg1[%c4_23, %c0_24] : memref<72x384xf32, #tpu.memory_space<vmem>>, vector<2x384xf32>
    %76 = arith.index_cast %arg0 : i32 to index
    %c6 = arith.constant 6 : index
    %77 = memref.load %arg2[%76, %c6] : memref<2x36xf32, #tpu.memory_space<smem>>
    %78 = vector.broadcast %77 : f32 to vector<2x384xf32>
    %79 = arith.mulf %75, %78 : vector<2x384xf32>
    %80 = arith.addf %74, %79 : vector<2x384xf32>
    %c28 = arith.constant 28 : index
    %c0_25 = arith.constant 0 : index
    %81 = vector.load %arg1[%c28, %c0_25] : memref<72x384xf32, #tpu.memory_space<vmem>>, vector<2x384xf32>
    %82 = arith.index_cast %arg0 : i32 to index
    %c7 = arith.constant 7 : index
    %83 = memref.load %arg2[%82, %c7] : memref<2x36xf32, #tpu.memory_space<smem>>
    %84 = vector.broadcast %83 : f32 to vector<2x384xf32>
    %85 = arith.mulf %81, %84 : vector<2x384xf32>
    %86 = arith.addf %80, %85 : vector<2x384xf32>
    %c52 = arith.constant 52 : index
    %c0_26 = arith.constant 0 : index
    %87 = vector.load %arg1[%c52, %c0_26] : memref<72x384xf32, #tpu.memory_space<vmem>>, vector<2x384xf32>
    %88 = arith.index_cast %arg0 : i32 to index
    %c8 = arith.constant 8 : index
    %89 = memref.load %arg2[%88, %c8] : memref<2x36xf32, #tpu.memory_space<smem>>
    %90 = vector.broadcast %89 : f32 to vector<2x384xf32>
    %91 = arith.mulf %87, %90 : vector<2x384xf32>
    %92 = arith.addf %86, %91 : vector<2x384xf32>
    %cst_27 = arith.constant 0.000000e+00 : f32
    %93 = vector.broadcast %cst_27 : f32 to vector<2x384xf32>
    %94 = arith.maximumf %92, %93 : vector<2x384xf32>
    %95 = arith.index_cast %arg0 : i32 to index
    %c0_28 = arith.constant 0 : index
    %96 = memref.load %arg4[%95, %c0_28] : memref<2x96xf32, #tpu.memory_space<smem>>
    %97 = vector.broadcast %96 : f32 to vector<2x384xf32>
    %98 = arith.mulf %94, %97 : vector<2x384xf32>
    %99 = arith.addf %8, %98 : vector<2x384xf32>
    %100 = arith.index_cast %arg0 : i32 to index
    %c16 = arith.constant 16 : index
    %101 = memref.load %arg4[%100, %c16] : memref<2x96xf32, #tpu.memory_space<smem>>
    %102 = vector.broadcast %101 : f32 to vector<2x384xf32>
    %103 = arith.mulf %94, %102 : vector<2x384xf32>
    %104 = arith.addf %13, %103 : vector<2x384xf32>
    %105 = arith.index_cast %arg0 : i32 to index
    %c32 = arith.constant 32 : index
    %106 = memref.load %arg4[%105, %c32] : memref<2x96xf32, #tpu.memory_space<smem>>
    %107 = vector.broadcast %106 : f32 to vector<2x384xf32>
    %108 = arith.mulf %94, %107 : vector<2x384xf32>
    %109 = arith.addf %18, %108 : vector<2x384xf32>
    %110 = arith.index_cast %arg0 : i32 to index
    %c48_29 = arith.constant 48 : index
    %111 = memref.load %arg4[%110, %c48_29] : memref<2x96xf32, #tpu.memory_space<smem>>
    %112 = vector.broadcast %111 : f32 to vector<2x384xf32>
    %113 = arith.mulf %94, %112 : vector<2x384xf32>
    %114 = arith.addf %23, %113 : vector<2x384xf32>
    %115 = arith.index_cast %arg0 : i32 to index
    %c64 = arith.constant 64 : index
    %116 = memref.load %arg4[%115, %c64] : memref<2x96xf32, #tpu.memory_space<smem>>
    %117 = vector.broadcast %116 : f32 to vector<2x384xf32>
    %118 = arith.mulf %94, %117 : vector<2x384xf32>
    %119 = arith.addf %28, %118 : vector<2x384xf32>
    %120 = arith.index_cast %arg0 : i32 to index
    %c80 = arith.constant 80 : index
    %121 = memref.load %arg4[%120, %c80] : memref<2x96xf32, #tpu.memory_space<smem>>
    %122 = vector.broadcast %121 : f32 to vector<2x384xf32>
    %123 = arith.mulf %94, %122 : vector<2x384xf32>
    %124 = arith.addf %33, %123 : vector<2x384xf32>
    %cst_30 = arith.constant 0.000000e+00 : f32
    %125 = vector.broadcast %cst_30 : f32 to vector<2x384xf32>
    %126 = arith.index_cast %arg0 : i32 to index
    %c1_31 = arith.constant 1 : index
    %127 = memref.load %arg3[%126, %c1_31] : memref<2x4xf32, #tpu.memory_space<smem>>
    %128 = vector.broadcast %127 : f32 to vector<2x384xf32>
    %129 = arith.addf %125, %128 : vector<2x384xf32>
    %c0_32 = arith.constant 0 : index
    %c0_33 = arith.constant 0 : index
    %130 = vector.load %arg1[%c0_32, %c0_33] : memref<72x384xf32, #tpu.memory_space<vmem>>, vector<2x384xf32>
    %131 = arith.index_cast %arg0 : i32 to index
    %c9 = arith.constant 9 : index
    %132 = memref.load %arg2[%131, %c9] : memref<2x36xf32, #tpu.memory_space<smem>>
    %133 = vector.broadcast %132 : f32 to vector<2x384xf32>
    %134 = arith.mulf %130, %133 : vector<2x384xf32>
    %135 = arith.addf %129, %134 : vector<2x384xf32>
    %c24_34 = arith.constant 24 : index
    %c0_35 = arith.constant 0 : index
    %136 = vector.load %arg1[%c24_34, %c0_35] : memref<72x384xf32, #tpu.memory_space<vmem>>, vector<2x384xf32>
    %137 = arith.index_cast %arg0 : i32 to index
    %c10 = arith.constant 10 : index
    %138 = memref.load %arg2[%137, %c10] : memref<2x36xf32, #tpu.memory_space<smem>>
    %139 = vector.broadcast %138 : f32 to vector<2x384xf32>
    %140 = arith.mulf %136, %139 : vector<2x384xf32>
    %141 = arith.addf %135, %140 : vector<2x384xf32>
    %c48_36 = arith.constant 48 : index
    %c0_37 = arith.constant 0 : index
    %142 = vector.load %arg1[%c48_36, %c0_37] : memref<72x384xf32, #tpu.memory_space<vmem>>, vector<2x384xf32>
    %143 = arith.index_cast %arg0 : i32 to index
    %c11 = arith.constant 11 : index
    %144 = memref.load %arg2[%143, %c11] : memref<2x36xf32, #tpu.memory_space<smem>>
    %145 = vector.broadcast %144 : f32 to vector<2x384xf32>
    %146 = arith.mulf %142, %145 : vector<2x384xf32>
    %147 = arith.addf %141, %146 : vector<2x384xf32>
    %c2_38 = arith.constant 2 : index
    %c0_39 = arith.constant 0 : index
    %148 = vector.load %arg1[%c2_38, %c0_39] : memref<72x384xf32, #tpu.memory_space<vmem>>, vector<2x384xf32>
    %149 = arith.index_cast %arg0 : i32 to index
    %c12 = arith.constant 12 : index
    %150 = memref.load %arg2[%149, %c12] : memref<2x36xf32, #tpu.memory_space<smem>>
    %151 = vector.broadcast %150 : f32 to vector<2x384xf32>
    %152 = arith.mulf %148, %151 : vector<2x384xf32>
    %153 = arith.addf %147, %152 : vector<2x384xf32>
    %c26_40 = arith.constant 26 : index
    %c0_41 = arith.constant 0 : index
    %154 = vector.load %arg1[%c26_40, %c0_41] : memref<72x384xf32, #tpu.memory_space<vmem>>, vector<2x384xf32>
    %155 = arith.index_cast %arg0 : i32 to index
    %c13 = arith.constant 13 : index
    %156 = memref.load %arg2[%155, %c13] : memref<2x36xf32, #tpu.memory_space<smem>>
    %157 = vector.broadcast %156 : f32 to vector<2x384xf32>
    %158 = arith.mulf %154, %157 : vector<2x384xf32>
    %159 = arith.addf %153, %158 : vector<2x384xf32>
    %c50_42 = arith.constant 50 : index
    %c0_43 = arith.constant 0 : index
    %160 = vector.load %arg1[%c50_42, %c0_43] : memref<72x384xf32, #tpu.memory_space<vmem>>, vector<2x384xf32>
    %161 = arith.index_cast %arg0 : i32 to index
    %c14 = arith.constant 14 : index
    %162 = memref.load %arg2[%161, %c14] : memref<2x36xf32, #tpu.memory_space<smem>>
    %163 = vector.broadcast %162 : f32 to vector<2x384xf32>
    %164 = arith.mulf %160, %163 : vector<2x384xf32>
    %165 = arith.addf %159, %164 : vector<2x384xf32>
    %c4_44 = arith.constant 4 : index
    %c0_45 = arith.constant 0 : index
    %166 = vector.load %arg1[%c4_44, %c0_45] : memref<72x384xf32, #tpu.memory_space<vmem>>, vector<2x384xf32>
    %167 = arith.index_cast %arg0 : i32 to index
    %c15 = arith.constant 15 : index
    %168 = memref.load %arg2[%167, %c15] : memref<2x36xf32, #tpu.memory_space<smem>>
    %169 = vector.broadcast %168 : f32 to vector<2x384xf32>
    %170 = arith.mulf %166, %169 : vector<2x384xf32>
    %171 = arith.addf %165, %170 : vector<2x384xf32>
    %c28_46 = arith.constant 28 : index
    %c0_47 = arith.constant 0 : index
    %172 = vector.load %arg1[%c28_46, %c0_47] : memref<72x384xf32, #tpu.memory_space<vmem>>, vector<2x384xf32>
    %173 = arith.index_cast %arg0 : i32 to index
    %c16_48 = arith.constant 16 : index
    %174 = memref.load %arg2[%173, %c16_48] : memref<2x36xf32, #tpu.memory_space<smem>>
    %175 = vector.broadcast %174 : f32 to vector<2x384xf32>
    %176 = arith.mulf %172, %175 : vector<2x384xf32>
    %177 = arith.addf %171, %176 : vector<2x384xf32>
    %c52_49 = arith.constant 52 : index
    %c0_50 = arith.constant 0 : index
    %178 = vector.load %arg1[%c52_49, %c0_50] : memref<72x384xf32, #tpu.memory_space<vmem>>, vector<2x384xf32>
    %179 = arith.index_cast %arg0 : i32 to index
    %c17 = arith.constant 17 : index
    %180 = memref.load %arg2[%179, %c17] : memref<2x36xf32, #tpu.memory_space<smem>>
    %181 = vector.broadcast %180 : f32 to vector<2x384xf32>
    %182 = arith.mulf %178, %181 : vector<2x384xf32>
    %183 = arith.addf %177, %182 : vector<2x384xf32>
    %cst_51 = arith.constant 0.000000e+00 : f32
    %184 = vector.broadcast %cst_51 : f32 to vector<2x384xf32>
    %185 = arith.maximumf %183, %184 : vector<2x384xf32>
    %186 = arith.index_cast %arg0 : i32 to index
    %c4_52 = arith.constant 4 : index
    %187 = memref.load %arg4[%186, %c4_52] : memref<2x96xf32, #tpu.memory_space<smem>>
    %188 = vector.broadcast %187 : f32 to vector<2x384xf32>
    %189 = arith.mulf %185, %188 : vector<2x384xf32>
    %190 = arith.addf %99, %189 : vector<2x384xf32>
    %191 = arith.index_cast %arg0 : i32 to index
    %c20 = arith.constant 20 : index
    %192 = memref.load %arg4[%191, %c20] : memref<2x96xf32, #tpu.memory_space<smem>>
    %193 = vector.broadcast %192 : f32 to vector<2x384xf32>
    %194 = arith.mulf %185, %193 : vector<2x384xf32>
    %195 = arith.addf %104, %194 : vector<2x384xf32>
    %196 = arith.index_cast %arg0 : i32 to index
    %c36 = arith.constant 36 : index
    %197 = memref.load %arg4[%196, %c36] : memref<2x96xf32, #tpu.memory_space<smem>>
    %198 = vector.broadcast %197 : f32 to vector<2x384xf32>
    %199 = arith.mulf %185, %198 : vector<2x384xf32>
    %200 = arith.addf %109, %199 : vector<2x384xf32>
    %201 = arith.index_cast %arg0 : i32 to index
    %c52_53 = arith.constant 52 : index
    %202 = memref.load %arg4[%201, %c52_53] : memref<2x96xf32, #tpu.memory_space<smem>>
    %203 = vector.broadcast %202 : f32 to vector<2x384xf32>
    %204 = arith.mulf %185, %203 : vector<2x384xf32>
    %205 = arith.addf %114, %204 : vector<2x384xf32>
    %206 = arith.index_cast %arg0 : i32 to index
    %c68 = arith.constant 68 : index
    %207 = memref.load %arg4[%206, %c68] : memref<2x96xf32, #tpu.memory_space<smem>>
    %208 = vector.broadcast %207 : f32 to vector<2x384xf32>
    %209 = arith.mulf %185, %208 : vector<2x384xf32>
    %210 = arith.addf %119, %209 : vector<2x384xf32>
    %211 = arith.index_cast %arg0 : i32 to index
    %c84 = arith.constant 84 : index
    %212 = memref.load %arg4[%211, %c84] : memref<2x96xf32, #tpu.memory_space<smem>>
    %213 = vector.broadcast %212 : f32 to vector<2x384xf32>
    %214 = arith.mulf %185, %213 : vector<2x384xf32>
    %215 = arith.addf %124, %214 : vector<2x384xf32>
    %cst_54 = arith.constant 0.000000e+00 : f32
    %216 = vector.broadcast %cst_54 : f32 to vector<2x384xf32>
    %217 = arith.index_cast %arg0 : i32 to index
    %c2_55 = arith.constant 2 : index
    %218 = memref.load %arg3[%217, %c2_55] : memref<2x4xf32, #tpu.memory_space<smem>>
    %219 = vector.broadcast %218 : f32 to vector<2x384xf32>
    %220 = arith.addf %216, %219 : vector<2x384xf32>
    %c0_56 = arith.constant 0 : index
    %c0_57 = arith.constant 0 : index
    %221 = vector.load %arg1[%c0_56, %c0_57] : memref<72x384xf32, #tpu.memory_space<vmem>>, vector<2x384xf32>
    %222 = arith.index_cast %arg0 : i32 to index
    %c18 = arith.constant 18 : index
    %223 = memref.load %arg2[%222, %c18] : memref<2x36xf32, #tpu.memory_space<smem>>
    %224 = vector.broadcast %223 : f32 to vector<2x384xf32>
    %225 = arith.mulf %221, %224 : vector<2x384xf32>
    %226 = arith.addf %220, %225 : vector<2x384xf32>
    %c24_58 = arith.constant 24 : index
    %c0_59 = arith.constant 0 : index
    %227 = vector.load %arg1[%c24_58, %c0_59] : memref<72x384xf32, #tpu.memory_space<vmem>>, vector<2x384xf32>
    %228 = arith.index_cast %arg0 : i32 to index
    %c19 = arith.constant 19 : index
    %229 = memref.load %arg2[%228, %c19] : memref<2x36xf32, #tpu.memory_space<smem>>
    %230 = vector.broadcast %229 : f32 to vector<2x384xf32>
    %231 = arith.mulf %227, %230 : vector<2x384xf32>
    %232 = arith.addf %226, %231 : vector<2x384xf32>
    %c48_60 = arith.constant 48 : index
    %c0_61 = arith.constant 0 : index
    %233 = vector.load %arg1[%c48_60, %c0_61] : memref<72x384xf32, #tpu.memory_space<vmem>>, vector<2x384xf32>
    %234 = arith.index_cast %arg0 : i32 to index
    %c20_62 = arith.constant 20 : index
    %235 = memref.load %arg2[%234, %c20_62] : memref<2x36xf32, #tpu.memory_space<smem>>
    %236 = vector.broadcast %235 : f32 to vector<2x384xf32>
    %237 = arith.mulf %233, %236 : vector<2x384xf32>
    %238 = arith.addf %232, %237 : vector<2x384xf32>
    %c2_63 = arith.constant 2 : index
    %c0_64 = arith.constant 0 : index
    %239 = vector.load %arg1[%c2_63, %c0_64] : memref<72x384xf32, #tpu.memory_space<vmem>>, vector<2x384xf32>
    %240 = arith.index_cast %arg0 : i32 to index
    %c21 = arith.constant 21 : index
    %241 = memref.load %arg2[%240, %c21] : memref<2x36xf32, #tpu.memory_space<smem>>
    %242 = vector.broadcast %241 : f32 to vector<2x384xf32>
    %243 = arith.mulf %239, %242 : vector<2x384xf32>
    %244 = arith.addf %238, %243 : vector<2x384xf32>
    %c26_65 = arith.constant 26 : index
    %c0_66 = arith.constant 0 : index
    %245 = vector.load %arg1[%c26_65, %c0_66] : memref<72x384xf32, #tpu.memory_space<vmem>>, vector<2x384xf32>
    %246 = arith.index_cast %arg0 : i32 to index
    %c22 = arith.constant 22 : index
    %247 = memref.load %arg2[%246, %c22] : memref<2x36xf32, #tpu.memory_space<smem>>
    %248 = vector.broadcast %247 : f32 to vector<2x384xf32>
    %249 = arith.mulf %245, %248 : vector<2x384xf32>
    %250 = arith.addf %244, %249 : vector<2x384xf32>
    %c50_67 = arith.constant 50 : index
    %c0_68 = arith.constant 0 : index
    %251 = vector.load %arg1[%c50_67, %c0_68] : memref<72x384xf32, #tpu.memory_space<vmem>>, vector<2x384xf32>
    %252 = arith.index_cast %arg0 : i32 to index
    %c23 = arith.constant 23 : index
    %253 = memref.load %arg2[%252, %c23] : memref<2x36xf32, #tpu.memory_space<smem>>
    %254 = vector.broadcast %253 : f32 to vector<2x384xf32>
    %255 = arith.mulf %251, %254 : vector<2x384xf32>
    %256 = arith.addf %250, %255 : vector<2x384xf32>
    %c4_69 = arith.constant 4 : index
    %c0_70 = arith.constant 0 : index
    %257 = vector.load %arg1[%c4_69, %c0_70] : memref<72x384xf32, #tpu.memory_space<vmem>>, vector<2x384xf32>
    %258 = arith.index_cast %arg0 : i32 to index
    %c24_71 = arith.constant 24 : index
    %259 = memref.load %arg2[%258, %c24_71] : memref<2x36xf32, #tpu.memory_space<smem>>
    %260 = vector.broadcast %259 : f32 to vector<2x384xf32>
    %261 = arith.mulf %257, %260 : vector<2x384xf32>
    %262 = arith.addf %256, %261 : vector<2x384xf32>
    %c28_72 = arith.constant 28 : index
    %c0_73 = arith.constant 0 : index
    %263 = vector.load %arg1[%c28_72, %c0_73] : memref<72x384xf32, #tpu.memory_space<vmem>>, vector<2x384xf32>
    %264 = arith.index_cast %arg0 : i32 to index
    %c25 = arith.constant 25 : index
    %265 = memref.load %arg2[%264, %c25] : memref<2x36xf32, #tpu.memory_space<smem>>
    %266 = vector.broadcast %265 : f32 to vector<2x384xf32>
    %267 = arith.mulf %263, %266 : vector<2x384xf32>
    %268 = arith.addf %262, %267 : vector<2x384xf32>
    %c52_74 = arith.constant 52 : index
    %c0_75 = arith.constant 0 : index
    %269 = vector.load %arg1[%c52_74, %c0_75] : memref<72x384xf32, #tpu.memory_space<vmem>>, vector<2x384xf32>
    %270 = arith.index_cast %arg0 : i32 to index
    %c26_76 = arith.constant 26 : index
    %271 = memref.load %arg2[%270, %c26_76] : memref<2x36xf32, #tpu.memory_space<smem>>
    %272 = vector.broadcast %271 : f32 to vector<2x384xf32>
    %273 = arith.mulf %269, %272 : vector<2x384xf32>
    %274 = arith.addf %268, %273 : vector<2x384xf32>
    %cst_77 = arith.constant 0.000000e+00 : f32
    %275 = vector.broadcast %cst_77 : f32 to vector<2x384xf32>
    %276 = arith.maximumf %274, %275 : vector<2x384xf32>
    %277 = arith.index_cast %arg0 : i32 to index
    %c8_78 = arith.constant 8 : index
    %278 = memref.load %arg4[%277, %c8_78] : memref<2x96xf32, #tpu.memory_space<smem>>
    %279 = vector.broadcast %278 : f32 to vector<2x384xf32>
    %280 = arith.mulf %276, %279 : vector<2x384xf32>
    %281 = arith.addf %190, %280 : vector<2x384xf32>
    %282 = arith.index_cast %arg0 : i32 to index
    %c24_79 = arith.constant 24 : index
    %283 = memref.load %arg4[%282, %c24_79] : memref<2x96xf32, #tpu.memory_space<smem>>
    %284 = vector.broadcast %283 : f32 to vector<2x384xf32>
    %285 = arith.mulf %276, %284 : vector<2x384xf32>
    %286 = arith.addf %195, %285 : vector<2x384xf32>
    %287 = arith.index_cast %arg0 : i32 to index
    %c40 = arith.constant 40 : index
    %288 = memref.load %arg4[%287, %c40] : memref<2x96xf32, #tpu.memory_space<smem>>
    %289 = vector.broadcast %288 : f32 to vector<2x384xf32>
    %290 = arith.mulf %276, %289 : vector<2x384xf32>
    %291 = arith.addf %200, %290 : vector<2x384xf32>
    %292 = arith.index_cast %arg0 : i32 to index
    %c56 = arith.constant 56 : index
    %293 = memref.load %arg4[%292, %c56] : memref<2x96xf32, #tpu.memory_space<smem>>
    %294 = vector.broadcast %293 : f32 to vector<2x384xf32>
    %295 = arith.mulf %276, %294 : vector<2x384xf32>
    %296 = arith.addf %205, %295 : vector<2x384xf32>
    %297 = arith.index_cast %arg0 : i32 to index
    %c72 = arith.constant 72 : index
    %298 = memref.load %arg4[%297, %c72] : memref<2x96xf32, #tpu.memory_space<smem>>
    %299 = vector.broadcast %298 : f32 to vector<2x384xf32>
    %300 = arith.mulf %276, %299 : vector<2x384xf32>
    %301 = arith.addf %210, %300 : vector<2x384xf32>
    %302 = arith.index_cast %arg0 : i32 to index
    %c88 = arith.constant 88 : index
    %303 = memref.load %arg4[%302, %c88] : memref<2x96xf32, #tpu.memory_space<smem>>
    %304 = vector.broadcast %303 : f32 to vector<2x384xf32>
    %305 = arith.mulf %276, %304 : vector<2x384xf32>
    %306 = arith.addf %215, %305 : vector<2x384xf32>
    %cst_80 = arith.constant 0.000000e+00 : f32
    %307 = vector.broadcast %cst_80 : f32 to vector<2x384xf32>
    %308 = arith.index_cast %arg0 : i32 to index
    %c3_81 = arith.constant 3 : index
    %309 = memref.load %arg3[%308, %c3_81] : memref<2x4xf32, #tpu.memory_space<smem>>
    %310 = vector.broadcast %309 : f32 to vector<2x384xf32>
    %311 = arith.addf %307, %310 : vector<2x384xf32>
    %c0_82 = arith.constant 0 : index
    %c0_83 = arith.constant 0 : index
    %312 = vector.load %arg1[%c0_82, %c0_83] : memref<72x384xf32, #tpu.memory_space<vmem>>, vector<2x384xf32>
    %313 = arith.index_cast %arg0 : i32 to index
    %c27 = arith.constant 27 : index
    %314 = memref.load %arg2[%313, %c27] : memref<2x36xf32, #tpu.memory_space<smem>>
    %315 = vector.broadcast %314 : f32 to vector<2x384xf32>
    %316 = arith.mulf %312, %315 : vector<2x384xf32>
    %317 = arith.addf %311, %316 : vector<2x384xf32>
    %c24_84 = arith.constant 24 : index
    %c0_85 = arith.constant 0 : index
    %318 = vector.load %arg1[%c24_84, %c0_85] : memref<72x384xf32, #tpu.memory_space<vmem>>, vector<2x384xf32>
    %319 = arith.index_cast %arg0 : i32 to index
    %c28_86 = arith.constant 28 : index
    %320 = memref.load %arg2[%319, %c28_86] : memref<2x36xf32, #tpu.memory_space<smem>>
    %321 = vector.broadcast %320 : f32 to vector<2x384xf32>
    %322 = arith.mulf %318, %321 : vector<2x384xf32>
    %323 = arith.addf %317, %322 : vector<2x384xf32>
    %c48_87 = arith.constant 48 : index
    %c0_88 = arith.constant 0 : index
    %324 = vector.load %arg1[%c48_87, %c0_88] : memref<72x384xf32, #tpu.memory_space<vmem>>, vector<2x384xf32>
    %325 = arith.index_cast %arg0 : i32 to index
    %c29 = arith.constant 29 : index
    %326 = memref.load %arg2[%325, %c29] : memref<2x36xf32, #tpu.memory_space<smem>>
    %327 = vector.broadcast %326 : f32 to vector<2x384xf32>
    %328 = arith.mulf %324, %327 : vector<2x384xf32>
    %329 = arith.addf %323, %328 : vector<2x384xf32>
    %c2_89 = arith.constant 2 : index
    %c0_90 = arith.constant 0 : index
    %330 = vector.load %arg1[%c2_89, %c0_90] : memref<72x384xf32, #tpu.memory_space<vmem>>, vector<2x384xf32>
    %331 = arith.index_cast %arg0 : i32 to index
    %c30 = arith.constant 30 : index
    %332 = memref.load %arg2[%331, %c30] : memref<2x36xf32, #tpu.memory_space<smem>>
    %333 = vector.broadcast %332 : f32 to vector<2x384xf32>
    %334 = arith.mulf %330, %333 : vector<2x384xf32>
    %335 = arith.addf %329, %334 : vector<2x384xf32>
    %c26_91 = arith.constant 26 : index
    %c0_92 = arith.constant 0 : index
    %336 = vector.load %arg1[%c26_91, %c0_92] : memref<72x384xf32, #tpu.memory_space<vmem>>, vector<2x384xf32>
    %337 = arith.index_cast %arg0 : i32 to index
    %c31 = arith.constant 31 : index
    %338 = memref.load %arg2[%337, %c31] : memref<2x36xf32, #tpu.memory_space<smem>>
    %339 = vector.broadcast %338 : f32 to vector<2x384xf32>
    %340 = arith.mulf %336, %339 : vector<2x384xf32>
    %341 = arith.addf %335, %340 : vector<2x384xf32>
    %c50_93 = arith.constant 50 : index
    %c0_94 = arith.constant 0 : index
    %342 = vector.load %arg1[%c50_93, %c0_94] : memref<72x384xf32, #tpu.memory_space<vmem>>, vector<2x384xf32>
    %343 = arith.index_cast %arg0 : i32 to index
    %c32_95 = arith.constant 32 : index
    %344 = memref.load %arg2[%343, %c32_95] : memref<2x36xf32, #tpu.memory_space<smem>>
    %345 = vector.broadcast %344 : f32 to vector<2x384xf32>
    %346 = arith.mulf %342, %345 : vector<2x384xf32>
    %347 = arith.addf %341, %346 : vector<2x384xf32>
    %c4_96 = arith.constant 4 : index
    %c0_97 = arith.constant 0 : index
    %348 = vector.load %arg1[%c4_96, %c0_97] : memref<72x384xf32, #tpu.memory_space<vmem>>, vector<2x384xf32>
    %349 = arith.index_cast %arg0 : i32 to index
    %c33 = arith.constant 33 : index
    %350 = memref.load %arg2[%349, %c33] : memref<2x36xf32, #tpu.memory_space<smem>>
    %351 = vector.broadcast %350 : f32 to vector<2x384xf32>
    %352 = arith.mulf %348, %351 : vector<2x384xf32>
    %353 = arith.addf %347, %352 : vector<2x384xf32>
    %c28_98 = arith.constant 28 : index
    %c0_99 = arith.constant 0 : index
    %354 = vector.load %arg1[%c28_98, %c0_99] : memref<72x384xf32, #tpu.memory_space<vmem>>, vector<2x384xf32>
    %355 = arith.index_cast %arg0 : i32 to index
    %c34 = arith.constant 34 : index
    %356 = memref.load %arg2[%355, %c34] : memref<2x36xf32, #tpu.memory_space<smem>>
    %357 = vector.broadcast %356 : f32 to vector<2x384xf32>
    %358 = arith.mulf %354, %357 : vector<2x384xf32>
    %359 = arith.addf %353, %358 : vector<2x384xf32>
    %c52_100 = arith.constant 52 : index
    %c0_101 = arith.constant 0 : index
    %360 = vector.load %arg1[%c52_100, %c0_101] : memref<72x384xf32, #tpu.memory_space<vmem>>, vector<2x384xf32>
    %361 = arith.index_cast %arg0 : i32 to index
    %c35 = arith.constant 35 : index
    %362 = memref.load %arg2[%361, %c35] : memref<2x36xf32, #tpu.memory_space<smem>>
    %363 = vector.broadcast %362 : f32 to vector<2x384xf32>
    %364 = arith.mulf %360, %363 : vector<2x384xf32>
    %365 = arith.addf %359, %364 : vector<2x384xf32>
    %cst_102 = arith.constant 0.000000e+00 : f32
    %366 = vector.broadcast %cst_102 : f32 to vector<2x384xf32>
    %367 = arith.maximumf %365, %366 : vector<2x384xf32>
    %368 = arith.index_cast %arg0 : i32 to index
    %c12_103 = arith.constant 12 : index
    %369 = memref.load %arg4[%368, %c12_103] : memref<2x96xf32, #tpu.memory_space<smem>>
    %370 = vector.broadcast %369 : f32 to vector<2x384xf32>
    %371 = arith.mulf %367, %370 : vector<2x384xf32>
    %372 = arith.addf %281, %371 : vector<2x384xf32>
    %373 = arith.index_cast %arg0 : i32 to index
    %c28_104 = arith.constant 28 : index
    %374 = memref.load %arg4[%373, %c28_104] : memref<2x96xf32, #tpu.memory_space<smem>>
    %375 = vector.broadcast %374 : f32 to vector<2x384xf32>
    %376 = arith.mulf %367, %375 : vector<2x384xf32>
    %377 = arith.addf %286, %376 : vector<2x384xf32>
    %378 = arith.index_cast %arg0 : i32 to index
    %c44 = arith.constant 44 : index
    %379 = memref.load %arg4[%378, %c44] : memref<2x96xf32, #tpu.memory_space<smem>>
    %380 = vector.broadcast %379 : f32 to vector<2x384xf32>
    %381 = arith.mulf %367, %380 : vector<2x384xf32>
    %382 = arith.addf %291, %381 : vector<2x384xf32>
    %383 = arith.index_cast %arg0 : i32 to index
    %c60 = arith.constant 60 : index
    %384 = memref.load %arg4[%383, %c60] : memref<2x96xf32, #tpu.memory_space<smem>>
    %385 = vector.broadcast %384 : f32 to vector<2x384xf32>
    %386 = arith.mulf %367, %385 : vector<2x384xf32>
    %387 = arith.addf %296, %386 : vector<2x384xf32>
    %388 = arith.index_cast %arg0 : i32 to index
    %c76 = arith.constant 76 : index
    %389 = memref.load %arg4[%388, %c76] : memref<2x96xf32, #tpu.memory_space<smem>>
    %390 = vector.broadcast %389 : f32 to vector<2x384xf32>
    %391 = arith.mulf %367, %390 : vector<2x384xf32>
    %392 = arith.addf %301, %391 : vector<2x384xf32>
    %393 = arith.index_cast %arg0 : i32 to index
    %c92 = arith.constant 92 : index
    %394 = memref.load %arg4[%393, %c92] : memref<2x96xf32, #tpu.memory_space<smem>>
    %395 = vector.broadcast %394 : f32 to vector<2x384xf32>
    %396 = arith.mulf %367, %395 : vector<2x384xf32>
    %397 = arith.addf %306, %396 : vector<2x384xf32>
    %cst_105 = arith.constant 0.000000e+00 : f32
    %398 = vector.broadcast %cst_105 : f32 to vector<2x384xf32>
    %399 = arith.index_cast %arg0 : i32 to index
    %c0_106 = arith.constant 0 : index
    %400 = memref.load %arg3[%399, %c0_106] : memref<2x4xf32, #tpu.memory_space<smem>>
    %401 = vector.broadcast %400 : f32 to vector<2x384xf32>
    %402 = arith.addf %398, %401 : vector<2x384xf32>
    %c6_107 = arith.constant 6 : index
    %c0_108 = arith.constant 0 : index
    %403 = vector.load %arg1[%c6_107, %c0_108] : memref<72x384xf32, #tpu.memory_space<vmem>>, vector<2x384xf32>
    %404 = arith.index_cast %arg0 : i32 to index
    %c0_109 = arith.constant 0 : index
    %405 = memref.load %arg2[%404, %c0_109] : memref<2x36xf32, #tpu.memory_space<smem>>
    %406 = vector.broadcast %405 : f32 to vector<2x384xf32>
    %407 = arith.mulf %403, %406 : vector<2x384xf32>
    %408 = arith.addf %402, %407 : vector<2x384xf32>
    %c30_110 = arith.constant 30 : index
    %c0_111 = arith.constant 0 : index
    %409 = vector.load %arg1[%c30_110, %c0_111] : memref<72x384xf32, #tpu.memory_space<vmem>>, vector<2x384xf32>
    %410 = arith.index_cast %arg0 : i32 to index
    %c1_112 = arith.constant 1 : index
    %411 = memref.load %arg2[%410, %c1_112] : memref<2x36xf32, #tpu.memory_space<smem>>
    %412 = vector.broadcast %411 : f32 to vector<2x384xf32>
    %413 = arith.mulf %409, %412 : vector<2x384xf32>
    %414 = arith.addf %408, %413 : vector<2x384xf32>
    %c54 = arith.constant 54 : index
    %c0_113 = arith.constant 0 : index
    %415 = vector.load %arg1[%c54, %c0_113] : memref<72x384xf32, #tpu.memory_space<vmem>>, vector<2x384xf32>
    %416 = arith.index_cast %arg0 : i32 to index
    %c2_114 = arith.constant 2 : index
    %417 = memref.load %arg2[%416, %c2_114] : memref<2x36xf32, #tpu.memory_space<smem>>
    %418 = vector.broadcast %417 : f32 to vector<2x384xf32>
    %419 = arith.mulf %415, %418 : vector<2x384xf32>
    %420 = arith.addf %414, %419 : vector<2x384xf32>
    %c8_115 = arith.constant 8 : index
    %c0_116 = arith.constant 0 : index
    %421 = vector.load %arg1[%c8_115, %c0_116] : memref<72x384xf32, #tpu.memory_space<vmem>>, vector<2x384xf32>
    %422 = arith.index_cast %arg0 : i32 to index
    %c3_117 = arith.constant 3 : index
    %423 = memref.load %arg2[%422, %c3_117] : memref<2x36xf32, #tpu.memory_space<smem>>
    %424 = vector.broadcast %423 : f32 to vector<2x384xf32>
    %425 = arith.mulf %421, %424 : vector<2x384xf32>
    %426 = arith.addf %420, %425 : vector<2x384xf32>
    %c32_118 = arith.constant 32 : index
    %c0_119 = arith.constant 0 : index
    %427 = vector.load %arg1[%c32_118, %c0_119] : memref<72x384xf32, #tpu.memory_space<vmem>>, vector<2x384xf32>
    %428 = arith.index_cast %arg0 : i32 to index
    %c4_120 = arith.constant 4 : index
    %429 = memref.load %arg2[%428, %c4_120] : memref<2x36xf32, #tpu.memory_space<smem>>
    %430 = vector.broadcast %429 : f32 to vector<2x384xf32>
    %431 = arith.mulf %427, %430 : vector<2x384xf32>
    %432 = arith.addf %426, %431 : vector<2x384xf32>
    %c56_121 = arith.constant 56 : index
    %c0_122 = arith.constant 0 : index
    %433 = vector.load %arg1[%c56_121, %c0_122] : memref<72x384xf32, #tpu.memory_space<vmem>>, vector<2x384xf32>
    %434 = arith.index_cast %arg0 : i32 to index
    %c5_123 = arith.constant 5 : index
    %435 = memref.load %arg2[%434, %c5_123] : memref<2x36xf32, #tpu.memory_space<smem>>
    %436 = vector.broadcast %435 : f32 to vector<2x384xf32>
    %437 = arith.mulf %433, %436 : vector<2x384xf32>
    %438 = arith.addf %432, %437 : vector<2x384xf32>
    %c10_124 = arith.constant 10 : index
    %c0_125 = arith.constant 0 : index
    %439 = vector.load %arg1[%c10_124, %c0_125] : memref<72x384xf32, #tpu.memory_space<vmem>>, vector<2x384xf32>
    %440 = arith.index_cast %arg0 : i32 to index
    %c6_126 = arith.constant 6 : index
    %441 = memref.load %arg2[%440, %c6_126] : memref<2x36xf32, #tpu.memory_space<smem>>
    %442 = vector.broadcast %441 : f32 to vector<2x384xf32>
    %443 = arith.mulf %439, %442 : vector<2x384xf32>
    %444 = arith.addf %438, %443 : vector<2x384xf32>
    %c34_127 = arith.constant 34 : index
    %c0_128 = arith.constant 0 : index
    %445 = vector.load %arg1[%c34_127, %c0_128] : memref<72x384xf32, #tpu.memory_space<vmem>>, vector<2x384xf32>
    %446 = arith.index_cast %arg0 : i32 to index
    %c7_129 = arith.constant 7 : index
    %447 = memref.load %arg2[%446, %c7_129] : memref<2x36xf32, #tpu.memory_space<smem>>
    %448 = vector.broadcast %447 : f32 to vector<2x384xf32>
    %449 = arith.mulf %445, %448 : vector<2x384xf32>
    %450 = arith.addf %444, %449 : vector<2x384xf32>
    %c58 = arith.constant 58 : index
    %c0_130 = arith.constant 0 : index
    %451 = vector.load %arg1[%c58, %c0_130] : memref<72x384xf32, #tpu.memory_space<vmem>>, vector<2x384xf32>
    %452 = arith.index_cast %arg0 : i32 to index
    %c8_131 = arith.constant 8 : index
    %453 = memref.load %arg2[%452, %c8_131] : memref<2x36xf32, #tpu.memory_space<smem>>
    %454 = vector.broadcast %453 : f32 to vector<2x384xf32>
    %455 = arith.mulf %451, %454 : vector<2x384xf32>
    %456 = arith.addf %450, %455 : vector<2x384xf32>
    %cst_132 = arith.constant 0.000000e+00 : f32
    %457 = vector.broadcast %cst_132 : f32 to vector<2x384xf32>
    %458 = arith.maximumf %456, %457 : vector<2x384xf32>
    %459 = arith.index_cast %arg0 : i32 to index
    %c1_133 = arith.constant 1 : index
    %460 = memref.load %arg4[%459, %c1_133] : memref<2x96xf32, #tpu.memory_space<smem>>
    %461 = vector.broadcast %460 : f32 to vector<2x384xf32>
    %462 = arith.mulf %458, %461 : vector<2x384xf32>
    %463 = arith.addf %372, %462 : vector<2x384xf32>
    %464 = arith.index_cast %arg0 : i32 to index
    %c17_134 = arith.constant 17 : index
    %465 = memref.load %arg4[%464, %c17_134] : memref<2x96xf32, #tpu.memory_space<smem>>
    %466 = vector.broadcast %465 : f32 to vector<2x384xf32>
    %467 = arith.mulf %458, %466 : vector<2x384xf32>
    %468 = arith.addf %377, %467 : vector<2x384xf32>
    %469 = arith.index_cast %arg0 : i32 to index
    %c33_135 = arith.constant 33 : index
    %470 = memref.load %arg4[%469, %c33_135] : memref<2x96xf32, #tpu.memory_space<smem>>
    %471 = vector.broadcast %470 : f32 to vector<2x384xf32>
    %472 = arith.mulf %458, %471 : vector<2x384xf32>
    %473 = arith.addf %382, %472 : vector<2x384xf32>
    %474 = arith.index_cast %arg0 : i32 to index
    %c49 = arith.constant 49 : index
    %475 = memref.load %arg4[%474, %c49] : memref<2x96xf32, #tpu.memory_space<smem>>
    %476 = vector.broadcast %475 : f32 to vector<2x384xf32>
    %477 = arith.mulf %458, %476 : vector<2x384xf32>
    %478 = arith.addf %387, %477 : vector<2x384xf32>
    %479 = arith.index_cast %arg0 : i32 to index
    %c65 = arith.constant 65 : index
    %480 = memref.load %arg4[%479, %c65] : memref<2x96xf32, #tpu.memory_space<smem>>
    %481 = vector.broadcast %480 : f32 to vector<2x384xf32>
    %482 = arith.mulf %458, %481 : vector<2x384xf32>
    %483 = arith.addf %392, %482 : vector<2x384xf32>
    %484 = arith.index_cast %arg0 : i32 to index
    %c81 = arith.constant 81 : index
    %485 = memref.load %arg4[%484, %c81] : memref<2x96xf32, #tpu.memory_space<smem>>
    %486 = vector.broadcast %485 : f32 to vector<2x384xf32>
    %487 = arith.mulf %458, %486 : vector<2x384xf32>
    %488 = arith.addf %397, %487 : vector<2x384xf32>
    %cst_136 = arith.constant 0.000000e+00 : f32
    %489 = vector.broadcast %cst_136 : f32 to vector<2x384xf32>
    %490 = arith.index_cast %arg0 : i32 to index
    %c1_137 = arith.constant 1 : index
    %491 = memref.load %arg3[%490, %c1_137] : memref<2x4xf32, #tpu.memory_space<smem>>
    %492 = vector.broadcast %491 : f32 to vector<2x384xf32>
    %493 = arith.addf %489, %492 : vector<2x384xf32>
    %c6_138 = arith.constant 6 : index
    %c0_139 = arith.constant 0 : index
    %494 = vector.load %arg1[%c6_138, %c0_139] : memref<72x384xf32, #tpu.memory_space<vmem>>, vector<2x384xf32>
    %495 = arith.index_cast %arg0 : i32 to index
    %c9_140 = arith.constant 9 : index
    %496 = memref.load %arg2[%495, %c9_140] : memref<2x36xf32, #tpu.memory_space<smem>>
    %497 = vector.broadcast %496 : f32 to vector<2x384xf32>
    %498 = arith.mulf %494, %497 : vector<2x384xf32>
    %499 = arith.addf %493, %498 : vector<2x384xf32>
    %c30_141 = arith.constant 30 : index
    %c0_142 = arith.constant 0 : index
    %500 = vector.load %arg1[%c30_141, %c0_142] : memref<72x384xf32, #tpu.memory_space<vmem>>, vector<2x384xf32>
    %501 = arith.index_cast %arg0 : i32 to index
    %c10_143 = arith.constant 10 : index
    %502 = memref.load %arg2[%501, %c10_143] : memref<2x36xf32, #tpu.memory_space<smem>>
    %503 = vector.broadcast %502 : f32 to vector<2x384xf32>
    %504 = arith.mulf %500, %503 : vector<2x384xf32>
    %505 = arith.addf %499, %504 : vector<2x384xf32>
    %c54_144 = arith.constant 54 : index
    %c0_145 = arith.constant 0 : index
    %506 = vector.load %arg1[%c54_144, %c0_145] : memref<72x384xf32, #tpu.memory_space<vmem>>, vector<2x384xf32>
    %507 = arith.index_cast %arg0 : i32 to index
    %c11_146 = arith.constant 11 : index
    %508 = memref.load %arg2[%507, %c11_146] : memref<2x36xf32, #tpu.memory_space<smem>>
    %509 = vector.broadcast %508 : f32 to vector<2x384xf32>
    %510 = arith.mulf %506, %509 : vector<2x384xf32>
    %511 = arith.addf %505, %510 : vector<2x384xf32>
    %c8_147 = arith.constant 8 : index
    %c0_148 = arith.constant 0 : index
    %512 = vector.load %arg1[%c8_147, %c0_148] : memref<72x384xf32, #tpu.memory_space<vmem>>, vector<2x384xf32>
    %513 = arith.index_cast %arg0 : i32 to index
    %c12_149 = arith.constant 12 : index
    %514 = memref.load %arg2[%513, %c12_149] : memref<2x36xf32, #tpu.memory_space<smem>>
    %515 = vector.broadcast %514 : f32 to vector<2x384xf32>
    %516 = arith.mulf %512, %515 : vector<2x384xf32>
    %517 = arith.addf %511, %516 : vector<2x384xf32>
    %c32_150 = arith.constant 32 : index
    %c0_151 = arith.constant 0 : index
    %518 = vector.load %arg1[%c32_150, %c0_151] : memref<72x384xf32, #tpu.memory_space<vmem>>, vector<2x384xf32>
    %519 = arith.index_cast %arg0 : i32 to index
    %c13_152 = arith.constant 13 : index
    %520 = memref.load %arg2[%519, %c13_152] : memref<2x36xf32, #tpu.memory_space<smem>>
    %521 = vector.broadcast %520 : f32 to vector<2x384xf32>
    %522 = arith.mulf %518, %521 : vector<2x384xf32>
    %523 = arith.addf %517, %522 : vector<2x384xf32>
    %c56_153 = arith.constant 56 : index
    %c0_154 = arith.constant 0 : index
    %524 = vector.load %arg1[%c56_153, %c0_154] : memref<72x384xf32, #tpu.memory_space<vmem>>, vector<2x384xf32>
    %525 = arith.index_cast %arg0 : i32 to index
    %c14_155 = arith.constant 14 : index
    %526 = memref.load %arg2[%525, %c14_155] : memref<2x36xf32, #tpu.memory_space<smem>>
    %527 = vector.broadcast %526 : f32 to vector<2x384xf32>
    %528 = arith.mulf %524, %527 : vector<2x384xf32>
    %529 = arith.addf %523, %528 : vector<2x384xf32>
    %c10_156 = arith.constant 10 : index
    %c0_157 = arith.constant 0 : index
    %530 = vector.load %arg1[%c10_156, %c0_157] : memref<72x384xf32, #tpu.memory_space<vmem>>, vector<2x384xf32>
    %531 = arith.index_cast %arg0 : i32 to index
    %c15_158 = arith.constant 15 : index
    %532 = memref.load %arg2[%531, %c15_158] : memref<2x36xf32, #tpu.memory_space<smem>>
    %533 = vector.broadcast %532 : f32 to vector<2x384xf32>
    %534 = arith.mulf %530, %533 : vector<2x384xf32>
    %535 = arith.addf %529, %534 : vector<2x384xf32>
    %c34_159 = arith.constant 34 : index
    %c0_160 = arith.constant 0 : index
    %536 = vector.load %arg1[%c34_159, %c0_160] : memref<72x384xf32, #tpu.memory_space<vmem>>, vector<2x384xf32>
    %537 = arith.index_cast %arg0 : i32 to index
    %c16_161 = arith.constant 16 : index
    %538 = memref.load %arg2[%537, %c16_161] : memref<2x36xf32, #tpu.memory_space<smem>>
    %539 = vector.broadcast %538 : f32 to vector<2x384xf32>
    %540 = arith.mulf %536, %539 : vector<2x384xf32>
    %541 = arith.addf %535, %540 : vector<2x384xf32>
    %c58_162 = arith.constant 58 : index
    %c0_163 = arith.constant 0 : index
    %542 = vector.load %arg1[%c58_162, %c0_163] : memref<72x384xf32, #tpu.memory_space<vmem>>, vector<2x384xf32>
    %543 = arith.index_cast %arg0 : i32 to index
    %c17_164 = arith.constant 17 : index
    %544 = memref.load %arg2[%543, %c17_164] : memref<2x36xf32, #tpu.memory_space<smem>>
    %545 = vector.broadcast %544 : f32 to vector<2x384xf32>
    %546 = arith.mulf %542, %545 : vector<2x384xf32>
    %547 = arith.addf %541, %546 : vector<2x384xf32>
    %cst_165 = arith.constant 0.000000e+00 : f32
    %548 = vector.broadcast %cst_165 : f32 to vector<2x384xf32>
    %549 = arith.maximumf %547, %548 : vector<2x384xf32>
    %550 = arith.index_cast %arg0 : i32 to index
    %c5_166 = arith.constant 5 : index
    %551 = memref.load %arg4[%550, %c5_166] : memref<2x96xf32, #tpu.memory_space<smem>>
    %552 = vector.broadcast %551 : f32 to vector<2x384xf32>
    %553 = arith.mulf %549, %552 : vector<2x384xf32>
    %554 = arith.addf %463, %553 : vector<2x384xf32>
    %555 = arith.index_cast %arg0 : i32 to index
    %c21_167 = arith.constant 21 : index
    %556 = memref.load %arg4[%555, %c21_167] : memref<2x96xf32, #tpu.memory_space<smem>>
    %557 = vector.broadcast %556 : f32 to vector<2x384xf32>
    %558 = arith.mulf %549, %557 : vector<2x384xf32>
    %559 = arith.addf %468, %558 : vector<2x384xf32>
    %560 = arith.index_cast %arg0 : i32 to index
    %c37 = arith.constant 37 : index
    %561 = memref.load %arg4[%560, %c37] : memref<2x96xf32, #tpu.memory_space<smem>>
    %562 = vector.broadcast %561 : f32 to vector<2x384xf32>
    %563 = arith.mulf %549, %562 : vector<2x384xf32>
    %564 = arith.addf %473, %563 : vector<2x384xf32>
    %565 = arith.index_cast %arg0 : i32 to index
    %c53 = arith.constant 53 : index
    %566 = memref.load %arg4[%565, %c53] : memref<2x96xf32, #tpu.memory_space<smem>>
    %567 = vector.broadcast %566 : f32 to vector<2x384xf32>
    %568 = arith.mulf %549, %567 : vector<2x384xf32>
    %569 = arith.addf %478, %568 : vector<2x384xf32>
    %570 = arith.index_cast %arg0 : i32 to index
    %c69 = arith.constant 69 : index
    %571 = memref.load %arg4[%570, %c69] : memref<2x96xf32, #tpu.memory_space<smem>>
    %572 = vector.broadcast %571 : f32 to vector<2x384xf32>
    %573 = arith.mulf %549, %572 : vector<2x384xf32>
    %574 = arith.addf %483, %573 : vector<2x384xf32>
    %575 = arith.index_cast %arg0 : i32 to index
    %c85 = arith.constant 85 : index
    %576 = memref.load %arg4[%575, %c85] : memref<2x96xf32, #tpu.memory_space<smem>>
    %577 = vector.broadcast %576 : f32 to vector<2x384xf32>
    %578 = arith.mulf %549, %577 : vector<2x384xf32>
    %579 = arith.addf %488, %578 : vector<2x384xf32>
    %cst_168 = arith.constant 0.000000e+00 : f32
    %580 = vector.broadcast %cst_168 : f32 to vector<2x384xf32>
    %581 = arith.index_cast %arg0 : i32 to index
    %c2_169 = arith.constant 2 : index
    %582 = memref.load %arg3[%581, %c2_169] : memref<2x4xf32, #tpu.memory_space<smem>>
    %583 = vector.broadcast %582 : f32 to vector<2x384xf32>
    %584 = arith.addf %580, %583 : vector<2x384xf32>
    %c6_170 = arith.constant 6 : index
    %c0_171 = arith.constant 0 : index
    %585 = vector.load %arg1[%c6_170, %c0_171] : memref<72x384xf32, #tpu.memory_space<vmem>>, vector<2x384xf32>
    %586 = arith.index_cast %arg0 : i32 to index
    %c18_172 = arith.constant 18 : index
    %587 = memref.load %arg2[%586, %c18_172] : memref<2x36xf32, #tpu.memory_space<smem>>
    %588 = vector.broadcast %587 : f32 to vector<2x384xf32>
    %589 = arith.mulf %585, %588 : vector<2x384xf32>
    %590 = arith.addf %584, %589 : vector<2x384xf32>
    %c30_173 = arith.constant 30 : index
    %c0_174 = arith.constant 0 : index
    %591 = vector.load %arg1[%c30_173, %c0_174] : memref<72x384xf32, #tpu.memory_space<vmem>>, vector<2x384xf32>
    %592 = arith.index_cast %arg0 : i32 to index
    %c19_175 = arith.constant 19 : index
    %593 = memref.load %arg2[%592, %c19_175] : memref<2x36xf32, #tpu.memory_space<smem>>
    %594 = vector.broadcast %593 : f32 to vector<2x384xf32>
    %595 = arith.mulf %591, %594 : vector<2x384xf32>
    %596 = arith.addf %590, %595 : vector<2x384xf32>
    %c54_176 = arith.constant 54 : index
    %c0_177 = arith.constant 0 : index
    %597 = vector.load %arg1[%c54_176, %c0_177] : memref<72x384xf32, #tpu.memory_space<vmem>>, vector<2x384xf32>
    %598 = arith.index_cast %arg0 : i32 to index
    %c20_178 = arith.constant 20 : index
    %599 = memref.load %arg2[%598, %c20_178] : memref<2x36xf32, #tpu.memory_space<smem>>
    %600 = vector.broadcast %599 : f32 to vector<2x384xf32>
    %601 = arith.mulf %597, %600 : vector<2x384xf32>
    %602 = arith.addf %596, %601 : vector<2x384xf32>
    %c8_179 = arith.constant 8 : index
    %c0_180 = arith.constant 0 : index
    %603 = vector.load %arg1[%c8_179, %c0_180] : memref<72x384xf32, #tpu.memory_space<vmem>>, vector<2x384xf32>
    %604 = arith.index_cast %arg0 : i32 to index
    %c21_181 = arith.constant 21 : index
    %605 = memref.load %arg2[%604, %c21_181] : memref<2x36xf32, #tpu.memory_space<smem>>
    %606 = vector.broadcast %605 : f32 to vector<2x384xf32>
    %607 = arith.mulf %603, %606 : vector<2x384xf32>
    %608 = arith.addf %602, %607 : vector<2x384xf32>
    %c32_182 = arith.constant 32 : index
    %c0_183 = arith.constant 0 : index
    %609 = vector.load %arg1[%c32_182, %c0_183] : memref<72x384xf32, #tpu.memory_space<vmem>>, vector<2x384xf32>
    %610 = arith.index_cast %arg0 : i32 to index
    %c22_184 = arith.constant 22 : index
    %611 = memref.load %arg2[%610, %c22_184] : memref<2x36xf32, #tpu.memory_space<smem>>
    %612 = vector.broadcast %611 : f32 to vector<2x384xf32>
    %613 = arith.mulf %609, %612 : vector<2x384xf32>
    %614 = arith.addf %608, %613 : vector<2x384xf32>
    %c56_185 = arith.constant 56 : index
    %c0_186 = arith.constant 0 : index
    %615 = vector.load %arg1[%c56_185, %c0_186] : memref<72x384xf32, #tpu.memory_space<vmem>>, vector<2x384xf32>
    %616 = arith.index_cast %arg0 : i32 to index
    %c23_187 = arith.constant 23 : index
    %617 = memref.load %arg2[%616, %c23_187] : memref<2x36xf32, #tpu.memory_space<smem>>
    %618 = vector.broadcast %617 : f32 to vector<2x384xf32>
    %619 = arith.mulf %615, %618 : vector<2x384xf32>
    %620 = arith.addf %614, %619 : vector<2x384xf32>
    %c10_188 = arith.constant 10 : index
    %c0_189 = arith.constant 0 : index
    %621 = vector.load %arg1[%c10_188, %c0_189] : memref<72x384xf32, #tpu.memory_space<vmem>>, vector<2x384xf32>
    %622 = arith.index_cast %arg0 : i32 to index
    %c24_190 = arith.constant 24 : index
    %623 = memref.load %arg2[%622, %c24_190] : memref<2x36xf32, #tpu.memory_space<smem>>
    %624 = vector.broadcast %623 : f32 to vector<2x384xf32>
    %625 = arith.mulf %621, %624 : vector<2x384xf32>
    %626 = arith.addf %620, %625 : vector<2x384xf32>
    %c34_191 = arith.constant 34 : index
    %c0_192 = arith.constant 0 : index
    %627 = vector.load %arg1[%c34_191, %c0_192] : memref<72x384xf32, #tpu.memory_space<vmem>>, vector<2x384xf32>
    %628 = arith.index_cast %arg0 : i32 to index
    %c25_193 = arith.constant 25 : index
    %629 = memref.load %arg2[%628, %c25_193] : memref<2x36xf32, #tpu.memory_space<smem>>
    %630 = vector.broadcast %629 : f32 to vector<2x384xf32>
    %631 = arith.mulf %627, %630 : vector<2x384xf32>
    %632 = arith.addf %626, %631 : vector<2x384xf32>
    %c58_194 = arith.constant 58 : index
    %c0_195 = arith.constant 0 : index
    %633 = vector.load %arg1[%c58_194, %c0_195] : memref<72x384xf32, #tpu.memory_space<vmem>>, vector<2x384xf32>
    %634 = arith.index_cast %arg0 : i32 to index
    %c26_196 = arith.constant 26 : index
    %635 = memref.load %arg2[%634, %c26_196] : memref<2x36xf32, #tpu.memory_space<smem>>
    %636 = vector.broadcast %635 : f32 to vector<2x384xf32>
    %637 = arith.mulf %633, %636 : vector<2x384xf32>
    %638 = arith.addf %632, %637 : vector<2x384xf32>
    %cst_197 = arith.constant 0.000000e+00 : f32
    %639 = vector.broadcast %cst_197 : f32 to vector<2x384xf32>
    %640 = arith.maximumf %638, %639 : vector<2x384xf32>
    %641 = arith.index_cast %arg0 : i32 to index
    %c9_198 = arith.constant 9 : index
    %642 = memref.load %arg4[%641, %c9_198] : memref<2x96xf32, #tpu.memory_space<smem>>
    %643 = vector.broadcast %642 : f32 to vector<2x384xf32>
    %644 = arith.mulf %640, %643 : vector<2x384xf32>
    %645 = arith.addf %554, %644 : vector<2x384xf32>
    %646 = arith.index_cast %arg0 : i32 to index
    %c25_199 = arith.constant 25 : index
    %647 = memref.load %arg4[%646, %c25_199] : memref<2x96xf32, #tpu.memory_space<smem>>
    %648 = vector.broadcast %647 : f32 to vector<2x384xf32>
    %649 = arith.mulf %640, %648 : vector<2x384xf32>
    %650 = arith.addf %559, %649 : vector<2x384xf32>
    %651 = arith.index_cast %arg0 : i32 to index
    %c41 = arith.constant 41 : index
    %652 = memref.load %arg4[%651, %c41] : memref<2x96xf32, #tpu.memory_space<smem>>
    %653 = vector.broadcast %652 : f32 to vector<2x384xf32>
    %654 = arith.mulf %640, %653 : vector<2x384xf32>
    %655 = arith.addf %564, %654 : vector<2x384xf32>
    %656 = arith.index_cast %arg0 : i32 to index
    %c57 = arith.constant 57 : index
    %657 = memref.load %arg4[%656, %c57] : memref<2x96xf32, #tpu.memory_space<smem>>
    %658 = vector.broadcast %657 : f32 to vector<2x384xf32>
    %659 = arith.mulf %640, %658 : vector<2x384xf32>
    %660 = arith.addf %569, %659 : vector<2x384xf32>
    %661 = arith.index_cast %arg0 : i32 to index
    %c73 = arith.constant 73 : index
    %662 = memref.load %arg4[%661, %c73] : memref<2x96xf32, #tpu.memory_space<smem>>
    %663 = vector.broadcast %662 : f32 to vector<2x384xf32>
    %664 = arith.mulf %640, %663 : vector<2x384xf32>
    %665 = arith.addf %574, %664 : vector<2x384xf32>
    %666 = arith.index_cast %arg0 : i32 to index
    %c89 = arith.constant 89 : index
    %667 = memref.load %arg4[%666, %c89] : memref<2x96xf32, #tpu.memory_space<smem>>
    %668 = vector.broadcast %667 : f32 to vector<2x384xf32>
    %669 = arith.mulf %640, %668 : vector<2x384xf32>
    %670 = arith.addf %579, %669 : vector<2x384xf32>
    %cst_200 = arith.constant 0.000000e+00 : f32
    %671 = vector.broadcast %cst_200 : f32 to vector<2x384xf32>
    %672 = arith.index_cast %arg0 : i32 to index
    %c3_201 = arith.constant 3 : index
    %673 = memref.load %arg3[%672, %c3_201] : memref<2x4xf32, #tpu.memory_space<smem>>
    %674 = vector.broadcast %673 : f32 to vector<2x384xf32>
    %675 = arith.addf %671, %674 : vector<2x384xf32>
    %c6_202 = arith.constant 6 : index
    %c0_203 = arith.constant 0 : index
    %676 = vector.load %arg1[%c6_202, %c0_203] : memref<72x384xf32, #tpu.memory_space<vmem>>, vector<2x384xf32>
    %677 = arith.index_cast %arg0 : i32 to index
    %c27_204 = arith.constant 27 : index
    %678 = memref.load %arg2[%677, %c27_204] : memref<2x36xf32, #tpu.memory_space<smem>>
    %679 = vector.broadcast %678 : f32 to vector<2x384xf32>
    %680 = arith.mulf %676, %679 : vector<2x384xf32>
    %681 = arith.addf %675, %680 : vector<2x384xf32>
    %c30_205 = arith.constant 30 : index
    %c0_206 = arith.constant 0 : index
    %682 = vector.load %arg1[%c30_205, %c0_206] : memref<72x384xf32, #tpu.memory_space<vmem>>, vector<2x384xf32>
    %683 = arith.index_cast %arg0 : i32 to index
    %c28_207 = arith.constant 28 : index
    %684 = memref.load %arg2[%683, %c28_207] : memref<2x36xf32, #tpu.memory_space<smem>>
    %685 = vector.broadcast %684 : f32 to vector<2x384xf32>
    %686 = arith.mulf %682, %685 : vector<2x384xf32>
    %687 = arith.addf %681, %686 : vector<2x384xf32>
    %c54_208 = arith.constant 54 : index
    %c0_209 = arith.constant 0 : index
    %688 = vector.load %arg1[%c54_208, %c0_209] : memref<72x384xf32, #tpu.memory_space<vmem>>, vector<2x384xf32>
    %689 = arith.index_cast %arg0 : i32 to index
    %c29_210 = arith.constant 29 : index
    %690 = memref.load %arg2[%689, %c29_210] : memref<2x36xf32, #tpu.memory_space<smem>>
    %691 = vector.broadcast %690 : f32 to vector<2x384xf32>
    %692 = arith.mulf %688, %691 : vector<2x384xf32>
    %693 = arith.addf %687, %692 : vector<2x384xf32>
    %c8_211 = arith.constant 8 : index
    %c0_212 = arith.constant 0 : index
    %694 = vector.load %arg1[%c8_211, %c0_212] : memref<72x384xf32, #tpu.memory_space<vmem>>, vector<2x384xf32>
    %695 = arith.index_cast %arg0 : i32 to index
    %c30_213 = arith.constant 30 : index
    %696 = memref.load %arg2[%695, %c30_213] : memref<2x36xf32, #tpu.memory_space<smem>>
    %697 = vector.broadcast %696 : f32 to vector<2x384xf32>
    %698 = arith.mulf %694, %697 : vector<2x384xf32>
    %699 = arith.addf %693, %698 : vector<2x384xf32>
    %c32_214 = arith.constant 32 : index
    %c0_215 = arith.constant 0 : index
    %700 = vector.load %arg1[%c32_214, %c0_215] : memref<72x384xf32, #tpu.memory_space<vmem>>, vector<2x384xf32>
    %701 = arith.index_cast %arg0 : i32 to index
    %c31_216 = arith.constant 31 : index
    %702 = memref.load %arg2[%701, %c31_216] : memref<2x36xf32, #tpu.memory_space<smem>>
    %703 = vector.broadcast %702 : f32 to vector<2x384xf32>
    %704 = arith.mulf %700, %703 : vector<2x384xf32>
    %705 = arith.addf %699, %704 : vector<2x384xf32>
    %c56_217 = arith.constant 56 : index
    %c0_218 = arith.constant 0 : index
    %706 = vector.load %arg1[%c56_217, %c0_218] : memref<72x384xf32, #tpu.memory_space<vmem>>, vector<2x384xf32>
    %707 = arith.index_cast %arg0 : i32 to index
    %c32_219 = arith.constant 32 : index
    %708 = memref.load %arg2[%707, %c32_219] : memref<2x36xf32, #tpu.memory_space<smem>>
    %709 = vector.broadcast %708 : f32 to vector<2x384xf32>
    %710 = arith.mulf %706, %709 : vector<2x384xf32>
    %711 = arith.addf %705, %710 : vector<2x384xf32>
    %c10_220 = arith.constant 10 : index
    %c0_221 = arith.constant 0 : index
    %712 = vector.load %arg1[%c10_220, %c0_221] : memref<72x384xf32, #tpu.memory_space<vmem>>, vector<2x384xf32>
    %713 = arith.index_cast %arg0 : i32 to index
    %c33_222 = arith.constant 33 : index
    %714 = memref.load %arg2[%713, %c33_222] : memref<2x36xf32, #tpu.memory_space<smem>>
    %715 = vector.broadcast %714 : f32 to vector<2x384xf32>
    %716 = arith.mulf %712, %715 : vector<2x384xf32>
    %717 = arith.addf %711, %716 : vector<2x384xf32>
    %c34_223 = arith.constant 34 : index
    %c0_224 = arith.constant 0 : index
    %718 = vector.load %arg1[%c34_223, %c0_224] : memref<72x384xf32, #tpu.memory_space<vmem>>, vector<2x384xf32>
    %719 = arith.index_cast %arg0 : i32 to index
    %c34_225 = arith.constant 34 : index
    %720 = memref.load %arg2[%719, %c34_225] : memref<2x36xf32, #tpu.memory_space<smem>>
    %721 = vector.broadcast %720 : f32 to vector<2x384xf32>
    %722 = arith.mulf %718, %721 : vector<2x384xf32>
    %723 = arith.addf %717, %722 : vector<2x384xf32>
    %c58_226 = arith.constant 58 : index
    %c0_227 = arith.constant 0 : index
    %724 = vector.load %arg1[%c58_226, %c0_227] : memref<72x384xf32, #tpu.memory_space<vmem>>, vector<2x384xf32>
    %725 = arith.index_cast %arg0 : i32 to index
    %c35_228 = arith.constant 35 : index
    %726 = memref.load %arg2[%725, %c35_228] : memref<2x36xf32, #tpu.memory_space<smem>>
    %727 = vector.broadcast %726 : f32 to vector<2x384xf32>
    %728 = arith.mulf %724, %727 : vector<2x384xf32>
    %729 = arith.addf %723, %728 : vector<2x384xf32>
    %cst_229 = arith.constant 0.000000e+00 : f32
    %730 = vector.broadcast %cst_229 : f32 to vector<2x384xf32>
    %731 = arith.maximumf %729, %730 : vector<2x384xf32>
    %732 = arith.index_cast %arg0 : i32 to index
    %c13_230 = arith.constant 13 : index
    %733 = memref.load %arg4[%732, %c13_230] : memref<2x96xf32, #tpu.memory_space<smem>>
    %734 = vector.broadcast %733 : f32 to vector<2x384xf32>
    %735 = arith.mulf %731, %734 : vector<2x384xf32>
    %736 = arith.addf %645, %735 : vector<2x384xf32>
    %737 = arith.index_cast %arg0 : i32 to index
    %c29_231 = arith.constant 29 : index
    %738 = memref.load %arg4[%737, %c29_231] : memref<2x96xf32, #tpu.memory_space<smem>>
    %739 = vector.broadcast %738 : f32 to vector<2x384xf32>
    %740 = arith.mulf %731, %739 : vector<2x384xf32>
    %741 = arith.addf %650, %740 : vector<2x384xf32>
    %742 = arith.index_cast %arg0 : i32 to index
    %c45 = arith.constant 45 : index
    %743 = memref.load %arg4[%742, %c45] : memref<2x96xf32, #tpu.memory_space<smem>>
    %744 = vector.broadcast %743 : f32 to vector<2x384xf32>
    %745 = arith.mulf %731, %744 : vector<2x384xf32>
    %746 = arith.addf %655, %745 : vector<2x384xf32>
    %747 = arith.index_cast %arg0 : i32 to index
    %c61 = arith.constant 61 : index
    %748 = memref.load %arg4[%747, %c61] : memref<2x96xf32, #tpu.memory_space<smem>>
    %749 = vector.broadcast %748 : f32 to vector<2x384xf32>
    %750 = arith.mulf %731, %749 : vector<2x384xf32>
    %751 = arith.addf %660, %750 : vector<2x384xf32>
    %752 = arith.index_cast %arg0 : i32 to index
    %c77 = arith.constant 77 : index
    %753 = memref.load %arg4[%752, %c77] : memref<2x96xf32, #tpu.memory_space<smem>>
    %754 = vector.broadcast %753 : f32 to vector<2x384xf32>
    %755 = arith.mulf %731, %754 : vector<2x384xf32>
    %756 = arith.addf %665, %755 : vector<2x384xf32>
    %757 = arith.index_cast %arg0 : i32 to index
    %c93 = arith.constant 93 : index
    %758 = memref.load %arg4[%757, %c93] : memref<2x96xf32, #tpu.memory_space<smem>>
    %759 = vector.broadcast %758 : f32 to vector<2x384xf32>
    %760 = arith.mulf %731, %759 : vector<2x384xf32>
    %761 = arith.addf %670, %760 : vector<2x384xf32>
    %cst_232 = arith.constant 0.000000e+00 : f32
    %762 = vector.broadcast %cst_232 : f32 to vector<2x384xf32>
    %763 = arith.index_cast %arg0 : i32 to index
    %c0_233 = arith.constant 0 : index
    %764 = memref.load %arg3[%763, %c0_233] : memref<2x4xf32, #tpu.memory_space<smem>>
    %765 = vector.broadcast %764 : f32 to vector<2x384xf32>
    %766 = arith.addf %762, %765 : vector<2x384xf32>
    %c12_234 = arith.constant 12 : index
    %c0_235 = arith.constant 0 : index
    %767 = vector.load %arg1[%c12_234, %c0_235] : memref<72x384xf32, #tpu.memory_space<vmem>>, vector<2x384xf32>
    %768 = arith.index_cast %arg0 : i32 to index
    %c0_236 = arith.constant 0 : index
    %769 = memref.load %arg2[%768, %c0_236] : memref<2x36xf32, #tpu.memory_space<smem>>
    %770 = vector.broadcast %769 : f32 to vector<2x384xf32>
    %771 = arith.mulf %767, %770 : vector<2x384xf32>
    %772 = arith.addf %766, %771 : vector<2x384xf32>
    %c36_237 = arith.constant 36 : index
    %c0_238 = arith.constant 0 : index
    %773 = vector.load %arg1[%c36_237, %c0_238] : memref<72x384xf32, #tpu.memory_space<vmem>>, vector<2x384xf32>
    %774 = arith.index_cast %arg0 : i32 to index
    %c1_239 = arith.constant 1 : index
    %775 = memref.load %arg2[%774, %c1_239] : memref<2x36xf32, #tpu.memory_space<smem>>
    %776 = vector.broadcast %775 : f32 to vector<2x384xf32>
    %777 = arith.mulf %773, %776 : vector<2x384xf32>
    %778 = arith.addf %772, %777 : vector<2x384xf32>
    %c60_240 = arith.constant 60 : index
    %c0_241 = arith.constant 0 : index
    %779 = vector.load %arg1[%c60_240, %c0_241] : memref<72x384xf32, #tpu.memory_space<vmem>>, vector<2x384xf32>
    %780 = arith.index_cast %arg0 : i32 to index
    %c2_242 = arith.constant 2 : index
    %781 = memref.load %arg2[%780, %c2_242] : memref<2x36xf32, #tpu.memory_space<smem>>
    %782 = vector.broadcast %781 : f32 to vector<2x384xf32>
    %783 = arith.mulf %779, %782 : vector<2x384xf32>
    %784 = arith.addf %778, %783 : vector<2x384xf32>
    %c14_243 = arith.constant 14 : index
    %c0_244 = arith.constant 0 : index
    %785 = vector.load %arg1[%c14_243, %c0_244] : memref<72x384xf32, #tpu.memory_space<vmem>>, vector<2x384xf32>
    %786 = arith.index_cast %arg0 : i32 to index
    %c3_245 = arith.constant 3 : index
    %787 = memref.load %arg2[%786, %c3_245] : memref<2x36xf32, #tpu.memory_space<smem>>
    %788 = vector.broadcast %787 : f32 to vector<2x384xf32>
    %789 = arith.mulf %785, %788 : vector<2x384xf32>
    %790 = arith.addf %784, %789 : vector<2x384xf32>
    %c38 = arith.constant 38 : index
    %c0_246 = arith.constant 0 : index
    %791 = vector.load %arg1[%c38, %c0_246] : memref<72x384xf32, #tpu.memory_space<vmem>>, vector<2x384xf32>
    %792 = arith.index_cast %arg0 : i32 to index
    %c4_247 = arith.constant 4 : index
    %793 = memref.load %arg2[%792, %c4_247] : memref<2x36xf32, #tpu.memory_space<smem>>
    %794 = vector.broadcast %793 : f32 to vector<2x384xf32>
    %795 = arith.mulf %791, %794 : vector<2x384xf32>
    %796 = arith.addf %790, %795 : vector<2x384xf32>
    %c62 = arith.constant 62 : index
    %c0_248 = arith.constant 0 : index
    %797 = vector.load %arg1[%c62, %c0_248] : memref<72x384xf32, #tpu.memory_space<vmem>>, vector<2x384xf32>
    %798 = arith.index_cast %arg0 : i32 to index
    %c5_249 = arith.constant 5 : index
    %799 = memref.load %arg2[%798, %c5_249] : memref<2x36xf32, #tpu.memory_space<smem>>
    %800 = vector.broadcast %799 : f32 to vector<2x384xf32>
    %801 = arith.mulf %797, %800 : vector<2x384xf32>
    %802 = arith.addf %796, %801 : vector<2x384xf32>
    %c16_250 = arith.constant 16 : index
    %c0_251 = arith.constant 0 : index
    %803 = vector.load %arg1[%c16_250, %c0_251] : memref<72x384xf32, #tpu.memory_space<vmem>>, vector<2x384xf32>
    %804 = arith.index_cast %arg0 : i32 to index
    %c6_252 = arith.constant 6 : index
    %805 = memref.load %arg2[%804, %c6_252] : memref<2x36xf32, #tpu.memory_space<smem>>
    %806 = vector.broadcast %805 : f32 to vector<2x384xf32>
    %807 = arith.mulf %803, %806 : vector<2x384xf32>
    %808 = arith.addf %802, %807 : vector<2x384xf32>
    %c40_253 = arith.constant 40 : index
    %c0_254 = arith.constant 0 : index
    %809 = vector.load %arg1[%c40_253, %c0_254] : memref<72x384xf32, #tpu.memory_space<vmem>>, vector<2x384xf32>
    %810 = arith.index_cast %arg0 : i32 to index
    %c7_255 = arith.constant 7 : index
    %811 = memref.load %arg2[%810, %c7_255] : memref<2x36xf32, #tpu.memory_space<smem>>
    %812 = vector.broadcast %811 : f32 to vector<2x384xf32>
    %813 = arith.mulf %809, %812 : vector<2x384xf32>
    %814 = arith.addf %808, %813 : vector<2x384xf32>
    %c64_256 = arith.constant 64 : index
    %c0_257 = arith.constant 0 : index
    %815 = vector.load %arg1[%c64_256, %c0_257] : memref<72x384xf32, #tpu.memory_space<vmem>>, vector<2x384xf32>
    %816 = arith.index_cast %arg0 : i32 to index
    %c8_258 = arith.constant 8 : index
    %817 = memref.load %arg2[%816, %c8_258] : memref<2x36xf32, #tpu.memory_space<smem>>
    %818 = vector.broadcast %817 : f32 to vector<2x384xf32>
    %819 = arith.mulf %815, %818 : vector<2x384xf32>
    %820 = arith.addf %814, %819 : vector<2x384xf32>
    %cst_259 = arith.constant 0.000000e+00 : f32
    %821 = vector.broadcast %cst_259 : f32 to vector<2x384xf32>
    %822 = arith.maximumf %820, %821 : vector<2x384xf32>
    %823 = arith.index_cast %arg0 : i32 to index
    %c2_260 = arith.constant 2 : index
    %824 = memref.load %arg4[%823, %c2_260] : memref<2x96xf32, #tpu.memory_space<smem>>
    %825 = vector.broadcast %824 : f32 to vector<2x384xf32>
    %826 = arith.mulf %822, %825 : vector<2x384xf32>
    %827 = arith.addf %736, %826 : vector<2x384xf32>
    %828 = arith.index_cast %arg0 : i32 to index
    %c18_261 = arith.constant 18 : index
    %829 = memref.load %arg4[%828, %c18_261] : memref<2x96xf32, #tpu.memory_space<smem>>
    %830 = vector.broadcast %829 : f32 to vector<2x384xf32>
    %831 = arith.mulf %822, %830 : vector<2x384xf32>
    %832 = arith.addf %741, %831 : vector<2x384xf32>
    %833 = arith.index_cast %arg0 : i32 to index
    %c34_262 = arith.constant 34 : index
    %834 = memref.load %arg4[%833, %c34_262] : memref<2x96xf32, #tpu.memory_space<smem>>
    %835 = vector.broadcast %834 : f32 to vector<2x384xf32>
    %836 = arith.mulf %822, %835 : vector<2x384xf32>
    %837 = arith.addf %746, %836 : vector<2x384xf32>
    %838 = arith.index_cast %arg0 : i32 to index
    %c50_263 = arith.constant 50 : index
    %839 = memref.load %arg4[%838, %c50_263] : memref<2x96xf32, #tpu.memory_space<smem>>
    %840 = vector.broadcast %839 : f32 to vector<2x384xf32>
    %841 = arith.mulf %822, %840 : vector<2x384xf32>
    %842 = arith.addf %751, %841 : vector<2x384xf32>
    %843 = arith.index_cast %arg0 : i32 to index
    %c66 = arith.constant 66 : index
    %844 = memref.load %arg4[%843, %c66] : memref<2x96xf32, #tpu.memory_space<smem>>
    %845 = vector.broadcast %844 : f32 to vector<2x384xf32>
    %846 = arith.mulf %822, %845 : vector<2x384xf32>
    %847 = arith.addf %756, %846 : vector<2x384xf32>
    %848 = arith.index_cast %arg0 : i32 to index
    %c82 = arith.constant 82 : index
    %849 = memref.load %arg4[%848, %c82] : memref<2x96xf32, #tpu.memory_space<smem>>
    %850 = vector.broadcast %849 : f32 to vector<2x384xf32>
    %851 = arith.mulf %822, %850 : vector<2x384xf32>
    %852 = arith.addf %761, %851 : vector<2x384xf32>
    %cst_264 = arith.constant 0.000000e+00 : f32
    %853 = vector.broadcast %cst_264 : f32 to vector<2x384xf32>
    %854 = arith.index_cast %arg0 : i32 to index
    %c1_265 = arith.constant 1 : index
    %855 = memref.load %arg3[%854, %c1_265] : memref<2x4xf32, #tpu.memory_space<smem>>
    %856 = vector.broadcast %855 : f32 to vector<2x384xf32>
    %857 = arith.addf %853, %856 : vector<2x384xf32>
    %c12_266 = arith.constant 12 : index
    %c0_267 = arith.constant 0 : index
    %858 = vector.load %arg1[%c12_266, %c0_267] : memref<72x384xf32, #tpu.memory_space<vmem>>, vector<2x384xf32>
    %859 = arith.index_cast %arg0 : i32 to index
    %c9_268 = arith.constant 9 : index
    %860 = memref.load %arg2[%859, %c9_268] : memref<2x36xf32, #tpu.memory_space<smem>>
    %861 = vector.broadcast %860 : f32 to vector<2x384xf32>
    %862 = arith.mulf %858, %861 : vector<2x384xf32>
    %863 = arith.addf %857, %862 : vector<2x384xf32>
    %c36_269 = arith.constant 36 : index
    %c0_270 = arith.constant 0 : index
    %864 = vector.load %arg1[%c36_269, %c0_270] : memref<72x384xf32, #tpu.memory_space<vmem>>, vector<2x384xf32>
    %865 = arith.index_cast %arg0 : i32 to index
    %c10_271 = arith.constant 10 : index
    %866 = memref.load %arg2[%865, %c10_271] : memref<2x36xf32, #tpu.memory_space<smem>>
    %867 = vector.broadcast %866 : f32 to vector<2x384xf32>
    %868 = arith.mulf %864, %867 : vector<2x384xf32>
    %869 = arith.addf %863, %868 : vector<2x384xf32>
    %c60_272 = arith.constant 60 : index
    %c0_273 = arith.constant 0 : index
    %870 = vector.load %arg1[%c60_272, %c0_273] : memref<72x384xf32, #tpu.memory_space<vmem>>, vector<2x384xf32>
    %871 = arith.index_cast %arg0 : i32 to index
    %c11_274 = arith.constant 11 : index
    %872 = memref.load %arg2[%871, %c11_274] : memref<2x36xf32, #tpu.memory_space<smem>>
    %873 = vector.broadcast %872 : f32 to vector<2x384xf32>
    %874 = arith.mulf %870, %873 : vector<2x384xf32>
    %875 = arith.addf %869, %874 : vector<2x384xf32>
    %c14_275 = arith.constant 14 : index
    %c0_276 = arith.constant 0 : index
    %876 = vector.load %arg1[%c14_275, %c0_276] : memref<72x384xf32, #tpu.memory_space<vmem>>, vector<2x384xf32>
    %877 = arith.index_cast %arg0 : i32 to index
    %c12_277 = arith.constant 12 : index
    %878 = memref.load %arg2[%877, %c12_277] : memref<2x36xf32, #tpu.memory_space<smem>>
    %879 = vector.broadcast %878 : f32 to vector<2x384xf32>
    %880 = arith.mulf %876, %879 : vector<2x384xf32>
    %881 = arith.addf %875, %880 : vector<2x384xf32>
    %c38_278 = arith.constant 38 : index
    %c0_279 = arith.constant 0 : index
    %882 = vector.load %arg1[%c38_278, %c0_279] : memref<72x384xf32, #tpu.memory_space<vmem>>, vector<2x384xf32>
    %883 = arith.index_cast %arg0 : i32 to index
    %c13_280 = arith.constant 13 : index
    %884 = memref.load %arg2[%883, %c13_280] : memref<2x36xf32, #tpu.memory_space<smem>>
    %885 = vector.broadcast %884 : f32 to vector<2x384xf32>
    %886 = arith.mulf %882, %885 : vector<2x384xf32>
    %887 = arith.addf %881, %886 : vector<2x384xf32>
    %c62_281 = arith.constant 62 : index
    %c0_282 = arith.constant 0 : index
    %888 = vector.load %arg1[%c62_281, %c0_282] : memref<72x384xf32, #tpu.memory_space<vmem>>, vector<2x384xf32>
    %889 = arith.index_cast %arg0 : i32 to index
    %c14_283 = arith.constant 14 : index
    %890 = memref.load %arg2[%889, %c14_283] : memref<2x36xf32, #tpu.memory_space<smem>>
    %891 = vector.broadcast %890 : f32 to vector<2x384xf32>
    %892 = arith.mulf %888, %891 : vector<2x384xf32>
    %893 = arith.addf %887, %892 : vector<2x384xf32>
    %c16_284 = arith.constant 16 : index
    %c0_285 = arith.constant 0 : index
    %894 = vector.load %arg1[%c16_284, %c0_285] : memref<72x384xf32, #tpu.memory_space<vmem>>, vector<2x384xf32>
    %895 = arith.index_cast %arg0 : i32 to index
    %c15_286 = arith.constant 15 : index
    %896 = memref.load %arg2[%895, %c15_286] : memref<2x36xf32, #tpu.memory_space<smem>>
    %897 = vector.broadcast %896 : f32 to vector<2x384xf32>
    %898 = arith.mulf %894, %897 : vector<2x384xf32>
    %899 = arith.addf %893, %898 : vector<2x384xf32>
    %c40_287 = arith.constant 40 : index
    %c0_288 = arith.constant 0 : index
    %900 = vector.load %arg1[%c40_287, %c0_288] : memref<72x384xf32, #tpu.memory_space<vmem>>, vector<2x384xf32>
    %901 = arith.index_cast %arg0 : i32 to index
    %c16_289 = arith.constant 16 : index
    %902 = memref.load %arg2[%901, %c16_289] : memref<2x36xf32, #tpu.memory_space<smem>>
    %903 = vector.broadcast %902 : f32 to vector<2x384xf32>
    %904 = arith.mulf %900, %903 : vector<2x384xf32>
    %905 = arith.addf %899, %904 : vector<2x384xf32>
    %c64_290 = arith.constant 64 : index
    %c0_291 = arith.constant 0 : index
    %906 = vector.load %arg1[%c64_290, %c0_291] : memref<72x384xf32, #tpu.memory_space<vmem>>, vector<2x384xf32>
    %907 = arith.index_cast %arg0 : i32 to index
    %c17_292 = arith.constant 17 : index
    %908 = memref.load %arg2[%907, %c17_292] : memref<2x36xf32, #tpu.memory_space<smem>>
    %909 = vector.broadcast %908 : f32 to vector<2x384xf32>
    %910 = arith.mulf %906, %909 : vector<2x384xf32>
    %911 = arith.addf %905, %910 : vector<2x384xf32>
    %cst_293 = arith.constant 0.000000e+00 : f32
    %912 = vector.broadcast %cst_293 : f32 to vector<2x384xf32>
    %913 = arith.maximumf %911, %912 : vector<2x384xf32>
    %914 = arith.index_cast %arg0 : i32 to index
    %c6_294 = arith.constant 6 : index
    %915 = memref.load %arg4[%914, %c6_294] : memref<2x96xf32, #tpu.memory_space<smem>>
    %916 = vector.broadcast %915 : f32 to vector<2x384xf32>
    %917 = arith.mulf %913, %916 : vector<2x384xf32>
    %918 = arith.addf %827, %917 : vector<2x384xf32>
    %919 = arith.index_cast %arg0 : i32 to index
    %c22_295 = arith.constant 22 : index
    %920 = memref.load %arg4[%919, %c22_295] : memref<2x96xf32, #tpu.memory_space<smem>>
    %921 = vector.broadcast %920 : f32 to vector<2x384xf32>
    %922 = arith.mulf %913, %921 : vector<2x384xf32>
    %923 = arith.addf %832, %922 : vector<2x384xf32>
    %924 = arith.index_cast %arg0 : i32 to index
    %c38_296 = arith.constant 38 : index
    %925 = memref.load %arg4[%924, %c38_296] : memref<2x96xf32, #tpu.memory_space<smem>>
    %926 = vector.broadcast %925 : f32 to vector<2x384xf32>
    %927 = arith.mulf %913, %926 : vector<2x384xf32>
    %928 = arith.addf %837, %927 : vector<2x384xf32>
    %929 = arith.index_cast %arg0 : i32 to index
    %c54_297 = arith.constant 54 : index
    %930 = memref.load %arg4[%929, %c54_297] : memref<2x96xf32, #tpu.memory_space<smem>>
    %931 = vector.broadcast %930 : f32 to vector<2x384xf32>
    %932 = arith.mulf %913, %931 : vector<2x384xf32>
    %933 = arith.addf %842, %932 : vector<2x384xf32>
    %934 = arith.index_cast %arg0 : i32 to index
    %c70 = arith.constant 70 : index
    %935 = memref.load %arg4[%934, %c70] : memref<2x96xf32, #tpu.memory_space<smem>>
    %936 = vector.broadcast %935 : f32 to vector<2x384xf32>
    %937 = arith.mulf %913, %936 : vector<2x384xf32>
    %938 = arith.addf %847, %937 : vector<2x384xf32>
    %939 = arith.index_cast %arg0 : i32 to index
    %c86 = arith.constant 86 : index
    %940 = memref.load %arg4[%939, %c86] : memref<2x96xf32, #tpu.memory_space<smem>>
    %941 = vector.broadcast %940 : f32 to vector<2x384xf32>
    %942 = arith.mulf %913, %941 : vector<2x384xf32>
    %943 = arith.addf %852, %942 : vector<2x384xf32>
    %cst_298 = arith.constant 0.000000e+00 : f32
    %944 = vector.broadcast %cst_298 : f32 to vector<2x384xf32>
    %945 = arith.index_cast %arg0 : i32 to index
    %c2_299 = arith.constant 2 : index
    %946 = memref.load %arg3[%945, %c2_299] : memref<2x4xf32, #tpu.memory_space<smem>>
    %947 = vector.broadcast %946 : f32 to vector<2x384xf32>
    %948 = arith.addf %944, %947 : vector<2x384xf32>
    %c12_300 = arith.constant 12 : index
    %c0_301 = arith.constant 0 : index
    %949 = vector.load %arg1[%c12_300, %c0_301] : memref<72x384xf32, #tpu.memory_space<vmem>>, vector<2x384xf32>
    %950 = arith.index_cast %arg0 : i32 to index
    %c18_302 = arith.constant 18 : index
    %951 = memref.load %arg2[%950, %c18_302] : memref<2x36xf32, #tpu.memory_space<smem>>
    %952 = vector.broadcast %951 : f32 to vector<2x384xf32>
    %953 = arith.mulf %949, %952 : vector<2x384xf32>
    %954 = arith.addf %948, %953 : vector<2x384xf32>
    %c36_303 = arith.constant 36 : index
    %c0_304 = arith.constant 0 : index
    %955 = vector.load %arg1[%c36_303, %c0_304] : memref<72x384xf32, #tpu.memory_space<vmem>>, vector<2x384xf32>
    %956 = arith.index_cast %arg0 : i32 to index
    %c19_305 = arith.constant 19 : index
    %957 = memref.load %arg2[%956, %c19_305] : memref<2x36xf32, #tpu.memory_space<smem>>
    %958 = vector.broadcast %957 : f32 to vector<2x384xf32>
    %959 = arith.mulf %955, %958 : vector<2x384xf32>
    %960 = arith.addf %954, %959 : vector<2x384xf32>
    %c60_306 = arith.constant 60 : index
    %c0_307 = arith.constant 0 : index
    %961 = vector.load %arg1[%c60_306, %c0_307] : memref<72x384xf32, #tpu.memory_space<vmem>>, vector<2x384xf32>
    %962 = arith.index_cast %arg0 : i32 to index
    %c20_308 = arith.constant 20 : index
    %963 = memref.load %arg2[%962, %c20_308] : memref<2x36xf32, #tpu.memory_space<smem>>
    %964 = vector.broadcast %963 : f32 to vector<2x384xf32>
    %965 = arith.mulf %961, %964 : vector<2x384xf32>
    %966 = arith.addf %960, %965 : vector<2x384xf32>
    %c14_309 = arith.constant 14 : index
    %c0_310 = arith.constant 0 : index
    %967 = vector.load %arg1[%c14_309, %c0_310] : memref<72x384xf32, #tpu.memory_space<vmem>>, vector<2x384xf32>
    %968 = arith.index_cast %arg0 : i32 to index
    %c21_311 = arith.constant 21 : index
    %969 = memref.load %arg2[%968, %c21_311] : memref<2x36xf32, #tpu.memory_space<smem>>
    %970 = vector.broadcast %969 : f32 to vector<2x384xf32>
    %971 = arith.mulf %967, %970 : vector<2x384xf32>
    %972 = arith.addf %966, %971 : vector<2x384xf32>
    %c38_312 = arith.constant 38 : index
    %c0_313 = arith.constant 0 : index
    %973 = vector.load %arg1[%c38_312, %c0_313] : memref<72x384xf32, #tpu.memory_space<vmem>>, vector<2x384xf32>
    %974 = arith.index_cast %arg0 : i32 to index
    %c22_314 = arith.constant 22 : index
    %975 = memref.load %arg2[%974, %c22_314] : memref<2x36xf32, #tpu.memory_space<smem>>
    %976 = vector.broadcast %975 : f32 to vector<2x384xf32>
    %977 = arith.mulf %973, %976 : vector<2x384xf32>
    %978 = arith.addf %972, %977 : vector<2x384xf32>
    %c62_315 = arith.constant 62 : index
    %c0_316 = arith.constant 0 : index
    %979 = vector.load %arg1[%c62_315, %c0_316] : memref<72x384xf32, #tpu.memory_space<vmem>>, vector<2x384xf32>
    %980 = arith.index_cast %arg0 : i32 to index
    %c23_317 = arith.constant 23 : index
    %981 = memref.load %arg2[%980, %c23_317] : memref<2x36xf32, #tpu.memory_space<smem>>
    %982 = vector.broadcast %981 : f32 to vector<2x384xf32>
    %983 = arith.mulf %979, %982 : vector<2x384xf32>
    %984 = arith.addf %978, %983 : vector<2x384xf32>
    %c16_318 = arith.constant 16 : index
    %c0_319 = arith.constant 0 : index
    %985 = vector.load %arg1[%c16_318, %c0_319] : memref<72x384xf32, #tpu.memory_space<vmem>>, vector<2x384xf32>
    %986 = arith.index_cast %arg0 : i32 to index
    %c24_320 = arith.constant 24 : index
    %987 = memref.load %arg2[%986, %c24_320] : memref<2x36xf32, #tpu.memory_space<smem>>
    %988 = vector.broadcast %987 : f32 to vector<2x384xf32>
    %989 = arith.mulf %985, %988 : vector<2x384xf32>
    %990 = arith.addf %984, %989 : vector<2x384xf32>
    %c40_321 = arith.constant 40 : index
    %c0_322 = arith.constant 0 : index
    %991 = vector.load %arg1[%c40_321, %c0_322] : memref<72x384xf32, #tpu.memory_space<vmem>>, vector<2x384xf32>
    %992 = arith.index_cast %arg0 : i32 to index
    %c25_323 = arith.constant 25 : index
    %993 = memref.load %arg2[%992, %c25_323] : memref<2x36xf32, #tpu.memory_space<smem>>
    %994 = vector.broadcast %993 : f32 to vector<2x384xf32>
    %995 = arith.mulf %991, %994 : vector<2x384xf32>
    %996 = arith.addf %990, %995 : vector<2x384xf32>
    %c64_324 = arith.constant 64 : index
    %c0_325 = arith.constant 0 : index
    %997 = vector.load %arg1[%c64_324, %c0_325] : memref<72x384xf32, #tpu.memory_space<vmem>>, vector<2x384xf32>
    %998 = arith.index_cast %arg0 : i32 to index
    %c26_326 = arith.constant 26 : index
    %999 = memref.load %arg2[%998, %c26_326] : memref<2x36xf32, #tpu.memory_space<smem>>
    %1000 = vector.broadcast %999 : f32 to vector<2x384xf32>
    %1001 = arith.mulf %997, %1000 : vector<2x384xf32>
    %1002 = arith.addf %996, %1001 : vector<2x384xf32>
    %cst_327 = arith.constant 0.000000e+00 : f32
    %1003 = vector.broadcast %cst_327 : f32 to vector<2x384xf32>
    %1004 = arith.maximumf %1002, %1003 : vector<2x384xf32>
    %1005 = arith.index_cast %arg0 : i32 to index
    %c10_328 = arith.constant 10 : index
    %1006 = memref.load %arg4[%1005, %c10_328] : memref<2x96xf32, #tpu.memory_space<smem>>
    %1007 = vector.broadcast %1006 : f32 to vector<2x384xf32>
    %1008 = arith.mulf %1004, %1007 : vector<2x384xf32>
    %1009 = arith.addf %918, %1008 : vector<2x384xf32>
    %1010 = arith.index_cast %arg0 : i32 to index
    %c26_329 = arith.constant 26 : index
    %1011 = memref.load %arg4[%1010, %c26_329] : memref<2x96xf32, #tpu.memory_space<smem>>
    %1012 = vector.broadcast %1011 : f32 to vector<2x384xf32>
    %1013 = arith.mulf %1004, %1012 : vector<2x384xf32>
    %1014 = arith.addf %923, %1013 : vector<2x384xf32>
    %1015 = arith.index_cast %arg0 : i32 to index
    %c42 = arith.constant 42 : index
    %1016 = memref.load %arg4[%1015, %c42] : memref<2x96xf32, #tpu.memory_space<smem>>
    %1017 = vector.broadcast %1016 : f32 to vector<2x384xf32>
    %1018 = arith.mulf %1004, %1017 : vector<2x384xf32>
    %1019 = arith.addf %928, %1018 : vector<2x384xf32>
    %1020 = arith.index_cast %arg0 : i32 to index
    %c58_330 = arith.constant 58 : index
    %1021 = memref.load %arg4[%1020, %c58_330] : memref<2x96xf32, #tpu.memory_space<smem>>
    %1022 = vector.broadcast %1021 : f32 to vector<2x384xf32>
    %1023 = arith.mulf %1004, %1022 : vector<2x384xf32>
    %1024 = arith.addf %933, %1023 : vector<2x384xf32>
    %1025 = arith.index_cast %arg0 : i32 to index
    %c74 = arith.constant 74 : index
    %1026 = memref.load %arg4[%1025, %c74] : memref<2x96xf32, #tpu.memory_space<smem>>
    %1027 = vector.broadcast %1026 : f32 to vector<2x384xf32>
    %1028 = arith.mulf %1004, %1027 : vector<2x384xf32>
    %1029 = arith.addf %938, %1028 : vector<2x384xf32>
    %1030 = arith.index_cast %arg0 : i32 to index
    %c90 = arith.constant 90 : index
    %1031 = memref.load %arg4[%1030, %c90] : memref<2x96xf32, #tpu.memory_space<smem>>
    %1032 = vector.broadcast %1031 : f32 to vector<2x384xf32>
    %1033 = arith.mulf %1004, %1032 : vector<2x384xf32>
    %1034 = arith.addf %943, %1033 : vector<2x384xf32>
    %cst_331 = arith.constant 0.000000e+00 : f32
    %1035 = vector.broadcast %cst_331 : f32 to vector<2x384xf32>
    %1036 = arith.index_cast %arg0 : i32 to index
    %c3_332 = arith.constant 3 : index
    %1037 = memref.load %arg3[%1036, %c3_332] : memref<2x4xf32, #tpu.memory_space<smem>>
    %1038 = vector.broadcast %1037 : f32 to vector<2x384xf32>
    %1039 = arith.addf %1035, %1038 : vector<2x384xf32>
    %c12_333 = arith.constant 12 : index
    %c0_334 = arith.constant 0 : index
    %1040 = vector.load %arg1[%c12_333, %c0_334] : memref<72x384xf32, #tpu.memory_space<vmem>>, vector<2x384xf32>
    %1041 = arith.index_cast %arg0 : i32 to index
    %c27_335 = arith.constant 27 : index
    %1042 = memref.load %arg2[%1041, %c27_335] : memref<2x36xf32, #tpu.memory_space<smem>>
    %1043 = vector.broadcast %1042 : f32 to vector<2x384xf32>
    %1044 = arith.mulf %1040, %1043 : vector<2x384xf32>
    %1045 = arith.addf %1039, %1044 : vector<2x384xf32>
    %c36_336 = arith.constant 36 : index
    %c0_337 = arith.constant 0 : index
    %1046 = vector.load %arg1[%c36_336, %c0_337] : memref<72x384xf32, #tpu.memory_space<vmem>>, vector<2x384xf32>
    %1047 = arith.index_cast %arg0 : i32 to index
    %c28_338 = arith.constant 28 : index
    %1048 = memref.load %arg2[%1047, %c28_338] : memref<2x36xf32, #tpu.memory_space<smem>>
    %1049 = vector.broadcast %1048 : f32 to vector<2x384xf32>
    %1050 = arith.mulf %1046, %1049 : vector<2x384xf32>
    %1051 = arith.addf %1045, %1050 : vector<2x384xf32>
    %c60_339 = arith.constant 60 : index
    %c0_340 = arith.constant 0 : index
    %1052 = vector.load %arg1[%c60_339, %c0_340] : memref<72x384xf32, #tpu.memory_space<vmem>>, vector<2x384xf32>
    %1053 = arith.index_cast %arg0 : i32 to index
    %c29_341 = arith.constant 29 : index
    %1054 = memref.load %arg2[%1053, %c29_341] : memref<2x36xf32, #tpu.memory_space<smem>>
    %1055 = vector.broadcast %1054 : f32 to vector<2x384xf32>
    %1056 = arith.mulf %1052, %1055 : vector<2x384xf32>
    %1057 = arith.addf %1051, %1056 : vector<2x384xf32>
    %c14_342 = arith.constant 14 : index
    %c0_343 = arith.constant 0 : index
    %1058 = vector.load %arg1[%c14_342, %c0_343] : memref<72x384xf32, #tpu.memory_space<vmem>>, vector<2x384xf32>
    %1059 = arith.index_cast %arg0 : i32 to index
    %c30_344 = arith.constant 30 : index
    %1060 = memref.load %arg2[%1059, %c30_344] : memref<2x36xf32, #tpu.memory_space<smem>>
    %1061 = vector.broadcast %1060 : f32 to vector<2x384xf32>
    %1062 = arith.mulf %1058, %1061 : vector<2x384xf32>
    %1063 = arith.addf %1057, %1062 : vector<2x384xf32>
    %c38_345 = arith.constant 38 : index
    %c0_346 = arith.constant 0 : index
    %1064 = vector.load %arg1[%c38_345, %c0_346] : memref<72x384xf32, #tpu.memory_space<vmem>>, vector<2x384xf32>
    %1065 = arith.index_cast %arg0 : i32 to index
    %c31_347 = arith.constant 31 : index
    %1066 = memref.load %arg2[%1065, %c31_347] : memref<2x36xf32, #tpu.memory_space<smem>>
    %1067 = vector.broadcast %1066 : f32 to vector<2x384xf32>
    %1068 = arith.mulf %1064, %1067 : vector<2x384xf32>
    %1069 = arith.addf %1063, %1068 : vector<2x384xf32>
    %c62_348 = arith.constant 62 : index
    %c0_349 = arith.constant 0 : index
    %1070 = vector.load %arg1[%c62_348, %c0_349] : memref<72x384xf32, #tpu.memory_space<vmem>>, vector<2x384xf32>
    %1071 = arith.index_cast %arg0 : i32 to index
    %c32_350 = arith.constant 32 : index
    %1072 = memref.load %arg2[%1071, %c32_350] : memref<2x36xf32, #tpu.memory_space<smem>>
    %1073 = vector.broadcast %1072 : f32 to vector<2x384xf32>
    %1074 = arith.mulf %1070, %1073 : vector<2x384xf32>
    %1075 = arith.addf %1069, %1074 : vector<2x384xf32>
    %c16_351 = arith.constant 16 : index
    %c0_352 = arith.constant 0 : index
    %1076 = vector.load %arg1[%c16_351, %c0_352] : memref<72x384xf32, #tpu.memory_space<vmem>>, vector<2x384xf32>
    %1077 = arith.index_cast %arg0 : i32 to index
    %c33_353 = arith.constant 33 : index
    %1078 = memref.load %arg2[%1077, %c33_353] : memref<2x36xf32, #tpu.memory_space<smem>>
    %1079 = vector.broadcast %1078 : f32 to vector<2x384xf32>
    %1080 = arith.mulf %1076, %1079 : vector<2x384xf32>
    %1081 = arith.addf %1075, %1080 : vector<2x384xf32>
    %c40_354 = arith.constant 40 : index
    %c0_355 = arith.constant 0 : index
    %1082 = vector.load %arg1[%c40_354, %c0_355] : memref<72x384xf32, #tpu.memory_space<vmem>>, vector<2x384xf32>
    %1083 = arith.index_cast %arg0 : i32 to index
    %c34_356 = arith.constant 34 : index
    %1084 = memref.load %arg2[%1083, %c34_356] : memref<2x36xf32, #tpu.memory_space<smem>>
    %1085 = vector.broadcast %1084 : f32 to vector<2x384xf32>
    %1086 = arith.mulf %1082, %1085 : vector<2x384xf32>
    %1087 = arith.addf %1081, %1086 : vector<2x384xf32>
    %c64_357 = arith.constant 64 : index
    %c0_358 = arith.constant 0 : index
    %1088 = vector.load %arg1[%c64_357, %c0_358] : memref<72x384xf32, #tpu.memory_space<vmem>>, vector<2x384xf32>
    %1089 = arith.index_cast %arg0 : i32 to index
    %c35_359 = arith.constant 35 : index
    %1090 = memref.load %arg2[%1089, %c35_359] : memref<2x36xf32, #tpu.memory_space<smem>>
    %1091 = vector.broadcast %1090 : f32 to vector<2x384xf32>
    %1092 = arith.mulf %1088, %1091 : vector<2x384xf32>
    %1093 = arith.addf %1087, %1092 : vector<2x384xf32>
    %cst_360 = arith.constant 0.000000e+00 : f32
    %1094 = vector.broadcast %cst_360 : f32 to vector<2x384xf32>
    %1095 = arith.maximumf %1093, %1094 : vector<2x384xf32>
    %1096 = arith.index_cast %arg0 : i32 to index
    %c14_361 = arith.constant 14 : index
    %1097 = memref.load %arg4[%1096, %c14_361] : memref<2x96xf32, #tpu.memory_space<smem>>
    %1098 = vector.broadcast %1097 : f32 to vector<2x384xf32>
    %1099 = arith.mulf %1095, %1098 : vector<2x384xf32>
    %1100 = arith.addf %1009, %1099 : vector<2x384xf32>
    %1101 = arith.index_cast %arg0 : i32 to index
    %c30_362 = arith.constant 30 : index
    %1102 = memref.load %arg4[%1101, %c30_362] : memref<2x96xf32, #tpu.memory_space<smem>>
    %1103 = vector.broadcast %1102 : f32 to vector<2x384xf32>
    %1104 = arith.mulf %1095, %1103 : vector<2x384xf32>
    %1105 = arith.addf %1014, %1104 : vector<2x384xf32>
    %1106 = arith.index_cast %arg0 : i32 to index
    %c46 = arith.constant 46 : index
    %1107 = memref.load %arg4[%1106, %c46] : memref<2x96xf32, #tpu.memory_space<smem>>
    %1108 = vector.broadcast %1107 : f32 to vector<2x384xf32>
    %1109 = arith.mulf %1095, %1108 : vector<2x384xf32>
    %1110 = arith.addf %1019, %1109 : vector<2x384xf32>
    %1111 = arith.index_cast %arg0 : i32 to index
    %c62_363 = arith.constant 62 : index
    %1112 = memref.load %arg4[%1111, %c62_363] : memref<2x96xf32, #tpu.memory_space<smem>>
    %1113 = vector.broadcast %1112 : f32 to vector<2x384xf32>
    %1114 = arith.mulf %1095, %1113 : vector<2x384xf32>
    %1115 = arith.addf %1024, %1114 : vector<2x384xf32>
    %1116 = arith.index_cast %arg0 : i32 to index
    %c78 = arith.constant 78 : index
    %1117 = memref.load %arg4[%1116, %c78] : memref<2x96xf32, #tpu.memory_space<smem>>
    %1118 = vector.broadcast %1117 : f32 to vector<2x384xf32>
    %1119 = arith.mulf %1095, %1118 : vector<2x384xf32>
    %1120 = arith.addf %1029, %1119 : vector<2x384xf32>
    %1121 = arith.index_cast %arg0 : i32 to index
    %c94 = arith.constant 94 : index
    %1122 = memref.load %arg4[%1121, %c94] : memref<2x96xf32, #tpu.memory_space<smem>>
    %1123 = vector.broadcast %1122 : f32 to vector<2x384xf32>
    %1124 = arith.mulf %1095, %1123 : vector<2x384xf32>
    %1125 = arith.addf %1034, %1124 : vector<2x384xf32>
    %cst_364 = arith.constant 0.000000e+00 : f32
    %1126 = vector.broadcast %cst_364 : f32 to vector<2x384xf32>
    %1127 = arith.index_cast %arg0 : i32 to index
    %c0_365 = arith.constant 0 : index
    %1128 = memref.load %arg3[%1127, %c0_365] : memref<2x4xf32, #tpu.memory_space<smem>>
    %1129 = vector.broadcast %1128 : f32 to vector<2x384xf32>
    %1130 = arith.addf %1126, %1129 : vector<2x384xf32>
    %c18_366 = arith.constant 18 : index
    %c0_367 = arith.constant 0 : index
    %1131 = vector.load %arg1[%c18_366, %c0_367] : memref<72x384xf32, #tpu.memory_space<vmem>>, vector<2x384xf32>
    %1132 = arith.index_cast %arg0 : i32 to index
    %c0_368 = arith.constant 0 : index
    %1133 = memref.load %arg2[%1132, %c0_368] : memref<2x36xf32, #tpu.memory_space<smem>>
    %1134 = vector.broadcast %1133 : f32 to vector<2x384xf32>
    %1135 = arith.mulf %1131, %1134 : vector<2x384xf32>
    %1136 = arith.addf %1130, %1135 : vector<2x384xf32>
    %c42_369 = arith.constant 42 : index
    %c0_370 = arith.constant 0 : index
    %1137 = vector.load %arg1[%c42_369, %c0_370] : memref<72x384xf32, #tpu.memory_space<vmem>>, vector<2x384xf32>
    %1138 = arith.index_cast %arg0 : i32 to index
    %c1_371 = arith.constant 1 : index
    %1139 = memref.load %arg2[%1138, %c1_371] : memref<2x36xf32, #tpu.memory_space<smem>>
    %1140 = vector.broadcast %1139 : f32 to vector<2x384xf32>
    %1141 = arith.mulf %1137, %1140 : vector<2x384xf32>
    %1142 = arith.addf %1136, %1141 : vector<2x384xf32>
    %c66_372 = arith.constant 66 : index
    %c0_373 = arith.constant 0 : index
    %1143 = vector.load %arg1[%c66_372, %c0_373] : memref<72x384xf32, #tpu.memory_space<vmem>>, vector<2x384xf32>
    %1144 = arith.index_cast %arg0 : i32 to index
    %c2_374 = arith.constant 2 : index
    %1145 = memref.load %arg2[%1144, %c2_374] : memref<2x36xf32, #tpu.memory_space<smem>>
    %1146 = vector.broadcast %1145 : f32 to vector<2x384xf32>
    %1147 = arith.mulf %1143, %1146 : vector<2x384xf32>
    %1148 = arith.addf %1142, %1147 : vector<2x384xf32>
    %c20_375 = arith.constant 20 : index
    %c0_376 = arith.constant 0 : index
    %1149 = vector.load %arg1[%c20_375, %c0_376] : memref<72x384xf32, #tpu.memory_space<vmem>>, vector<2x384xf32>
    %1150 = arith.index_cast %arg0 : i32 to index
    %c3_377 = arith.constant 3 : index
    %1151 = memref.load %arg2[%1150, %c3_377] : memref<2x36xf32, #tpu.memory_space<smem>>
    %1152 = vector.broadcast %1151 : f32 to vector<2x384xf32>
    %1153 = arith.mulf %1149, %1152 : vector<2x384xf32>
    %1154 = arith.addf %1148, %1153 : vector<2x384xf32>
    %c44_378 = arith.constant 44 : index
    %c0_379 = arith.constant 0 : index
    %1155 = vector.load %arg1[%c44_378, %c0_379] : memref<72x384xf32, #tpu.memory_space<vmem>>, vector<2x384xf32>
    %1156 = arith.index_cast %arg0 : i32 to index
    %c4_380 = arith.constant 4 : index
    %1157 = memref.load %arg2[%1156, %c4_380] : memref<2x36xf32, #tpu.memory_space<smem>>
    %1158 = vector.broadcast %1157 : f32 to vector<2x384xf32>
    %1159 = arith.mulf %1155, %1158 : vector<2x384xf32>
    %1160 = arith.addf %1154, %1159 : vector<2x384xf32>
    %c68_381 = arith.constant 68 : index
    %c0_382 = arith.constant 0 : index
    %1161 = vector.load %arg1[%c68_381, %c0_382] : memref<72x384xf32, #tpu.memory_space<vmem>>, vector<2x384xf32>
    %1162 = arith.index_cast %arg0 : i32 to index
    %c5_383 = arith.constant 5 : index
    %1163 = memref.load %arg2[%1162, %c5_383] : memref<2x36xf32, #tpu.memory_space<smem>>
    %1164 = vector.broadcast %1163 : f32 to vector<2x384xf32>
    %1165 = arith.mulf %1161, %1164 : vector<2x384xf32>
    %1166 = arith.addf %1160, %1165 : vector<2x384xf32>
    %c22_384 = arith.constant 22 : index
    %c0_385 = arith.constant 0 : index
    %1167 = vector.load %arg1[%c22_384, %c0_385] : memref<72x384xf32, #tpu.memory_space<vmem>>, vector<2x384xf32>
    %1168 = arith.index_cast %arg0 : i32 to index
    %c6_386 = arith.constant 6 : index
    %1169 = memref.load %arg2[%1168, %c6_386] : memref<2x36xf32, #tpu.memory_space<smem>>
    %1170 = vector.broadcast %1169 : f32 to vector<2x384xf32>
    %1171 = arith.mulf %1167, %1170 : vector<2x384xf32>
    %1172 = arith.addf %1166, %1171 : vector<2x384xf32>
    %c46_387 = arith.constant 46 : index
    %c0_388 = arith.constant 0 : index
    %1173 = vector.load %arg1[%c46_387, %c0_388] : memref<72x384xf32, #tpu.memory_space<vmem>>, vector<2x384xf32>
    %1174 = arith.index_cast %arg0 : i32 to index
    %c7_389 = arith.constant 7 : index
    %1175 = memref.load %arg2[%1174, %c7_389] : memref<2x36xf32, #tpu.memory_space<smem>>
    %1176 = vector.broadcast %1175 : f32 to vector<2x384xf32>
    %1177 = arith.mulf %1173, %1176 : vector<2x384xf32>
    %1178 = arith.addf %1172, %1177 : vector<2x384xf32>
    %c70_390 = arith.constant 70 : index
    %c0_391 = arith.constant 0 : index
    %1179 = vector.load %arg1[%c70_390, %c0_391] : memref<72x384xf32, #tpu.memory_space<vmem>>, vector<2x384xf32>
    %1180 = arith.index_cast %arg0 : i32 to index
    %c8_392 = arith.constant 8 : index
    %1181 = memref.load %arg2[%1180, %c8_392] : memref<2x36xf32, #tpu.memory_space<smem>>
    %1182 = vector.broadcast %1181 : f32 to vector<2x384xf32>
    %1183 = arith.mulf %1179, %1182 : vector<2x384xf32>
    %1184 = arith.addf %1178, %1183 : vector<2x384xf32>
    %cst_393 = arith.constant 0.000000e+00 : f32
    %1185 = vector.broadcast %cst_393 : f32 to vector<2x384xf32>
    %1186 = arith.maximumf %1184, %1185 : vector<2x384xf32>
    %1187 = arith.index_cast %arg0 : i32 to index
    %c3_394 = arith.constant 3 : index
    %1188 = memref.load %arg4[%1187, %c3_394] : memref<2x96xf32, #tpu.memory_space<smem>>
    %1189 = vector.broadcast %1188 : f32 to vector<2x384xf32>
    %1190 = arith.mulf %1186, %1189 : vector<2x384xf32>
    %1191 = arith.addf %1100, %1190 : vector<2x384xf32>
    %1192 = arith.index_cast %arg0 : i32 to index
    %c19_395 = arith.constant 19 : index
    %1193 = memref.load %arg4[%1192, %c19_395] : memref<2x96xf32, #tpu.memory_space<smem>>
    %1194 = vector.broadcast %1193 : f32 to vector<2x384xf32>
    %1195 = arith.mulf %1186, %1194 : vector<2x384xf32>
    %1196 = arith.addf %1105, %1195 : vector<2x384xf32>
    %1197 = arith.index_cast %arg0 : i32 to index
    %c35_396 = arith.constant 35 : index
    %1198 = memref.load %arg4[%1197, %c35_396] : memref<2x96xf32, #tpu.memory_space<smem>>
    %1199 = vector.broadcast %1198 : f32 to vector<2x384xf32>
    %1200 = arith.mulf %1186, %1199 : vector<2x384xf32>
    %1201 = arith.addf %1110, %1200 : vector<2x384xf32>
    %1202 = arith.index_cast %arg0 : i32 to index
    %c51 = arith.constant 51 : index
    %1203 = memref.load %arg4[%1202, %c51] : memref<2x96xf32, #tpu.memory_space<smem>>
    %1204 = vector.broadcast %1203 : f32 to vector<2x384xf32>
    %1205 = arith.mulf %1186, %1204 : vector<2x384xf32>
    %1206 = arith.addf %1115, %1205 : vector<2x384xf32>
    %1207 = arith.index_cast %arg0 : i32 to index
    %c67 = arith.constant 67 : index
    %1208 = memref.load %arg4[%1207, %c67] : memref<2x96xf32, #tpu.memory_space<smem>>
    %1209 = vector.broadcast %1208 : f32 to vector<2x384xf32>
    %1210 = arith.mulf %1186, %1209 : vector<2x384xf32>
    %1211 = arith.addf %1120, %1210 : vector<2x384xf32>
    %1212 = arith.index_cast %arg0 : i32 to index
    %c83 = arith.constant 83 : index
    %1213 = memref.load %arg4[%1212, %c83] : memref<2x96xf32, #tpu.memory_space<smem>>
    %1214 = vector.broadcast %1213 : f32 to vector<2x384xf32>
    %1215 = arith.mulf %1186, %1214 : vector<2x384xf32>
    %1216 = arith.addf %1125, %1215 : vector<2x384xf32>
    %cst_397 = arith.constant 0.000000e+00 : f32
    %1217 = vector.broadcast %cst_397 : f32 to vector<2x384xf32>
    %1218 = arith.index_cast %arg0 : i32 to index
    %c1_398 = arith.constant 1 : index
    %1219 = memref.load %arg3[%1218, %c1_398] : memref<2x4xf32, #tpu.memory_space<smem>>
    %1220 = vector.broadcast %1219 : f32 to vector<2x384xf32>
    %1221 = arith.addf %1217, %1220 : vector<2x384xf32>
    %c18_399 = arith.constant 18 : index
    %c0_400 = arith.constant 0 : index
    %1222 = vector.load %arg1[%c18_399, %c0_400] : memref<72x384xf32, #tpu.memory_space<vmem>>, vector<2x384xf32>
    %1223 = arith.index_cast %arg0 : i32 to index
    %c9_401 = arith.constant 9 : index
    %1224 = memref.load %arg2[%1223, %c9_401] : memref<2x36xf32, #tpu.memory_space<smem>>
    %1225 = vector.broadcast %1224 : f32 to vector<2x384xf32>
    %1226 = arith.mulf %1222, %1225 : vector<2x384xf32>
    %1227 = arith.addf %1221, %1226 : vector<2x384xf32>
    %c42_402 = arith.constant 42 : index
    %c0_403 = arith.constant 0 : index
    %1228 = vector.load %arg1[%c42_402, %c0_403] : memref<72x384xf32, #tpu.memory_space<vmem>>, vector<2x384xf32>
    %1229 = arith.index_cast %arg0 : i32 to index
    %c10_404 = arith.constant 10 : index
    %1230 = memref.load %arg2[%1229, %c10_404] : memref<2x36xf32, #tpu.memory_space<smem>>
    %1231 = vector.broadcast %1230 : f32 to vector<2x384xf32>
    %1232 = arith.mulf %1228, %1231 : vector<2x384xf32>
    %1233 = arith.addf %1227, %1232 : vector<2x384xf32>
    %c66_405 = arith.constant 66 : index
    %c0_406 = arith.constant 0 : index
    %1234 = vector.load %arg1[%c66_405, %c0_406] : memref<72x384xf32, #tpu.memory_space<vmem>>, vector<2x384xf32>
    %1235 = arith.index_cast %arg0 : i32 to index
    %c11_407 = arith.constant 11 : index
    %1236 = memref.load %arg2[%1235, %c11_407] : memref<2x36xf32, #tpu.memory_space<smem>>
    %1237 = vector.broadcast %1236 : f32 to vector<2x384xf32>
    %1238 = arith.mulf %1234, %1237 : vector<2x384xf32>
    %1239 = arith.addf %1233, %1238 : vector<2x384xf32>
    %c20_408 = arith.constant 20 : index
    %c0_409 = arith.constant 0 : index
    %1240 = vector.load %arg1[%c20_408, %c0_409] : memref<72x384xf32, #tpu.memory_space<vmem>>, vector<2x384xf32>
    %1241 = arith.index_cast %arg0 : i32 to index
    %c12_410 = arith.constant 12 : index
    %1242 = memref.load %arg2[%1241, %c12_410] : memref<2x36xf32, #tpu.memory_space<smem>>
    %1243 = vector.broadcast %1242 : f32 to vector<2x384xf32>
    %1244 = arith.mulf %1240, %1243 : vector<2x384xf32>
    %1245 = arith.addf %1239, %1244 : vector<2x384xf32>
    %c44_411 = arith.constant 44 : index
    %c0_412 = arith.constant 0 : index
    %1246 = vector.load %arg1[%c44_411, %c0_412] : memref<72x384xf32, #tpu.memory_space<vmem>>, vector<2x384xf32>
    %1247 = arith.index_cast %arg0 : i32 to index
    %c13_413 = arith.constant 13 : index
    %1248 = memref.load %arg2[%1247, %c13_413] : memref<2x36xf32, #tpu.memory_space<smem>>
    %1249 = vector.broadcast %1248 : f32 to vector<2x384xf32>
    %1250 = arith.mulf %1246, %1249 : vector<2x384xf32>
    %1251 = arith.addf %1245, %1250 : vector<2x384xf32>
    %c68_414 = arith.constant 68 : index
    %c0_415 = arith.constant 0 : index
    %1252 = vector.load %arg1[%c68_414, %c0_415] : memref<72x384xf32, #tpu.memory_space<vmem>>, vector<2x384xf32>
    %1253 = arith.index_cast %arg0 : i32 to index
    %c14_416 = arith.constant 14 : index
    %1254 = memref.load %arg2[%1253, %c14_416] : memref<2x36xf32, #tpu.memory_space<smem>>
    %1255 = vector.broadcast %1254 : f32 to vector<2x384xf32>
    %1256 = arith.mulf %1252, %1255 : vector<2x384xf32>
    %1257 = arith.addf %1251, %1256 : vector<2x384xf32>
    %c22_417 = arith.constant 22 : index
    %c0_418 = arith.constant 0 : index
    %1258 = vector.load %arg1[%c22_417, %c0_418] : memref<72x384xf32, #tpu.memory_space<vmem>>, vector<2x384xf32>
    %1259 = arith.index_cast %arg0 : i32 to index
    %c15_419 = arith.constant 15 : index
    %1260 = memref.load %arg2[%1259, %c15_419] : memref<2x36xf32, #tpu.memory_space<smem>>
    %1261 = vector.broadcast %1260 : f32 to vector<2x384xf32>
    %1262 = arith.mulf %1258, %1261 : vector<2x384xf32>
    %1263 = arith.addf %1257, %1262 : vector<2x384xf32>
    %c46_420 = arith.constant 46 : index
    %c0_421 = arith.constant 0 : index
    %1264 = vector.load %arg1[%c46_420, %c0_421] : memref<72x384xf32, #tpu.memory_space<vmem>>, vector<2x384xf32>
    %1265 = arith.index_cast %arg0 : i32 to index
    %c16_422 = arith.constant 16 : index
    %1266 = memref.load %arg2[%1265, %c16_422] : memref<2x36xf32, #tpu.memory_space<smem>>
    %1267 = vector.broadcast %1266 : f32 to vector<2x384xf32>
    %1268 = arith.mulf %1264, %1267 : vector<2x384xf32>
    %1269 = arith.addf %1263, %1268 : vector<2x384xf32>
    %c70_423 = arith.constant 70 : index
    %c0_424 = arith.constant 0 : index
    %1270 = vector.load %arg1[%c70_423, %c0_424] : memref<72x384xf32, #tpu.memory_space<vmem>>, vector<2x384xf32>
    %1271 = arith.index_cast %arg0 : i32 to index
    %c17_425 = arith.constant 17 : index
    %1272 = memref.load %arg2[%1271, %c17_425] : memref<2x36xf32, #tpu.memory_space<smem>>
    %1273 = vector.broadcast %1272 : f32 to vector<2x384xf32>
    %1274 = arith.mulf %1270, %1273 : vector<2x384xf32>
    %1275 = arith.addf %1269, %1274 : vector<2x384xf32>
    %cst_426 = arith.constant 0.000000e+00 : f32
    %1276 = vector.broadcast %cst_426 : f32 to vector<2x384xf32>
    %1277 = arith.maximumf %1275, %1276 : vector<2x384xf32>
    %1278 = arith.index_cast %arg0 : i32 to index
    %c7_427 = arith.constant 7 : index
    %1279 = memref.load %arg4[%1278, %c7_427] : memref<2x96xf32, #tpu.memory_space<smem>>
    %1280 = vector.broadcast %1279 : f32 to vector<2x384xf32>
    %1281 = arith.mulf %1277, %1280 : vector<2x384xf32>
    %1282 = arith.addf %1191, %1281 : vector<2x384xf32>
    %1283 = arith.index_cast %arg0 : i32 to index
    %c23_428 = arith.constant 23 : index
    %1284 = memref.load %arg4[%1283, %c23_428] : memref<2x96xf32, #tpu.memory_space<smem>>
    %1285 = vector.broadcast %1284 : f32 to vector<2x384xf32>
    %1286 = arith.mulf %1277, %1285 : vector<2x384xf32>
    %1287 = arith.addf %1196, %1286 : vector<2x384xf32>
    %1288 = arith.index_cast %arg0 : i32 to index
    %c39 = arith.constant 39 : index
    %1289 = memref.load %arg4[%1288, %c39] : memref<2x96xf32, #tpu.memory_space<smem>>
    %1290 = vector.broadcast %1289 : f32 to vector<2x384xf32>
    %1291 = arith.mulf %1277, %1290 : vector<2x384xf32>
    %1292 = arith.addf %1201, %1291 : vector<2x384xf32>
    %1293 = arith.index_cast %arg0 : i32 to index
    %c55 = arith.constant 55 : index
    %1294 = memref.load %arg4[%1293, %c55] : memref<2x96xf32, #tpu.memory_space<smem>>
    %1295 = vector.broadcast %1294 : f32 to vector<2x384xf32>
    %1296 = arith.mulf %1277, %1295 : vector<2x384xf32>
    %1297 = arith.addf %1206, %1296 : vector<2x384xf32>
    %1298 = arith.index_cast %arg0 : i32 to index
    %c71 = arith.constant 71 : index
    %1299 = memref.load %arg4[%1298, %c71] : memref<2x96xf32, #tpu.memory_space<smem>>
    %1300 = vector.broadcast %1299 : f32 to vector<2x384xf32>
    %1301 = arith.mulf %1277, %1300 : vector<2x384xf32>
    %1302 = arith.addf %1211, %1301 : vector<2x384xf32>
    %1303 = arith.index_cast %arg0 : i32 to index
    %c87 = arith.constant 87 : index
    %1304 = memref.load %arg4[%1303, %c87] : memref<2x96xf32, #tpu.memory_space<smem>>
    %1305 = vector.broadcast %1304 : f32 to vector<2x384xf32>
    %1306 = arith.mulf %1277, %1305 : vector<2x384xf32>
    %1307 = arith.addf %1216, %1306 : vector<2x384xf32>
    %cst_429 = arith.constant 0.000000e+00 : f32
    %1308 = vector.broadcast %cst_429 : f32 to vector<2x384xf32>
    %1309 = arith.index_cast %arg0 : i32 to index
    %c2_430 = arith.constant 2 : index
    %1310 = memref.load %arg3[%1309, %c2_430] : memref<2x4xf32, #tpu.memory_space<smem>>
    %1311 = vector.broadcast %1310 : f32 to vector<2x384xf32>
    %1312 = arith.addf %1308, %1311 : vector<2x384xf32>
    %c18_431 = arith.constant 18 : index
    %c0_432 = arith.constant 0 : index
    %1313 = vector.load %arg1[%c18_431, %c0_432] : memref<72x384xf32, #tpu.memory_space<vmem>>, vector<2x384xf32>
    %1314 = arith.index_cast %arg0 : i32 to index
    %c18_433 = arith.constant 18 : index
    %1315 = memref.load %arg2[%1314, %c18_433] : memref<2x36xf32, #tpu.memory_space<smem>>
    %1316 = vector.broadcast %1315 : f32 to vector<2x384xf32>
    %1317 = arith.mulf %1313, %1316 : vector<2x384xf32>
    %1318 = arith.addf %1312, %1317 : vector<2x384xf32>
    %c42_434 = arith.constant 42 : index
    %c0_435 = arith.constant 0 : index
    %1319 = vector.load %arg1[%c42_434, %c0_435] : memref<72x384xf32, #tpu.memory_space<vmem>>, vector<2x384xf32>
    %1320 = arith.index_cast %arg0 : i32 to index
    %c19_436 = arith.constant 19 : index
    %1321 = memref.load %arg2[%1320, %c19_436] : memref<2x36xf32, #tpu.memory_space<smem>>
    %1322 = vector.broadcast %1321 : f32 to vector<2x384xf32>
    %1323 = arith.mulf %1319, %1322 : vector<2x384xf32>
    %1324 = arith.addf %1318, %1323 : vector<2x384xf32>
    %c66_437 = arith.constant 66 : index
    %c0_438 = arith.constant 0 : index
    %1325 = vector.load %arg1[%c66_437, %c0_438] : memref<72x384xf32, #tpu.memory_space<vmem>>, vector<2x384xf32>
    %1326 = arith.index_cast %arg0 : i32 to index
    %c20_439 = arith.constant 20 : index
    %1327 = memref.load %arg2[%1326, %c20_439] : memref<2x36xf32, #tpu.memory_space<smem>>
    %1328 = vector.broadcast %1327 : f32 to vector<2x384xf32>
    %1329 = arith.mulf %1325, %1328 : vector<2x384xf32>
    %1330 = arith.addf %1324, %1329 : vector<2x384xf32>
    %c20_440 = arith.constant 20 : index
    %c0_441 = arith.constant 0 : index
    %1331 = vector.load %arg1[%c20_440, %c0_441] : memref<72x384xf32, #tpu.memory_space<vmem>>, vector<2x384xf32>
    %1332 = arith.index_cast %arg0 : i32 to index
    %c21_442 = arith.constant 21 : index
    %1333 = memref.load %arg2[%1332, %c21_442] : memref<2x36xf32, #tpu.memory_space<smem>>
    %1334 = vector.broadcast %1333 : f32 to vector<2x384xf32>
    %1335 = arith.mulf %1331, %1334 : vector<2x384xf32>
    %1336 = arith.addf %1330, %1335 : vector<2x384xf32>
    %c44_443 = arith.constant 44 : index
    %c0_444 = arith.constant 0 : index
    %1337 = vector.load %arg1[%c44_443, %c0_444] : memref<72x384xf32, #tpu.memory_space<vmem>>, vector<2x384xf32>
    %1338 = arith.index_cast %arg0 : i32 to index
    %c22_445 = arith.constant 22 : index
    %1339 = memref.load %arg2[%1338, %c22_445] : memref<2x36xf32, #tpu.memory_space<smem>>
    %1340 = vector.broadcast %1339 : f32 to vector<2x384xf32>
    %1341 = arith.mulf %1337, %1340 : vector<2x384xf32>
    %1342 = arith.addf %1336, %1341 : vector<2x384xf32>
    %c68_446 = arith.constant 68 : index
    %c0_447 = arith.constant 0 : index
    %1343 = vector.load %arg1[%c68_446, %c0_447] : memref<72x384xf32, #tpu.memory_space<vmem>>, vector<2x384xf32>
    %1344 = arith.index_cast %arg0 : i32 to index
    %c23_448 = arith.constant 23 : index
    %1345 = memref.load %arg2[%1344, %c23_448] : memref<2x36xf32, #tpu.memory_space<smem>>
    %1346 = vector.broadcast %1345 : f32 to vector<2x384xf32>
    %1347 = arith.mulf %1343, %1346 : vector<2x384xf32>
    %1348 = arith.addf %1342, %1347 : vector<2x384xf32>
    %c22_449 = arith.constant 22 : index
    %c0_450 = arith.constant 0 : index
    %1349 = vector.load %arg1[%c22_449, %c0_450] : memref<72x384xf32, #tpu.memory_space<vmem>>, vector<2x384xf32>
    %1350 = arith.index_cast %arg0 : i32 to index
    %c24_451 = arith.constant 24 : index
    %1351 = memref.load %arg2[%1350, %c24_451] : memref<2x36xf32, #tpu.memory_space<smem>>
    %1352 = vector.broadcast %1351 : f32 to vector<2x384xf32>
    %1353 = arith.mulf %1349, %1352 : vector<2x384xf32>
    %1354 = arith.addf %1348, %1353 : vector<2x384xf32>
    %c46_452 = arith.constant 46 : index
    %c0_453 = arith.constant 0 : index
    %1355 = vector.load %arg1[%c46_452, %c0_453] : memref<72x384xf32, #tpu.memory_space<vmem>>, vector<2x384xf32>
    %1356 = arith.index_cast %arg0 : i32 to index
    %c25_454 = arith.constant 25 : index
    %1357 = memref.load %arg2[%1356, %c25_454] : memref<2x36xf32, #tpu.memory_space<smem>>
    %1358 = vector.broadcast %1357 : f32 to vector<2x384xf32>
    %1359 = arith.mulf %1355, %1358 : vector<2x384xf32>
    %1360 = arith.addf %1354, %1359 : vector<2x384xf32>
    %c70_455 = arith.constant 70 : index
    %c0_456 = arith.constant 0 : index
    %1361 = vector.load %arg1[%c70_455, %c0_456] : memref<72x384xf32, #tpu.memory_space<vmem>>, vector<2x384xf32>
    %1362 = arith.index_cast %arg0 : i32 to index
    %c26_457 = arith.constant 26 : index
    %1363 = memref.load %arg2[%1362, %c26_457] : memref<2x36xf32, #tpu.memory_space<smem>>
    %1364 = vector.broadcast %1363 : f32 to vector<2x384xf32>
    %1365 = arith.mulf %1361, %1364 : vector<2x384xf32>
    %1366 = arith.addf %1360, %1365 : vector<2x384xf32>
    %cst_458 = arith.constant 0.000000e+00 : f32
    %1367 = vector.broadcast %cst_458 : f32 to vector<2x384xf32>
    %1368 = arith.maximumf %1366, %1367 : vector<2x384xf32>
    %1369 = arith.index_cast %arg0 : i32 to index
    %c11_459 = arith.constant 11 : index
    %1370 = memref.load %arg4[%1369, %c11_459] : memref<2x96xf32, #tpu.memory_space<smem>>
    %1371 = vector.broadcast %1370 : f32 to vector<2x384xf32>
    %1372 = arith.mulf %1368, %1371 : vector<2x384xf32>
    %1373 = arith.addf %1282, %1372 : vector<2x384xf32>
    %1374 = arith.index_cast %arg0 : i32 to index
    %c27_460 = arith.constant 27 : index
    %1375 = memref.load %arg4[%1374, %c27_460] : memref<2x96xf32, #tpu.memory_space<smem>>
    %1376 = vector.broadcast %1375 : f32 to vector<2x384xf32>
    %1377 = arith.mulf %1368, %1376 : vector<2x384xf32>
    %1378 = arith.addf %1287, %1377 : vector<2x384xf32>
    %1379 = arith.index_cast %arg0 : i32 to index
    %c43 = arith.constant 43 : index
    %1380 = memref.load %arg4[%1379, %c43] : memref<2x96xf32, #tpu.memory_space<smem>>
    %1381 = vector.broadcast %1380 : f32 to vector<2x384xf32>
    %1382 = arith.mulf %1368, %1381 : vector<2x384xf32>
    %1383 = arith.addf %1292, %1382 : vector<2x384xf32>
    %1384 = arith.index_cast %arg0 : i32 to index
    %c59 = arith.constant 59 : index
    %1385 = memref.load %arg4[%1384, %c59] : memref<2x96xf32, #tpu.memory_space<smem>>
    %1386 = vector.broadcast %1385 : f32 to vector<2x384xf32>
    %1387 = arith.mulf %1368, %1386 : vector<2x384xf32>
    %1388 = arith.addf %1297, %1387 : vector<2x384xf32>
    %1389 = arith.index_cast %arg0 : i32 to index
    %c75 = arith.constant 75 : index
    %1390 = memref.load %arg4[%1389, %c75] : memref<2x96xf32, #tpu.memory_space<smem>>
    %1391 = vector.broadcast %1390 : f32 to vector<2x384xf32>
    %1392 = arith.mulf %1368, %1391 : vector<2x384xf32>
    %1393 = arith.addf %1302, %1392 : vector<2x384xf32>
    %1394 = arith.index_cast %arg0 : i32 to index
    %c91 = arith.constant 91 : index
    %1395 = memref.load %arg4[%1394, %c91] : memref<2x96xf32, #tpu.memory_space<smem>>
    %1396 = vector.broadcast %1395 : f32 to vector<2x384xf32>
    %1397 = arith.mulf %1368, %1396 : vector<2x384xf32>
    %1398 = arith.addf %1307, %1397 : vector<2x384xf32>
    %cst_461 = arith.constant 0.000000e+00 : f32
    %1399 = vector.broadcast %cst_461 : f32 to vector<2x384xf32>
    %1400 = arith.index_cast %arg0 : i32 to index
    %c3_462 = arith.constant 3 : index
    %1401 = memref.load %arg3[%1400, %c3_462] : memref<2x4xf32, #tpu.memory_space<smem>>
    %1402 = vector.broadcast %1401 : f32 to vector<2x384xf32>
    %1403 = arith.addf %1399, %1402 : vector<2x384xf32>
    %c18_463 = arith.constant 18 : index
    %c0_464 = arith.constant 0 : index
    %1404 = vector.load %arg1[%c18_463, %c0_464] : memref<72x384xf32, #tpu.memory_space<vmem>>, vector<2x384xf32>
    %1405 = arith.index_cast %arg0 : i32 to index
    %c27_465 = arith.constant 27 : index
    %1406 = memref.load %arg2[%1405, %c27_465] : memref<2x36xf32, #tpu.memory_space<smem>>
    %1407 = vector.broadcast %1406 : f32 to vector<2x384xf32>
    %1408 = arith.mulf %1404, %1407 : vector<2x384xf32>
    %1409 = arith.addf %1403, %1408 : vector<2x384xf32>
    %c42_466 = arith.constant 42 : index
    %c0_467 = arith.constant 0 : index
    %1410 = vector.load %arg1[%c42_466, %c0_467] : memref<72x384xf32, #tpu.memory_space<vmem>>, vector<2x384xf32>
    %1411 = arith.index_cast %arg0 : i32 to index
    %c28_468 = arith.constant 28 : index
    %1412 = memref.load %arg2[%1411, %c28_468] : memref<2x36xf32, #tpu.memory_space<smem>>
    %1413 = vector.broadcast %1412 : f32 to vector<2x384xf32>
    %1414 = arith.mulf %1410, %1413 : vector<2x384xf32>
    %1415 = arith.addf %1409, %1414 : vector<2x384xf32>
    %c66_469 = arith.constant 66 : index
    %c0_470 = arith.constant 0 : index
    %1416 = vector.load %arg1[%c66_469, %c0_470] : memref<72x384xf32, #tpu.memory_space<vmem>>, vector<2x384xf32>
    %1417 = arith.index_cast %arg0 : i32 to index
    %c29_471 = arith.constant 29 : index
    %1418 = memref.load %arg2[%1417, %c29_471] : memref<2x36xf32, #tpu.memory_space<smem>>
    %1419 = vector.broadcast %1418 : f32 to vector<2x384xf32>
    %1420 = arith.mulf %1416, %1419 : vector<2x384xf32>
    %1421 = arith.addf %1415, %1420 : vector<2x384xf32>
    %c20_472 = arith.constant 20 : index
    %c0_473 = arith.constant 0 : index
    %1422 = vector.load %arg1[%c20_472, %c0_473] : memref<72x384xf32, #tpu.memory_space<vmem>>, vector<2x384xf32>
    %1423 = arith.index_cast %arg0 : i32 to index
    %c30_474 = arith.constant 30 : index
    %1424 = memref.load %arg2[%1423, %c30_474] : memref<2x36xf32, #tpu.memory_space<smem>>
    %1425 = vector.broadcast %1424 : f32 to vector<2x384xf32>
    %1426 = arith.mulf %1422, %1425 : vector<2x384xf32>
    %1427 = arith.addf %1421, %1426 : vector<2x384xf32>
    %c44_475 = arith.constant 44 : index
    %c0_476 = arith.constant 0 : index
    %1428 = vector.load %arg1[%c44_475, %c0_476] : memref<72x384xf32, #tpu.memory_space<vmem>>, vector<2x384xf32>
    %1429 = arith.index_cast %arg0 : i32 to index
    %c31_477 = arith.constant 31 : index
    %1430 = memref.load %arg2[%1429, %c31_477] : memref<2x36xf32, #tpu.memory_space<smem>>
    %1431 = vector.broadcast %1430 : f32 to vector<2x384xf32>
    %1432 = arith.mulf %1428, %1431 : vector<2x384xf32>
    %1433 = arith.addf %1427, %1432 : vector<2x384xf32>
    %c68_478 = arith.constant 68 : index
    %c0_479 = arith.constant 0 : index
    %1434 = vector.load %arg1[%c68_478, %c0_479] : memref<72x384xf32, #tpu.memory_space<vmem>>, vector<2x384xf32>
    %1435 = arith.index_cast %arg0 : i32 to index
    %c32_480 = arith.constant 32 : index
    %1436 = memref.load %arg2[%1435, %c32_480] : memref<2x36xf32, #tpu.memory_space<smem>>
    %1437 = vector.broadcast %1436 : f32 to vector<2x384xf32>
    %1438 = arith.mulf %1434, %1437 : vector<2x384xf32>
    %1439 = arith.addf %1433, %1438 : vector<2x384xf32>
    %c22_481 = arith.constant 22 : index
    %c0_482 = arith.constant 0 : index
    %1440 = vector.load %arg1[%c22_481, %c0_482] : memref<72x384xf32, #tpu.memory_space<vmem>>, vector<2x384xf32>
    %1441 = arith.index_cast %arg0 : i32 to index
    %c33_483 = arith.constant 33 : index
    %1442 = memref.load %arg2[%1441, %c33_483] : memref<2x36xf32, #tpu.memory_space<smem>>
    %1443 = vector.broadcast %1442 : f32 to vector<2x384xf32>
    %1444 = arith.mulf %1440, %1443 : vector<2x384xf32>
    %1445 = arith.addf %1439, %1444 : vector<2x384xf32>
    %c46_484 = arith.constant 46 : index
    %c0_485 = arith.constant 0 : index
    %1446 = vector.load %arg1[%c46_484, %c0_485] : memref<72x384xf32, #tpu.memory_space<vmem>>, vector<2x384xf32>
    %1447 = arith.index_cast %arg0 : i32 to index
    %c34_486 = arith.constant 34 : index
    %1448 = memref.load %arg2[%1447, %c34_486] : memref<2x36xf32, #tpu.memory_space<smem>>
    %1449 = vector.broadcast %1448 : f32 to vector<2x384xf32>
    %1450 = arith.mulf %1446, %1449 : vector<2x384xf32>
    %1451 = arith.addf %1445, %1450 : vector<2x384xf32>
    %c70_487 = arith.constant 70 : index
    %c0_488 = arith.constant 0 : index
    %1452 = vector.load %arg1[%c70_487, %c0_488] : memref<72x384xf32, #tpu.memory_space<vmem>>, vector<2x384xf32>
    %1453 = arith.index_cast %arg0 : i32 to index
    %c35_489 = arith.constant 35 : index
    %1454 = memref.load %arg2[%1453, %c35_489] : memref<2x36xf32, #tpu.memory_space<smem>>
    %1455 = vector.broadcast %1454 : f32 to vector<2x384xf32>
    %1456 = arith.mulf %1452, %1455 : vector<2x384xf32>
    %1457 = arith.addf %1451, %1456 : vector<2x384xf32>
    %cst_490 = arith.constant 0.000000e+00 : f32
    %1458 = vector.broadcast %cst_490 : f32 to vector<2x384xf32>
    %1459 = arith.maximumf %1457, %1458 : vector<2x384xf32>
    %1460 = arith.index_cast %arg0 : i32 to index
    %c15_491 = arith.constant 15 : index
    %1461 = memref.load %arg4[%1460, %c15_491] : memref<2x96xf32, #tpu.memory_space<smem>>
    %1462 = vector.broadcast %1461 : f32 to vector<2x384xf32>
    %1463 = arith.mulf %1459, %1462 : vector<2x384xf32>
    %1464 = arith.addf %1373, %1463 : vector<2x384xf32>
    %1465 = arith.index_cast %arg0 : i32 to index
    %c31_492 = arith.constant 31 : index
    %1466 = memref.load %arg4[%1465, %c31_492] : memref<2x96xf32, #tpu.memory_space<smem>>
    %1467 = vector.broadcast %1466 : f32 to vector<2x384xf32>
    %1468 = arith.mulf %1459, %1467 : vector<2x384xf32>
    %1469 = arith.addf %1378, %1468 : vector<2x384xf32>
    %1470 = arith.index_cast %arg0 : i32 to index
    %c47 = arith.constant 47 : index
    %1471 = memref.load %arg4[%1470, %c47] : memref<2x96xf32, #tpu.memory_space<smem>>
    %1472 = vector.broadcast %1471 : f32 to vector<2x384xf32>
    %1473 = arith.mulf %1459, %1472 : vector<2x384xf32>
    %1474 = arith.addf %1383, %1473 : vector<2x384xf32>
    %1475 = arith.index_cast %arg0 : i32 to index
    %c63 = arith.constant 63 : index
    %1476 = memref.load %arg4[%1475, %c63] : memref<2x96xf32, #tpu.memory_space<smem>>
    %1477 = vector.broadcast %1476 : f32 to vector<2x384xf32>
    %1478 = arith.mulf %1459, %1477 : vector<2x384xf32>
    %1479 = arith.addf %1388, %1478 : vector<2x384xf32>
    %1480 = arith.index_cast %arg0 : i32 to index
    %c79 = arith.constant 79 : index
    %1481 = memref.load %arg4[%1480, %c79] : memref<2x96xf32, #tpu.memory_space<smem>>
    %1482 = vector.broadcast %1481 : f32 to vector<2x384xf32>
    %1483 = arith.mulf %1459, %1482 : vector<2x384xf32>
    %1484 = arith.addf %1393, %1483 : vector<2x384xf32>
    %1485 = arith.index_cast %arg0 : i32 to index
    %c95 = arith.constant 95 : index
    %1486 = memref.load %arg4[%1485, %c95] : memref<2x96xf32, #tpu.memory_space<smem>>
    %1487 = vector.broadcast %1486 : f32 to vector<2x384xf32>
    %1488 = arith.mulf %1459, %1487 : vector<2x384xf32>
    %1489 = arith.addf %1398, %1488 : vector<2x384xf32>
    %c0_i32_493 = arith.constant 0 : i32
    %c0_i32_494 = arith.constant 0 : i32
    %c0_i32_495 = arith.constant 0 : i32
    %1490 = tpu.memref_slice %arg6[%arg0, %c0_i32_494, %c0_i32_495] : memref<2x2304x128xbf16, #tpu.memory_space<any>> -> memref<1x2304x128xbf16, #tpu.memory_space<any>>
    %1491 = tpu.memref_squeeze %1490 : memref<1x2304x128xbf16, #tpu.memory_space<any>> -> memref<2304x128xbf16, #tpu.memory_space<any>>
    %1492 = tpu.memref_slice %arg12[%c0_i32_493] : memref<1x!tpu.dma_semaphore, #tpu.memory_space<semaphore_mem>> -> memref<1x!tpu.dma_semaphore, #tpu.memory_space<semaphore_mem>>
    %1493 = tpu.memref_squeeze %1492 : memref<1x!tpu.dma_semaphore, #tpu.memory_space<semaphore_mem>> -> memref<!tpu.dma_semaphore, #tpu.memory_space<semaphore_mem>>
    tpu.wait_dma2 semaphore(%1493 : memref<!tpu.dma_semaphore, #tpu.memory_space<semaphore_mem>>) src(%1491 : memref<2304x128xbf16, #tpu.memory_space<any>>) dst(%arg11 : memref<2304x128xbf16, #tpu.memory_space<vmem>>)
    %cst_496 = arith.constant 0.000000e+00 : f32
    %1494 = vector.broadcast %cst_496 : f32 to vector<2x128xf32>
    %cst_497 = arith.constant 0.000000e+00 : f32
    %1495 = vector.broadcast %cst_497 : f32 to vector<2x384xf32>
    %1496 = arith.maximumf %1464, %1495 : vector<2x384xf32>
    %1497 = arith.truncf %1496 : vector<2x384xf32> to vector<2x384xbf16>
    %c0_498 = arith.constant 0 : index
    %c0_499 = arith.constant 0 : index
    %1498 = vector.load %arg11[%c0_498, %c0_499] : memref<2304x128xbf16, #tpu.memory_space<vmem>>, vector<384x128xbf16>
    %cst_500 = arith.constant dense<0.000000e+00> : vector<2x128xf32>
    %1499 = tpu.matmul %1497, %1498, %cst_500 {dimension_numbers = #tpu.dot_dimension_numbers<[1], [0], [0], [1], [0, 0, 1, 1], [], []>} : vector<2x384xbf16>, vector<384x128xbf16>, vector<2x128xf32> -> vector<2x128xf32>
    %1500 = arith.addf %1494, %1499 : vector<2x128xf32>
    %cst_501 = arith.constant 0.000000e+00 : f32
    %1501 = vector.broadcast %cst_501 : f32 to vector<2x384xf32>
    %1502 = arith.maximumf %1469, %1501 : vector<2x384xf32>
    %1503 = arith.truncf %1502 : vector<2x384xf32> to vector<2x384xbf16>
    %c384 = arith.constant 384 : index
    %c0_502 = arith.constant 0 : index
    %1504 = vector.load %arg11[%c384, %c0_502] : memref<2304x128xbf16, #tpu.memory_space<vmem>>, vector<384x128xbf16>
    %cst_503 = arith.constant dense<0.000000e+00> : vector<2x128xf32>
    %1505 = tpu.matmul %1503, %1504, %cst_503 {dimension_numbers = #tpu.dot_dimension_numbers<[1], [0], [0], [1], [0, 0, 1, 1], [], []>} : vector<2x384xbf16>, vector<384x128xbf16>, vector<2x128xf32> -> vector<2x128xf32>
    %1506 = arith.addf %1500, %1505 : vector<2x128xf32>
    %cst_504 = arith.constant 0.000000e+00 : f32
    %1507 = vector.broadcast %cst_504 : f32 to vector<2x384xf32>
    %1508 = arith.maximumf %1474, %1507 : vector<2x384xf32>
    %1509 = arith.truncf %1508 : vector<2x384xf32> to vector<2x384xbf16>
    %c768 = arith.constant 768 : index
    %c0_505 = arith.constant 0 : index
    %1510 = vector.load %arg11[%c768, %c0_505] : memref<2304x128xbf16, #tpu.memory_space<vmem>>, vector<384x128xbf16>
    %cst_506 = arith.constant dense<0.000000e+00> : vector<2x128xf32>
    %1511 = tpu.matmul %1509, %1510, %cst_506 {dimension_numbers = #tpu.dot_dimension_numbers<[1], [0], [0], [1], [0, 0, 1, 1], [], []>} : vector<2x384xbf16>, vector<384x128xbf16>, vector<2x128xf32> -> vector<2x128xf32>
    %1512 = arith.addf %1506, %1511 : vector<2x128xf32>
    %cst_507 = arith.constant 0.000000e+00 : f32
    %1513 = vector.broadcast %cst_507 : f32 to vector<2x384xf32>
    %1514 = arith.maximumf %1479, %1513 : vector<2x384xf32>
    %1515 = arith.truncf %1514 : vector<2x384xf32> to vector<2x384xbf16>
    %c1152 = arith.constant 1152 : index
    %c0_508 = arith.constant 0 : index
    %1516 = vector.load %arg11[%c1152, %c0_508] : memref<2304x128xbf16, #tpu.memory_space<vmem>>, vector<384x128xbf16>
    %cst_509 = arith.constant dense<0.000000e+00> : vector<2x128xf32>
    %1517 = tpu.matmul %1515, %1516, %cst_509 {dimension_numbers = #tpu.dot_dimension_numbers<[1], [0], [0], [1], [0, 0, 1, 1], [], []>} : vector<2x384xbf16>, vector<384x128xbf16>, vector<2x128xf32> -> vector<2x128xf32>
    %1518 = arith.addf %1512, %1517 : vector<2x128xf32>
    %cst_510 = arith.constant 0.000000e+00 : f32
    %1519 = vector.broadcast %cst_510 : f32 to vector<2x384xf32>
    %1520 = arith.maximumf %1484, %1519 : vector<2x384xf32>
    %1521 = arith.truncf %1520 : vector<2x384xf32> to vector<2x384xbf16>
    %c1536 = arith.constant 1536 : index
    %c0_511 = arith.constant 0 : index
    %1522 = vector.load %arg11[%c1536, %c0_511] : memref<2304x128xbf16, #tpu.memory_space<vmem>>, vector<384x128xbf16>
    %cst_512 = arith.constant dense<0.000000e+00> : vector<2x128xf32>
    %1523 = tpu.matmul %1521, %1522, %cst_512 {dimension_numbers = #tpu.dot_dimension_numbers<[1], [0], [0], [1], [0, 0, 1, 1], [], []>} : vector<2x384xbf16>, vector<384x128xbf16>, vector<2x128xf32> -> vector<2x128xf32>
    %1524 = arith.addf %1518, %1523 : vector<2x128xf32>
    %cst_513 = arith.constant 0.000000e+00 : f32
    %1525 = vector.broadcast %cst_513 : f32 to vector<2x384xf32>
    %1526 = arith.maximumf %1489, %1525 : vector<2x384xf32>
    %1527 = arith.truncf %1526 : vector<2x384xf32> to vector<2x384xbf16>
    %c1920 = arith.constant 1920 : index
    %c0_514 = arith.constant 0 : index
    %1528 = vector.load %arg11[%c1920, %c0_514] : memref<2304x128xbf16, #tpu.memory_space<vmem>>, vector<384x128xbf16>
    %cst_515 = arith.constant dense<0.000000e+00> : vector<2x128xf32>
    %1529 = tpu.matmul %1527, %1528, %cst_515 {dimension_numbers = #tpu.dot_dimension_numbers<[1], [0], [0], [1], [0, 0, 1, 1], [], []>} : vector<2x384xbf16>, vector<384x128xbf16>, vector<2x128xf32> -> vector<2x128xf32>
    %1530 = arith.addf %1524, %1529 : vector<2x128xf32>
    %c0_516 = arith.constant 0 : index
    %c0_517 = arith.constant 0 : index
    %c0_518 = arith.constant 0 : index
    %1531 = vector.load %arg7[%c0_516, %c0_517, %c0_518] : memref<1x1x128xf32, #tpu.memory_space<vmem>>, vector<1x1x128xf32>
    %1532 = vector.shape_cast %1531 : vector<1x1x128xf32> to vector<1x128xf32>
    %1533 = vector.broadcast %1532 : vector<1x128xf32> to vector<2x128xf32>
    %1534 = arith.addf %1530, %1533 : vector<2x128xf32>
    %cst_519 = arith.constant 0.000000e+00 : f32
    %1535 = vector.broadcast %cst_519 : f32 to vector<2x128xf32>
    %1536 = arith.maximumf %1534, %1535 : vector<2x128xf32>
    %1537 = arith.truncf %1536 : vector<2x128xf32> to vector<2x128xbf16>
    %c0_520 = arith.constant 0 : index
    %c0_521 = arith.constant 0 : index
    %c0_522 = arith.constant 0 : index
    %1538 = vector.load %arg8[%c0_520, %c0_521, %c0_522] : memref<1x128x128xbf16, #tpu.memory_space<vmem>>, vector<1x128x128xbf16>
    %1539 = vector.shape_cast %1538 : vector<1x128x128xbf16> to vector<128x128xbf16>
    %cst_523 = arith.constant dense<0.000000e+00> : vector<2x128xf32>
    %1540 = tpu.matmul %1537, %1539, %cst_523 {dimension_numbers = #tpu.dot_dimension_numbers<[1], [0], [0], [1], [0, 0, 1, 1], [], []>} : vector<2x128xbf16>, vector<128x128xbf16>, vector<2x128xf32> -> vector<2x128xf32>
    %c0_524 = arith.constant 0 : index
    %c0_525 = arith.constant 0 : index
    %c0_526 = arith.constant 0 : index
    %1541 = vector.load %arg9[%c0_524, %c0_525, %c0_526] : memref<1x1x128xf32, #tpu.memory_space<vmem>>, vector<1x1x128xf32>
    %1542 = vector.shape_cast %1541 : vector<1x1x128xf32> to vector<1x128xf32>
    %1543 = vector.broadcast %1542 : vector<1x128xf32> to vector<2x128xf32>
    %1544 = arith.addf %1540, %1543 : vector<2x128xf32>
    %c0_527 = arith.constant 0 : index
    %c0_528 = arith.constant 0 : index
    %c0_529 = arith.constant 0 : index
    %1545 = vector.load %arg10[%c0_527, %c0_528, %c0_529] : memref<1x8x128xf32, #tpu.memory_space<vmem>>, vector<1x2x128xf32>
    %1546 = vector.shape_cast %1545 : vector<1x2x128xf32> to vector<2x128xf32>
    %1547 = vector.shape_cast %1544 : vector<2x128xf32> to vector<1x2x128xf32>
    tpu.vector_store %arg10[%c0_527, %c0_528, %c0_529], %1547 {strides = array<i32>} : memref<1x8x128xf32, #tpu.memory_space<vmem>>, vector<1x2x128xf32>,
    return
  }
  func.func @transform_0(%arg0: i32) -> (i32, i32) {
    %c0_i32 = arith.constant 0 : i32
    %c0_i32_0 = arith.constant 0 : i32
    %c0_i32_1 = arith.constant 0 : i32
    return %c0_i32, %c0_i32_0 : i32, i32
  }
  func.func @transform_1(%arg0: i32) -> (i32, i32) {
    %c0_i32 = arith.constant 0 : i32
    %c0_i32_0 = arith.constant 0 : i32
    %c0_i32_1 = arith.constant 0 : i32
    return %c0_i32, %c0_i32_0 : i32, i32
  }
  func.func @transform_2(%arg0: i32) -> (i32, i32) {
    %c0_i32 = arith.constant 0 : i32
    %c0_i32_0 = arith.constant 0 : i32
    %c0_i32_1 = arith.constant 0 : i32
    return %c0_i32, %c0_i32_0 : i32, i32
  }
  func.func @transform_3(%arg0: i32) -> (i32, i32) {
    %c0_i32 = arith.constant 0 : i32
    %c0_i32_0 = arith.constant 0 : i32
    %c0_i32_1 = arith.constant 0 : i32
    return %c0_i32, %c0_i32_0 : i32, i32
  }
  func.func @transform_4(%arg0: i32) -> (i32, i32) {
    %c0_i32 = arith.constant 0 : i32
    %c0_i32_0 = arith.constant 0 : i32
    %c0_i32_1 = arith.constant 0 : i32
    return %c0_i32, %c0_i32_0 : i32, i32
  }
  func.func @transform_6(%arg0: i32) -> (i32, i32, i32) {
    %c0_i32 = arith.constant 0 : i32
    %c0_i32_0 = arith.constant 0 : i32
    %c0_i32_1 = arith.constant 0 : i32
    return %arg0, %c0_i32, %c0_i32_0 : i32, i32, i32
  }
  func.func @transform_7(%arg0: i32) -> (i32, i32, i32) {
    %c0_i32 = arith.constant 0 : i32
    %c0_i32_0 = arith.constant 0 : i32
    %c0_i32_1 = arith.constant 0 : i32
    return %arg0, %c0_i32, %c0_i32_0 : i32, i32, i32
  }
  func.func @transform_8(%arg0: i32) -> (i32, i32, i32) {
    %c0_i32 = arith.constant 0 : i32
    %c0_i32_0 = arith.constant 0 : i32
    %c0_i32_1 = arith.constant 0 : i32
    return %arg0, %c0_i32, %c0_i32_0 : i32, i32, i32
  }
  func.func @transform_9(%arg0: i32) -> (i32, i32, i32) {
    %c0_i32 = arith.constant 0 : i32
    %c0_i32_0 = arith.constant 0 : i32
    %c0_i32_1 = arith.constant 0 : i32
    return %arg0, %c0_i32, %c0_i32_0 : i32, i32, i32
  }
}

</mosaic_0001>

<llo_original>
// kernel: a3c_forward.1
$region0: #{a3c_forward.1}
  #allocation0 [shape = 'u32[]', space=smem, size = 0x4, offset = 0x4, fixed_abs, tag = 'smem constant byte address 0x4 - core index']
  #allocation1 [shape = 'u32[144,128]{1,0:T(1,128)}', space=vmem, size = 0x12000, scoped, tag = 'internal scratch']
  #allocation2 [shape = 'bf16[2304,128]{1,0:T(8,128)(2,1)}', space=vmem, size = 0x90000, scoped, tag = 'scratch operand']
  #allocation3 [shape = 's32[1]{0}', space=sflag, size = 0x4, scoped, tag = 'scratch operand']
  #allocation11 [shape = 's32[]', space=sflag, size = 0x4, offset = 0, fixed_abs, tag = 'sflag constant byte address 0x0 - dummy sync flag']
  %s0 = inlined_call_operand.vmem [shape: f32[72,384], index: 0, kind: input, shape index: {}]
  %s1 = inlined_call_operand.vmem [shape: f32[2,36], index: 1, kind: input, shape index: {}]
  %s2 = inlined_call_operand.vmem [shape: f32[2,4], index: 2, kind: input, shape index: {}]
  %s3 = inlined_call_operand.vmem [shape: f32[2,96], index: 3, kind: input, shape index: {}]
  %s4 = inlined_call_operand.vmem [shape: f32[2,6], index: 4, kind: input, shape index: {}]
  %s5 = inlined_call_operand.vmem [shape: bf16[2,2304,128], index: 5, kind: input, shape index: {}]
  %s6 = inlined_call_operand.vmem [shape: f32[2,1,128], index: 6, kind: input, shape index: {}]
  %s7 = inlined_call_operand.vmem [shape: bf16[2,128,128], index: 7, kind: input, shape index: {}]
  %s8 = inlined_call_operand.vmem [shape: f32[2,1,128], index: 8, kind: input, shape index: {}]
  %s9 = inlined_call_operand.vmem [shape: f32[2,8,128], index: 9, kind: output, shape index: {}]
  %s10 = sld [smem:[#allocation0]]
  $region115: #{a3c_forward.1} parent=0
    _
  %s12 = ssub.s32 1, %s10
  %s13 = scalar_select 0, %s12, %s10
  $region1: #{a3c_forward.1} parent=0
    #allocation4 [shape = 'u8[1024]{0}', space=smem, size = 0x400, scoped, tag = 'input window, operand 1, single buffered']
    #allocation5 [shape = 's32[2]{0}', space=sflag, size = 0x8, scoped, tag = 'scoped memory for a3c_forward.1']
    #allocation6 [shape = 'u8[1024]{0}', space=smem, size = 0x400, scoped, tag = 'input window, operand 2, single buffered']
    #allocation7 [shape = 's32[1]{0}', space=sflag, size = 0x4, scoped, tag = 'scoped memory for a3c_forward.1']
    #allocation8 [shape = 'u8[1024]{0}', space=smem, size = 0x400, scoped, tag = 'input window, operand 3, single buffered']
    #allocation9 [shape = 'u8[1024]{0}', space=smem, size = 0x400, scoped, tag = 'input window, operand 4, single buffered']
    #allocation10 [shape = 's32[1]{0}', space=sflag, size = 0x4, scoped, tag = 'scoped memory for a3c_forward.1']
    %14 = vsyncpa [#allocation5], 0
    %15 = vsyncpa [#allocation7], 0
    %16 = vsyncpa [#allocation10], 0
    loop: start=0, step=1, limit=4
    $region2: #{a3c_forward.1} parent=1 // loop_pre_header
      _
    $region3: #{a3c_forward.1} parent=1 // loop_header
      %s18 = sphi 0, %s22
      %p19 = scmp.ge.s32.totalorder %s18, 4
      %s26 = sphi 0, %s26
      %s28 = sphi 0, %s26
      %s29 = sphi 0, %s28
      %s43 = sphi 0, %s29
      %s47 = sphi 0, %s47
      %s49 = sphi 0, %s47
      %s50 = sphi 0, %s49
      %s64 = sphi 0, %s50
      %s68 = sphi 0, %s68
      %s70 = sphi 0, %s68
      %s71 = sphi 0, %s70
      %s85 = sphi 0, %s71
      %s89 = sphi 0, %s89
      %s91 = sphi 0, %s89
      %s92 = sphi 0, %s91
      %s106 = sphi 0, %s92
      %s110 = sphi 0, %s110
      %s112 = sphi 0, %s110
      %s113 = sphi 0, %s112
      %s127 = sphi 0, %s113
      %s133 = sphi 0, %s135
      %s136 = sphi 0, %s133
      %s137 = sphi 0, %s136
      %s153 = sphi 0, %s137
      %s159 = sphi 0, %s161
      %s162 = sphi 0, %s159
      %s163 = sphi 0, %s162
      %s179 = sphi 0, %s163
      %s185 = sphi 0, %s187
      %s188 = sphi 0, %s185
      %s189 = sphi 0, %s188
      %s205 = sphi 0, %s189
      %s211 = sphi 0, %s213
      %s214 = sphi 0, %s211
      %s215 = sphi 0, %s214
      %s231 = sphi 0, %s215
    $region4: #{a3c_forward.1} parent=1 // loop_header_branch
      %21 = sbr.rel (%p19) target = $region8
    $region5: #{a3c_forward.1} parent=1 // loop_body
      %s23 = ssub.s32 %s18, 1
      %s24 = ssub.s32 %s18, 2
      %s25 = sadd.s32 %s18, 1
      %s27 = sadd.s32 %s26, 1
      %p30 = scmp.eq.s32.totalorder %s18, 1
      %p31 = scmp.ne.s32.totalorder %s26, %s28
      %p32 = scmp.eq.s32.totalorder %s18, 0
      %p33 = por %p31, %p32
      %p34 = scmp.ne.s32.totalorder %s26, %s28
      %p35 = scmp.eq.s32.totalorder %s23, 1
      %p36 = por %p34, %p35
      %p37 = scmp.ne.s32.totalorder %s28, %s29
      %p38 = scmp.eq.s32.totalorder %s23, 0
      %p39 = por %p37, %p38
      %p40 = scmp.ne.s32.totalorder %s28, %s29
      %p41 = scmp.eq.s32.totalorder %s24, 1
      %p42 = por %p40, %p41
      %p44 = scmp.ne.s32.totalorder %s29, %s43
      %p45 = scmp.eq.s32.totalorder %s24, 0
      %p46 = por %p44, %p45
      %s48 = sadd.s32 %s47, 1
      %p51 = scmp.eq.s32.totalorder %s18, 1
      %p52 = scmp.ne.s32.totalorder %s47, %s49
      %p53 = scmp.eq.s32.totalorder %s18, 0
      %p54 = por %p52, %p53
      %p55 = scmp.ne.s32.totalorder %s47, %s49
      %p56 = scmp.eq.s32.totalorder %s23, 1
      %p57 = por %p55, %p56
      %p58 = scmp.ne.s32.totalorder %s49, %s50
      %p59 = scmp.eq.s32.totalorder %s23, 0
      %p60 = por %p58, %p59
      %p61 = scmp.ne.s32.totalorder %s49, %s50
      %p62 = scmp.eq.s32.totalorder %s24, 1
      %p63 = por %p61, %p62
      %p65 = scmp.ne.s32.totalorder %s50, %s64
      %p66 = scmp.eq.s32.totalorder %s24, 0
      %p67 = por %p65, %p66
      %s69 = sadd.s32 %s68, 1
      %p72 = scmp.eq.s32.totalorder %s18, 1
      %p73 = scmp.ne.s32.totalorder %s68, %s70
      %p74 = scmp.eq.s32.totalorder %s18, 0
      %p75 = por %p73, %p74
      %p76 = scmp.ne.s32.totalorder %s68, %s70
      %p77 = scmp.eq.s32.totalorder %s23, 1
      %p78 = por %p76, %p77
      %p79 = scmp.ne.s32.totalorder %s70, %s71
      %p80 = scmp.eq.s32.totalorder %s23, 0
      %p81 = por %p79, %p80
      %p82 = scmp.ne.s32.totalorder %s70, %s71
      %p83 = scmp.eq.s32.totalorder %s24, 1
      %p84 = por %p82, %p83
      %p86 = scmp.ne.s32.totalorder %s71, %s85
      %p87 = scmp.eq.s32.totalorder %s24, 0
      %p88 = por %p86, %p87
      %s90 = sadd.s32 %s89, 1
      %p93 = scmp.eq.s32.totalorder %s18, 1
      %p94 = scmp.ne.s32.totalorder %s89, %s91
      %p95 = scmp.eq.s32.totalorder %s18, 0
      %p96 = por %p94, %p95
      %p97 = scmp.ne.s32.totalorder %s89, %s91
      %p98 = scmp.eq.s32.totalorder %s23, 1
      %p99 = por %p97, %p98
      %p100 = scmp.ne.s32.totalorder %s91, %s92
      %p101 = scmp.eq.s32.totalorder %s23, 0
      %p102 = por %p100, %p101
      %p103 = scmp.ne.s32.totalorder %s91, %s92
      %p104 = scmp.eq.s32.totalorder %s24, 1
      %p105 = por %p103, %p104
      %p107 = scmp.ne.s32.totalorder %s92, %s106
      %p108 = scmp.eq.s32.totalorder %s24, 0
      %p109 = por %p107, %p108
      %s111 = sadd.s32 %s110, 1
      %p114 = scmp.eq.s32.totalorder %s18, 1
      %p115 = scmp.ne.s32.totalorder %s110, %s112
      %p116 = scmp.eq.s32.totalorder %s18, 0
      %p117 = por %p115, %p116
      %p118 = scmp.ne.s32.totalorder %s110, %s112
      %p119 = scmp.eq.s32.totalorder %s23, 1
      %p120 = por %p118, %p119
      %p121 = scmp.ne.s32.totalorder %s112, %s113
      %p122 = scmp.eq.s32.totalorder %s23, 0
      %p123 = por %p121, %p122
      %p124 = scmp.ne.s32.totalorder %s112, %s113
      %p125 = scmp.eq.s32.totalorder %s24, 1
      %p126 = por %p124, %p125
      %p128 = scmp.ne.s32.totalorder %s113, %s127
      %p129 = scmp.eq.s32.totalorder %s24, 0
      %p130 = por %p128, %p129
      %s131 = ssub.s32 %s18, %s25
      %p132 = scmp.eq.s32.totalorder %s131, 0
      %s134 = sadd.s32 %s133, 1
      %s135 = scalar_select %p132, %s133, %s134
      %p138 = pneg %p132
      %p139 = scmp.eq.s32.totalorder %s18, 1
      %p140 = por %p138, %p139
      %p141 = scmp.ne.s32.totalorder %s133, %s136
      %p142 = scmp.eq.s32.totalorder %s18, 0
      %p143 = por %p141, %p142
      %p144 = scmp.ne.s32.totalorder %s133, %s136
      %p145 = scmp.eq.s32.totalorder %s23, 1
      %p146 = por %p144, %p145
      %p147 = scmp.ne.s32.totalorder %s136, %s137
      %p148 = scmp.eq.s32.totalorder %s23, 0
      %p149 = por %p147, %p148
      %p150 = scmp.ne.s32.totalorder %s136, %s137
      %p151 = scmp.eq.s32.totalorder %s24, 1
      %p152 = por %p150, %p151
      %p154 = scmp.ne.s32.totalorder %s137, %s153
      %p155 = scmp.eq.s32.totalorder %s24, 0
      %p156 = por %p154, %p155
      %s157 = ssub.s32 %s18, %s25
      %p158 = scmp.eq.s32.totalorder %s157, 0
      %s160 = sadd.s32 %s159, 1
      %s161 = scalar_select %p158, %s159, %s160
      %p164 = pneg %p158
      %p165 = scmp.eq.s32.totalorder %s18, 1
      %p166 = por %p164, %p165
      %p167 = scmp.ne.s32.totalorder %s159, %s162
      %p168 = scmp.eq.s32.totalorder %s18, 0
      %p169 = por %p167, %p168
      %p170 = scmp.ne.s32.totalorder %s159, %s162
      %p171 = scmp.eq.s32.totalorder %s23, 1
      %p172 = por %p170, %p171
      %p173 = scmp.ne.s32.totalorder %s162, %s163
      %p174 = scmp.eq.s32.totalorder %s23, 0
      %p175 = por %p173, %p174
      %p176 = scmp.ne.s32.totalorder %s162, %s163
      %p177 = scmp.eq.s32.totalorder %s24, 1
      %p178 = por %p176, %p177
      %p180 = scmp.ne.s32.totalorder %s163, %s179
      %p181 = scmp.eq.s32.totalorder %s24, 0
      %p182 = por %p180, %p181
      %s183 = ssub.s32 %s18, %s25
      %p184 = scmp.eq.s32.totalorder %s183, 0
      %s186 = sadd.s32 %s185, 1
      %s187 = scalar_select %p184, %s185, %s186
      %p190 = pneg %p184
      %p191 = scmp.eq.s32.totalorder %s18, 1
      %p192 = por %p190, %p191
      %p193 = scmp.ne.s32.totalorder %s185, %s188
      %p194 = scmp.eq.s32.totalorder %s18, 0
      %p195 = por %p193, %p194
      %p196 = scmp.ne.s32.totalorder %s185, %s188
      %p197 = scmp.eq.s32.totalorder %s23, 1
      %p198 = por %p196, %p197
      %p199 = scmp.ne.s32.totalorder %s188, %s189
      %p200 = scmp.eq.s32.totalorder %s23, 0
      %p201 = por %p199, %p200
      %p202 = scmp.ne.s32.totalorder %s188, %s189
      %p203 = scmp.eq.s32.totalorder %s24, 1
      %p204 = por %p202, %p203
      %p206 = scmp.ne.s32.totalorder %s189, %s205
      %p207 = scmp.eq.s32.totalorder %s24, 0
      %p208 = por %p206, %p207
      %s209 = ssub.s32 %s18, %s25
      %p210 = scmp.eq.s32.totalorder %s209, 0
      %s212 = sadd.s32 %s211, 1
      %s213 = scalar_select %p210, %s211, %s212
      %p216 = pneg %p210
      %p217 = scmp.eq.s32.totalorder %s18, 1
      %p218 = por %p216, %p217
      %p219 = scmp.ne.s32.totalorder %s211, %s214
      %p220 = scmp.eq.s32.totalorder %s18, 0
      %p221 = por %p219, %p220
      %p222 = scmp.ne.s32.totalorder %s211, %s214
      %p223 = scmp.eq.s32.totalorder %s23, 1
      %p224 = por %p222, %p223
      %p225 = scmp.ne.s32.totalorder %s214, %s215
      %p226 = scmp.eq.s32.totalorder %s23, 0
      %p227 = por %p225, %p226
      %p228 = scmp.ne.s32.totalorder %s214, %s215
      %p229 = scmp.eq.s32.totalorder %s24, 1
      %p230 = por %p228, %p229
      %p232 = scmp.ne.s32.totalorder %s215, %s231
      %p233 = scmp.eq.s32.totalorder %s24, 0
      %p234 = por %p232, %p233
      %p235 = scmp.le.s32.totalorder 1, %s18
      %p236 = scmp.lt.s32.totalorder %s18, 3
      %p237 = pnand %p235, %p236
      %p238 = pneg %p237
      // Predicated region
      $region9: #{a3c_forward.1} parent=5 // pred_check
        _
      $region10: #{a3c_forward.1} parent=5 // pred_check_branch
        %240 = sbr.rel (%p237) target = $region12
      $region11: #{a3c_forward.1} parent=5 // pred_region
        %s241 = ssub.s32 %s18, 1
        // Predicated region
        $region13: #{a3c_forward.1} parent=11 // pred_check
          %p242 = pneg %p39
        $region14: #{a3c_forward.1} parent=11 // pred_check_branch
          %244 = sbr.rel (%p242) target = $region16
        $region15: #{a3c_forward.1} parent=11 // pred_region
          _
        $region16: #{a3c_forward.1} parent=11 // pred_fallthru
          _
        // Predicated region
        $region17: #{a3c_forward.1} parent=11 // pred_check
          %p245 = pneg %p60
        $region18: #{a3c_forward.1} parent=11 // pred_check_branch
          %247 = sbr.rel (%p245) target = $region20
        $region19: #{a3c_forward.1} parent=11 // pred_region
          %s249 = ssub.s32 32, 32
          %250 = vsyncadd [#allocation5], %s249
          %s252 = sshll.u32 %s1, 4
          %s253 = int_to_ptr.vmem [resolvable:$true] %s252
          %255 = dma.vmem_to_smem %s253, 32, [#allocation4], [#allocation5]
        $region20: #{a3c_forward.1} parent=11 // pred_fallthru
          _
        // Predicated region
        $region21: #{a3c_forward.1} parent=11 // pred_check
          %p256 = pneg %p81
        $region22: #{a3c_forward.1} parent=11 // pred_check_branch
          %258 = sbr.rel (%p256) target = $region24
        $region23: #{a3c_forward.1} parent=11 // pred_region
          %s260 = ssub.s32 32, 32
          %261 = vsyncadd [#allocation7], %s260
          %s263 = sshll.u32 %s2, 4
          %s264 = int_to_ptr.vmem [resolvable:$true] %s263
          %266 = dma.vmem_to_smem %s264, 32, [#allocation6], [#allocation7]
        $region24: #{a3c_forward.1} parent=11 // pred_fallthru
          _
        // Predicated region
        $region25: #{a3c_forward.1} parent=11 // pred_check
          %p267 = pneg %p102
        $region26: #{a3c_forward.1} parent=11 // pred_check_branch
          %269 = sbr.rel (%p267) target = $region28
        $region27: #{a3c_forward.1} parent=11 // pred_region
          %s271 = ssub.s32 32, 32
          %272 = vsyncadd [#allocation7], %s271
          %s274 = sshll.u32 %s3, 4
          %s275 = int_to_ptr.vmem [resolvable:$true] %s274
          %277 = dma.vmem_to_smem %s275, 32, [#allocation8], [#allocation7]
        $region28: #{a3c_forward.1} parent=11 // pred_fallthru
          _
        // Predicated region
        $region29: #{a3c_forward.1} parent=11 // pred_check
          %p278 = pneg %p123
        $region30: #{a3c_forward.1} parent=11 // pred_check_branch
          %280 = sbr.rel (%p278) target = $region32
        $region31: #{a3c_forward.1} parent=11 // pred_region
          %s282 = ssub.s32 32, 32
          %283 = vsyncadd [#allocation10], %s282
          %s285 = sshll.u32 %s4, 4
          %s286 = int_to_ptr.vmem [resolvable:$true] %s285
          %288 = dma.vmem_to_smem %s286, 32, [#allocation9], [#allocation10]
        $region32: #{a3c_forward.1} parent=11 // pred_fallthru
          _
      $region12: #{a3c_forward.1} parent=5 // pred_fallthru
        _
      %p289 = scmp.lt.s32.totalorder %s18, 2
      // Predicated region
      $region33: #{a3c_forward.1} parent=5 // pred_check
        %p290 = pneg %p289
      $region34: #{a3c_forward.1} parent=5 // pred_check_branch
        %292 = sbr.rel (%p290) target = $region36
      $region35: #{a3c_forward.1} parent=5 // pred_region
        // Predicated region
        $region37: #{a3c_forward.1} parent=35 // pred_check
          %p293 = pneg %p143
        $region38: #{a3c_forward.1} parent=35 // pred_check_branch
          %295 = sbr.rel (%p293) target = $region40
        $region39: #{a3c_forward.1} parent=35 // pred_region
          %p296 = scmp.lt.s32.totalorder %s18, 1
          %s297 = scalar_select %p296, %s18, 1
          %s298 = scalar_lea.vmem %s6, %s297
        $region40: #{a3c_forward.1} parent=35 // pred_fallthru
          _
        // Predicated region
        $region41: #{a3c_forward.1} parent=35 // pred_check
          %p299 = pneg %p169
        $region42: #{a3c_forward.1} parent=35 // pred_check_branch
          %301 = sbr.rel (%p299) target = $region44
        $region43: #{a3c_forward.1} parent=35 // pred_region
          %p302 = scmp.lt.s32.totalorder %s18, 1
          %s303 = scalar_select %p302, %s18, 1
          %s304 = smul.addr %s303, 16
          %s305 = smul.addr %s304, 4
          %s306 = scalar_lea.vmem %s7, %s305
        $region44: #{a3c_forward.1} parent=35 // pred_fallthru
          _
        // Predicated region
        $region45: #{a3c_forward.1} parent=35 // pred_check
          %p307 = pneg %p195
        $region46: #{a3c_forward.1} parent=35 // pred_check_branch
          %309 = sbr.rel (%p307) target = $region48
        $region47: #{a3c_forward.1} parent=35 // pred_region
          %p310 = scmp.lt.s32.totalorder %s18, 1
          %s311 = scalar_select %p310, %s18, 1
          %s312 = scalar_lea.vmem %s8, %s311
        $region48: #{a3c_forward.1} parent=35 // pred_fallthru
          _
      $region36: #{a3c_forward.1} parent=5 // pred_fallthru
        _
      %p313 = scmp.le.s32.totalorder 1, %s18
      %p314 = scmp.lt.s32.totalorder %s18, 3
      %p315 = pnand %p313, %p314
      %p316 = pneg %p315
      // Predicated region
      $region49: #{a3c_forward.1} parent=5 // pred_check
        _
      $region50: #{a3c_forward.1} parent=5 // pred_check_branch
        %318 = sbr.rel (%p315) target = $region52
      $region51: #{a3c_forward.1} parent=5 // pred_region
        %s319 = ssub.s32 %s18, 1
        // Predicated region
        $region53: #{a3c_forward.1} parent=51 // pred_check
          %p320 = pneg %p60
        $region54: #{a3c_forward.1} parent=51 // pred_check_branch
          %322 = sbr.rel (%p320) target = $region56
        $region55: #{a3c_forward.1} parent=51 // pred_region
          %323 = dma.done [#allocation5], 32
        $region56: #{a3c_forward.1} parent=51 // pred_fallthru
          _
        // Predicated region
        $region57: #{a3c_forward.1} parent=51 // pred_check
          %p324 = pneg %p81
        $region58: #{a3c_forward.1} parent=51 // pred_check_branch
          %326 = sbr.rel (%p324) target = $region60
        $region59: #{a3c_forward.1} parent=51 // pred_region
          %327 = dma.done [#allocation7], 32
        $region60: #{a3c_forward.1} parent=51 // pred_fallthru
          _
        // Predicated region
        $region61: #{a3c_forward.1} parent=51 // pred_check
          %p328 = pneg %p102
        $region62: #{a3c_forward.1} parent=51 // pred_check_branch
          %330 = sbr.rel (%p328) target = $region64
        $region63: #{a3c_forward.1} parent=51 // pred_region
          %331 = dma.done [#allocation7], 32
        $region64: #{a3c_forward.1} parent=51 // pred_fallthru
          _
        // Predicated region
        $region65: #{a3c_forward.1} parent=51 // pred_check
          %p332 = pneg %p123
        $region66: #{a3c_forward.1} parent=51 // pred_check_branch
          %334 = sbr.rel (%p332) target = $region68
        $region67: #{a3c_forward.1} parent=51 // pred_region
          %335 = dma.done [#allocation10], 32
        $region68: #{a3c_forward.1} parent=51 // pred_fallthru
          _
        %336 = sfence
        %p337 = pneg %p39
        %p338 = pneg %p36
        %p339 = pneg %p60
        %p340 = pneg %p57
        %p341 = pneg %p81
        %p342 = pneg %p78
        %p343 = pneg %p102
        %p344 = pneg %p99
        %p345 = pneg %p123
        %p346 = pneg %p120
        %p347 = scmp.lt.s32.totalorder %s23, 1
        %s348 = scalar_select %p347, %s23, 1
        %s349 = scalar_lea.vmem %s6, %s348
        %p350 = pneg %p149
        %p351 = pneg %p146
        %p352 = scmp.lt.s32.totalorder %s23, 1
        %s353 = scalar_select %p352, %s23, 1
        %s354 = smul.addr %s353, 16
        %s355 = smul.addr %s354, 4
        %s356 = scalar_lea.vmem %s7, %s355
        %p357 = pneg %p175
        %p358 = pneg %p172
        %p359 = scmp.lt.s32.totalorder %s23, 1
        %s360 = scalar_select %p359, %s23, 1
        %s361 = scalar_lea.vmem %s8, %s360
        %p362 = pneg %p201
        %p363 = pneg %p198
        %p364 = pneg %p227
        %p365 = pneg %p224
        %p366 = scmp.lt.s32.totalorder %s23, 1
        %s367 = scalar_select %p366, %s23, 1
        %s368 = smul.addr %s367, 8
        %s369 = scalar_lea.vmem %s9, %s368
        %p370 = scmp.lt.s32.totalorder %s23, 1
        %s371 = scalar_select %p370, %s23, 1
        %s372 = scalar_lea.vmem %s6, %s371
        %p373 = scmp.lt.s32.totalorder %s23, 1
        %s374 = scalar_select %p373, %s23, 1
        %s375 = smul.addr %s374, 16
        %s376 = smul.addr %s375, 4
        %s377 = scalar_lea.vmem %s7, %s376
        %p378 = scmp.lt.s32.totalorder %s23, 1
        %s379 = scalar_select %p378, %s23, 1
        %s380 = scalar_lea.vmem %s8, %s379
        %p381 = scmp.lt.s32.totalorder %s23, 1
        %s382 = scalar_select %p381, %s23, 1
        %s383 = smul.addr %s382, 8
        %s384 = scalar_lea.vmem %s9, %s383
        %s386 = smul.u32 %s23, 288
        %s387 = smul.addr %s386, 4
        %s388 = scalar_lea.vmem %s5, %s387
        %p390 = scmp.lt.u32.totalorder 1152, 8
        %p391 = pneg %p390
        // Predicated region
        $region69: #{a3c_forward.1} parent=51 // pred_check
          _
        $region70: #{a3c_forward.1} parent=51 // pred_check_branch
          %393 = sbr.rel (%p390) target = $region72
        $region71: #{a3c_forward.1} parent=51 // pred_region
          %s409 = sand.u32 1152, 7
          %p410 = scmp.eq.s32.totalorder %s409, 0
          // Predicated region
          $region84: #{a3c_forward.1} parent=71 // pred_check
            %p411 = pneg %p410
          $region85: #{a3c_forward.1} parent=71 // pred_check_branch
            %413 = sbr.rel (%p411) target = $region87
          $region86: #{a3c_forward.1} parent=71 // pred_region
            loop: start=0, step=1, limit=1
            $region88: #{a3c_forward.1} parent=86 // loop_pre_header
              _
            $region89: #{a3c_forward.1} parent=86 // loop_header
              %s415 = sphi 0, %s419
              %p416 = scmp.ge.s32.totalorder %s415, 1
              %s420 = sphi %s388, %s388
              %s421 = sphi [#allocation2], [#allocation2]
            $region90: #{a3c_forward.1} parent=86 // loop_header_branch
              %418 = sbr.rel (%p416) target = $region94
            $region91: #{a3c_forward.1} parent=86 // loop_body
              %v422 = vld [vmem:[%s420] sm:$0xff]
              %423 = vst [vmem:[%s421] sm:$0xff] %v422
              %v424 = vld [vmem:[%s420 + $0x8] sm:$0xff]
              %425 = vst [vmem:[%s421 + $0x8] sm:$0xff] %v424
              %v426 = vld [vmem:[%s420 + $0x10] sm:$0xff]
              %427 = vst [vmem:[%s421 + $0x10] sm:$0xff] %v426
              %v428 = vld [vmem:[%s420 + $0x18] sm:$0xff]
              %429 = vst [vmem:[%s421 + $0x18] sm:$0xff] %v428
              %v430 = vld [vmem:[%s420 + $0x20] sm:$0xff]
              %431 = vst [vmem:[%s421 + $0x20] sm:$0xff] %v430
              %v432 = vld [vmem:[%s420 + $0x28] sm:$0xff]
              %433 = vst [vmem:[%s421 + $0x28] sm:$0xff] %v432
              %v434 = vld [vmem:[%s420 + $0x30] sm:$0xff]
              %435 = vst [vmem:[%s421 + $0x30] sm:$0xff] %v434
              %v436 = vld [vmem:[%s420 + $0x38] sm:$0xff]
              %437 = vst [vmem:[%s421 + $0x38] sm:$0xff] %v436
              %v438 = vld [vmem:[%s420 + $0x40] sm:$0xff]
              %439 = vst [vmem:[%s421 + $0x40] sm:$0xff] %v438
              %v440 = vld [vmem:[%s420 + $0x48] sm:$0xff]
              %441 = vst [vmem:[%s421 + $0x48] sm:$0xff] %v440
              %v442 = vld [vmem:[%s420 + $0x50] sm:$0xff]
              %443 = vst [vmem:[%s421 + $0x50] sm:$0xff] %v442
              %v444 = vld [vmem:[%s420 + $0x58] sm:$0xff]
              %445 = vst [vmem:[%s421 + $0x58] sm:$0xff] %v444
              %v446 = vld [vmem:[%s420 + $0x60] sm:$0xff]
              %447 = vst [vmem:[%s421 + $0x60] sm:$0xff] %v446
              %v448 = vld [vmem:[%s420 + $0x68] sm:$0xff]
              %449 = vst [vmem:[%s421 + $0x68] sm:$0xff] %v448
              %v450 = vld [vmem:[%s420 + $0x70] sm:$0xff]
              %451 = vst [vmem:[%s421 + $0x70] sm:$0xff] %v450
              %v452 = vld [vmem:[%s420 + $0x78] sm:$0xff]
              %453 = vst [vmem:[%s421 + $0x78] sm:$0xff] %v452
              %v454 = vld [vmem:[%s420 + $0x80] sm:$0xff]
              %455 = vst [vmem:[%s421 + $0x80] sm:$0xff] %v454
              %v456 = vld [vmem:[%s420 + $0x88] sm:$0xff]
              %457 = vst [vmem:[%s421 + $0x88] sm:$0xff] %v456
              %v458 = vld [vmem:[%s420 + $0x90] sm:$0xff]
              %459 = vst [vmem:[%s421 + $0x90] sm:$0xff] %v458
              %v460 = vld [vmem:[%s420 + $0x98] sm:$0xff]
              %461 = vst [vmem:[%s421 + $0x98] sm:$0xff] %v460
              %v462 = vld [vmem:[%s420 + $0xa0] sm:$0xff]
              %463 = vst [vmem:[%s421 + $0xa0] sm:$0xff] %v462
              %v464 = vld [vmem:[%s420 + $0xa8] sm:$0xff]
              %465 = vst [vmem:[%s421 + $0xa8] sm:$0xff] %v464
              %v466 = vld [vmem:[%s420 + $0xb0] sm:$0xff]
              %467 = vst [vmem:[%s421 + $0xb0] sm:$0xff] %v466
              %v468 = vld [vmem:[%s420 + $0xb8] sm:$0xff]
              %469 = vst [vmem:[%s421 + $0xb8] sm:$0xff] %v468
              %v470 = vld [vmem:[%s420 + $0xc0] sm:$0xff]
              %471 = vst [vmem:[%s421 + $0xc0] sm:$0xff] %v470
              %v472 = vld [vmem:[%s420 + $0xc8] sm:$0xff]
              %473 = vst [vmem:[%s421 + $0xc8] sm:$0xff] %v472
              %v474 = vld [vmem:[%s420 + $0xd0] sm:$0xff]
              %475 = vst [vmem:[%s421 + $0xd0] sm:$0xff] %v474
              %v476 = vld [vmem:[%s420 + $0xd8] sm:$0xff]
              %477 = vst [vmem:[%s421 + $0xd8] sm:$0xff] %v476
              %v478 = vld [vmem:[%s420 + $0xe0] sm:$0xff]
              %479 = vst [vmem:[%s421 + $0xe0] sm:$0xff] %v478
              %v480 = vld [vmem:[%s420 + $0xe8] sm:$0xff]
              %481 = vst [vmem:[%s421 + $0xe8] sm:$0xff] %v480
              %v482 = vld [vmem:[%s420 + $0xf0] sm:$0xff]
              %483 = vst [vmem:[%s421 + $0xf0] sm:$0xff] %v482
              %v484 = vld [vmem:[%s420 + $0xf8] sm:$0xff]
              %485 = vst [vmem:[%s421 + $0xf8] sm:$0xff] %v484
              %v486 = vld [vmem:[%s420 + $0x100] sm:$0xff]
              %487 = vst [vmem:[%s421 + $0x100] sm:$0xff] %v486
              %v488 = vld [vmem:[%s420 + $0x108] sm:$0xff]
              %489 = vst [vmem:[%s421 + $0x108] sm:$0xff] %v488
              %v490 = vld [vmem:[%s420 + $0x110] sm:$0xff]
              %491 = vst [vmem:[%s421 + $0x110] sm:$0xff] %v490
              %v492 = vld [vmem:[%s420 + $0x118] sm:$0xff]
              %493 = vst [vmem:[%s421 + $0x118] sm:$0xff] %v492
              %v494 = vld [vmem:[%s420 + $0x120] sm:$0xff]
              %495 = vst [vmem:[%s421 + $0x120] sm:$0xff] %v494
              %v496 = vld [vmem:[%s420 + $0x128] sm:$0xff]
              %497 = vst [vmem:[%s421 + $0x128] sm:$0xff] %v496
              %v498 = vld [vmem:[%s420 + $0x130] sm:$0xff]
              %499 = vst [vmem:[%s421 + $0x130] sm:$0xff] %v498
              %v500 = vld [vmem:[%s420 + $0x138] sm:$0xff]
              %501 = vst [vmem:[%s421 + $0x138] sm:$0xff] %v500
              %v502 = vld [vmem:[%s420 + $0x140] sm:$0xff]
              %503 = vst [vmem:[%s421 + $0x140] sm:$0xff] %v502
              %v504 = vld [vmem:[%s420 + $0x148] sm:$0xff]
              %505 = vst [vmem:[%s421 + $0x148] sm:$0xff] %v504
              %v506 = vld [vmem:[%s420 + $0x150] sm:$0xff]
              %507 = vst [vmem:[%s421 + $0x150] sm:$0xff] %v506
              %v508 = vld [vmem:[%s420 + $0x158] sm:$0xff]
              %509 = vst [vmem:[%s421 + $0x158] sm:$0xff] %v508
              %v510 = vld [vmem:[%s420 + $0x160] sm:$0xff]
              %511 = vst [vmem:[%s421 + $0x160] sm:$0xff] %v510
              %v512 = vld [vmem:[%s420 + $0x168] sm:$0xff]
              %513 = vst [vmem:[%s421 + $0x168] sm:$0xff] %v512
              %v514 = vld [vmem:[%s420 + $0x170] sm:$0xff]
              %515 = vst [vmem:[%s421 + $0x170] sm:$0xff] %v514
              %v516 = vld [vmem:[%s420 + $0x178] sm:$0xff]
              %517 = vst [vmem:[%s421 + $0x178] sm:$0xff] %v516
              %v518 = vld [vmem:[%s420 + $0x180] sm:$0xff]
              %519 = vst [vmem:[%s421 + $0x180] sm:$0xff] %v518
              %v520 = vld [vmem:[%s420 + $0x188] sm:$0xff]
              %521 = vst [vmem:[%s421 + $0x188] sm:$0xff] %v520
              %v522 = vld [vmem:[%s420 + $0x190] sm:$0xff]
              %523 = vst [vmem:[%s421 + $0x190] sm:$0xff] %v522
              %v524 = vld [vmem:[%s420 + $0x198] sm:$0xff]
              %525 = vst [vmem:[%s421 + $0x198] sm:$0xff] %v524
              %v526 = vld [vmem:[%s420 + $0x1a0] sm:$0xff]
              %527 = vst [vmem:[%s421 + $0x1a0] sm:$0xff] %v526
              %v528 = vld [vmem:[%s420 + $0x1a8] sm:$0xff]
              %529 = vst [vmem:[%s421 + $0x1a8] sm:$0xff] %v528
              %v530 = vld [vmem:[%s420 + $0x1b0] sm:$0xff]
              %531 = vst [vmem:[%s421 + $0x1b0] sm:$0xff] %v530
              %v532 = vld [vmem:[%s420 + $0x1b8] sm:$0xff]
              %533 = vst [vmem:[%s421 + $0x1b8] sm:$0xff] %v532
              %v534 = vld [vmem:[%s420 + $0x1c0] sm:$0xff]
              %535 = vst [vmem:[%s421 + $0x1c0] sm:$0xff] %v534
              %v536 = vld [vmem:[%s420 + $0x1c8] sm:$0xff]
              %537 = vst [vmem:[%s421 + $0x1c8] sm:$0xff] %v536
              %v538 = vld [vmem:[%s420 + $0x1d0] sm:$0xff]
              %539 = vst [vmem:[%s421 + $0x1d0] sm:$0xff] %v538
              %v540 = vld [vmem:[%s420 + $0x1d8] sm:$0xff]
              %541 = vst [vmem:[%s421 + $0x1d8] sm:$0xff] %v540
              %v542 = vld [vmem:[%s420 + $0x1e0] sm:$0xff]
              %543 = vst [vmem:[%s421 + $0x1e0] sm:$0xff] %v542
              %v544 = vld [vmem:[%s420 + $0x1e8] sm:$0xff]
              %545 = vst [vmem:[%s421 + $0x1e8] sm:$0xff] %v544
              %v546 = vld [vmem:[%s420 + $0x1f0] sm:$0xff]
              %547 = vst [vmem:[%s421 + $0x1f0] sm:$0xff] %v546
              %v548 = vld [vmem:[%s420 + $0x1f8] sm:$0xff]
              %549 = vst [vmem:[%s421 + $0x1f8] sm:$0xff] %v548
              %v550 = vld [vmem:[%s420 + $0x200] sm:$0xff]
              %551 = vst [vmem:[%s421 + $0x200] sm:$0xff] %v550
              %v552 = vld [vmem:[%s420 + $0x208] sm:$0xff]
              %553 = vst [vmem:[%s421 + $0x208] sm:$0xff] %v552
              %v554 = vld [vmem:[%s420 + $0x210] sm:$0xff]
              %555 = vst [vmem:[%s421 + $0x210] sm:$0xff] %v554
              %v556 = vld [vmem:[%s420 + $0x218] sm:$0xff]
              %557 = vst [vmem:[%s421 + $0x218] sm:$0xff] %v556
              %v558 = vld [vmem:[%s420 + $0x220] sm:$0xff]
              %559 = vst [vmem:[%s421 + $0x220] sm:$0xff] %v558
              %v560 = vld [vmem:[%s420 + $0x228] sm:$0xff]
              %561 = vst [vmem:[%s421 + $0x228] sm:$0xff] %v560
              %v562 = vld [vmem:[%s420 + $0x230] sm:$0xff]
              %563 = vst [vmem:[%s421 + $0x230] sm:$0xff] %v562
              %v564 = vld [vmem:[%s420 + $0x238] sm:$0xff]
              %565 = vst [vmem:[%s421 + $0x238] sm:$0xff] %v564
              %v566 = vld [vmem:[%s420 + $0x240] sm:$0xff]
              %567 = vst [vmem:[%s421 + $0x240] sm:$0xff] %v566
              %v568 = vld [vmem:[%s420 + $0x248] sm:$0xff]
              %569 = vst [vmem:[%s421 + $0x248] sm:$0xff] %v568
              %v570 = vld [vmem:[%s420 + $0x250] sm:$0xff]
              %571 = vst [vmem:[%s421 + $0x250] sm:$0xff] %v570
              %v572 = vld [vmem:[%s420 + $0x258] sm:$0xff]
              %573 = vst [vmem:[%s421 + $0x258] sm:$0xff] %v572
              %v574 = vld [vmem:[%s420 + $0x260] sm:$0xff]
              %575 = vst [vmem:[%s421 + $0x260] sm:$0xff] %v574
              %v576 = vld [vmem:[%s420 + $0x268] sm:$0xff]
              %577 = vst [vmem:[%s421 + $0x268] sm:$0xff] %v576
              %v578 = vld [vmem:[%s420 + $0x270] sm:$0xff]
              %579 = vst [vmem:[%s421 + $0x270] sm:$0xff] %v578
              %v580 = vld [vmem:[%s420 + $0x278] sm:$0xff]
              %581 = vst [vmem:[%s421 + $0x278] sm:$0xff] %v580
              %v582 = vld [vmem:[%s420 + $0x280] sm:$0xff]
              %583 = vst [vmem:[%s421 + $0x280] sm:$0xff] %v582
              %v584 = vld [vmem:[%s420 + $0x288] sm:$0xff]
              %585 = vst [vmem:[%s421 + $0x288] sm:$0xff] %v584
              %v586 = vld [vmem:[%s420 + $0x290] sm:$0xff]
              %587 = vst [vmem:[%s421 + $0x290] sm:$0xff] %v586
              %v588 = vld [vmem:[%s420 + $0x298] sm:$0xff]
              %589 = vst [vmem:[%s421 + $0x298] sm:$0xff] %v588
              %v590 = vld [vmem:[%s420 + $0x2a0] sm:$0xff]
              %591 = vst [vmem:[%s421 + $0x2a0] sm:$0xff] %v590
              %v592 = vld [vmem:[%s420 + $0x2a8] sm:$0xff]
              %593 = vst [vmem:[%s421 + $0x2a8] sm:$0xff] %v592
              %v594 = vld [vmem:[%s420 + $0x2b0] sm:$0xff]
              %595 = vst [vmem:[%s421 + $0x2b0] sm:$0xff] %v594
              %v596 = vld [vmem:[%s420 + $0x2b8] sm:$0xff]
              %597 = vst [vmem:[%s421 + $0x2b8] sm:$0xff] %v596
              %v598 = vld [vmem:[%s420 + $0x2c0] sm:$0xff]
              %599 = vst [vmem:[%s421 + $0x2c0] sm:$0xff] %v598
              %v600 = vld [vmem:[%s420 + $0x2c8] sm:$0xff]
              %601 = vst [vmem:[%s421 + $0x2c8] sm:$0xff] %v600
              %v602 = vld [vmem:[%s420 + $0x2d0] sm:$0xff]
              %603 = vst [vmem:[%s421 + $0x2d0] sm:$0xff] %v602
              %v604 = vld [vmem:[%s420 + $0x2d8] sm:$0xff]
              %605 = vst [vmem:[%s421 + $0x2d8] sm:$0xff] %v604
              %v606 = vld [vmem:[%s420 + $0x2e0] sm:$0xff]
              %607 = vst [vmem:[%s421 + $0x2e0] sm:$0xff] %v606
              %v608 = vld [vmem:[%s420 + $0x2e8] sm:$0xff]
              %609 = vst [vmem:[%s421 + $0x2e8] sm:$0xff] %v608
              %v610 = vld [vmem:[%s420 + $0x2f0] sm:$0xff]
              %611 = vst [vmem:[%s421 + $0x2f0] sm:$0xff] %v610
              %v612 = vld [vmem:[%s420 + $0x2f8] sm:$0xff]
              %613 = vst [vmem:[%s421 + $0x2f8] sm:$0xff] %v612
              %v614 = vld [vmem:[%s420 + $0x300] sm:$0xff]
              %615 = vst [vmem:[%s421 + $0x300] sm:$0xff] %v614
              %v616 = vld [vmem:[%s420 + $0x308] sm:$0xff]
              %617 = vst [vmem:[%s421 + $0x308] sm:$0xff] %v616
              %v618 = vld [vmem:[%s420 + $0x310] sm:$0xff]
              %619 = vst [vmem:[%s421 + $0x310] sm:$0xff] %v618
              %v620 = vld [vmem:[%s420 + $0x318] sm:$0xff]
              %621 = vst [vmem:[%s421 + $0x318] sm:$0xff] %v620
              %v622 = vld [vmem:[%s420 + $0x320] sm:$0xff]
              %623 = vst [vmem:[%s421 + $0x320] sm:$0xff] %v622
              %v624 = vld [vmem:[%s420 + $0x328] sm:$0xff]
              %625 = vst [vmem:[%s421 + $0x328] sm:$0xff] %v624
              %v626 = vld [vmem:[%s420 + $0x330] sm:$0xff]
              %627 = vst [vmem:[%s421 + $0x330] sm:$0xff] %v626
              %v628 = vld [vmem:[%s420 + $0x338] sm:$0xff]
              %629 = vst [vmem:[%s421 + $0x338] sm:$0xff] %v628
              %v630 = vld [vmem:[%s420 + $0x340] sm:$0xff]
              %631 = vst [vmem:[%s421 + $0x340] sm:$0xff] %v630
              %v632 = vld [vmem:[%s420 + $0x348] sm:$0xff]
              %633 = vst [vmem:[%s421 + $0x348] sm:$0xff] %v632
              %v634 = vld [vmem:[%s420 + $0x350] sm:$0xff]
              %635 = vst [vmem:[%s421 + $0x350] sm:$0xff] %v634
              %v636 = vld [vmem:[%s420 + $0x358] sm:$0xff]
              %637 = vst [vmem:[%s421 + $0x358] sm:$0xff] %v636
              %v638 = vld [vmem:[%s420 + $0x360] sm:$0xff]
              %639 = vst [vmem:[%s421 + $0x360] sm:$0xff] %v638
              %v640 = vld [vmem:[%s420 + $0x368] sm:$0xff]
              %641 = vst [vmem:[%s421 + $0x368] sm:$0xff] %v640
              %v642 = vld [vmem:[%s420 + $0x370] sm:$0xff]
              %643 = vst [vmem:[%s421 + $0x370] sm:$0xff] %v642
              %v644 = vld [vmem:[%s420 + $0x378] sm:$0xff]
              %645 = vst [vmem:[%s421 + $0x378] sm:$0xff] %v644
              %v646 = vld [vmem:[%s420 + $0x380] sm:$0xff]
              %647 = vst [vmem:[%s421 + $0x380] sm:$0xff] %v646
              %v648 = vld [vmem:[%s420 + $0x388] sm:$0xff]
              %649 = vst [vmem:[%s421 + $0x388] sm:$0xff] %v648
              %v650 = vld [vmem:[%s420 + $0x390] sm:$0xff]
              %651 = vst [vmem:[%s421 + $0x390] sm:$0xff] %v650
              %v652 = vld [vmem:[%s420 + $0x398] sm:$0xff]
              %653 = vst [vmem:[%s421 + $0x398] sm:$0xff] %v652
              %v654 = vld [vmem:[%s420 + $0x3a0] sm:$0xff]
              %655 = vst [vmem:[%s421 + $0x3a0] sm:$0xff] %v654
              %v656 = vld [vmem:[%s420 + $0x3a8] sm:$0xff]
              %657 = vst [vmem:[%s421 + $0x3a8] sm:$0xff] %v656
              %v658 = vld [vmem:[%s420 + $0x3b0] sm:$0xff]
              %659 = vst [vmem:[%s421 + $0x3b0] sm:$0xff] %v658
              %v660 = vld [vmem:[%s420 + $0x3b8] sm:$0xff]
              %661 = vst [vmem:[%s421 + $0x3b8] sm:$0xff] %v660
              %v662 = vld [vmem:[%s420 + $0x3c0] sm:$0xff]
              %663 = vst [vmem:[%s421 + $0x3c0] sm:$0xff] %v662
              %v664 = vld [vmem:[%s420 + $0x3c8] sm:$0xff]
              %665 = vst [vmem:[%s421 + $0x3c8] sm:$0xff] %v664
              %v666 = vld [vmem:[%s420 + $0x3d0] sm:$0xff]
              %667 = vst [vmem:[%s421 + $0x3d0] sm:$0xff] %v666
              %v668 = vld [vmem:[%s420 + $0x3d8] sm:$0xff]
              %669 = vst [vmem:[%s421 + $0x3d8] sm:$0xff] %v668
              %v670 = vld [vmem:[%s420 + $0x3e0] sm:$0xff]
              %671 = vst [vmem:[%s421 + $0x3e0] sm:$0xff] %v670
              %v672 = vld [vmem:[%s420 + $0x3e8] sm:$0xff]
              %673 = vst [vmem:[%s421 + $0x3e8] sm:$0xff] %v672
              %v674 = vld [vmem:[%s420 + $0x3f0] sm:$0xff]
              %675 = vst [vmem:[%s421 + $0x3f0] sm:$0xff] %v674
              %v676 = vld [vmem:[%s420 + $0x3f8] sm:$0xff]
              %677 = vst [vmem:[%s421 + $0x3f8] sm:$0xff] %v676
              %v678 = vld [vmem:[%s420 + $0x400] sm:$0xff]
              %679 = vst [vmem:[%s421 + $0x400] sm:$0xff] %v678
              %v680 = vld [vmem:[%s420 + $0x408] sm:$0xff]
              %681 = vst [vmem:[%s421 + $0x408] sm:$0xff] %v680
              %v682 = vld [vmem:[%s420 + $0x410] sm:$0xff]
              %683 = vst [vmem:[%s421 + $0x410] sm:$0xff] %v682
              %v684 = vld [vmem:[%s420 + $0x418] sm:$0xff]
              %685 = vst [vmem:[%s421 + $0x418] sm:$0xff] %v684
              %v686 = vld [vmem:[%s420 + $0x420] sm:$0xff]
              %687 = vst [vmem:[%s421 + $0x420] sm:$0xff] %v686
              %v688 = vld [vmem:[%s420 + $0x428] sm:$0xff]
              %689 = vst [vmem:[%s421 + $0x428] sm:$0xff] %v688
              %v690 = vld [vmem:[%s420 + $0x430] sm:$0xff]
              %691 = vst [vmem:[%s421 + $0x430] sm:$0xff] %v690
              %v692 = vld [vmem:[%s420 + $0x438] sm:$0xff]
              %693 = vst [vmem:[%s421 + $0x438] sm:$0xff] %v692
              %v694 = vld [vmem:[%s420 + $0x440] sm:$0xff]
              %695 = vst [vmem:[%s421 + $0x440] sm:$0xff] %v694
              %v696 = vld [vmem:[%s420 + $0x448] sm:$0xff]
              %697 = vst [vmem:[%s421 + $0x448] sm:$0xff] %v696
              %v698 = vld [vmem:[%s420 + $0x450] sm:$0xff]
              %699 = vst [vmem:[%s421 + $0x450] sm:$0xff] %v698
              %v700 = vld [vmem:[%s420 + $0x458] sm:$0xff]
              %701 = vst [vmem:[%s421 + $0x458] sm:$0xff] %v700
              %v702 = vld [vmem:[%s420 + $0x460] sm:$0xff]
              %703 = vst [vmem:[%s421 + $0x460] sm:$0xff] %v702
              %v704 = vld [vmem:[%s420 + $0x468] sm:$0xff]
              %705 = vst [vmem:[%s421 + $0x468] sm:$0xff] %v704
              %v706 = vld [vmem:[%s420 + $0x470] sm:$0xff]
              %707 = vst [vmem:[%s421 + $0x470] sm:$0xff] %v706
              %v708 = vld [vmem:[%s420 + $0x478] sm:$0xff]
              %709 = vst [vmem:[%s421 + $0x478] sm:$0xff] %v708
            $region92: #{a3c_forward.1} parent=86 // loop_footer
              %s419 = sadd.s32 1, %s415
            $region93: #{a3c_forward.1} parent=86 // loop_footer_branch
              %414 = sbr.rel target = $region89
            $region94: #{a3c_forward.1} parent=86 // loop_exit
              _
          $region87: #{a3c_forward.1} parent=71 // pred_fallthru
            _
          %p710 = pneg %p410
          // Predicated region
          $region95: #{a3c_forward.1} parent=71 // pred_check
            _
          $region96: #{a3c_forward.1} parent=71 // pred_check_branch
            %712 = sbr.rel (%p410) target = $region98
          $region97: #{a3c_forward.1} parent=71 // pred_region
            %s713 = sand.u32 1152, 7
          $region98: #{a3c_forward.1} parent=71 // pred_fallthru
            _
        $region72: #{a3c_forward.1} parent=51 // pred_fallthru
          _
        // Predicated region
        $region73: #{a3c_forward.1} parent=51 // pred_check
          %p394 = pneg %p390
        $region74: #{a3c_forward.1} parent=51 // pred_check_branch
          %396 = sbr.rel (%p394) target = $region76
        $region75: #{a3c_forward.1} parent=51 // pred_region
          %s397 = sshll.u32 1, 1152
          %s398 = ssub.s32 %s397, 1
          loop: start=0, step=1, limit=1
          $region77: #{a3c_forward.1} parent=75 // loop_pre_header
            _
          $region78: #{a3c_forward.1} parent=75 // loop_header
            %s400 = sphi 0, %s404
            %p401 = scmp.ge.s32.totalorder %s400, 1
            %s405 = sphi %s388, %s388
            %s406 = sphi [#allocation2], [#allocation2]
          $region79: #{a3c_forward.1} parent=75 // loop_header_branch
            %403 = sbr.rel (%p401) target = $region83
          $region80: #{a3c_forward.1} parent=75 // loop_body
            %v407 = vld [vmem:[%s405] sm:%s398]
            %408 = vst [vmem:[%s406] sm:%s398] %v407
          $region81: #{a3c_forward.1} parent=75 // loop_footer
            %s404 = sadd.s32 1, %s400
          $region82: #{a3c_forward.1} parent=75 // loop_footer_branch
            %399 = sbr.rel target = $region78
          $region83: #{a3c_forward.1} parent=75 // loop_exit
            _
        $region76: #{a3c_forward.1} parent=51 // pred_fallthru
          _
        // Predicated region
        $region99: #{a3c_forward.1} parent=51 // pred_check
          _
        $region100: #{a3c_forward.1} parent=51 // pred_check_branch
          %716 = sbr.rel (0) target = $region102
        $region101: #{a3c_forward.1} parent=51 // pred_region
          %717 = vsyncadd [#allocation3], 18432
        $region102: #{a3c_forward.1} parent=51 // pred_fallthru
          _
        %s718 = smul.u32 %s23, 128
        %s719 = sld [smem:[#allocation9 + %s718]]
        %v720 = vstv %s719
        %v721 = vadd.f32 %v720, 0.0
        %s722 = sadd.s32 %s718, 1
        %s723 = sld [smem:[#allocation9 + %s722]]
        %v724 = vstv %s723
        %v725 = vadd.f32 %v724, 0.0
        %s726 = sadd.s32 %s718, 2
        %s727 = sld [smem:[#allocation9 + %s726]]
        %v728 = vstv %s727
        %v729 = vadd.f32 %v728, 0.0
        %s730 = sadd.s32 %s718, 3
        %s731 = sld [smem:[#allocation9 + %s730]]
        %v732 = vstv %s731
        %v733 = vadd.f32 %v732, 0.0
        %s734 = sadd.s32 %s718, 4
        %s735 = sld [smem:[#allocation9 + %s734]]
        %v736 = vstv %s735
        %v737 = vadd.f32 %v736, 0.0
        %s738 = sadd.s32 %s718, 5
        %s739 = sld [smem:[#allocation9 + %s738]]
        %v740 = vstv %s739
        %v741 = vadd.f32 %v740, 0.0
        %s742 = sld [smem:[#allocation6 + %s718]]
        %v743 = vstv %s742
        %v744 = vadd.f32 %v743, 0.0
        %v745 = vld [vmem:[%s0] sm:$0x3]
        %v746 = vld [vmem:[%s0 + $0x8] sm:$0x3]
        %v747 = vld [vmem:[%s0 + $0x10] sm:$0x3]
        %s748 = sld [smem:[#allocation4 + %s718]]
        %v749 = vstv %s748
        %v750 = vmul.f32 %v745, %v749
        %v751 = vmul.f32 %v746, %v749
        %v752 = vmul.f32 %v747, %v749
        %v753 = vadd.f32 %v744, %v750
        %v754 = vadd.f32 %v744, %v751
        %v755 = vadd.f32 %v744, %v752
        %v756 = vld [vmem:[%s0 + $0x48] sm:$0x3]
        %v757 = vld [vmem:[%s0 + $0x50] sm:$0x3]
        %v758 = vld [vmem:[%s0 + $0x58] sm:$0x3]
        %s759 = sld [smem:[#allocation4 + %s722]]
        %v760 = vstv %s759
        %v761 = vmul.f32 %v756, %v760
        %v762 = vmul.f32 %v757, %v760
        %v763 = vmul.f32 %v758, %v760
        %v764 = vadd.f32 %v753, %v761
        %v765 = vadd.f32 %v754, %v762
        %v766 = vadd.f32 %v755, %v763
        %v767 = vld [vmem:[%s0 + $0x90] sm:$0x3]
        %v768 = vld [vmem:[%s0 + $0x98] sm:$0x3]
        %v769 = vld [vmem:[%s0 + $0xa0] sm:$0x3]
        %s770 = sld [smem:[#allocation4 + %s726]]
        %v771 = vstv %s770
        %v772 = vmul.f32 %v767, %v771
        %v773 = vmul.f32 %v768, %v771
        %v774 = vmul.f32 %v769, %v771
        %v775 = vadd.f32 %v764, %v772
        %v776 = vadd.f32 %v765, %v773
        %v777 = vadd.f32 %v766, %v774
        %v778 = vld [vmem:[%s0] sm:$0xc]
        %v779 = vld [vmem:[%s0 + $0x8] sm:$0xc]
        %v780 = vld [vmem:[%s0 + $0x10] sm:$0xc]
        %s781 = sld [smem:[#allocation4 + %s730]]
        %v782 = vstv %s781
        %v783 = vmul.f32 %v778, %v782
        %v784 = vmul.f32 %v779, %v782
        %v785 = vmul.f32 %v780, %v782
        %v789 = vrot.slane %v783, 2
        %v790 = vrot.slane %v784, 2
        %v791 = vrot.slane %v785, 2
        %v795 = vadd.f32 %v775, %v789
        %v796 = vadd.f32 %v776, %v790
        %v797 = vadd.f32 %v777, %v791
        %v798 = vld [vmem:[%s0 + $0x48] sm:$0xc]
        %v799 = vld [vmem:[%s0 + $0x50] sm:$0xc]
        %v800 = vld [vmem:[%s0 + $0x58] sm:$0xc]
        %s801 = sld [smem:[#allocation4 + %s734]]
        %v802 = vstv %s801
        %v803 = vmul.f32 %v798, %v802
        %v804 = vmul.f32 %v799, %v802
        %v805 = vmul.f32 %v800, %v802
        %v809 = vrot.slane %v803, 2
        %v810 = vrot.slane %v804, 2
        %v811 = vrot.slane %v805, 2
        %v815 = vadd.f32 %v795, %v809
        %v816 = vadd.f32 %v796, %v810
        %v817 = vadd.f32 %v797, %v811
        %v818 = vld [vmem:[%s0 + $0x90] sm:$0xc]
        %v819 = vld [vmem:[%s0 + $0x98] sm:$0xc]
        %v820 = vld [vmem:[%s0 + $0xa0] sm:$0xc]
        %s821 = sld [smem:[#allocation4 + %s738]]
        %v822 = vstv %s821
        %v823 = vmul.f32 %v818, %v822
        %v824 = vmul.f32 %v819, %v822
        %v825 = vmul.f32 %v820, %v822
        %v829 = vrot.slane %v823, 2
        %v830 = vrot.slane %v824, 2
        %v831 = vrot.slane %v825, 2
        %v835 = vadd.f32 %v815, %v829
        %v836 = vadd.f32 %v816, %v830
        %v837 = vadd.f32 %v817, %v831
        %v838 = vld [vmem:[%s0] sm:$0x30]
        %v839 = vld [vmem:[%s0 + $0x8] sm:$0x30]
        %v840 = vld [vmem:[%s0 + $0x10] sm:$0x30]
        %s841 = sadd.s32 %s718, 6
        %s842 = sld [smem:[#allocation4 + %s841]]
        %v843 = vstv %s842
        %v844 = vmul.f32 %v838, %v843
        %v845 = vmul.f32 %v839, %v843
        %v846 = vmul.f32 %v840, %v843
        %v850 = vrot.slane %v844, 4
        %v851 = vrot.slane %v845, 4
        %v852 = vrot.slane %v846, 4
        %v856 = vadd.f32 %v835, %v850
        %v857 = vadd.f32 %v836, %v851
        %v858 = vadd.f32 %v837, %v852
        %v859 = vld [vmem:[%s0 + $0x48] sm:$0x30]
        %v860 = vld [vmem:[%s0 + $0x50] sm:$0x30]
        %v861 = vld [vmem:[%s0 + $0x58] sm:$0x30]
        %s862 = sadd.s32 %s718, 7
        %s863 = sld [smem:[#allocation4 + %s862]]
        %v864 = vstv %s863
        %v865 = vmul.f32 %v859, %v864
        %v866 = vmul.f32 %v860, %v864
        %v867 = vmul.f32 %v861, %v864
        %v871 = vrot.slane %v865, 4
        %v872 = vrot.slane %v866, 4
        %v873 = vrot.slane %v867, 4
        %v877 = vadd.f32 %v856, %v871
        %v878 = vadd.f32 %v857, %v872
        %v879 = vadd.f32 %v858, %v873
        %v880 = vld [vmem:[%s0 + $0x90] sm:$0x30]
        %v881 = vld [vmem:[%s0 + $0x98] sm:$0x30]
        %v882 = vld [vmem:[%s0 + $0xa0] sm:$0x30]
        %s883 = sadd.s32 %s718, 8
        %s884 = sld [smem:[#allocation4 + %s883]]
        %v885 = vstv %s884
        %v886 = vmul.f32 %v880, %v885
        %v887 = vmul.f32 %v881, %v885
        %v888 = vmul.f32 %v882, %v885
        %v892 = vrot.slane %v886, 4
        %v893 = vrot.slane %v887, 4
        %v894 = vrot.slane %v888, 4
        %v898 = vadd.f32 %v877, %v892
        %v899 = vadd.f32 %v878, %v893
        %v900 = vadd.f32 %v879, %v894
        %v901 = vmax.f32 %v898, 0.0
        %v902 = vmax.f32 %v899, 0.0
        %v903 = vmax.f32 %v900, 0.0
        %s904 = sld [smem:[#allocation8 + %s718]]
        %v905 = vstv %s904
        %v906 = vmul.f32 %v901, %v905
        %v907 = vmul.f32 %v902, %v905
        %v908 = vmul.f32 %v903, %v905
        %v909 = vadd.f32 %v721, %v906
        %v910 = vadd.f32 %v721, %v907
        %v911 = vadd.f32 %v721, %v908
        %s912 = sadd.s32 %s718, 16
        %s913 = sld [smem:[#allocation8 + %s912]]
        %v914 = vstv %s913
        %v915 = vmul.f32 %v901, %v914
        %v916 = vmul.f32 %v902, %v914
        %v917 = vmul.f32 %v903, %v914
        %v918 = vadd.f32 %v725, %v915
        %v919 = vadd.f32 %v725, %v916
        %v920 = vadd.f32 %v725, %v917
        %s921 = sadd.s32 %s718, 32
        %s922 = sld [smem:[#allocation8 + %s921]]
        %v923 = vstv %s922
        %v924 = vmul.f32 %v901, %v923
        %v925 = vmul.f32 %v902, %v923
        %v926 = vmul.f32 %v903, %v923
        %v927 = vadd.f32 %v729, %v924
        %v928 = vadd.f32 %v729, %v925
        %v929 = vadd.f32 %v729, %v926
        %s930 = sadd.s32 %s718, 48
        %s931 = sld [smem:[#allocation8 + %s930]]
        %v932 = vstv %s931
        %v933 = vmul.f32 %v901, %v932
        %v934 = vmul.f32 %v902, %v932
        %v935 = vmul.f32 %v903, %v932
        %v936 = vadd.f32 %v733, %v933
        %v937 = vadd.f32 %v733, %v934
        %v938 = vadd.f32 %v733, %v935
        %s939 = sadd.s32 %s718, 64
        %s940 = sld [smem:[#allocation8 + %s939]]
        %v941 = vstv %s940
        %v942 = vmul.f32 %v901, %v941
        %v943 = vmul.f32 %v902, %v941
        %v944 = vmul.f32 %v903, %v941
        %v945 = vadd.f32 %v737, %v942
        %v946 = vadd.f32 %v737, %v943
        %v947 = vadd.f32 %v737, %v944
        %s948 = sadd.s32 %s718, 80
        %s949 = sld [smem:[#allocation8 + %s948]]
        %v950 = vstv %s949
        %v951 = vmul.f32 %v901, %v950
        %v952 = vmul.f32 %v902, %v950
        %v953 = vmul.f32 %v903, %v950
        %v954 = vadd.f32 %v741, %v951
        %v955 = vadd.f32 %v741, %v952
        %v956 = vadd.f32 %v741, %v953
        %s957 = sld [smem:[#allocation6 + %s722]]
        %v958 = vstv %s957
        %v959 = vadd.f32 %v958, 0.0
        %s960 = sadd.s32 %s718, 9
        %s961 = sld [smem:[#allocation4 + %s960]]
        %v962 = vstv %s961
        %v963 = vmul.f32 %v745, %v962
        %v964 = vmul.f32 %v746, %v962
        %v965 = vmul.f32 %v747, %v962
        %v966 = vadd.f32 %v959, %v963
        %v967 = vadd.f32 %v959, %v964
        %v968 = vadd.f32 %v959, %v965
        %s969 = sadd.s32 %s718, 10
        %s970 = sld [smem:[#allocation4 + %s969]]
        %v971 = vstv %s970
        %v972 = vmul.f32 %v756, %v971
        %v973 = vmul.f32 %v757, %v971
        %v974 = vmul.f32 %v758, %v971
        %v975 = vadd.f32 %v966, %v972
        %v976 = vadd.f32 %v967, %v973
        %v977 = vadd.f32 %v968, %v974
        %s978 = sadd.s32 %s718, 11
        %s979 = sld [smem:[#allocation4 + %s978]]
        %v980 = vstv %s979
        %v981 = vmul.f32 %v767, %v980
        %v982 = vmul.f32 %v768, %v980
        %v983 = vmul.f32 %v769, %v980
        %v984 = vadd.f32 %v975, %v981
        %v985 = vadd.f32 %v976, %v982
        %v986 = vadd.f32 %v977, %v983
        %s987 = sadd.s32 %s718, 12
        %s988 = sld [smem:[#allocation4 + %s987]]
        %v989 = vstv %s988
        %v990 = vmul.f32 %v778, %v989
        %v991 = vmul.f32 %v779, %v989
        %v992 = vmul.f32 %v780, %v989
        %v996 = vrot.slane %v990, 2
        %v997 = vrot.slane %v991, 2
        %v998 = vrot.slane %v992, 2
        %v1002 = vadd.f32 %v984, %v996
        %v1003 = vadd.f32 %v985, %v997
        %v1004 = vadd.f32 %v986, %v998
        %s1005 = sadd.s32 %s718, 13
        %s1006 = sld [smem:[#allocation4 + %s1005]]
        %v1007 = vstv %s1006
        %v1008 = vmul.f32 %v798, %v1007
        %v1009 = vmul.f32 %v799, %v1007
        %v1010 = vmul.f32 %v800, %v1007
        %v1014 = vrot.slane %v1008, 2
        %v1015 = vrot.slane %v1009, 2
        %v1016 = vrot.slane %v1010, 2
        %v1020 = vadd.f32 %v1002, %v1014
        %v1021 = vadd.f32 %v1003, %v1015
        %v1022 = vadd.f32 %v1004, %v1016
        %s1023 = sadd.s32 %s718, 14
        %s1024 = sld [smem:[#allocation4 + %s1023]]
        %v1025 = vstv %s1024
        %v1026 = vmul.f32 %v818, %v1025
        %v1027 = vmul.f32 %v819, %v1025
        %v1028 = vmul.f32 %v820, %v1025
        %v1032 = vrot.slane %v1026, 2
        %v1033 = vrot.slane %v1027, 2
        %v1034 = vrot.slane %v1028, 2
        %v1038 = vadd.f32 %v1020, %v1032
        %v1039 = vadd.f32 %v1021, %v1033
        %v1040 = vadd.f32 %v1022, %v1034
        %s1041 = sadd.s32 %s718, 15
        %s1042 = sld [smem:[#allocation4 + %s1041]]
        %v1043 = vstv %s1042
        %v1044 = vmul.f32 %v838, %v1043
        %v1045 = vmul.f32 %v839, %v1043
        %v1046 = vmul.f32 %v840, %v1043
        %v1050 = vrot.slane %v1044, 4
        %v1051 = vrot.slane %v1045, 4
        %v1052 = vrot.slane %v1046, 4
        %v1056 = vadd.f32 %v1038, %v1050
        %v1057 = vadd.f32 %v1039, %v1051
        %v1058 = vadd.f32 %v1040, %v1052
        %s1059 = sld [smem:[#allocation4 + %s912]]
        %v1060 = vstv %s1059
        %v1061 = vmul.f32 %v859, %v1060
        %v1062 = vmul.f32 %v860, %v1060
        %v1063 = vmul.f32 %v861, %v1060
        %v1067 = vrot.slane %v1061, 4
        %v1068 = vrot.slane %v1062, 4
        %v1069 = vrot.slane %v1063, 4
        %v1073 = vadd.f32 %v1056, %v1067
        %v1074 = vadd.f32 %v1057, %v1068
        %v1075 = vadd.f32 %v1058, %v1069
        %s1076 = sadd.s32 %s718, 17
        %s1077 = sld [smem:[#allocation4 + %s1076]]
        %v1078 = vstv %s1077
        %v1079 = vmul.f32 %v880, %v1078
        %v1080 = vmul.f32 %v881, %v1078
        %v1081 = vmul.f32 %v882, %v1078
        %v1085 = vrot.slane %v1079, 4
        %v1086 = vrot.slane %v1080, 4
        %v1087 = vrot.slane %v1081, 4
        %v1091 = vadd.f32 %v1073, %v1085
        %v1092 = vadd.f32 %v1074, %v1086
        %v1093 = vadd.f32 %v1075, %v1087
        %v1094 = vmax.f32 %v1091, 0.0
        %v1095 = vmax.f32 %v1092, 0.0
        %v1096 = vmax.f32 %v1093, 0.0
        %s1097 = sld [smem:[#allocation8 + %s734]]
        %v1098 = vstv %s1097
        %v1099 = vmul.f32 %v1094, %v1098
        %v1100 = vmul.f32 %v1095, %v1098
        %v1101 = vmul.f32 %v1096, %v1098
        %v1102 = vadd.f32 %v909, %v1099
        %v1103 = vadd.f32 %v910, %v1100
        %v1104 = vadd.f32 %v911, %v1101
        %s1105 = sadd.s32 %s718, 20
        %s1106 = sld [smem:[#allocation8 + %s1105]]
        %v1107 = vstv %s1106
        %v1108 = vmul.f32 %v1094, %v1107
        %v1109 = vmul.f32 %v1095, %v1107
        %v1110 = vmul.f32 %v1096, %v1107
        %v1111 = vadd.f32 %v918, %v1108
        %v1112 = vadd.f32 %v919, %v1109
        %v1113 = vadd.f32 %v920, %v1110
        %s1114 = sadd.s32 %s718, 36
        %s1115 = sld [smem:[#allocation8 + %s1114]]
        %v1116 = vstv %s1115
        %v1117 = vmul.f32 %v1094, %v1116
        %v1118 = vmul.f32 %v1095, %v1116
        %v1119 = vmul.f32 %v1096, %v1116
        %v1120 = vadd.f32 %v927, %v1117
        %v1121 = vadd.f32 %v928, %v1118
        %v1122 = vadd.f32 %v929, %v1119
        %s1123 = sadd.s32 %s718, 52
        %s1124 = sld [smem:[#allocation8 + %s1123]]
        %v1125 = vstv %s1124
        %v1126 = vmul.f32 %v1094, %v1125
        %v1127 = vmul.f32 %v1095, %v1125
        %v1128 = vmul.f32 %v1096, %v1125
        %v1129 = vadd.f32 %v936, %v1126
        %v1130 = vadd.f32 %v937, %v1127
        %v1131 = vadd.f32 %v938, %v1128
        %s1132 = sadd.s32 %s718, 68
        %s1133 = sld [smem:[#allocation8 + %s1132]]
        %v1134 = vstv %s1133
        %v1135 = vmul.f32 %v1094, %v1134
        %v1136 = vmul.f32 %v1095, %v1134
        %v1137 = vmul.f32 %v1096, %v1134
        %v1138 = vadd.f32 %v945, %v1135
        %v1139 = vadd.f32 %v946, %v1136
        %v1140 = vadd.f32 %v947, %v1137
        %s1141 = sadd.s32 %s718, 84
        %s1142 = sld [smem:[#allocation8 + %s1141]]
        %v1143 = vstv %s1142
        %v1144 = vmul.f32 %v1094, %v1143
        %v1145 = vmul.f32 %v1095, %v1143
        %v1146 = vmul.f32 %v1096, %v1143
        %v1147 = vadd.f32 %v954, %v1144
        %v1148 = vadd.f32 %v955, %v1145
        %v1149 = vadd.f32 %v956, %v1146
        %s1150 = sld [smem:[#allocation6 + %s726]]
        %v1151 = vstv %s1150
        %v1152 = vadd.f32 %v1151, 0.0
        %s1153 = sadd.s32 %s718, 18
        %s1154 = sld [smem:[#allocation4 + %s1153]]
        %v1155 = vstv %s1154
        %v1156 = vmul.f32 %v745, %v1155
        %v1157 = vmul.f32 %v746, %v1155
        %v1158 = vmul.f32 %v747, %v1155
        %v1159 = vadd.f32 %v1152, %v1156
        %v1160 = vadd.f32 %v1152, %v1157
        %v1161 = vadd.f32 %v1152, %v1158
        %s1162 = sadd.s32 %s718, 19
        %s1163 = sld [smem:[#allocation4 + %s1162]]
        %v1164 = vstv %s1163
        %v1165 = vmul.f32 %v756, %v1164
        %v1166 = vmul.f32 %v757, %v1164
        %v1167 = vmul.f32 %v758, %v1164
        %v1168 = vadd.f32 %v1159, %v1165
        %v1169 = vadd.f32 %v1160, %v1166
        %v1170 = vadd.f32 %v1161, %v1167
        %s1171 = sld [smem:[#allocation4 + %s1105]]
        %v1172 = vstv %s1171
        %v1173 = vmul.f32 %v767, %v1172
        %v1174 = vmul.f32 %v768, %v1172
        %v1175 = vmul.f32 %v769, %v1172
        %v1176 = vadd.f32 %v1168, %v1173
        %v1177 = vadd.f32 %v1169, %v1174
        %v1178 = vadd.f32 %v1170, %v1175
        %s1179 = sadd.s32 %s718, 21
        %s1180 = sld [smem:[#allocation4 + %s1179]]
        %v1181 = vstv %s1180
        %v1182 = vmul.f32 %v778, %v1181
        %v1183 = vmul.f32 %v779, %v1181
        %v1184 = vmul.f32 %v780, %v1181
        %v1188 = vrot.slane %v1182, 2
        %v1189 = vrot.slane %v1183, 2
        %v1190 = vrot.slane %v1184, 2
        %v1194 = vadd.f32 %v1176, %v1188
        %v1195 = vadd.f32 %v1177, %v1189
        %v1196 = vadd.f32 %v1178, %v1190
        %s1197 = sadd.s32 %s718, 22
        %s1198 = sld [smem:[#allocation4 + %s1197]]
        %v1199 = vstv %s1198
        %v1200 = vmul.f32 %v798, %v1199
        %v1201 = vmul.f32 %v799, %v1199
        %v1202 = vmul.f32 %v800, %v1199
        %v1206 = vrot.slane %v1200, 2
        %v1207 = vrot.slane %v1201, 2
        %v1208 = vrot.slane %v1202, 2
        %v1212 = vadd.f32 %v1194, %v1206
        %v1213 = vadd.f32 %v1195, %v1207
        %v1214 = vadd.f32 %v1196, %v1208
        %s1215 = sadd.s32 %s718, 23
        %s1216 = sld [smem:[#allocation4 + %s1215]]
        %v1217 = vstv %s1216
        %v1218 = vmul.f32 %v818, %v1217
        %v1219 = vmul.f32 %v819, %v1217
        %v1220 = vmul.f32 %v820, %v1217
        %v1224 = vrot.slane %v1218, 2
        %v1225 = vrot.slane %v1219, 2
        %v1226 = vrot.slane %v1220, 2
        %v1230 = vadd.f32 %v1212, %v1224
        %v1231 = vadd.f32 %v1213, %v1225
        %v1232 = vadd.f32 %v1214, %v1226
        %s1233 = sadd.s32 %s718, 24
        %s1234 = sld [smem:[#allocation4 + %s1233]]
        %v1235 = vstv %s1234
        %v1236 = vmul.f32 %v838, %v1235
        %v1237 = vmul.f32 %v839, %v1235
        %v1238 = vmul.f32 %v840, %v1235
        %v1242 = vrot.slane %v1236, 4
        %v1243 = vrot.slane %v1237, 4
        %v1244 = vrot.slane %v1238, 4
        %v1248 = vadd.f32 %v1230, %v1242
        %v1249 = vadd.f32 %v1231, %v1243
        %v1250 = vadd.f32 %v1232, %v1244
        %s1251 = sadd.s32 %s718, 25
        %s1252 = sld [smem:[#allocation4 + %s1251]]
        %v1253 = vstv %s1252
        %v1254 = vmul.f32 %v859, %v1253
        %v1255 = vmul.f32 %v860, %v1253
        %v1256 = vmul.f32 %v861, %v1253
        %v1260 = vrot.slane %v1254, 4
        %v1261 = vrot.slane %v1255, 4
        %v1262 = vrot.slane %v1256, 4
        %v1266 = vadd.f32 %v1248, %v1260
        %v1267 = vadd.f32 %v1249, %v1261
        %v1268 = vadd.f32 %v1250, %v1262
        %s1269 = sadd.s32 %s718, 26
        %s1270 = sld [smem:[#allocation4 + %s1269]]
        %v1271 = vstv %s1270
        %v1272 = vmul.f32 %v880, %v1271
        %v1273 = vmul.f32 %v881, %v1271
        %v1274 = vmul.f32 %v882, %v1271
        %v1278 = vrot.slane %v1272, 4
        %v1279 = vrot.slane %v1273, 4
        %v1280 = vrot.slane %v1274, 4
        %v1284 = vadd.f32 %v1266, %v1278
        %v1285 = vadd.f32 %v1267, %v1279
        %v1286 = vadd.f32 %v1268, %v1280
        %v1287 = vmax.f32 %v1284, 0.0
        %v1288 = vmax.f32 %v1285, 0.0
        %v1289 = vmax.f32 %v1286, 0.0
        %s1290 = sld [smem:[#allocation8 + %s883]]
        %v1291 = vstv %s1290
        %v1292 = vmul.f32 %v1287, %v1291
        %v1293 = vmul.f32 %v1288, %v1291
        %v1294 = vmul.f32 %v1289, %v1291
        %v1295 = vadd.f32 %v1102, %v1292
        %v1296 = vadd.f32 %v1103, %v1293
        %v1297 = vadd.f32 %v1104, %v1294
        %s1298 = sld [smem:[#allocation8 + %s1233]]
        %v1299 = vstv %s1298
        %v1300 = vmul.f32 %v1287, %v1299
        %v1301 = vmul.f32 %v1288, %v1299
        %v1302 = vmul.f32 %v1289, %v1299
        %v1303 = vadd.f32 %v1111, %v1300
        %v1304 = vadd.f32 %v1112, %v1301
        %v1305 = vadd.f32 %v1113, %v1302
        %s1306 = sadd.s32 %s718, 40
        %s1307 = sld [smem:[#allocation8 + %s1306]]
        %v1308 = vstv %s1307
        %v1309 = vmul.f32 %v1287, %v1308
        %v1310 = vmul.f32 %v1288, %v1308
        %v1311 = vmul.f32 %v1289, %v1308
        %v1312 = vadd.f32 %v1120, %v1309
        %v1313 = vadd.f32 %v1121, %v1310
        %v1314 = vadd.f32 %v1122, %v1311
        %s1315 = sadd.s32 %s718, 56
        %s1316 = sld [smem:[#allocation8 + %s1315]]
        %v1317 = vstv %s1316
        %v1318 = vmul.f32 %v1287, %v1317
        %v1319 = vmul.f32 %v1288, %v1317
        %v1320 = vmul.f32 %v1289, %v1317
        %v1321 = vadd.f32 %v1129, %v1318
        %v1322 = vadd.f32 %v1130, %v1319
        %v1323 = vadd.f32 %v1131, %v1320
        %s1324 = sadd.s32 %s718, 72
        %s1325 = sld [smem:[#allocation8 + %s1324]]
        %v1326 = vstv %s1325
        %v1327 = vmul.f32 %v1287, %v1326
        %v1328 = vmul.f32 %v1288, %v1326
        %v1329 = vmul.f32 %v1289, %v1326
        %v1330 = vadd.f32 %v1138, %v1327
        %v1331 = vadd.f32 %v1139, %v1328
        %v1332 = vadd.f32 %v1140, %v1329
        %s1333 = sadd.s32 %s718, 88
        %s1334 = sld [smem:[#allocation8 + %s1333]]
        %v1335 = vstv %s1334
        %v1336 = vmul.f32 %v1287, %v1335
        %v1337 = vmul.f32 %v1288, %v1335
        %v1338 = vmul.f32 %v1289, %v1335
        %v1339 = vadd.f32 %v1147, %v1336
        %v1340 = vadd.f32 %v1148, %v1337
        %v1341 = vadd.f32 %v1149, %v1338
        %s1342 = sld [smem:[#allocation6 + %s730]]
        %v1343 = vstv %s1342
        %v1344 = vadd.f32 %v1343, 0.0
        %s1345 = sadd.s32 %s718, 27
        %s1346 = sld [smem:[#allocation4 + %s1345]]
        %v1347 = vstv %s1346
        %v1348 = vmul.f32 %v745, %v1347
        %v1349 = vmul.f32 %v746, %v1347
        %v1350 = vmul.f32 %v747, %v1347
        %v1351 = vadd.f32 %v1344, %v1348
        %v1352 = vadd.f32 %v1344, %v1349
        %v1353 = vadd.f32 %v1344, %v1350
        %s1354 = sadd.s32 %s718, 28
        %s1355 = sld [smem:[#allocation4 + %s1354]]
        %v1356 = vstv %s1355
        %v1357 = vmul.f32 %v756, %v1356
        %v1358 = vmul.f32 %v757, %v1356
        %v1359 = vmul.f32 %v758, %v1356
        %v1360 = vadd.f32 %v1351, %v1357
        %v1361 = vadd.f32 %v1352, %v1358
        %v1362 = vadd.f32 %v1353, %v1359
        %s1363 = sadd.s32 %s718, 29
        %s1364 = sld [smem:[#allocation4 + %s1363]]
        %v1365 = vstv %s1364
        %v1366 = vmul.f32 %v767, %v1365
        %v1367 = vmul.f32 %v768, %v1365
        %v1368 = vmul.f32 %v769, %v1365
        %v1369 = vadd.f32 %v1360, %v1366
        %v1370 = vadd.f32 %v1361, %v1367
        %v1371 = vadd.f32 %v1362, %v1368
        %s1372 = sadd.s32 %s718, 30
        %s1373 = sld [smem:[#allocation4 + %s1372]]
        %v1374 = vstv %s1373
        %v1375 = vmul.f32 %v778, %v1374
        %v1376 = vmul.f32 %v779, %v1374
        %v1377 = vmul.f32 %v780, %v1374
        %v1381 = vrot.slane %v1375, 2
        %v1382 = vrot.slane %v1376, 2
        %v1383 = vrot.slane %v1377, 2
        %v1387 = vadd.f32 %v1369, %v1381
        %v1388 = vadd.f32 %v1370, %v1382
        %v1389 = vadd.f32 %v1371, %v1383
        %s1390 = sadd.s32 %s718, 31
        %s1391 = sld [smem:[#allocation4 + %s1390]]
        %v1392 = vstv %s1391
        %v1393 = vmul.f32 %v798, %v1392
        %v1394 = vmul.f32 %v799, %v1392
        %v1395 = vmul.f32 %v800, %v1392
        %v1399 = vrot.slane %v1393, 2
        %v1400 = vrot.slane %v1394, 2
        %v1401 = vrot.slane %v1395, 2
        %v1405 = vadd.f32 %v1387, %v1399
        %v1406 = vadd.f32 %v1388, %v1400
        %v1407 = vadd.f32 %v1389, %v1401
        %s1408 = sld [smem:[#allocation4 + %s921]]
        %v1409 = vstv %s1408
        %v1410 = vmul.f32 %v818, %v1409
        %v1411 = vmul.f32 %v819, %v1409
        %v1412 = vmul.f32 %v820, %v1409
        %v1416 = vrot.slane %v1410, 2
        %v1417 = vrot.slane %v1411, 2
        %v1418 = vrot.slane %v1412, 2
        %v1422 = vadd.f32 %v1405, %v1416
        %v1423 = vadd.f32 %v1406, %v1417
        %v1424 = vadd.f32 %v1407, %v1418
        %s1425 = sadd.s32 %s718, 33
        %s1426 = sld [smem:[#allocation4 + %s1425]]
        %v1427 = vstv %s1426
        %v1428 = vmul.f32 %v838, %v1427
        %v1429 = vmul.f32 %v839, %v1427
        %v1430 = vmul.f32 %v840, %v1427
        %v1434 = vrot.slane %v1428, 4
        %v1435 = vrot.slane %v1429, 4
        %v1436 = vrot.slane %v1430, 4
        %v1440 = vadd.f32 %v1422, %v1434
        %v1441 = vadd.f32 %v1423, %v1435
        %v1442 = vadd.f32 %v1424, %v1436
        %s1443 = sadd.s32 %s718, 34
        %s1444 = sld [smem:[#allocation4 + %s1443]]
        %v1445 = vstv %s1444
        %v1446 = vmul.f32 %v859, %v1445
        %v1447 = vmul.f32 %v860, %v1445
        %v1448 = vmul.f32 %v861, %v1445
        %v1452 = vrot.slane %v1446, 4
        %v1453 = vrot.slane %v1447, 4
        %v1454 = vrot.slane %v1448, 4
        %v1458 = vadd.f32 %v1440, %v1452
        %v1459 = vadd.f32 %v1441, %v1453
        %v1460 = vadd.f32 %v1442, %v1454
        %s1461 = sadd.s32 %s718, 35
        %s1462 = sld [smem:[#allocation4 + %s1461]]
        %v1463 = vstv %s1462
        %v1464 = vmul.f32 %v880, %v1463
        %v1465 = vmul.f32 %v881, %v1463
        %v1466 = vmul.f32 %v882, %v1463
        %v1470 = vrot.slane %v1464, 4
        %v1471 = vrot.slane %v1465, 4
        %v1472 = vrot.slane %v1466, 4
        %v1476 = vadd.f32 %v1458, %v1470
        %v1477 = vadd.f32 %v1459, %v1471
        %v1478 = vadd.f32 %v1460, %v1472
        %v1479 = vmax.f32 %v1476, 0.0
        %v1480 = vmax.f32 %v1477, 0.0
        %v1481 = vmax.f32 %v1478, 0.0
        %s1482 = sld [smem:[#allocation8 + %s987]]
        %v1483 = vstv %s1482
        %v1484 = vmul.f32 %v1479, %v1483
        %v1485 = vmul.f32 %v1480, %v1483
        %v1486 = vmul.f32 %v1481, %v1483
        %v1487 = vadd.f32 %v1295, %v1484
        %v1488 = vadd.f32 %v1296, %v1485
        %v1489 = vadd.f32 %v1297, %v1486
        %s1490 = sld [smem:[#allocation8 + %s1354]]
        %v1491 = vstv %s1490
        %v1492 = vmul.f32 %v1479, %v1491
        %v1493 = vmul.f32 %v1480, %v1491
        %v1494 = vmul.f32 %v1481, %v1491
        %v1495 = vadd.f32 %v1303, %v1492
        %v1496 = vadd.f32 %v1304, %v1493
        %v1497 = vadd.f32 %v1305, %v1494
        %s1498 = sadd.s32 %s718, 44
        %s1499 = sld [smem:[#allocation8 + %s1498]]
        %v1500 = vstv %s1499
        %v1501 = vmul.f32 %v1479, %v1500
        %v1502 = vmul.f32 %v1480, %v1500
        %v1503 = vmul.f32 %v1481, %v1500
        %v1504 = vadd.f32 %v1312, %v1501
        %v1505 = vadd.f32 %v1313, %v1502
        %v1506 = vadd.f32 %v1314, %v1503
        %s1507 = sadd.s32 %s718, 60
        %s1508 = sld [smem:[#allocation8 + %s1507]]
        %v1509 = vstv %s1508
        %v1510 = vmul.f32 %v1479, %v1509
        %v1511 = vmul.f32 %v1480, %v1509
        %v1512 = vmul.f32 %v1481, %v1509
        %v1513 = vadd.f32 %v1321, %v1510
        %v1514 = vadd.f32 %v1322, %v1511
        %v1515 = vadd.f32 %v1323, %v1512
        %s1516 = sadd.s32 %s718, 76
        %s1517 = sld [smem:[#allocation8 + %s1516]]
        %v1518 = vstv %s1517
        %v1519 = vmul.f32 %v1479, %v1518
        %v1520 = vmul.f32 %v1480, %v1518
        %v1521 = vmul.f32 %v1481, %v1518
        %v1522 = vadd.f32 %v1330, %v1519
        %v1523 = vadd.f32 %v1331, %v1520
        %v1524 = vadd.f32 %v1332, %v1521
        %s1525 = sadd.s32 %s718, 92
        %s1526 = sld [smem:[#allocation8 + %s1525]]
        %v1527 = vstv %s1526
        %v1528 = vmul.f32 %v1479, %v1527
        %v1529 = vmul.f32 %v1480, %v1527
        %v1530 = vmul.f32 %v1481, %v1527
        %v1531 = vadd.f32 %v1339, %v1528
        %v1532 = vadd.f32 %v1340, %v1529
        %v1533 = vadd.f32 %v1341, %v1530
        %v1534 = vld [vmem:[%s0] sm:$0xc0]
        %v1535 = vld [vmem:[%s0 + $0x8] sm:$0xc0]
        %v1536 = vld [vmem:[%s0 + $0x10] sm:$0xc0]
        %v1537 = vmul.f32 %v1534, %v749
        %v1538 = vmul.f32 %v1535, %v749
        %v1539 = vmul.f32 %v1536, %v749
        %v1540 = vadd.f32 %v744, %v1537
        %v1541 = vadd.f32 %v744, %v1538
        %v1542 = vadd.f32 %v744, %v1539
        %v1543 = vld [vmem:[%s0 + $0x48] sm:$0xc0]
        %v1544 = vld [vmem:[%s0 + $0x50] sm:$0xc0]
        %v1545 = vld [vmem:[%s0 + $0x58] sm:$0xc0]
        %v1546 = vmul.f32 %v1543, %v760
        %v1547 = vmul.f32 %v1544, %v760
        %v1548 = vmul.f32 %v1545, %v760
        %v1549 = vadd.f32 %v1540, %v1546
        %v1550 = vadd.f32 %v1541, %v1547
        %v1551 = vadd.f32 %v1542, %v1548
        %v1552 = vld [vmem:[%s0 + $0x90] sm:$0xc0]
        %v1553 = vld [vmem:[%s0 + $0x98] sm:$0xc0]
        %v1554 = vld [vmem:[%s0 + $0xa0] sm:$0xc0]
        %v1555 = vmul.f32 %v1552, %v771
        %v1556 = vmul.f32 %v1553, %v771
        %v1557 = vmul.f32 %v1554, %v771
        %v1558 = vadd.f32 %v1549, %v1555
        %v1559 = vadd.f32 %v1550, %v1556
        %v1560 = vadd.f32 %v1551, %v1557
        %v1561 = vld [vmem:[%s0 + $0x18] sm:$0x3]
        %v1562 = vld [vmem:[%s0 + $0x20] sm:$0x3]
        %v1563 = vld [vmem:[%s0 + $0x28] sm:$0x3]
        %v1564 = vmul.f32 %v1561, %v782
        %v1565 = vmul.f32 %v1562, %v782
        %v1566 = vmul.f32 %v1563, %v782
        %v1570 = vrot.slane %v1564, 2
        %v1571 = vrot.slane %v1565, 2
        %v1572 = vrot.slane %v1566, 2
        %v1576 = vadd.f32 %v1558, %v1570
        %v1577 = vadd.f32 %v1559, %v1571
        %v1578 = vadd.f32 %v1560, %v1572
        %v1579 = vld [vmem:[%s0 + $0x60] sm:$0x3]
        %v1580 = vld [vmem:[%s0 + $0x68] sm:$0x3]
        %v1581 = vld [vmem:[%s0 + $0x70] sm:$0x3]
        %v1582 = vmul.f32 %v1579, %v802
        %v1583 = vmul.f32 %v1580, %v802
        %v1584 = vmul.f32 %v1581, %v802
        %v1588 = vrot.slane %v1582, 2
        %v1589 = vrot.slane %v1583, 2
        %v1590 = vrot.slane %v1584, 2
        %v1594 = vadd.f32 %v1576, %v1588
        %v1595 = vadd.f32 %v1577, %v1589
        %v1596 = vadd.f32 %v1578, %v1590
        %v1597 = vld [vmem:[%s0 + $0xa8] sm:$0x3]
        %v1598 = vld [vmem:[%s0 + $0xb0] sm:$0x3]
        %v1599 = vld [vmem:[%s0 + $0xb8] sm:$0x3]
        %v1600 = vmul.f32 %v1597, %v822
        %v1601 = vmul.f32 %v1598, %v822
        %v1602 = vmul.f32 %v1599, %v822
        %v1606 = vrot.slane %v1600, 2
        %v1607 = vrot.slane %v1601, 2
        %v1608 = vrot.slane %v1602, 2
        %v1612 = vadd.f32 %v1594, %v1606
        %v1613 = vadd.f32 %v1595, %v1607
        %v1614 = vadd.f32 %v1596, %v1608
        %v1615 = vld [vmem:[%s0 + $0x18] sm:$0xc]
        %v1616 = vld [vmem:[%s0 + $0x20] sm:$0xc]
        %v1617 = vld [vmem:[%s0 + $0x28] sm:$0xc]
        %v1618 = vmul.f32 %v1615, %v843
        %v1619 = vmul.f32 %v1616, %v843
        %v1620 = vmul.f32 %v1617, %v843
        %v1624 = vrot.slane %v1618, 4
        %v1625 = vrot.slane %v1619, 4
        %v1626 = vrot.slane %v1620, 4
        %v1630 = vadd.f32 %v1612, %v1624
        %v1631 = vadd.f32 %v1613, %v1625
        %v1632 = vadd.f32 %v1614, %v1626
        %v1633 = vld [vmem:[%s0 + $0x60] sm:$0xc]
        %v1634 = vld [vmem:[%s0 + $0x68] sm:$0xc]
        %v1635 = vld [vmem:[%s0 + $0x70] sm:$0xc]
        %v1636 = vmul.f32 %v1633, %v864
        %v1637 = vmul.f32 %v1634, %v864
        %v1638 = vmul.f32 %v1635, %v864
        %v1642 = vrot.slane %v1636, 4
        %v1643 = vrot.slane %v1637, 4
        %v1644 = vrot.slane %v1638, 4
        %v1648 = vadd.f32 %v1630, %v1642
        %v1649 = vadd.f32 %v1631, %v1643
        %v1650 = vadd.f32 %v1632, %v1644
        %v1651 = vld [vmem:[%s0 + $0xa8] sm:$0xc]
        %v1652 = vld [vmem:[%s0 + $0xb0] sm:$0xc]
        %v1653 = vld [vmem:[%s0 + $0xb8] sm:$0xc]
        %v1654 = vmul.f32 %v1651, %v885
        %v1655 = vmul.f32 %v1652, %v885
        %v1656 = vmul.f32 %v1653, %v885
        %v1660 = vrot.slane %v1654, 4
        %v1661 = vrot.slane %v1655, 4
        %v1662 = vrot.slane %v1656, 4
        %v1666 = vadd.f32 %v1648, %v1660
        %v1667 = vadd.f32 %v1649, %v1661
        %v1668 = vadd.f32 %v1650, %v1662
        %v1669 = vmax.f32 %v1666, 0.0
        %v1670 = vmax.f32 %v1667, 0.0
        %v1671 = vmax.f32 %v1668, 0.0
        %s1672 = sld [smem:[#allocation8 + %s722]]
        %v1673 = vstv %s1672
        %v1674 = vmul.f32 %v1669, %v1673
        %v1675 = vmul.f32 %v1670, %v1673
        %v1676 = vmul.f32 %v1671, %v1673
        %v1680 = vrot.slane %v1674, 6
        %v1681 = vrot.slane %v1675, 6
        %v1682 = vrot.slane %v1676, 6
        %v1686 = vadd.f32 %v1487, %v1680
        %v1687 = vadd.f32 %v1488, %v1681
        %v1688 = vadd.f32 %v1489, %v1682
        %s1689 = sld [smem:[#allocation8 + %s1076]]
        %v1690 = vstv %s1689
        %v1691 = vmul.f32 %v1669, %v1690
        %v1692 = vmul.f32 %v1670, %v1690
        %v1693 = vmul.f32 %v1671, %v1690
        %v1697 = vrot.slane %v1691, 6
        %v1698 = vrot.slane %v1692, 6
        %v1699 = vrot.slane %v1693, 6
        %v1703 = vadd.f32 %v1495, %v1697
        %v1704 = vadd.f32 %v1496, %v1698
        %v1705 = vadd.f32 %v1497, %v1699
        %s1706 = sld [smem:[#allocation8 + %s1425]]
        %v1707 = vstv %s1706
        %v1708 = vmul.f32 %v1669, %v1707
        %v1709 = vmul.f32 %v1670, %v1707
        %v1710 = vmul.f32 %v1671, %v1707
        %v1714 = vrot.slane %v1708, 6
        %v1715 = vrot.slane %v1709, 6
        %v1716 = vrot.slane %v1710, 6
        %v1720 = vadd.f32 %v1504, %v1714
        %v1721 = vadd.f32 %v1505, %v1715
        %v1722 = vadd.f32 %v1506, %v1716
        %s1723 = sadd.s32 %s718, 49
        %s1724 = sld [smem:[#allocation8 + %s1723]]
        %v1725 = vstv %s1724
        %v1726 = vmul.f32 %v1669, %v1725
        %v1727 = vmul.f32 %v1670, %v1725
        %v1728 = vmul.f32 %v1671, %v1725
        %v1732 = vrot.slane %v1726, 6
        %v1733 = vrot.slane %v1727, 6
        %v1734 = vrot.slane %v1728, 6
        %v1738 = vadd.f32 %v1513, %v1732
        %v1739 = vadd.f32 %v1514, %v1733
        %v1740 = vadd.f32 %v1515, %v1734
        %s1741 = sadd.s32 %s718, 65
        %s1742 = sld [smem:[#allocation8 + %s1741]]
        %v1743 = vstv %s1742
        %v1744 = vmul.f32 %v1669, %v1743
        %v1745 = vmul.f32 %v1670, %v1743
        %v1746 = vmul.f32 %v1671, %v1743
        %v1750 = vrot.slane %v1744, 6
        %v1751 = vrot.slane %v1745, 6
        %v1752 = vrot.slane %v1746, 6
        %v1756 = vadd.f32 %v1522, %v1750
        %v1757 = vadd.f32 %v1523, %v1751
        %v1758 = vadd.f32 %v1524, %v1752
        %s1759 = sadd.s32 %s718, 81
        %s1760 = sld [smem:[#allocation8 + %s1759]]
        %v1761 = vstv %s1760
        %v1762 = vmul.f32 %v1669, %v1761
        %v1763 = vmul.f32 %v1670, %v1761
        %v1764 = vmul.f32 %v1671, %v1761
        %v1768 = vrot.slane %v1762, 6
        %v1769 = vrot.slane %v1763, 6
        %v1770 = vrot.slane %v1764, 6
        %v1774 = vadd.f32 %v1531, %v1768
        %v1775 = vadd.f32 %v1532, %v1769
        %v1776 = vadd.f32 %v1533, %v1770
        %v1777 = vmul.f32 %v1534, %v962
        %v1778 = vmul.f32 %v1535, %v962
        %v1779 = vmul.f32 %v1536, %v962
        %v1780 = vadd.f32 %v959, %v1777
        %v1781 = vadd.f32 %v959, %v1778
        %v1782 = vadd.f32 %v959, %v1779
        %v1783 = vmul.f32 %v1543, %v971
        %v1784 = vmul.f32 %v1544, %v971
        %v1785 = vmul.f32 %v1545, %v971
        %v1786 = vadd.f32 %v1780, %v1783
        %v1787 = vadd.f32 %v1781, %v1784
        %v1788 = vadd.f32 %v1782, %v1785
        %v1789 = vmul.f32 %v1552, %v980
        %v1790 = vmul.f32 %v1553, %v980
        %v1791 = vmul.f32 %v1554, %v980
        %v1792 = vadd.f32 %v1786, %v1789
        %v1793 = vadd.f32 %v1787, %v1790
        %v1794 = vadd.f32 %v1788, %v1791
        %v1795 = vmul.f32 %v1561, %v989
        %v1796 = vmul.f32 %v1562, %v989
        %v1797 = vmul.f32 %v1563, %v989
        %v1801 = vrot.slane %v1795, 2
        %v1802 = vrot.slane %v1796, 2
        %v1803 = vrot.slane %v1797, 2
        %v1807 = vadd.f32 %v1792, %v1801
        %v1808 = vadd.f32 %v1793, %v1802
        %v1809 = vadd.f32 %v1794, %v1803
        %v1810 = vmul.f32 %v1579, %v1007
        %v1811 = vmul.f32 %v1580, %v1007
        %v1812 = vmul.f32 %v1581, %v1007
        %v1816 = vrot.slane %v1810, 2
        %v1817 = vrot.slane %v1811, 2
        %v1818 = vrot.slane %v1812, 2
        %v1822 = vadd.f32 %v1807, %v1816
        %v1823 = vadd.f32 %v1808, %v1817
        %v1824 = vadd.f32 %v1809, %v1818
        %v1825 = vmul.f32 %v1597, %v1025
        %v1826 = vmul.f32 %v1598, %v1025
        %v1827 = vmul.f32 %v1599, %v1025
        %v1831 = vrot.slane %v1825, 2
        %v1832 = vrot.slane %v1826, 2
        %v1833 = vrot.slane %v1827, 2
        %v1837 = vadd.f32 %v1822, %v1831
        %v1838 = vadd.f32 %v1823, %v1832
        %v1839 = vadd.f32 %v1824, %v1833
        %v1840 = vmul.f32 %v1615, %v1043
        %v1841 = vmul.f32 %v1616, %v1043
        %v1842 = vmul.f32 %v1617, %v1043
        %v1846 = vrot.slane %v1840, 4
        %v1847 = vrot.slane %v1841, 4
        %v1848 = vrot.slane %v1842, 4
        %v1852 = vadd.f32 %v1837, %v1846
        %v1853 = vadd.f32 %v1838, %v1847
        %v1854 = vadd.f32 %v1839, %v1848
        %v1855 = vmul.f32 %v1633, %v1060
        %v1856 = vmul.f32 %v1634, %v1060
        %v1857 = vmul.f32 %v1635, %v1060
        %v1861 = vrot.slane %v1855, 4
        %v1862 = vrot.slane %v1856, 4
        %v1863 = vrot.slane %v1857, 4
        %v1867 = vadd.f32 %v1852, %v1861
        %v1868 = vadd.f32 %v1853, %v1862
        %v1869 = vadd.f32 %v1854, %v1863
        %v1870 = vmul.f32 %v1651, %v1078
        %v1871 = vmul.f32 %v1652, %v1078
        %v1872 = vmul.f32 %v1653, %v1078
        %v1876 = vrot.slane %v1870, 4
        %v1877 = vrot.slane %v1871, 4
        %v1878 = vrot.slane %v1872, 4
        %v1882 = vadd.f32 %v1867, %v1876
        %v1883 = vadd.f32 %v1868, %v1877
        %v1884 = vadd.f32 %v1869, %v1878
        %v1885 = vmax.f32 %v1882, 0.0
        %v1886 = vmax.f32 %v1883, 0.0
        %v1887 = vmax.f32 %v1884, 0.0
        %s1888 = sld [smem:[#allocation8 + %s738]]
        %v1889 = vstv %s1888
        %v1890 = vmul.f32 %v1885, %v1889
        %v1891 = vmul.f32 %v1886, %v1889
        %v1892 = vmul.f32 %v1887, %v1889
        %v1896 = vrot.slane %v1890, 6
        %v1897 = vrot.slane %v1891, 6
        %v1898 = vrot.slane %v1892, 6
        %v1902 = vadd.f32 %v1686, %v1896
        %v1903 = vadd.f32 %v1687, %v1897
        %v1904 = vadd.f32 %v1688, %v1898
        %s1905 = sld [smem:[#allocation8 + %s1179]]
        %v1906 = vstv %s1905
        %v1907 = vmul.f32 %v1885, %v1906
        %v1908 = vmul.f32 %v1886, %v1906
        %v1909 = vmul.f32 %v1887, %v1906
        %v1913 = vrot.slane %v1907, 6
        %v1914 = vrot.slane %v1908, 6
        %v1915 = vrot.slane %v1909, 6
        %v1919 = vadd.f32 %v1703, %v1913
        %v1920 = vadd.f32 %v1704, %v1914
        %v1921 = vadd.f32 %v1705, %v1915
        %s1922 = sadd.s32 %s718, 37
        %s1923 = sld [smem:[#allocation8 + %s1922]]
        %v1924 = vstv %s1923
        %v1925 = vmul.f32 %v1885, %v1924
        %v1926 = vmul.f32 %v1886, %v1924
        %v1927 = vmul.f32 %v1887, %v1924
        %v1931 = vrot.slane %v1925, 6
        %v1932 = vrot.slane %v1926, 6
        %v1933 = vrot.slane %v1927, 6
        %v1937 = vadd.f32 %v1720, %v1931
        %v1938 = vadd.f32 %v1721, %v1932
        %v1939 = vadd.f32 %v1722, %v1933
        %s1940 = sadd.s32 %s718, 53
        %s1941 = sld [smem:[#allocation8 + %s1940]]
        %v1942 = vstv %s1941
        %v1943 = vmul.f32 %v1885, %v1942
        %v1944 = vmul.f32 %v1886, %v1942
        %v1945 = vmul.f32 %v1887, %v1942
        %v1949 = vrot.slane %v1943, 6
        %v1950 = vrot.slane %v1944, 6
        %v1951 = vrot.slane %v1945, 6
        %v1955 = vadd.f32 %v1738, %v1949
        %v1956 = vadd.f32 %v1739, %v1950
        %v1957 = vadd.f32 %v1740, %v1951
        %s1958 = sadd.s32 %s718, 69
        %s1959 = sld [smem:[#allocation8 + %s1958]]
        %v1960 = vstv %s1959
        %v1961 = vmul.f32 %v1885, %v1960
        %v1962 = vmul.f32 %v1886, %v1960
        %v1963 = vmul.f32 %v1887, %v1960
        %v1967 = vrot.slane %v1961, 6
        %v1968 = vrot.slane %v1962, 6
        %v1969 = vrot.slane %v1963, 6
        %v1973 = vadd.f32 %v1756, %v1967
        %v1974 = vadd.f32 %v1757, %v1968
        %v1975 = vadd.f32 %v1758, %v1969
        %s1976 = sadd.s32 %s718, 85
        %s1977 = sld [smem:[#allocation8 + %s1976]]
        %v1978 = vstv %s1977
        %v1979 = vmul.f32 %v1885, %v1978
        %v1980 = vmul.f32 %v1886, %v1978
        %v1981 = vmul.f32 %v1887, %v1978
        %v1985 = vrot.slane %v1979, 6
        %v1986 = vrot.slane %v1980, 6
        %v1987 = vrot.slane %v1981, 6
        %v1991 = vadd.f32 %v1774, %v1985
        %v1992 = vadd.f32 %v1775, %v1986
        %v1993 = vadd.f32 %v1776, %v1987
        %v1994 = vmul.f32 %v1534, %v1155
        %v1995 = vmul.f32 %v1535, %v1155
        %v1996 = vmul.f32 %v1536, %v1155
        %v1997 = vadd.f32 %v1152, %v1994
        %v1998 = vadd.f32 %v1152, %v1995
        %v1999 = vadd.f32 %v1152, %v1996
        %v2000 = vmul.f32 %v1543, %v1164
        %v2001 = vmul.f32 %v1544, %v1164
        %v2002 = vmul.f32 %v1545, %v1164
        %v2003 = vadd.f32 %v1997, %v2000
        %v2004 = vadd.f32 %v1998, %v2001
        %v2005 = vadd.f32 %v1999, %v2002
        %v2006 = vmul.f32 %v1552, %v1172
        %v2007 = vmul.f32 %v1553, %v1172
        %v2008 = vmul.f32 %v1554, %v1172
        %v2009 = vadd.f32 %v2003, %v2006
        %v2010 = vadd.f32 %v2004, %v2007
        %v2011 = vadd.f32 %v2005, %v2008
        %v2012 = vmul.f32 %v1561, %v1181
        %v2013 = vmul.f32 %v1562, %v1181
        %v2014 = vmul.f32 %v1563, %v1181
        %v2018 = vrot.slane %v2012, 2
        %v2019 = vrot.slane %v2013, 2
        %v2020 = vrot.slane %v2014, 2
        %v2024 = vadd.f32 %v2009, %v2018
        %v2025 = vadd.f32 %v2010, %v2019
        %v2026 = vadd.f32 %v2011, %v2020
        %v2027 = vmul.f32 %v1579, %v1199
        %v2028 = vmul.f32 %v1580, %v1199
        %v2029 = vmul.f32 %v1581, %v1199
        %v2033 = vrot.slane %v2027, 2
        %v2034 = vrot.slane %v2028, 2
        %v2035 = vrot.slane %v2029, 2
        %v2039 = vadd.f32 %v2024, %v2033
        %v2040 = vadd.f32 %v2025, %v2034
        %v2041 = vadd.f32 %v2026, %v2035
        %v2042 = vmul.f32 %v1597, %v1217
        %v2043 = vmul.f32 %v1598, %v1217
        %v2044 = vmul.f32 %v1599, %v1217
        %v2048 = vrot.slane %v2042, 2
        %v2049 = vrot.slane %v2043, 2
        %v2050 = vrot.slane %v2044, 2
        %v2054 = vadd.f32 %v2039, %v2048
        %v2055 = vadd.f32 %v2040, %v2049
        %v2056 = vadd.f32 %v2041, %v2050
        %v2057 = vmul.f32 %v1615, %v1235
        %v2058 = vmul.f32 %v1616, %v1235
        %v2059 = vmul.f32 %v1617, %v1235
        %v2063 = vrot.slane %v2057, 4
        %v2064 = vrot.slane %v2058, 4
        %v2065 = vrot.slane %v2059, 4
        %v2069 = vadd.f32 %v2054, %v2063
        %v2070 = vadd.f32 %v2055, %v2064
        %v2071 = vadd.f32 %v2056, %v2065
        %v2072 = vmul.f32 %v1633, %v1253
        %v2073 = vmul.f32 %v1634, %v1253
        %v2074 = vmul.f32 %v1635, %v1253
        %v2078 = vrot.slane %v2072, 4
        %v2079 = vrot.slane %v2073, 4
        %v2080 = vrot.slane %v2074, 4
        %v2084 = vadd.f32 %v2069, %v2078
        %v2085 = vadd.f32 %v2070, %v2079
        %v2086 = vadd.f32 %v2071, %v2080
        %v2087 = vmul.f32 %v1651, %v1271
        %v2088 = vmul.f32 %v1652, %v1271
        %v2089 = vmul.f32 %v1653, %v1271
        %v2093 = vrot.slane %v2087, 4
        %v2094 = vrot.slane %v2088, 4
        %v2095 = vrot.slane %v2089, 4
        %v2099 = vadd.f32 %v2084, %v2093
        %v2100 = vadd.f32 %v2085, %v2094
        %v2101 = vadd.f32 %v2086, %v2095
        %v2102 = vmax.f32 %v2099, 0.0
        %v2103 = vmax.f32 %v2100, 0.0
        %v2104 = vmax.f32 %v2101, 0.0
        %s2105 = sld [smem:[#allocation8 + %s960]]
        %v2106 = vstv %s2105
        %v2107 = vmul.f32 %v2102, %v2106
        %v2108 = vmul.f32 %v2103, %v2106
        %v2109 = vmul.f32 %v2104, %v2106
        %v2113 = vrot.slane %v2107, 6
        %v2114 = vrot.slane %v2108, 6
        %v2115 = vrot.slane %v2109, 6
        %v2119 = vadd.f32 %v1902, %v2113
        %v2120 = vadd.f32 %v1903, %v2114
        %v2121 = vadd.f32 %v1904, %v2115
        %s2122 = sld [smem:[#allocation8 + %s1251]]
        %v2123 = vstv %s2122
        %v2124 = vmul.f32 %v2102, %v2123
        %v2125 = vmul.f32 %v2103, %v2123
        %v2126 = vmul.f32 %v2104, %v2123
        %v2130 = vrot.slane %v2124, 6
        %v2131 = vrot.slane %v2125, 6
        %v2132 = vrot.slane %v2126, 6
        %v2136 = vadd.f32 %v1919, %v2130
        %v2137 = vadd.f32 %v1920, %v2131
        %v2138 = vadd.f32 %v1921, %v2132
        %s2139 = sadd.s32 %s718, 41
        %s2140 = sld [smem:[#allocation8 + %s2139]]
        %v2141 = vstv %s2140
        %v2142 = vmul.f32 %v2102, %v2141
        %v2143 = vmul.f32 %v2103, %v2141
        %v2144 = vmul.f32 %v2104, %v2141
        %v2148 = vrot.slane %v2142, 6
        %v2149 = vrot.slane %v2143, 6
        %v2150 = vrot.slane %v2144, 6
        %v2154 = vadd.f32 %v1937, %v2148
        %v2155 = vadd.f32 %v1938, %v2149
        %v2156 = vadd.f32 %v1939, %v2150
        %s2157 = sadd.s32 %s718, 57
        %s2158 = sld [smem:[#allocation8 + %s2157]]
        %v2159 = vstv %s2158
        %v2160 = vmul.f32 %v2102, %v2159
        %v2161 = vmul.f32 %v2103, %v2159
        %v2162 = vmul.f32 %v2104, %v2159
        %v2166 = vrot.slane %v2160, 6
        %v2167 = vrot.slane %v2161, 6
        %v2168 = vrot.slane %v2162, 6
        %v2172 = vadd.f32 %v1955, %v2166
        %v2173 = vadd.f32 %v1956, %v2167
        %v2174 = vadd.f32 %v1957, %v2168
        %s2175 = sadd.s32 %s718, 73
        %s2176 = sld [smem:[#allocation8 + %s2175]]
        %v2177 = vstv %s2176
        %v2178 = vmul.f32 %v2102, %v2177
        %v2179 = vmul.f32 %v2103, %v2177
        %v2180 = vmul.f32 %v2104, %v2177
        %v2184 = vrot.slane %v2178, 6
        %v2185 = vrot.slane %v2179, 6
        %v2186 = vrot.slane %v2180, 6
        %v2190 = vadd.f32 %v1973, %v2184
        %v2191 = vadd.f32 %v1974, %v2185
        %v2192 = vadd.f32 %v1975, %v2186
        %s2193 = sadd.s32 %s718, 89
        %s2194 = sld [smem:[#allocation8 + %s2193]]
        %v2195 = vstv %s2194
        %v2196 = vmul.f32 %v2102, %v2195
        %v2197 = vmul.f32 %v2103, %v2195
        %v2198 = vmul.f32 %v2104, %v2195
        %v2202 = vrot.slane %v2196, 6
        %v2203 = vrot.slane %v2197, 6
        %v2204 = vrot.slane %v2198, 6
        %v2208 = vadd.f32 %v1991, %v2202
        %v2209 = vadd.f32 %v1992, %v2203
        %v2210 = vadd.f32 %v1993, %v2204
        %v2211 = vmul.f32 %v1534, %v1347
        %v2212 = vmul.f32 %v1535, %v1347
        %v2213 = vmul.f32 %v1536, %v1347
        %v2214 = vadd.f32 %v1344, %v2211
        %v2215 = vadd.f32 %v1344, %v2212
        %v2216 = vadd.f32 %v1344, %v2213
        %v2217 = vmul.f32 %v1543, %v1356
        %v2218 = vmul.f32 %v1544, %v1356
        %v2219 = vmul.f32 %v1545, %v1356
        %v2220 = vadd.f32 %v2214, %v2217
        %v2221 = vadd.f32 %v2215, %v2218
        %v2222 = vadd.f32 %v2216, %v2219
        %v2223 = vmul.f32 %v1552, %v1365
        %v2224 = vmul.f32 %v1553, %v1365
        %v2225 = vmul.f32 %v1554, %v1365
        %v2226 = vadd.f32 %v2220, %v2223
        %v2227 = vadd.f32 %v2221, %v2224
        %v2228 = vadd.f32 %v2222, %v2225
        %v2229 = vmul.f32 %v1561, %v1374
        %v2230 = vmul.f32 %v1562, %v1374
        %v2231 = vmul.f32 %v1563, %v1374
        %v2235 = vrot.slane %v2229, 2
        %v2236 = vrot.slane %v2230, 2
        %v2237 = vrot.slane %v2231, 2
        %v2241 = vadd.f32 %v2226, %v2235
        %v2242 = vadd.f32 %v2227, %v2236
        %v2243 = vadd.f32 %v2228, %v2237
        %v2244 = vmul.f32 %v1579, %v1392
        %v2245 = vmul.f32 %v1580, %v1392
        %v2246 = vmul.f32 %v1581, %v1392
        %v2250 = vrot.slane %v2244, 2
        %v2251 = vrot.slane %v2245, 2
        %v2252 = vrot.slane %v2246, 2
        %v2256 = vadd.f32 %v2241, %v2250
        %v2257 = vadd.f32 %v2242, %v2251
        %v2258 = vadd.f32 %v2243, %v2252
        %v2259 = vmul.f32 %v1597, %v1409
        %v2260 = vmul.f32 %v1598, %v1409
        %v2261 = vmul.f32 %v1599, %v1409
        %v2265 = vrot.slane %v2259, 2
        %v2266 = vrot.slane %v2260, 2
        %v2267 = vrot.slane %v2261, 2
        %v2271 = vadd.f32 %v2256, %v2265
        %v2272 = vadd.f32 %v2257, %v2266
        %v2273 = vadd.f32 %v2258, %v2267
        %v2274 = vmul.f32 %v1615, %v1427
        %v2275 = vmul.f32 %v1616, %v1427
        %v2276 = vmul.f32 %v1617, %v1427
        %v2280 = vrot.slane %v2274, 4
        %v2281 = vrot.slane %v2275, 4
        %v2282 = vrot.slane %v2276, 4
        %v2286 = vadd.f32 %v2271, %v2280
        %v2287 = vadd.f32 %v2272, %v2281
        %v2288 = vadd.f32 %v2273, %v2282
        %v2289 = vmul.f32 %v1633, %v1445
        %v2290 = vmul.f32 %v1634, %v1445
        %v2291 = vmul.f32 %v1635, %v1445
        %v2295 = vrot.slane %v2289, 4
        %v2296 = vrot.slane %v2290, 4
        %v2297 = vrot.slane %v2291, 4
        %v2301 = vadd.f32 %v2286, %v2295
        %v2302 = vadd.f32 %v2287, %v2296
        %v2303 = vadd.f32 %v2288, %v2297
        %v2304 = vmul.f32 %v1651, %v1463
        %v2305 = vmul.f32 %v1652, %v1463
        %v2306 = vmul.f32 %v1653, %v1463
        %v2310 = vrot.slane %v2304, 4
        %v2311 = vrot.slane %v2305, 4
        %v2312 = vrot.slane %v2306, 4
        %v2316 = vadd.f32 %v2301, %v2310
        %v2317 = vadd.f32 %v2302, %v2311
        %v2318 = vadd.f32 %v2303, %v2312
        %v2319 = vmax.f32 %v2316, 0.0
        %v2320 = vmax.f32 %v2317, 0.0
        %v2321 = vmax.f32 %v2318, 0.0
        %s2322 = sld [smem:[#allocation8 + %s1005]]
        %v2323 = vstv %s2322
        %v2324 = vmul.f32 %v2319, %v2323
        %v2325 = vmul.f32 %v2320, %v2323
        %v2326 = vmul.f32 %v2321, %v2323
        %v2330 = vrot.slane %v2324, 6
        %v2331 = vrot.slane %v2325, 6
        %v2332 = vrot.slane %v2326, 6
        %v2336 = vadd.f32 %v2119, %v2330
        %v2337 = vadd.f32 %v2120, %v2331
        %v2338 = vadd.f32 %v2121, %v2332
        %s2339 = sld [smem:[#allocation8 + %s1363]]
        %v2340 = vstv %s2339
        %v2341 = vmul.f32 %v2319, %v2340
        %v2342 = vmul.f32 %v2320, %v2340
        %v2343 = vmul.f32 %v2321, %v2340
        %v2347 = vrot.slane %v2341, 6
        %v2348 = vrot.slane %v2342, 6
        %v2349 = vrot.slane %v2343, 6
        %v2353 = vadd.f32 %v2136, %v2347
        %v2354 = vadd.f32 %v2137, %v2348
        %v2355 = vadd.f32 %v2138, %v2349
        %s2356 = sadd.s32 %s718, 45
        %s2357 = sld [smem:[#allocation8 + %s2356]]
        %v2358 = vstv %s2357
        %v2359 = vmul.f32 %v2319, %v2358
        %v2360 = vmul.f32 %v2320, %v2358
        %v2361 = vmul.f32 %v2321, %v2358
        %v2365 = vrot.slane %v2359, 6
        %v2366 = vrot.slane %v2360, 6
        %v2367 = vrot.slane %v2361, 6
        %v2371 = vadd.f32 %v2154, %v2365
        %v2372 = vadd.f32 %v2155, %v2366
        %v2373 = vadd.f32 %v2156, %v2367
        %s2374 = sadd.s32 %s718, 61
        %s2375 = sld [smem:[#allocation8 + %s2374]]
        %v2376 = vstv %s2375
        %v2377 = vmul.f32 %v2319, %v2376
        %v2378 = vmul.f32 %v2320, %v2376
        %v2379 = vmul.f32 %v2321, %v2376
        %v2383 = vrot.slane %v2377, 6
        %v2384 = vrot.slane %v2378, 6
        %v2385 = vrot.slane %v2379, 6
        %v2389 = vadd.f32 %v2172, %v2383
        %v2390 = vadd.f32 %v2173, %v2384
        %v2391 = vadd.f32 %v2174, %v2385
        %s2392 = sadd.s32 %s718, 77
        %s2393 = sld [smem:[#allocation8 + %s2392]]
        %v2394 = vstv %s2393
        %v2395 = vmul.f32 %v2319, %v2394
        %v2396 = vmul.f32 %v2320, %v2394
        %v2397 = vmul.f32 %v2321, %v2394
        %v2401 = vrot.slane %v2395, 6
        %v2402 = vrot.slane %v2396, 6
        %v2403 = vrot.slane %v2397, 6
        %v2407 = vadd.f32 %v2190, %v2401
        %v2408 = vadd.f32 %v2191, %v2402
        %v2409 = vadd.f32 %v2192, %v2403
        %s2410 = sadd.s32 %s718, 93
        %s2411 = sld [smem:[#allocation8 + %s2410]]
        %v2412 = vstv %s2411
        %v2413 = vmul.f32 %v2319, %v2412
        %v2414 = vmul.f32 %v2320, %v2412
        %v2415 = vmul.f32 %v2321, %v2412
        %v2419 = vrot.slane %v2413, 6
        %v2420 = vrot.slane %v2414, 6
        %v2421 = vrot.slane %v2415, 6
        %v2425 = vadd.f32 %v2208, %v2419
        %v2426 = vadd.f32 %v2209, %v2420
        %v2427 = vadd.f32 %v2210, %v2421
        %v2428 = vld [vmem:[%s0 + $0x18] sm:$0x30]
        %v2429 = vld [vmem:[%s0 + $0x20] sm:$0x30]
        %v2430 = vld [vmem:[%s0 + $0x28] sm:$0x30]
        %v2431 = vmul.f32 %v2428, %v749
        %v2432 = vmul.f32 %v2429, %v749
        %v2433 = vmul.f32 %v2430, %v749
        %v2434 = vadd.f32 %v744, %v2431
        %v2435 = vadd.f32 %v744, %v2432
        %v2436 = vadd.f32 %v744, %v2433
        %v2437 = vld [vmem:[%s0 + $0x60] sm:$0x30]
        %v2438 = vld [vmem:[%s0 + $0x68] sm:$0x30]
        %v2439 = vld [vmem:[%s0 + $0x70] sm:$0x30]
        %v2440 = vmul.f32 %v2437, %v760
        %v2441 = vmul.f32 %v2438, %v760
        %v2442 = vmul.f32 %v2439, %v760
        %v2443 = vadd.f32 %v2434, %v2440
        %v2444 = vadd.f32 %v2435, %v2441
        %v2445 = vadd.f32 %v2436, %v2442
        %v2446 = vld [vmem:[%s0 + $0xa8] sm:$0x30]
        %v2447 = vld [vmem:[%s0 + $0xb0] sm:$0x30]
        %v2448 = vld [vmem:[%s0 + $0xb8] sm:$0x30]
        %v2449 = vmul.f32 %v2446, %v771
        %v2450 = vmul.f32 %v2447, %v771
        %v2451 = vmul.f32 %v2448, %v771
        %v2452 = vadd.f32 %v2443, %v2449
        %v2453 = vadd.f32 %v2444, %v2450
        %v2454 = vadd.f32 %v2445, %v2451
        %v2455 = vld [vmem:[%s0 + $0x18] sm:$0xc0]
        %v2456 = vld [vmem:[%s0 + $0x20] sm:$0xc0]
        %v2457 = vld [vmem:[%s0 + $0x28] sm:$0xc0]
        %v2458 = vmul.f32 %v2455, %v782
        %v2459 = vmul.f32 %v2456, %v782
        %v2460 = vmul.f32 %v2457, %v782
        %v2464 = vrot.slane %v2458, 2
        %v2465 = vrot.slane %v2459, 2
        %v2466 = vrot.slane %v2460, 2
        %v2470 = vadd.f32 %v2452, %v2464
        %v2471 = vadd.f32 %v2453, %v2465
        %v2472 = vadd.f32 %v2454, %v2466
        %v2473 = vld [vmem:[%s0 + $0x60] sm:$0xc0]
        %v2474 = vld [vmem:[%s0 + $0x68] sm:$0xc0]
        %v2475 = vld [vmem:[%s0 + $0x70] sm:$0xc0]
        %v2476 = vmul.f32 %v2473, %v802
        %v2477 = vmul.f32 %v2474, %v802
        %v2478 = vmul.f32 %v2475, %v802
        %v2482 = vrot.slane %v2476, 2
        %v2483 = vrot.slane %v2477, 2
        %v2484 = vrot.slane %v2478, 2
        %v2488 = vadd.f32 %v2470, %v2482
        %v2489 = vadd.f32 %v2471, %v2483
        %v2490 = vadd.f32 %v2472, %v2484
        %v2491 = vld [vmem:[%s0 + $0xa8] sm:$0xc0]
        %v2492 = vld [vmem:[%s0 + $0xb0] sm:$0xc0]
        %v2493 = vld [vmem:[%s0 + $0xb8] sm:$0xc0]
        %v2494 = vmul.f32 %v2491, %v822
        %v2495 = vmul.f32 %v2492, %v822
        %v2496 = vmul.f32 %v2493, %v822
        %v2500 = vrot.slane %v2494, 2
        %v2501 = vrot.slane %v2495, 2
        %v2502 = vrot.slane %v2496, 2
        %v2506 = vadd.f32 %v2488, %v2500
        %v2507 = vadd.f32 %v2489, %v2501
        %v2508 = vadd.f32 %v2490, %v2502
        %v2509 = vld [vmem:[%s0 + $0x30] sm:$0x3]
        %v2510 = vld [vmem:[%s0 + $0x38] sm:$0x3]
        %v2511 = vld [vmem:[%s0 + $0x40] sm:$0x3]
        %v2512 = vmul.f32 %v2509, %v843
        %v2513 = vmul.f32 %v2510, %v843
        %v2514 = vmul.f32 %v2511, %v843
        %v2518 = vrot.slane %v2512, 4
        %v2519 = vrot.slane %v2513, 4
        %v2520 = vrot.slane %v2514, 4
        %v2524 = vadd.f32 %v2506, %v2518
        %v2525 = vadd.f32 %v2507, %v2519
        %v2526 = vadd.f32 %v2508, %v2520
        %v2527 = vld [vmem:[%s0 + $0x78] sm:$0x3]
        %v2528 = vld [vmem:[%s0 + $0x80] sm:$0x3]
        %v2529 = vld [vmem:[%s0 + $0x88] sm:$0x3]
        %v2530 = vmul.f32 %v2527, %v864
        %v2531 = vmul.f32 %v2528, %v864
        %v2532 = vmul.f32 %v2529, %v864
        %v2536 = vrot.slane %v2530, 4
        %v2537 = vrot.slane %v2531, 4
        %v2538 = vrot.slane %v2532, 4
        %v2542 = vadd.f32 %v2524, %v2536
        %v2543 = vadd.f32 %v2525, %v2537
        %v2544 = vadd.f32 %v2526, %v2538
        %v2545 = vld [vmem:[%s0 + $0xc0] sm:$0x3]
        %v2546 = vld [vmem:[%s0 + $0xc8] sm:$0x3]
        %v2547 = vld [vmem:[%s0 + $0xd0] sm:$0x3]
        %v2548 = vmul.f32 %v2545, %v885
        %v2549 = vmul.f32 %v2546, %v885
        %v2550 = vmul.f32 %v2547, %v885
        %v2554 = vrot.slane %v2548, 4
        %v2555 = vrot.slane %v2549, 4
        %v2556 = vrot.slane %v2550, 4
        %v2560 = vadd.f32 %v2542, %v2554
        %v2561 = vadd.f32 %v2543, %v2555
        %v2562 = vadd.f32 %v2544, %v2556
        %v2563 = vmax.f32 %v2560, 0.0
        %v2564 = vmax.f32 %v2561, 0.0
        %v2565 = vmax.f32 %v2562, 0.0
        %s2566 = sld [smem:[#allocation8 + %s726]]
        %v2567 = vstv %s2566
        %v2568 = vmul.f32 %v2563, %v2567
        %v2569 = vmul.f32 %v2564, %v2567
        %v2570 = vmul.f32 %v2565, %v2567
        %v2574 = vrot.slane %v2568, 4
        %v2575 = vrot.slane %v2569, 4
        %v2576 = vrot.slane %v2570, 4
        %v2580 = vadd.f32 %v2336, %v2574
        %v2581 = vadd.f32 %v2337, %v2575
        %v2582 = vadd.f32 %v2338, %v2576
        %s2583 = sld [smem:[#allocation8 + %s1153]]
        %v2584 = vstv %s2583
        %v2585 = vmul.f32 %v2563, %v2584
        %v2586 = vmul.f32 %v2564, %v2584
        %v2587 = vmul.f32 %v2565, %v2584
        %v2591 = vrot.slane %v2585, 4
        %v2592 = vrot.slane %v2586, 4
        %v2593 = vrot.slane %v2587, 4
        %v2597 = vadd.f32 %v2353, %v2591
        %v2598 = vadd.f32 %v2354, %v2592
        %v2599 = vadd.f32 %v2355, %v2593
        %s2600 = sld [smem:[#allocation8 + %s1443]]
        %v2601 = vstv %s2600
        %v2602 = vmul.f32 %v2563, %v2601
        %v2603 = vmul.f32 %v2564, %v2601
        %v2604 = vmul.f32 %v2565, %v2601
        %v2608 = vrot.slane %v2602, 4
        %v2609 = vrot.slane %v2603, 4
        %v2610 = vrot.slane %v2604, 4
        %v2614 = vadd.f32 %v2371, %v2608
        %v2615 = vadd.f32 %v2372, %v2609
        %v2616 = vadd.f32 %v2373, %v2610
        %s2617 = sadd.s32 %s718, 50
        %s2618 = sld [smem:[#allocation8 + %s2617]]
        %v2619 = vstv %s2618
        %v2620 = vmul.f32 %v2563, %v2619
        %v2621 = vmul.f32 %v2564, %v2619
        %v2622 = vmul.f32 %v2565, %v2619
        %v2626 = vrot.slane %v2620, 4
        %v2627 = vrot.slane %v2621, 4
        %v2628 = vrot.slane %v2622, 4
        %v2632 = vadd.f32 %v2389, %v2626
        %v2633 = vadd.f32 %v2390, %v2627
        %v2634 = vadd.f32 %v2391, %v2628
        %s2635 = sadd.s32 %s718, 66
        %s2636 = sld [smem:[#allocation8 + %s2635]]
        %v2637 = vstv %s2636
        %v2638 = vmul.f32 %v2563, %v2637
        %v2639 = vmul.f32 %v2564, %v2637
        %v2640 = vmul.f32 %v2565, %v2637
        %v2644 = vrot.slane %v2638, 4
        %v2645 = vrot.slane %v2639, 4
        %v2646 = vrot.slane %v2640, 4
        %v2650 = vadd.f32 %v2407, %v2644
        %v2651 = vadd.f32 %v2408, %v2645
        %v2652 = vadd.f32 %v2409, %v2646
        %s2653 = sadd.s32 %s718, 82
        %s2654 = sld [smem:[#allocation8 + %s2653]]
        %v2655 = vstv %s2654
        %v2656 = vmul.f32 %v2563, %v2655
        %v2657 = vmul.f32 %v2564, %v2655
        %v2658 = vmul.f32 %v2565, %v2655
        %v2662 = vrot.slane %v2656, 4
        %v2663 = vrot.slane %v2657, 4
        %v2664 = vrot.slane %v2658, 4
        %v2668 = vadd.f32 %v2425, %v2662
        %v2669 = vadd.f32 %v2426, %v2663
        %v2670 = vadd.f32 %v2427, %v2664
        %v2671 = vmul.f32 %v2428, %v962
        %v2672 = vmul.f32 %v2429, %v962
        %v2673 = vmul.f32 %v2430, %v962
        %v2674 = vadd.f32 %v959, %v2671
        %v2675 = vadd.f32 %v959, %v2672
        %v2676 = vadd.f32 %v959, %v2673
        %v2677 = vmul.f32 %v2437, %v971
        %v2678 = vmul.f32 %v2438, %v971
        %v2679 = vmul.f32 %v2439, %v971
        %v2680 = vadd.f32 %v2674, %v2677
        %v2681 = vadd.f32 %v2675, %v2678
        %v2682 = vadd.f32 %v2676, %v2679
        %v2683 = vmul.f32 %v2446, %v980
        %v2684 = vmul.f32 %v2447, %v980
        %v2685 = vmul.f32 %v2448, %v980
        %v2686 = vadd.f32 %v2680, %v2683
        %v2687 = vadd.f32 %v2681, %v2684
        %v2688 = vadd.f32 %v2682, %v2685
        %v2689 = vmul.f32 %v2455, %v989
        %v2690 = vmul.f32 %v2456, %v989
        %v2691 = vmul.f32 %v2457, %v989
        %v2695 = vrot.slane %v2689, 2
        %v2696 = vrot.slane %v2690, 2
        %v2697 = vrot.slane %v2691, 2
        %v2701 = vadd.f32 %v2686, %v2695
        %v2702 = vadd.f32 %v2687, %v2696
        %v2703 = vadd.f32 %v2688, %v2697
        %v2704 = vmul.f32 %v2473, %v1007
        %v2705 = vmul.f32 %v2474, %v1007
        %v2706 = vmul.f32 %v2475, %v1007
        %v2710 = vrot.slane %v2704, 2
        %v2711 = vrot.slane %v2705, 2
        %v2712 = vrot.slane %v2706, 2
        %v2716 = vadd.f32 %v2701, %v2710
        %v2717 = vadd.f32 %v2702, %v2711
        %v2718 = vadd.f32 %v2703, %v2712
        %v2719 = vmul.f32 %v2491, %v1025
        %v2720 = vmul.f32 %v2492, %v1025
        %v2721 = vmul.f32 %v2493, %v1025
        %v2725 = vrot.slane %v2719, 2
        %v2726 = vrot.slane %v2720, 2
        %v2727 = vrot.slane %v2721, 2
        %v2731 = vadd.f32 %v2716, %v2725
        %v2732 = vadd.f32 %v2717, %v2726
        %v2733 = vadd.f32 %v2718, %v2727
        %v2734 = vmul.f32 %v2509, %v1043
        %v2735 = vmul.f32 %v2510, %v1043
        %v2736 = vmul.f32 %v2511, %v1043
        %v2740 = vrot.slane %v2734, 4
        %v2741 = vrot.slane %v2735, 4
        %v2742 = vrot.slane %v2736, 4
        %v2746 = vadd.f32 %v2731, %v2740
        %v2747 = vadd.f32 %v2732, %v2741
        %v2748 = vadd.f32 %v2733, %v2742
        %v2749 = vmul.f32 %v2527, %v1060
        %v2750 = vmul.f32 %v2528, %v1060
        %v2751 = vmul.f32 %v2529, %v1060
        %v2755 = vrot.slane %v2749, 4
        %v2756 = vrot.slane %v2750, 4
        %v2757 = vrot.slane %v2751, 4
        %v2761 = vadd.f32 %v2746, %v2755
        %v2762 = vadd.f32 %v2747, %v2756
        %v2763 = vadd.f32 %v2748, %v2757
        %v2764 = vmul.f32 %v2545, %v1078
        %v2765 = vmul.f32 %v2546, %v1078
        %v2766 = vmul.f32 %v2547, %v1078
        %v2770 = vrot.slane %v2764, 4
        %v2771 = vrot.slane %v2765, 4
        %v2772 = vrot.slane %v2766, 4
        %v2776 = vadd.f32 %v2761, %v2770
        %v2777 = vadd.f32 %v2762, %v2771
        %v2778 = vadd.f32 %v2763, %v2772
        %v2779 = vmax.f32 %v2776, 0.0
        %v2780 = vmax.f32 %v2777, 0.0
        %v2781 = vmax.f32 %v2778, 0.0
        %s2782 = sld [smem:[#allocation8 + %s841]]
        %v2783 = vstv %s2782
        %v2784 = vmul.f32 %v2779, %v2783
        %v2785 = vmul.f32 %v2780, %v2783
        %v2786 = vmul.f32 %v2781, %v2783
        %v2790 = vrot.slane %v2784, 4
        %v2791 = vrot.slane %v2785, 4
        %v2792 = vrot.slane %v2786, 4
        %v2796 = vadd.f32 %v2580, %v2790
        %v2797 = vadd.f32 %v2581, %v2791
        %v2798 = vadd.f32 %v2582, %v2792
        %s2799 = sld [smem:[#allocation8 + %s1197]]
        %v2800 = vstv %s2799
        %v2801 = vmul.f32 %v2779, %v2800
        %v2802 = vmul.f32 %v2780, %v2800
        %v2803 = vmul.f32 %v2781, %v2800
        %v2807 = vrot.slane %v2801, 4
        %v2808 = vrot.slane %v2802, 4
        %v2809 = vrot.slane %v2803, 4
        %v2813 = vadd.f32 %v2597, %v2807
        %v2814 = vadd.f32 %v2598, %v2808
        %v2815 = vadd.f32 %v2599, %v2809
        %s2816 = sadd.s32 %s718, 38
        %s2817 = sld [smem:[#allocation8 + %s2816]]
        %v2818 = vstv %s2817
        %v2819 = vmul.f32 %v2779, %v2818
        %v2820 = vmul.f32 %v2780, %v2818
        %v2821 = vmul.f32 %v2781, %v2818
        %v2825 = vrot.slane %v2819, 4
        %v2826 = vrot.slane %v2820, 4
        %v2827 = vrot.slane %v2821, 4
        %v2831 = vadd.f32 %v2614, %v2825
        %v2832 = vadd.f32 %v2615, %v2826
        %v2833 = vadd.f32 %v2616, %v2827
        %s2834 = sadd.s32 %s718, 54
        %s2835 = sld [smem:[#allocation8 + %s2834]]
        %v2836 = vstv %s2835
        %v2837 = vmul.f32 %v2779, %v2836
        %v2838 = vmul.f32 %v2780, %v2836
        %v2839 = vmul.f32 %v2781, %v2836
        %v2843 = vrot.slane %v2837, 4
        %v2844 = vrot.slane %v2838, 4
        %v2845 = vrot.slane %v2839, 4
        %v2849 = vadd.f32 %v2632, %v2843
        %v2850 = vadd.f32 %v2633, %v2844
        %v2851 = vadd.f32 %v2634, %v2845
        %s2852 = sadd.s32 %s718, 70
        %s2853 = sld [smem:[#allocation8 + %s2852]]
        %v2854 = vstv %s2853
        %v2855 = vmul.f32 %v2779, %v2854
        %v2856 = vmul.f32 %v2780, %v2854
        %v2857 = vmul.f32 %v2781, %v2854
        %v2861 = vrot.slane %v2855, 4
        %v2862 = vrot.slane %v2856, 4
        %v2863 = vrot.slane %v2857, 4
        %v2867 = vadd.f32 %v2650, %v2861
        %v2868 = vadd.f32 %v2651, %v2862
        %v2869 = vadd.f32 %v2652, %v2863
        %s2870 = sadd.s32 %s718, 86
        %s2871 = sld [smem:[#allocation8 + %s2870]]
        %v2872 = vstv %s2871
        %v2873 = vmul.f32 %v2779, %v2872
        %v2874 = vmul.f32 %v2780, %v2872
        %v2875 = vmul.f32 %v2781, %v2872
        %v2879 = vrot.slane %v2873, 4
        %v2880 = vrot.slane %v2874, 4
        %v2881 = vrot.slane %v2875, 4
        %v2885 = vadd.f32 %v2668, %v2879
        %v2886 = vadd.f32 %v2669, %v2880
        %v2887 = vadd.f32 %v2670, %v2881
        %v2888 = vmul.f32 %v2428, %v1155
        %v2889 = vmul.f32 %v2429, %v1155
        %v2890 = vmul.f32 %v2430, %v1155
        %v2891 = vadd.f32 %v1152, %v2888
        %v2892 = vadd.f32 %v1152, %v2889
        %v2893 = vadd.f32 %v1152, %v2890
        %v2894 = vmul.f32 %v2437, %v1164
        %v2895 = vmul.f32 %v2438, %v1164
        %v2896 = vmul.f32 %v2439, %v1164
        %v2897 = vadd.f32 %v2891, %v2894
        %v2898 = vadd.f32 %v2892, %v2895
        %v2899 = vadd.f32 %v2893, %v2896
        %v2900 = vmul.f32 %v2446, %v1172
        %v2901 = vmul.f32 %v2447, %v1172
        %v2902 = vmul.f32 %v2448, %v1172
        %v2903 = vadd.f32 %v2897, %v2900
        %v2904 = vadd.f32 %v2898, %v2901
        %v2905 = vadd.f32 %v2899, %v2902
        %v2906 = vmul.f32 %v2455, %v1181
        %v2907 = vmul.f32 %v2456, %v1181
        %v2908 = vmul.f32 %v2457, %v1181
        %v2912 = vrot.slane %v2906, 2
        %v2913 = vrot.slane %v2907, 2
        %v2914 = vrot.slane %v2908, 2
        %v2918 = vadd.f32 %v2903, %v2912
        %v2919 = vadd.f32 %v2904, %v2913
        %v2920 = vadd.f32 %v2905, %v2914
        %v2921 = vmul.f32 %v2473, %v1199
        %v2922 = vmul.f32 %v2474, %v1199
        %v2923 = vmul.f32 %v2475, %v1199
        %v2927 = vrot.slane %v2921, 2
        %v2928 = vrot.slane %v2922, 2
        %v2929 = vrot.slane %v2923, 2
        %v2933 = vadd.f32 %v2918, %v2927
        %v2934 = vadd.f32 %v2919, %v2928
        %v2935 = vadd.f32 %v2920, %v2929
        %v2936 = vmul.f32 %v2491, %v1217
        %v2937 = vmul.f32 %v2492, %v1217
        %v2938 = vmul.f32 %v2493, %v1217
        %v2942 = vrot.slane %v2936, 2
        %v2943 = vrot.slane %v2937, 2
        %v2944 = vrot.slane %v2938, 2
        %v2948 = vadd.f32 %v2933, %v2942
        %v2949 = vadd.f32 %v2934, %v2943
        %v2950 = vadd.f32 %v2935, %v2944
        %v2951 = vmul.f32 %v2509, %v1235
        %v2952 = vmul.f32 %v2510, %v1235
        %v2953 = vmul.f32 %v2511, %v1235
        %v2957 = vrot.slane %v2951, 4
        %v2958 = vrot.slane %v2952, 4
        %v2959 = vrot.slane %v2953, 4
        %v2963 = vadd.f32 %v2948, %v2957
        %v2964 = vadd.f32 %v2949, %v2958
        %v2965 = vadd.f32 %v2950, %v2959
        %v2966 = vmul.f32 %v2527, %v1253
        %v2967 = vmul.f32 %v2528, %v1253
        %v2968 = vmul.f32 %v2529, %v1253
        %v2972 = vrot.slane %v2966, 4
        %v2973 = vrot.slane %v2967, 4
        %v2974 = vrot.slane %v2968, 4
        %v2978 = vadd.f32 %v2963, %v2972
        %v2979 = vadd.f32 %v2964, %v2973
        %v2980 = vadd.f32 %v2965, %v2974
        %v2981 = vmul.f32 %v2545, %v1271
        %v2982 = vmul.f32 %v2546, %v1271
        %v2983 = vmul.f32 %v2547, %v1271
        %v2987 = vrot.slane %v2981, 4
        %v2988 = vrot.slane %v2982, 4
        %v2989 = vrot.slane %v2983, 4
        %v2993 = vadd.f32 %v2978, %v2987
        %v2994 = vadd.f32 %v2979, %v2988
        %v2995 = vadd.f32 %v2980, %v2989
        %v2996 = vmax.f32 %v2993, 0.0
        %v2997 = vmax.f32 %v2994, 0.0
        %v2998 = vmax.f32 %v2995, 0.0
        %s2999 = sld [smem:[#allocation8 + %s969]]
        %v3000 = vstv %s2999
        %v3001 = vmul.f32 %v2996, %v3000
        %v3002 = vmul.f32 %v2997, %v3000
        %v3003 = vmul.f32 %v2998, %v3000
        %v3007 = vrot.slane %v3001, 4
        %v3008 = vrot.slane %v3002, 4
        %v3009 = vrot.slane %v3003, 4
        %v3013 = vadd.f32 %v2796, %v3007
        %v3014 = vadd.f32 %v2797, %v3008
        %v3015 = vadd.f32 %v2798, %v3009
        %s3016 = sld [smem:[#allocation8 + %s1269]]
        %v3017 = vstv %s3016
        %v3018 = vmul.f32 %v2996, %v3017
        %v3019 = vmul.f32 %v2997, %v3017
        %v3020 = vmul.f32 %v2998, %v3017
        %v3024 = vrot.slane %v3018, 4
        %v3025 = vrot.slane %v3019, 4
        %v3026 = vrot.slane %v3020, 4
        %v3030 = vadd.f32 %v2813, %v3024
        %v3031 = vadd.f32 %v2814, %v3025
        %v3032 = vadd.f32 %v2815, %v3026
        %s3033 = sadd.s32 %s718, 42
        %s3034 = sld [smem:[#allocation8 + %s3033]]
        %v3035 = vstv %s3034
        %v3036 = vmul.f32 %v2996, %v3035
        %v3037 = vmul.f32 %v2997, %v3035
        %v3038 = vmul.f32 %v2998, %v3035
        %v3042 = vrot.slane %v3036, 4
        %v3043 = vrot.slane %v3037, 4
        %v3044 = vrot.slane %v3038, 4
        %v3048 = vadd.f32 %v2831, %v3042
        %v3049 = vadd.f32 %v2832, %v3043
        %v3050 = vadd.f32 %v2833, %v3044
        %s3051 = sadd.s32 %s718, 58
        %s3052 = sld [smem:[#allocation8 + %s3051]]
        %v3053 = vstv %s3052
        %v3054 = vmul.f32 %v2996, %v3053
        %v3055 = vmul.f32 %v2997, %v3053
        %v3056 = vmul.f32 %v2998, %v3053
        %v3060 = vrot.slane %v3054, 4
        %v3061 = vrot.slane %v3055, 4
        %v3062 = vrot.slane %v3056, 4
        %v3066 = vadd.f32 %v2849, %v3060
        %v3067 = vadd.f32 %v2850, %v3061
        %v3068 = vadd.f32 %v2851, %v3062
        %s3069 = sadd.s32 %s718, 74
        %s3070 = sld [smem:[#allocation8 + %s3069]]
        %v3071 = vstv %s3070
        %v3072 = vmul.f32 %v2996, %v3071
        %v3073 = vmul.f32 %v2997, %v3071
        %v3074 = vmul.f32 %v2998, %v3071
        %v3078 = vrot.slane %v3072, 4
        %v3079 = vrot.slane %v3073, 4
        %v3080 = vrot.slane %v3074, 4
        %v3084 = vadd.f32 %v2867, %v3078
        %v3085 = vadd.f32 %v2868, %v3079
        %v3086 = vadd.f32 %v2869, %v3080
        %s3087 = sadd.s32 %s718, 90
        %s3088 = sld [smem:[#allocation8 + %s3087]]
        %v3089 = vstv %s3088
        %v3090 = vmul.f32 %v2996, %v3089
        %v3091 = vmul.f32 %v2997, %v3089
        %v3092 = vmul.f32 %v2998, %v3089
        %v3096 = vrot.slane %v3090, 4
        %v3097 = vrot.slane %v3091, 4
        %v3098 = vrot.slane %v3092, 4
        %v3102 = vadd.f32 %v2885, %v3096
        %v3103 = vadd.f32 %v2886, %v3097
        %v3104 = vadd.f32 %v2887, %v3098
        %v3105 = vmul.f32 %v2428, %v1347
        %v3106 = vmul.f32 %v2429, %v1347
        %v3107 = vmul.f32 %v2430, %v1347
        %v3108 = vadd.f32 %v1344, %v3105
        %v3109 = vadd.f32 %v1344, %v3106
        %v3110 = vadd.f32 %v1344, %v3107
        %v3111 = vmul.f32 %v2437, %v1356
        %v3112 = vmul.f32 %v2438, %v1356
        %v3113 = vmul.f32 %v2439, %v1356
        %v3114 = vadd.f32 %v3108, %v3111
        %v3115 = vadd.f32 %v3109, %v3112
        %v3116 = vadd.f32 %v3110, %v3113
        %v3117 = vmul.f32 %v2446, %v1365
        %v3118 = vmul.f32 %v2447, %v1365
        %v3119 = vmul.f32 %v2448, %v1365
        %v3120 = vadd.f32 %v3114, %v3117
        %v3121 = vadd.f32 %v3115, %v3118
        %v3122 = vadd.f32 %v3116, %v3119
        %v3123 = vmul.f32 %v2455, %v1374
        %v3124 = vmul.f32 %v2456, %v1374
        %v3125 = vmul.f32 %v2457, %v1374
        %v3129 = vrot.slane %v3123, 2
        %v3130 = vrot.slane %v3124, 2
        %v3131 = vrot.slane %v3125, 2
        %v3135 = vadd.f32 %v3120, %v3129
        %v3136 = vadd.f32 %v3121, %v3130
        %v3137 = vadd.f32 %v3122, %v3131
        %v3138 = vmul.f32 %v2473, %v1392
        %v3139 = vmul.f32 %v2474, %v1392
        %v3140 = vmul.f32 %v2475, %v1392
        %v3144 = vrot.slane %v3138, 2
        %v3145 = vrot.slane %v3139, 2
        %v3146 = vrot.slane %v3140, 2
        %v3150 = vadd.f32 %v3135, %v3144
        %v3151 = vadd.f32 %v3136, %v3145
        %v3152 = vadd.f32 %v3137, %v3146
        %v3153 = vmul.f32 %v2491, %v1409
        %v3154 = vmul.f32 %v2492, %v1409
        %v3155 = vmul.f32 %v2493, %v1409
        %v3159 = vrot.slane %v3153, 2
        %v3160 = vrot.slane %v3154, 2
        %v3161 = vrot.slane %v3155, 2
        %v3165 = vadd.f32 %v3150, %v3159
        %v3166 = vadd.f32 %v3151, %v3160
        %v3167 = vadd.f32 %v3152, %v3161
        %v3168 = vmul.f32 %v2509, %v1427
        %v3169 = vmul.f32 %v2510, %v1427
        %v3170 = vmul.f32 %v2511, %v1427
        %v3174 = vrot.slane %v3168, 4
        %v3175 = vrot.slane %v3169, 4
        %v3176 = vrot.slane %v3170, 4
        %v3180 = vadd.f32 %v3165, %v3174
        %v3181 = vadd.f32 %v3166, %v3175
        %v3182 = vadd.f32 %v3167, %v3176
        %v3183 = vmul.f32 %v2527, %v1445
        %v3184 = vmul.f32 %v2528, %v1445
        %v3185 = vmul.f32 %v2529, %v1445
        %v3189 = vrot.slane %v3183, 4
        %v3190 = vrot.slane %v3184, 4
        %v3191 = vrot.slane %v3185, 4
        %v3195 = vadd.f32 %v3180, %v3189
        %v3196 = vadd.f32 %v3181, %v3190
        %v3197 = vadd.f32 %v3182, %v3191
        %v3198 = vmul.f32 %v2545, %v1463
        %v3199 = vmul.f32 %v2546, %v1463
        %v3200 = vmul.f32 %v2547, %v1463
        %v3204 = vrot.slane %v3198, 4
        %v3205 = vrot.slane %v3199, 4
        %v3206 = vrot.slane %v3200, 4
        %v3210 = vadd.f32 %v3195, %v3204
        %v3211 = vadd.f32 %v3196, %v3205
        %v3212 = vadd.f32 %v3197, %v3206
        %v3213 = vmax.f32 %v3210, 0.0
        %v3214 = vmax.f32 %v3211, 0.0
        %v3215 = vmax.f32 %v3212, 0.0
        %s3216 = sld [smem:[#allocation8 + %s1023]]
        %v3217 = vstv %s3216
        %v3218 = vmul.f32 %v3213, %v3217
        %v3219 = vmul.f32 %v3214, %v3217
        %v3220 = vmul.f32 %v3215, %v3217
        %v3224 = vrot.slane %v3218, 4
        %v3225 = vrot.slane %v3219, 4
        %v3226 = vrot.slane %v3220, 4
        %v3230 = vadd.f32 %v3013, %v3224
        %v3231 = vadd.f32 %v3014, %v3225
        %v3232 = vadd.f32 %v3015, %v3226
        %s3233 = sld [smem:[#allocation8 + %s1372]]
        %v3234 = vstv %s3233
        %v3235 = vmul.f32 %v3213, %v3234
        %v3236 = vmul.f32 %v3214, %v3234
        %v3237 = vmul.f32 %v3215, %v3234
        %v3241 = vrot.slane %v3235, 4
        %v3242 = vrot.slane %v3236, 4
        %v3243 = vrot.slane %v3237, 4
        %v3247 = vadd.f32 %v3030, %v3241
        %v3248 = vadd.f32 %v3031, %v3242
        %v3249 = vadd.f32 %v3032, %v3243
        %s3250 = sadd.s32 %s718, 46
        %s3251 = sld [smem:[#allocation8 + %s3250]]
        %v3252 = vstv %s3251
        %v3253 = vmul.f32 %v3213, %v3252
        %v3254 = vmul.f32 %v3214, %v3252
        %v3255 = vmul.f32 %v3215, %v3252
        %v3259 = vrot.slane %v3253, 4
        %v3260 = vrot.slane %v3254, 4
        %v3261 = vrot.slane %v3255, 4
        %v3265 = vadd.f32 %v3048, %v3259
        %v3266 = vadd.f32 %v3049, %v3260
        %v3267 = vadd.f32 %v3050, %v3261
        %s3268 = sadd.s32 %s718, 62
        %s3269 = sld [smem:[#allocation8 + %s3268]]
        %v3270 = vstv %s3269
        %v3271 = vmul.f32 %v3213, %v3270
        %v3272 = vmul.f32 %v3214, %v3270
        %v3273 = vmul.f32 %v3215, %v3270
        %v3277 = vrot.slane %v3271, 4
        %v3278 = vrot.slane %v3272, 4
        %v3279 = vrot.slane %v3273, 4
        %v3283 = vadd.f32 %v3066, %v3277
        %v3284 = vadd.f32 %v3067, %v3278
        %v3285 = vadd.f32 %v3068, %v3279
        %s3286 = sadd.s32 %s718, 78
        %s3287 = sld [smem:[#allocation8 + %s3286]]
        %v3288 = vstv %s3287
        %v3289 = vmul.f32 %v3213, %v3288
        %v3290 = vmul.f32 %v3214, %v3288
        %v3291 = vmul.f32 %v3215, %v3288
        %v3295 = vrot.slane %v3289, 4
        %v3296 = vrot.slane %v3290, 4
        %v3297 = vrot.slane %v3291, 4
        %v3301 = vadd.f32 %v3084, %v3295
        %v3302 = vadd.f32 %v3085, %v3296
        %v3303 = vadd.f32 %v3086, %v3297
        %s3304 = sadd.s32 %s718, 94
        %s3305 = sld [smem:[#allocation8 + %s3304]]
        %v3306 = vstv %s3305
        %v3307 = vmul.f32 %v3213, %v3306
        %v3308 = vmul.f32 %v3214, %v3306
        %v3309 = vmul.f32 %v3215, %v3306
        %v3313 = vrot.slane %v3307, 4
        %v3314 = vrot.slane %v3308, 4
        %v3315 = vrot.slane %v3309, 4
        %v3319 = vadd.f32 %v3102, %v3313
        %v3320 = vadd.f32 %v3103, %v3314
        %v3321 = vadd.f32 %v3104, %v3315
        %v3322 = vld [vmem:[%s0 + $0x30] sm:$0xc]
        %v3323 = vld [vmem:[%s0 + $0x38] sm:$0xc]
        %v3324 = vld [vmem:[%s0 + $0x40] sm:$0xc]
        %v3325 = vmul.f32 %v3322, %v749
        %v3326 = vmul.f32 %v3323, %v749
        %v3327 = vmul.f32 %v3324, %v749
        %v3328 = vadd.f32 %v744, %v3325
        %v3329 = vadd.f32 %v744, %v3326
        %v3330 = vadd.f32 %v744, %v3327
        %v3331 = vld [vmem:[%s0 + $0x78] sm:$0xc]
        %v3332 = vld [vmem:[%s0 + $0x80] sm:$0xc]
        %v3333 = vld [vmem:[%s0 + $0x88] sm:$0xc]
        %v3334 = vmul.f32 %v3331, %v760
        %v3335 = vmul.f32 %v3332, %v760
        %v3336 = vmul.f32 %v3333, %v760
        %v3337 = vadd.f32 %v3328, %v3334
        %v3338 = vadd.f32 %v3329, %v3335
        %v3339 = vadd.f32 %v3330, %v3336
        %v3340 = vld [vmem:[%s0 + $0xc0] sm:$0xc]
        %v3341 = vld [vmem:[%s0 + $0xc8] sm:$0xc]
        %v3342 = vld [vmem:[%s0 + $0xd0] sm:$0xc]
        %v3343 = vmul.f32 %v3340, %v771
        %v3344 = vmul.f32 %v3341, %v771
        %v3345 = vmul.f32 %v3342, %v771
        %v3346 = vadd.f32 %v3337, %v3343
        %v3347 = vadd.f32 %v3338, %v3344
        %v3348 = vadd.f32 %v3339, %v3345
        %v3349 = vld [vmem:[%s0 + $0x30] sm:$0x30]
        %v3350 = vld [vmem:[%s0 + $0x38] sm:$0x30]
        %v3351 = vld [vmem:[%s0 + $0x40] sm:$0x30]
        %v3352 = vmul.f32 %v3349, %v782
        %v3353 = vmul.f32 %v3350, %v782
        %v3354 = vmul.f32 %v3351, %v782
        %v3358 = vrot.slane %v3352, 2
        %v3359 = vrot.slane %v3353, 2
        %v3360 = vrot.slane %v3354, 2
        %v3364 = vadd.f32 %v3346, %v3358
        %v3365 = vadd.f32 %v3347, %v3359
        %v3366 = vadd.f32 %v3348, %v3360
        %v3367 = vld [vmem:[%s0 + $0x78] sm:$0x30]
        %v3368 = vld [vmem:[%s0 + $0x80] sm:$0x30]
        %v3369 = vld [vmem:[%s0 + $0x88] sm:$0x30]
        %v3370 = vmul.f32 %v3367, %v802
        %v3371 = vmul.f32 %v3368, %v802
        %v3372 = vmul.f32 %v3369, %v802
        %v3376 = vrot.slane %v3370, 2
        %v3377 = vrot.slane %v3371, 2
        %v3378 = vrot.slane %v3372, 2
        %v3382 = vadd.f32 %v3364, %v3376
        %v3383 = vadd.f32 %v3365, %v3377
        %v3384 = vadd.f32 %v3366, %v3378
        %v3385 = vld [vmem:[%s0 + $0xc0] sm:$0x30]
        %v3386 = vld [vmem:[%s0 + $0xc8] sm:$0x30]
        %v3387 = vld [vmem:[%s0 + $0xd0] sm:$0x30]
        %v3388 = vmul.f32 %v3385, %v822
        %v3389 = vmul.f32 %v3386, %v822
        %v3390 = vmul.f32 %v3387, %v822
        %v3394 = vrot.slane %v3388, 2
        %v3395 = vrot.slane %v3389, 2
        %v3396 = vrot.slane %v3390, 2
        %v3400 = vadd.f32 %v3382, %v3394
        %v3401 = vadd.f32 %v3383, %v3395
        %v3402 = vadd.f32 %v3384, %v3396
        %v3403 = vld [vmem:[%s0 + $0x30] sm:$0xc0]
        %v3404 = vld [vmem:[%s0 + $0x38] sm:$0xc0]
        %v3405 = vld [vmem:[%s0 + $0x40] sm:$0xc0]
        %v3406 = vmul.f32 %v3403, %v843
        %v3407 = vmul.f32 %v3404, %v843
        %v3408 = vmul.f32 %v3405, %v843
        %v3412 = vrot.slane %v3406, 4
        %v3413 = vrot.slane %v3407, 4
        %v3414 = vrot.slane %v3408, 4
        %v3418 = vadd.f32 %v3400, %v3412
        %v3419 = vadd.f32 %v3401, %v3413
        %v3420 = vadd.f32 %v3402, %v3414
        %v3421 = vld [vmem:[%s0 + $0x78] sm:$0xc0]
        %v3422 = vld [vmem:[%s0 + $0x80] sm:$0xc0]
        %v3423 = vld [vmem:[%s0 + $0x88] sm:$0xc0]
        %v3424 = vmul.f32 %v3421, %v864
        %v3425 = vmul.f32 %v3422, %v864
        %v3426 = vmul.f32 %v3423, %v864
        %v3430 = vrot.slane %v3424, 4
        %v3431 = vrot.slane %v3425, 4
        %v3432 = vrot.slane %v3426, 4
        %v3436 = vadd.f32 %v3418, %v3430
        %v3437 = vadd.f32 %v3419, %v3431
        %v3438 = vadd.f32 %v3420, %v3432
        %v3439 = vld [vmem:[%s0 + $0xc0] sm:$0xc0]
        %v3440 = vld [vmem:[%s0 + $0xc8] sm:$0xc0]
        %v3441 = vld [vmem:[%s0 + $0xd0] sm:$0xc0]
        %v3442 = vmul.f32 %v3439, %v885
        %v3443 = vmul.f32 %v3440, %v885
        %v3444 = vmul.f32 %v3441, %v885
        %v3448 = vrot.slane %v3442, 4
        %v3449 = vrot.slane %v3443, 4
        %v3450 = vrot.slane %v3444, 4
        %v3454 = vadd.f32 %v3436, %v3448
        %v3455 = vadd.f32 %v3437, %v3449
        %v3456 = vadd.f32 %v3438, %v3450
        %v3457 = vmax.f32 %v3454, 0.0
        %v3458 = vmax.f32 %v3455, 0.0
        %v3459 = vmax.f32 %v3456, 0.0
        %s3460 = sld [smem:[#allocation8 + %s730]]
        %v3461 = vstv %s3460
        %v3462 = vmul.f32 %v3457, %v3461
        %v3463 = vmul.f32 %v3458, %v3461
        %v3464 = vmul.f32 %v3459, %v3461
        %v3468 = vrot.slane %v3462, 2
        %v3469 = vrot.slane %v3463, 2
        %v3470 = vrot.slane %v3464, 2
        %v3474 = vadd.f32 %v3230, %v3468
        %v3475 = vadd.f32 %v3231, %v3469
        %v3476 = vadd.f32 %v3232, %v3470
        %s3477 = sld [smem:[#allocation8 + %s1162]]
        %v3478 = vstv %s3477
        %v3479 = vmul.f32 %v3457, %v3478
        %v3480 = vmul.f32 %v3458, %v3478
        %v3481 = vmul.f32 %v3459, %v3478
        %v3485 = vrot.slane %v3479, 2
        %v3486 = vrot.slane %v3480, 2
        %v3487 = vrot.slane %v3481, 2
        %v3491 = vadd.f32 %v3247, %v3485
        %v3492 = vadd.f32 %v3248, %v3486
        %v3493 = vadd.f32 %v3249, %v3487
        %s3494 = sld [smem:[#allocation8 + %s1461]]
        %v3495 = vstv %s3494
        %v3496 = vmul.f32 %v3457, %v3495
        %v3497 = vmul.f32 %v3458, %v3495
        %v3498 = vmul.f32 %v3459, %v3495
        %v3502 = vrot.slane %v3496, 2
        %v3503 = vrot.slane %v3497, 2
        %v3504 = vrot.slane %v3498, 2
        %v3508 = vadd.f32 %v3265, %v3502
        %v3509 = vadd.f32 %v3266, %v3503
        %v3510 = vadd.f32 %v3267, %v3504
        %s3511 = sadd.s32 %s718, 51
        %s3512 = sld [smem:[#allocation8 + %s3511]]
        %v3513 = vstv %s3512
        %v3514 = vmul.f32 %v3457, %v3513
        %v3515 = vmul.f32 %v3458, %v3513
        %v3516 = vmul.f32 %v3459, %v3513
        %v3520 = vrot.slane %v3514, 2
        %v3521 = vrot.slane %v3515, 2
        %v3522 = vrot.slane %v3516, 2
        %v3526 = vadd.f32 %v3283, %v3520
        %v3527 = vadd.f32 %v3284, %v3521
        %v3528 = vadd.f32 %v3285, %v3522
        %s3529 = sadd.s32 %s718, 67
        %s3530 = sld [smem:[#allocation8 + %s3529]]
        %v3531 = vstv %s3530
        %v3532 = vmul.f32 %v3457, %v3531
        %v3533 = vmul.f32 %v3458, %v3531
        %v3534 = vmul.f32 %v3459, %v3531
        %v3538 = vrot.slane %v3532, 2
        %v3539 = vrot.slane %v3533, 2
        %v3540 = vrot.slane %v3534, 2
        %v3544 = vadd.f32 %v3301, %v3538
        %v3545 = vadd.f32 %v3302, %v3539
        %v3546 = vadd.f32 %v3303, %v3540
        %s3547 = sadd.s32 %s718, 83
        %s3548 = sld [smem:[#allocation8 + %s3547]]
        %v3549 = vstv %s3548
        %v3550 = vmul.f32 %v3457, %v3549
        %v3551 = vmul.f32 %v3458, %v3549
        %v3552 = vmul.f32 %v3459, %v3549
        %v3556 = vrot.slane %v3550, 2
        %v3557 = vrot.slane %v3551, 2
        %v3558 = vrot.slane %v3552, 2
        %v3562 = vadd.f32 %v3319, %v3556
        %v3563 = vadd.f32 %v3320, %v3557
        %v3564 = vadd.f32 %v3321, %v3558
        %v3565 = vmul.f32 %v3322, %v962
        %v3566 = vmul.f32 %v3323, %v962
        %v3567 = vmul.f32 %v3324, %v962
        %v3568 = vadd.f32 %v959, %v3565
        %v3569 = vadd.f32 %v959, %v3566
        %v3570 = vadd.f32 %v959, %v3567
        %v3571 = vmul.f32 %v3331, %v971
        %v3572 = vmul.f32 %v3332, %v971
        %v3573 = vmul.f32 %v3333, %v971
        %v3574 = vadd.f32 %v3568, %v3571
        %v3575 = vadd.f32 %v3569, %v3572
        %v3576 = vadd.f32 %v3570, %v3573
        %v3577 = vmul.f32 %v3340, %v980
        %v3578 = vmul.f32 %v3341, %v980
        %v3579 = vmul.f32 %v3342, %v980
        %v3580 = vadd.f32 %v3574, %v3577
        %v3581 = vadd.f32 %v3575, %v3578
        %v3582 = vadd.f32 %v3576, %v3579
        %v3583 = vmul.f32 %v3349, %v989
        %v3584 = vmul.f32 %v3350, %v989
        %v3585 = vmul.f32 %v3351, %v989
        %v3589 = vrot.slane %v3583, 2
        %v3590 = vrot.slane %v3584, 2
        %v3591 = vrot.slane %v3585, 2
        %v3595 = vadd.f32 %v3580, %v3589
        %v3596 = vadd.f32 %v3581, %v3590
        %v3597 = vadd.f32 %v3582, %v3591
        %v3598 = vmul.f32 %v3367, %v1007
        %v3599 = vmul.f32 %v3368, %v1007
        %v3600 = vmul.f32 %v3369, %v1007
        %v3604 = vrot.slane %v3598, 2
        %v3605 = vrot.slane %v3599, 2
        %v3606 = vrot.slane %v3600, 2
        %v3610 = vadd.f32 %v3595, %v3604
        %v3611 = vadd.f32 %v3596, %v3605
        %v3612 = vadd.f32 %v3597, %v3606
        %v3613 = vmul.f32 %v3385, %v1025
        %v3614 = vmul.f32 %v3386, %v1025
        %v3615 = vmul.f32 %v3387, %v1025
        %v3619 = vrot.slane %v3613, 2
        %v3620 = vrot.slane %v3614, 2
        %v3621 = vrot.slane %v3615, 2
        %v3625 = vadd.f32 %v3610, %v3619
        %v3626 = vadd.f32 %v3611, %v3620
        %v3627 = vadd.f32 %v3612, %v3621
        %v3628 = vmul.f32 %v3403, %v1043
        %v3629 = vmul.f32 %v3404, %v1043
        %v3630 = vmul.f32 %v3405, %v1043
        %v3634 = vrot.slane %v3628, 4
        %v3635 = vrot.slane %v3629, 4
        %v3636 = vrot.slane %v3630, 4
        %v3640 = vadd.f32 %v3625, %v3634
        %v3641 = vadd.f32 %v3626, %v3635
        %v3642 = vadd.f32 %v3627, %v3636
        %v3643 = vmul.f32 %v3421, %v1060
        %v3644 = vmul.f32 %v3422, %v1060
        %v3645 = vmul.f32 %v3423, %v1060
        %v3649 = vrot.slane %v3643, 4
        %v3650 = vrot.slane %v3644, 4
        %v3651 = vrot.slane %v3645, 4
        %v3655 = vadd.f32 %v3640, %v3649
        %v3656 = vadd.f32 %v3641, %v3650
        %v3657 = vadd.f32 %v3642, %v3651
        %v3658 = vmul.f32 %v3439, %v1078
        %v3659 = vmul.f32 %v3440, %v1078
        %v3660 = vmul.f32 %v3441, %v1078
        %v3664 = vrot.slane %v3658, 4
        %v3665 = vrot.slane %v3659, 4
        %v3666 = vrot.slane %v3660, 4
        %v3670 = vadd.f32 %v3655, %v3664
        %v3671 = vadd.f32 %v3656, %v3665
        %v3672 = vadd.f32 %v3657, %v3666
        %v3673 = vmax.f32 %v3670, 0.0
        %v3674 = vmax.f32 %v3671, 0.0
        %v3675 = vmax.f32 %v3672, 0.0
        %s3676 = sld [smem:[#allocation8 + %s862]]
        %v3677 = vstv %s3676
        %v3678 = vmul.f32 %v3673, %v3677
        %v3679 = vmul.f32 %v3674, %v3677
        %v3680 = vmul.f32 %v3675, %v3677
        %v3684 = vrot.slane %v3678, 2
        %v3685 = vrot.slane %v3679, 2
        %v3686 = vrot.slane %v3680, 2
        %v3690 = vadd.f32 %v3474, %v3684
        %v3691 = vadd.f32 %v3475, %v3685
        %v3692 = vadd.f32 %v3476, %v3686
        %s3693 = sld [smem:[#allocation8 + %s1215]]
        %v3694 = vstv %s3693
        %v3695 = vmul.f32 %v3673, %v3694
        %v3696 = vmul.f32 %v3674, %v3694
        %v3697 = vmul.f32 %v3675, %v3694
        %v3701 = vrot.slane %v3695, 2
        %v3702 = vrot.slane %v3696, 2
        %v3703 = vrot.slane %v3697, 2
        %v3707 = vadd.f32 %v3491, %v3701
        %v3708 = vadd.f32 %v3492, %v3702
        %v3709 = vadd.f32 %v3493, %v3703
        %s3710 = sadd.s32 %s718, 39
        %s3711 = sld [smem:[#allocation8 + %s3710]]
        %v3712 = vstv %s3711
        %v3713 = vmul.f32 %v3673, %v3712
        %v3714 = vmul.f32 %v3674, %v3712
        %v3715 = vmul.f32 %v3675, %v3712
        %v3719 = vrot.slane %v3713, 2
        %v3720 = vrot.slane %v3714, 2
        %v3721 = vrot.slane %v3715, 2
        %v3725 = vadd.f32 %v3508, %v3719
        %v3726 = vadd.f32 %v3509, %v3720
        %v3727 = vadd.f32 %v3510, %v3721
        %s3728 = sadd.s32 %s718, 55
        %s3729 = sld [smem:[#allocation8 + %s3728]]
        %v3730 = vstv %s3729
        %v3731 = vmul.f32 %v3673, %v3730
        %v3732 = vmul.f32 %v3674, %v3730
        %v3733 = vmul.f32 %v3675, %v3730
        %v3737 = vrot.slane %v3731, 2
        %v3738 = vrot.slane %v3732, 2
        %v3739 = vrot.slane %v3733, 2
        %v3743 = vadd.f32 %v3526, %v3737
        %v3744 = vadd.f32 %v3527, %v3738
        %v3745 = vadd.f32 %v3528, %v3739
        %s3746 = sadd.s32 %s718, 71
        %s3747 = sld [smem:[#allocation8 + %s3746]]
        %v3748 = vstv %s3747
        %v3749 = vmul.f32 %v3673, %v3748
        %v3750 = vmul.f32 %v3674, %v3748
        %v3751 = vmul.f32 %v3675, %v3748
        %v3755 = vrot.slane %v3749, 2
        %v3756 = vrot.slane %v3750, 2
        %v3757 = vrot.slane %v3751, 2
        %v3761 = vadd.f32 %v3544, %v3755
        %v3762 = vadd.f32 %v3545, %v3756
        %v3763 = vadd.f32 %v3546, %v3757
        %s3764 = sadd.s32 %s718, 87
        %s3765 = sld [smem:[#allocation8 + %s3764]]
        %v3766 = vstv %s3765
        %v3767 = vmul.f32 %v3673, %v3766
        %v3768 = vmul.f32 %v3674, %v3766
        %v3769 = vmul.f32 %v3675, %v3766
        %v3773 = vrot.slane %v3767, 2
        %v3774 = vrot.slane %v3768, 2
        %v3775 = vrot.slane %v3769, 2
        %v3779 = vadd.f32 %v3562, %v3773
        %v3780 = vadd.f32 %v3563, %v3774
        %v3781 = vadd.f32 %v3564, %v3775
        %v3782 = vmul.f32 %v3322, %v1155
        %v3783 = vmul.f32 %v3323, %v1155
        %v3784 = vmul.f32 %v3324, %v1155
        %v3785 = vadd.f32 %v1152, %v3782
        %v3786 = vadd.f32 %v1152, %v3783
        %v3787 = vadd.f32 %v1152, %v3784
        %v3788 = vmul.f32 %v3331, %v1164
        %v3789 = vmul.f32 %v3332, %v1164
        %v3790 = vmul.f32 %v3333, %v1164
        %v3791 = vadd.f32 %v3785, %v3788
        %v3792 = vadd.f32 %v3786, %v3789
        %v3793 = vadd.f32 %v3787, %v3790
        %v3794 = vmul.f32 %v3340, %v1172
        %v3795 = vmul.f32 %v3341, %v1172
        %v3796 = vmul.f32 %v3342, %v1172
        %v3797 = vadd.f32 %v3791, %v3794
        %v3798 = vadd.f32 %v3792, %v3795
        %v3799 = vadd.f32 %v3793, %v3796
        %v3800 = vmul.f32 %v3349, %v1181
        %v3801 = vmul.f32 %v3350, %v1181
        %v3802 = vmul.f32 %v3351, %v1181
        %v3806 = vrot.slane %v3800, 2
        %v3807 = vrot.slane %v3801, 2
        %v3808 = vrot.slane %v3802, 2
        %v3812 = vadd.f32 %v3797, %v3806
        %v3813 = vadd.f32 %v3798, %v3807
        %v3814 = vadd.f32 %v3799, %v3808
        %v3815 = vmul.f32 %v3367, %v1199
        %v3816 = vmul.f32 %v3368, %v1199
        %v3817 = vmul.f32 %v3369, %v1199
        %v3821 = vrot.slane %v3815, 2
        %v3822 = vrot.slane %v3816, 2
        %v3823 = vrot.slane %v3817, 2
        %v3827 = vadd.f32 %v3812, %v3821
        %v3828 = vadd.f32 %v3813, %v3822
        %v3829 = vadd.f32 %v3814, %v3823
        %v3830 = vmul.f32 %v3385, %v1217
        %v3831 = vmul.f32 %v3386, %v1217
        %v3832 = vmul.f32 %v3387, %v1217
        %v3836 = vrot.slane %v3830, 2
        %v3837 = vrot.slane %v3831, 2
        %v3838 = vrot.slane %v3832, 2
        %v3842 = vadd.f32 %v3827, %v3836
        %v3843 = vadd.f32 %v3828, %v3837
        %v3844 = vadd.f32 %v3829, %v3838
        %v3845 = vmul.f32 %v3403, %v1235
        %v3846 = vmul.f32 %v3404, %v1235
        %v3847 = vmul.f32 %v3405, %v1235
        %v3851 = vrot.slane %v3845, 4
        %v3852 = vrot.slane %v3846, 4
        %v3853 = vrot.slane %v3847, 4
        %v3857 = vadd.f32 %v3842, %v3851
        %v3858 = vadd.f32 %v3843, %v3852
        %v3859 = vadd.f32 %v3844, %v3853
        %v3860 = vmul.f32 %v3421, %v1253
        %v3861 = vmul.f32 %v3422, %v1253
        %v3862 = vmul.f32 %v3423, %v1253
        %v3866 = vrot.slane %v3860, 4
        %v3867 = vrot.slane %v3861, 4
        %v3868 = vrot.slane %v3862, 4
        %v3872 = vadd.f32 %v3857, %v3866
        %v3873 = vadd.f32 %v3858, %v3867
        %v3874 = vadd.f32 %v3859, %v3868
        %v3875 = vmul.f32 %v3439, %v1271
        %v3876 = vmul.f32 %v3440, %v1271
        %v3877 = vmul.f32 %v3441, %v1271
        %v3881 = vrot.slane %v3875, 4
        %v3882 = vrot.slane %v3876, 4
        %v3883 = vrot.slane %v3877, 4
        %v3887 = vadd.f32 %v3872, %v3881
        %v3888 = vadd.f32 %v3873, %v3882
        %v3889 = vadd.f32 %v3874, %v3883
        %v3890 = vmax.f32 %v3887, 0.0
        %v3891 = vmax.f32 %v3888, 0.0
        %v3892 = vmax.f32 %v3889, 0.0
        %s3893 = sld [smem:[#allocation8 + %s978]]
        %v3894 = vstv %s3893
        %v3895 = vmul.f32 %v3890, %v3894
        %v3896 = vmul.f32 %v3891, %v3894
        %v3897 = vmul.f32 %v3892, %v3894
        %v3901 = vrot.slane %v3895, 2
        %v3902 = vrot.slane %v3896, 2
        %v3903 = vrot.slane %v3897, 2
        %v3907 = vadd.f32 %v3690, %v3901
        %v3908 = vadd.f32 %v3691, %v3902
        %v3909 = vadd.f32 %v3692, %v3903
        %s3910 = sld [smem:[#allocation8 + %s1345]]
        %v3911 = vstv %s3910
        %v3912 = vmul.f32 %v3890, %v3911
        %v3913 = vmul.f32 %v3891, %v3911
        %v3914 = vmul.f32 %v3892, %v3911
        %v3918 = vrot.slane %v3912, 2
        %v3919 = vrot.slane %v3913, 2
        %v3920 = vrot.slane %v3914, 2
        %v3924 = vadd.f32 %v3707, %v3918
        %v3925 = vadd.f32 %v3708, %v3919
        %v3926 = vadd.f32 %v3709, %v3920
        %s3927 = sadd.s32 %s718, 43
        %s3928 = sld [smem:[#allocation8 + %s3927]]
        %v3929 = vstv %s3928
        %v3930 = vmul.f32 %v3890, %v3929
        %v3931 = vmul.f32 %v3891, %v3929
        %v3932 = vmul.f32 %v3892, %v3929
        %v3936 = vrot.slane %v3930, 2
        %v3937 = vrot.slane %v3931, 2
        %v3938 = vrot.slane %v3932, 2
        %v3942 = vadd.f32 %v3725, %v3936
        %v3943 = vadd.f32 %v3726, %v3937
        %v3944 = vadd.f32 %v3727, %v3938
        %s3945 = sadd.s32 %s718, 59
        %s3946 = sld [smem:[#allocation8 + %s3945]]
        %v3947 = vstv %s3946
        %v3948 = vmul.f32 %v3890, %v3947
        %v3949 = vmul.f32 %v3891, %v3947
        %v3950 = vmul.f32 %v3892, %v3947
        %v3954 = vrot.slane %v3948, 2
        %v3955 = vrot.slane %v3949, 2
        %v3956 = vrot.slane %v3950, 2
        %v3960 = vadd.f32 %v3743, %v3954
        %v3961 = vadd.f32 %v3744, %v3955
        %v3962 = vadd.f32 %v3745, %v3956
        %s3963 = sadd.s32 %s718, 75
        %s3964 = sld [smem:[#allocation8 + %s3963]]
        %v3965 = vstv %s3964
        %v3966 = vmul.f32 %v3890, %v3965
        %v3967 = vmul.f32 %v3891, %v3965
        %v3968 = vmul.f32 %v3892, %v3965
        %v3972 = vrot.slane %v3966, 2
        %v3973 = vrot.slane %v3967, 2
        %v3974 = vrot.slane %v3968, 2
        %v3978 = vadd.f32 %v3761, %v3972
        %v3979 = vadd.f32 %v3762, %v3973
        %v3980 = vadd.f32 %v3763, %v3974
        %s3981 = sadd.s32 %s718, 91
        %s3982 = sld [smem:[#allocation8 + %s3981]]
        %v3983 = vstv %s3982
        %v3984 = vmul.f32 %v3890, %v3983
        %v3985 = vmul.f32 %v3891, %v3983
        %v3986 = vmul.f32 %v3892, %v3983
        %v3990 = vrot.slane %v3984, 2
        %v3991 = vrot.slane %v3985, 2
        %v3992 = vrot.slane %v3986, 2
        %v3996 = vadd.f32 %v3779, %v3990
        %v3997 = vadd.f32 %v3780, %v3991
        %v3998 = vadd.f32 %v3781, %v3992
        %v3999 = vmul.f32 %v3322, %v1347
        %v4000 = vmul.f32 %v3323, %v1347
        %v4001 = vmul.f32 %v3324, %v1347
        %v4002 = vadd.f32 %v1344, %v3999
        %v4003 = vadd.f32 %v1344, %v4000
        %v4004 = vadd.f32 %v1344, %v4001
        %v4005 = vmul.f32 %v3331, %v1356
        %v4006 = vmul.f32 %v3332, %v1356
        %v4007 = vmul.f32 %v3333, %v1356
        %v4008 = vadd.f32 %v4002, %v4005
        %v4009 = vadd.f32 %v4003, %v4006
        %v4010 = vadd.f32 %v4004, %v4007
        %v4011 = vmul.f32 %v3340, %v1365
        %v4012 = vmul.f32 %v3341, %v1365
        %v4013 = vmul.f32 %v3342, %v1365
        %v4014 = vadd.f32 %v4008, %v4011
        %v4015 = vadd.f32 %v4009, %v4012
        %v4016 = vadd.f32 %v4010, %v4013
        %v4017 = vmul.f32 %v3349, %v1374
        %v4018 = vmul.f32 %v3350, %v1374
        %v4019 = vmul.f32 %v3351, %v1374
        %v4023 = vrot.slane %v4017, 2
        %v4024 = vrot.slane %v4018, 2
        %v4025 = vrot.slane %v4019, 2
        %v4029 = vadd.f32 %v4014, %v4023
        %v4030 = vadd.f32 %v4015, %v4024
        %v4031 = vadd.f32 %v4016, %v4025
        %v4032 = vmul.f32 %v3367, %v1392
        %v4033 = vmul.f32 %v3368, %v1392
        %v4034 = vmul.f32 %v3369, %v1392
        %v4038 = vrot.slane %v4032, 2
        %v4039 = vrot.slane %v4033, 2
        %v4040 = vrot.slane %v4034, 2
        %v4044 = vadd.f32 %v4029, %v4038
        %v4045 = vadd.f32 %v4030, %v4039
        %v4046 = vadd.f32 %v4031, %v4040
        %v4047 = vmul.f32 %v3385, %v1409
        %v4048 = vmul.f32 %v3386, %v1409
        %v4049 = vmul.f32 %v3387, %v1409
        %v4053 = vrot.slane %v4047, 2
        %v4054 = vrot.slane %v4048, 2
        %v4055 = vrot.slane %v4049, 2
        %v4059 = vadd.f32 %v4044, %v4053
        %v4060 = vadd.f32 %v4045, %v4054
        %v4061 = vadd.f32 %v4046, %v4055
        %v4062 = vmul.f32 %v3403, %v1427
        %v4063 = vmul.f32 %v3404, %v1427
        %v4064 = vmul.f32 %v3405, %v1427
        %v4068 = vrot.slane %v4062, 4
        %v4069 = vrot.slane %v4063, 4
        %v4070 = vrot.slane %v4064, 4
        %v4074 = vadd.f32 %v4059, %v4068
        %v4075 = vadd.f32 %v4060, %v4069
        %v4076 = vadd.f32 %v4061, %v4070
        %v4077 = vmul.f32 %v3421, %v1445
        %v4078 = vmul.f32 %v3422, %v1445
        %v4079 = vmul.f32 %v3423, %v1445
        %v4083 = vrot.slane %v4077, 4
        %v4084 = vrot.slane %v4078, 4
        %v4085 = vrot.slane %v4079, 4
        %v4089 = vadd.f32 %v4074, %v4083
        %v4090 = vadd.f32 %v4075, %v4084
        %v4091 = vadd.f32 %v4076, %v4085
        %v4092 = vmul.f32 %v3439, %v1463
        %v4093 = vmul.f32 %v3440, %v1463
        %v4094 = vmul.f32 %v3441, %v1463
        %v4098 = vrot.slane %v4092, 4
        %v4099 = vrot.slane %v4093, 4
        %v4100 = vrot.slane %v4094, 4
        %v4104 = vadd.f32 %v4089, %v4098
        %v4105 = vadd.f32 %v4090, %v4099
        %v4106 = vadd.f32 %v4091, %v4100
        %v4107 = vmax.f32 %v4104, 0.0
        %v4108 = vmax.f32 %v4105, 0.0
        %v4109 = vmax.f32 %v4106, 0.0
        %s4110 = sld [smem:[#allocation8 + %s1041]]
        %v4111 = vstv %s4110
        %v4112 = vmul.f32 %v4107, %v4111
        %v4113 = vmul.f32 %v4108, %v4111
        %v4114 = vmul.f32 %v4109, %v4111
        %v4118 = vrot.slane %v4112, 2
        %v4119 = vrot.slane %v4113, 2
        %v4120 = vrot.slane %v4114, 2
        %v4124 = vadd.f32 %v3907, %v4118
        %v4125 = vadd.f32 %v3908, %v4119
        %v4126 = vadd.f32 %v3909, %v4120
        %s4127 = sld [smem:[#allocation8 + %s1390]]
        %v4128 = vstv %s4127
        %v4129 = vmul.f32 %v4107, %v4128
        %v4130 = vmul.f32 %v4108, %v4128
        %v4131 = vmul.f32 %v4109, %v4128
        %v4135 = vrot.slane %v4129, 2
        %v4136 = vrot.slane %v4130, 2
        %v4137 = vrot.slane %v4131, 2
        %v4141 = vadd.f32 %v3924, %v4135
        %v4142 = vadd.f32 %v3925, %v4136
        %v4143 = vadd.f32 %v3926, %v4137
        %s4144 = sadd.s32 %s718, 47
        %s4145 = sld [smem:[#allocation8 + %s4144]]
        %v4146 = vstv %s4145
        %v4147 = vmul.f32 %v4107, %v4146
        %v4148 = vmul.f32 %v4108, %v4146
        %v4149 = vmul.f32 %v4109, %v4146
        %v4153 = vrot.slane %v4147, 2
        %v4154 = vrot.slane %v4148, 2
        %v4155 = vrot.slane %v4149, 2
        %v4159 = vadd.f32 %v3942, %v4153
        %v4160 = vadd.f32 %v3943, %v4154
        %v4161 = vadd.f32 %v3944, %v4155
        %s4162 = sadd.s32 %s718, 63
        %s4163 = sld [smem:[#allocation8 + %s4162]]
        %v4164 = vstv %s4163
        %v4165 = vmul.f32 %v4107, %v4164
        %v4166 = vmul.f32 %v4108, %v4164
        %v4167 = vmul.f32 %v4109, %v4164
        %v4171 = vrot.slane %v4165, 2
        %v4172 = vrot.slane %v4166, 2
        %v4173 = vrot.slane %v4167, 2
        %v4177 = vadd.f32 %v3960, %v4171
        %v4178 = vadd.f32 %v3961, %v4172
        %v4179 = vadd.f32 %v3962, %v4173
        %s4180 = sadd.s32 %s718, 79
        %s4181 = sld [smem:[#allocation8 + %s4180]]
        %v4182 = vstv %s4181
        %v4183 = vmul.f32 %v4107, %v4182
        %v4184 = vmul.f32 %v4108, %v4182
        %v4185 = vmul.f32 %v4109, %v4182
        %v4189 = vrot.slane %v4183, 2
        %v4190 = vrot.slane %v4184, 2
        %v4191 = vrot.slane %v4185, 2
        %v4195 = vadd.f32 %v3978, %v4189
        %v4196 = vadd.f32 %v3979, %v4190
        %v4197 = vadd.f32 %v3980, %v4191
        %s4198 = sadd.s32 %s718, 95
        %s4199 = sld [smem:[#allocation8 + %s4198]]
        %v4200 = vstv %s4199
        %v4201 = vmul.f32 %v4107, %v4200
        %v4202 = vmul.f32 %v4108, %v4200
        %v4203 = vmul.f32 %v4109, %v4200
        %v4207 = vrot.slane %v4201, 2
        %v4208 = vrot.slane %v4202, 2
        %v4209 = vrot.slane %v4203, 2
        %v4213 = vadd.f32 %v3996, %v4207
        %v4214 = vadd.f32 %v3997, %v4208
        %v4215 = vadd.f32 %v3998, %v4209
        %s4216 = smul.u32 4, 288
        %s4217 = smul.u32 %s4216, 1
        %s4218 = sshll.u32 %s4217, 4
        %4219 = dma.done [#allocation3], %s4218
        %v4220 = vmax.f32 %v4124, 0.0
        %v4221 = vmax.f32 %v4125, 0.0
        %v4222 = vmax.f32 %v4126, 0.0
        %v4223 = vpack.c.bf16 %v4220, %v4220
        %v4224 = vpack.c.bf16 %v4221, %v4221
        %v4225 = vpack.c.bf16 %v4222, %v4222
        %v4226 = vld [vmem:[#allocation2] sm:$0xf]
        %v4227 = vld [vmem:[#allocation2 + $0x4] sm:$0xf]
        %v4228 = vld [vmem:[#allocation2 + $0x8] sm:$0xf]
        %v4229 = vld [vmem:[#allocation2 + $0xc] sm:$0xf]
        %v4230 = vld [vmem:[#allocation2 + $0x10] sm:$0xf]
        %v4231 = vld [vmem:[#allocation2 + $0x14] sm:$0xf]
        %v4232 = vld [vmem:[#allocation2 + $0x18] sm:$0xf]
        %v4233 = vld [vmem:[#allocation2 + $0x1c] sm:$0xf]
        %v4234 = vld [vmem:[#allocation2 + $0x20] sm:$0xf]
        %v4235 = vld [vmem:[#allocation2 + $0x24] sm:$0xf]
        %v4236 = vld [vmem:[#allocation2 + $0x28] sm:$0xf]
        %v4237 = vld [vmem:[#allocation2 + $0x2c] sm:$0xf]
        %v4238 = vld [vmem:[#allocation2 + $0x30] sm:$0xf]
        %v4239 = vld [vmem:[#allocation2 + $0x34] sm:$0xf]
        %v4240 = vld [vmem:[#allocation2 + $0x38] sm:$0xf]
        %v4241 = vld [vmem:[#allocation2 + $0x3c] sm:$0xf]
        %v4242 = vld [vmem:[#allocation2 + $0x40] sm:$0xf]
        %v4243 = vld [vmem:[#allocation2 + $0x44] sm:$0xf]
        %v4244 = vld [vmem:[#allocation2 + $0x48] sm:$0xf]
        %v4245 = vld [vmem:[#allocation2 + $0x4c] sm:$0xf]
        %v4246 = vld [vmem:[#allocation2 + $0x50] sm:$0xf]
        %v4247 = vld [vmem:[#allocation2 + $0x54] sm:$0xf]
        %v4248 = vld [vmem:[#allocation2 + $0x58] sm:$0xf]
        %v4249 = vld [vmem:[#allocation2 + $0x5c] sm:$0xf]
        %v4250 = vld [vmem:[#allocation2 + $0x60] sm:$0xf]
        %v4251 = vld [vmem:[#allocation2 + $0x64] sm:$0xf]
        %v4252 = vld [vmem:[#allocation2 + $0x68] sm:$0xf]
        %v4253 = vld [vmem:[#allocation2 + $0x6c] sm:$0xf]
        %v4254 = vld [vmem:[#allocation2 + $0x70] sm:$0xf]
        %v4255 = vld [vmem:[#allocation2 + $0x74] sm:$0xf]
        %v4256 = vld [vmem:[#allocation2 + $0x78] sm:$0xf]
        %v4257 = vld [vmem:[#allocation2 + $0x7c] sm:$0xf]
        %v4258 = vld [vmem:[#allocation2 + $0x80] sm:$0xf]
        %v4259 = vld [vmem:[#allocation2 + $0x84] sm:$0xf]
        %v4260 = vld [vmem:[#allocation2 + $0x88] sm:$0xf]
        %v4261 = vld [vmem:[#allocation2 + $0x8c] sm:$0xf]
        %v4262 = vld [vmem:[#allocation2 + $0x90] sm:$0xf]
        %v4263 = vld [vmem:[#allocation2 + $0x94] sm:$0xf]
        %v4264 = vld [vmem:[#allocation2 + $0x98] sm:$0xf]
        %v4265 = vld [vmem:[#allocation2 + $0x9c] sm:$0xf]
        %v4266 = vld [vmem:[#allocation2 + $0xa0] sm:$0xf]
        %v4267 = vld [vmem:[#allocation2 + $0xa4] sm:$0xf]
        %v4268 = vld [vmem:[#allocation2 + $0xa8] sm:$0xf]
        %v4269 = vld [vmem:[#allocation2 + $0xac] sm:$0xf]
        %v4270 = vld [vmem:[#allocation2 + $0xb0] sm:$0xf]
        %v4271 = vld [vmem:[#allocation2 + $0xb4] sm:$0xf]
        %v4272 = vld [vmem:[#allocation2 + $0xb8] sm:$0xf]
        %v4273 = vld [vmem:[#allocation2 + $0xbc] sm:$0xf]
        %v4274 = vmax.f32 %v4141, 0.0
        %v4275 = vmax.f32 %v4142, 0.0
        %v4276 = vmax.f32 %v4143, 0.0
        %v4277 = vpack.c.bf16 %v4274, %v4274
        %v4278 = vpack.c.bf16 %v4275, %v4275
        %v4279 = vpack.c.bf16 %v4276, %v4276
        %v4280 = vld [vmem:[#allocation2 + $0xc0] sm:$0xf]
        %v4281 = vld [vmem:[#allocation2 + $0xc4] sm:$0xf]
        %v4282 = vld [vmem:[#allocation2 + $0xc8] sm:$0xf]
        %v4283 = vld [vmem:[#allocation2 + $0xcc] sm:$0xf]
        %v4284 = vld [vmem:[#allocation2 + $0xd0] sm:$0xf]
        %v4285 = vld [vmem:[#allocation2 + $0xd4] sm:$0xf]
        %v4286 = vld [vmem:[#allocation2 + $0xd8] sm:$0xf]
        %v4287 = vld [vmem:[#allocation2 + $0xdc] sm:$0xf]
        %v4288 = vld [vmem:[#allocation2 + $0xe0] sm:$0xf]
        %v4289 = vld [vmem:[#allocation2 + $0xe4] sm:$0xf]
        %v4290 = vld [vmem:[#allocation2 + $0xe8] sm:$0xf]
        %v4291 = vld [vmem:[#allocation2 + $0xec] sm:$0xf]
        %v4292 = vld [vmem:[#allocation2 + $0xf0] sm:$0xf]
        %v4293 = vld [vmem:[#allocation2 + $0xf4] sm:$0xf]
        %v4294 = vld [vmem:[#allocation2 + $0xf8] sm:$0xf]
        %v4295 = vld [vmem:[#allocation2 + $0xfc] sm:$0xf]
        %v4296 = vld [vmem:[#allocation2 + $0x100] sm:$0xf]
        %v4297 = vld [vmem:[#allocation2 + $0x104] sm:$0xf]
        %v4298 = vld [vmem:[#allocation2 + $0x108] sm:$0xf]
        %v4299 = vld [vmem:[#allocation2 + $0x10c] sm:$0xf]
        %v4300 = vld [vmem:[#allocation2 + $0x110] sm:$0xf]
        %v4301 = vld [vmem:[#allocation2 + $0x114] sm:$0xf]
        %v4302 = vld [vmem:[#allocation2 + $0x118] sm:$0xf]
        %v4303 = vld [vmem:[#allocation2 + $0x11c] sm:$0xf]
        %v4304 = vld [vmem:[#allocation2 + $0x120] sm:$0xf]
        %v4305 = vld [vmem:[#allocation2 + $0x124] sm:$0xf]
        %v4306 = vld [vmem:[#allocation2 + $0x128] sm:$0xf]
        %v4307 = vld [vmem:[#allocation2 + $0x12c] sm:$0xf]
        %v4308 = vld [vmem:[#allocation2 + $0x130] sm:$0xf]
        %v4309 = vld [vmem:[#allocation2 + $0x134] sm:$0xf]
        %v4310 = vld [vmem:[#allocation2 + $0x138] sm:$0xf]
        %v4311 = vld [vmem:[#allocation2 + $0x13c] sm:$0xf]
        %v4312 = vld [vmem:[#allocation2 + $0x140] sm:$0xf]
        %v4313 = vld [vmem:[#allocation2 + $0x144] sm:$0xf]
        %v4314 = vld [vmem:[#allocation2 + $0x148] sm:$0xf]
        %v4315 = vld [vmem:[#allocation2 + $0x14c] sm:$0xf]
        %v4316 = vld [vmem:[#allocation2 + $0x150] sm:$0xf]
        %v4317 = vld [vmem:[#allocation2 + $0x154] sm:$0xf]
        %v4318 = vld [vmem:[#allocation2 + $0x158] sm:$0xf]
        %v4319 = vld [vmem:[#allocation2 + $0x15c] sm:$0xf]
        %v4320 = vld [vmem:[#allocation2 + $0x160] sm:$0xf]
        %v4321 = vld [vmem:[#allocation2 + $0x164] sm:$0xf]
        %v4322 = vld [vmem:[#allocation2 + $0x168] sm:$0xf]
        %v4323 = vld [vmem:[#allocation2 + $0x16c] sm:$0xf]
        %v4324 = vld [vmem:[#allocation2 + $0x170] sm:$0xf]
        %v4325 = vld [vmem:[#allocation2 + $0x174] sm:$0xf]
        %v4326 = vld [vmem:[#allocation2 + $0x178] sm:$0xf]
        %v4327 = vld [vmem:[#allocation2 + $0x17c] sm:$0xf]
        %v4376 = vunpack.c.l.b16 %v4280
        %v4377 = vunpack.c.l.b16 %v4281
        %v4378 = vunpack.c.l.b16 %v4282
        %v4379 = vunpack.c.l.b16 %v4283
        %v4380 = vunpack.c.l.b16 %v4284
        %v4381 = vunpack.c.l.b16 %v4285
        %v4382 = vunpack.c.l.b16 %v4286
        %v4383 = vunpack.c.l.b16 %v4287
        %v4384 = vunpack.c.l.b16 %v4288
        %v4385 = vunpack.c.l.b16 %v4289
        %v4386 = vunpack.c.l.b16 %v4290
        %v4387 = vunpack.c.l.b16 %v4291
        %v4388 = vunpack.c.l.b16 %v4292
        %v4389 = vunpack.c.l.b16 %v4293
        %v4390 = vunpack.c.l.b16 %v4294
        %v4391 = vunpack.c.l.b16 %v4295
        %v4392 = vunpack.c.l.b16 %v4296
        %v4393 = vunpack.c.l.b16 %v4297
        %v4394 = vunpack.c.l.b16 %v4298
        %v4395 = vunpack.c.l.b16 %v4299
        %v4396 = vunpack.c.l.b16 %v4300
        %v4397 = vunpack.c.l.b16 %v4301
        %v4398 = vunpack.c.l.b16 %v4302
        %v4399 = vunpack.c.l.b16 %v4303
        %v4400 = vunpack.c.l.b16 %v4304
        %v4401 = vunpack.c.l.b16 %v4305
        %v4402 = vunpack.c.l.b16 %v4306
        %v4403 = vunpack.c.l.b16 %v4307
        %v4404 = vunpack.c.l.b16 %v4308
        %v4405 = vunpack.c.l.b16 %v4309
        %v4406 = vunpack.c.l.b16 %v4310
        %v4407 = vunpack.c.l.b16 %v4311
        %v4408 = vunpack.c.l.b16 %v4312
        %v4409 = vunpack.c.l.b16 %v4313
        %v4410 = vunpack.c.l.b16 %v4314
        %v4411 = vunpack.c.l.b16 %v4315
        %v4412 = vunpack.c.l.b16 %v4316
        %v4413 = vunpack.c.l.b16 %v4317
        %v4414 = vunpack.c.l.b16 %v4318
        %v4415 = vunpack.c.l.b16 %v4319
        %v4416 = vunpack.c.l.b16 %v4320
        %v4417 = vunpack.c.l.b16 %v4321
        %v4418 = vunpack.c.l.b16 %v4322
        %v4419 = vunpack.c.l.b16 %v4323
        %v4420 = vunpack.c.l.b16 %v4324
        %v4421 = vunpack.c.l.b16 %v4325
        %v4422 = vunpack.c.l.b16 %v4326
        %v4423 = vunpack.c.l.b16 %v4327
        %v4424 = vpack.c.b16 %v4377, %v4376
        %v4425 = vpack.c.b16 %v4379, %v4378
        %v4426 = vpack.c.b16 %v4381, %v4380
        %v4427 = vpack.c.b16 %v4383, %v4382
        %v4428 = vpack.c.b16 %v4385, %v4384
        %v4429 = vpack.c.b16 %v4387, %v4386
        %v4430 = vpack.c.b16 %v4389, %v4388
        %v4431 = vpack.c.b16 %v4391, %v4390
        %v4432 = vpack.c.b16 %v4393, %v4392
        %v4433 = vpack.c.b16 %v4395, %v4394
        %v4434 = vpack.c.b16 %v4397, %v4396
        %v4435 = vpack.c.b16 %v4399, %v4398
        %v4436 = vpack.c.b16 %v4401, %v4400
        %v4437 = vpack.c.b16 %v4403, %v4402
        %v4438 = vpack.c.b16 %v4405, %v4404
        %v4439 = vpack.c.b16 %v4407, %v4406
        %v4440 = vpack.c.b16 %v4409, %v4408
        %v4441 = vpack.c.b16 %v4411, %v4410
        %v4442 = vpack.c.b16 %v4413, %v4412
        %v4443 = vpack.c.b16 %v4415, %v4414
        %v4444 = vpack.c.b16 %v4417, %v4416
        %v4445 = vpack.c.b16 %v4419, %v4418
        %v4446 = vpack.c.b16 %v4421, %v4420
        %v4447 = vpack.c.b16 %v4423, %v4422
        %4472 = vmatprep.subr.bf16.mxu0 0
        %4473 = vmatpush1.bf16.msra.mxu0 %v4431
        %4474 = vmatprep.subr.bf16.mxu0 0
        %4475 = vmatpush1.bf16.msra.mxu0 %v4430
        %4476 = vmatprep.subr.bf16.mxu0 0
        %4477 = vmatpush1.bf16.msra.mxu0 %v4429
        %4478 = vmatprep.subr.bf16.mxu0 0
        %4479 = vmatpush1.bf16.msra.mxu0 %v4428
        %4480 = vmatprep.subr.bf16.mxu0 0
        %4481 = vmatpush1.bf16.msra.mxu0 %v4427
        %4482 = vmatprep.subr.bf16.mxu0 0
        %4483 = vmatpush1.bf16.msra.mxu0 %v4426
        %4484 = vmatprep.subr.bf16.mxu0 0
        %4485 = vmatpush1.bf16.msra.mxu0 %v4425
        %4486 = vmatprep.subr.bf16.mxu0 0
        %4487 = vmatpush1.bf16.msra.mxu0 %v4424
        %4488 = vmatprep.subr.bf16.mxu0 0
        %4489 = vmatpush2.bf16.msra.mxu0 %v4439
        %4490 = vmatprep.subr.bf16.mxu0 0
        %4491 = vmatpush2.bf16.msra.mxu0 %v4438
        %4492 = vmatprep.subr.bf16.mxu0 0
        %4493 = vmatpush2.bf16.msra.mxu0 %v4437
        %4494 = vmatprep.subr.bf16.mxu0 0
        %4495 = vmatpush2.bf16.msra.mxu0 %v4436
        %4496 = vmatprep.subr.bf16.mxu0 0
        %4497 = vmatpush2.bf16.msra.mxu0 %v4435
        %4498 = vmatprep.subr.bf16.mxu0 0
        %4499 = vmatpush2.bf16.msra.mxu0 %v4434
        %4500 = vmatprep.subr.bf16.mxu0 0
        %4501 = vmatpush2.bf16.msra.mxu0 %v4433
        %4502 = vmatprep.subr.bf16.mxu0 0
        %4503 = vmatpush2.bf16.msra.mxu0 %v4432
        %4504 = vmatprep.mubr.bf16.mxu0 %v4278
        %4505 = vmatmul.mubr.bf16.gmra.mxu0 %v4277
        %v4506 = vpop.f32.mrf.mxu0
        %v4507 = vadd.f32 0.0, %v4506
        %v4508 = vpop.f32.mrf.mxu0
        %v4509 = vpop.f32.mrf.mxu0
        %v4510 = vpop.f32.mrf.mxu0
        %4511 = vdwg.mxu0
        %4512 = vmatprep.subr.bf16.mxu0 0
        %4513 = vmatpush1.bf16.msra.mxu0 %v4447
        %4514 = vmatprep.subr.bf16.mxu0 0
        %4515 = vmatpush1.bf16.msra.mxu0 %v4446
        %4516 = vmatprep.subr.bf16.mxu0 0
        %4517 = vmatpush1.bf16.msra.mxu0 %v4445
        %4518 = vmatprep.subr.bf16.mxu0 0
        %4519 = vmatpush1.bf16.msra.mxu0 %v4444
        %4520 = vmatprep.subr.bf16.mxu0 0
        %4521 = vmatpush1.bf16.msra.mxu0 %v4443
        %4522 = vmatprep.subr.bf16.mxu0 0
        %4523 = vmatpush1.bf16.msra.mxu0 %v4442
        %4524 = vmatprep.subr.bf16.mxu0 0
        %4525 = vmatpush1.bf16.msra.mxu0 %v4441
        %4526 = vmatprep.subr.bf16.mxu0 0
        %4527 = vmatpush1.bf16.msra.mxu0 %v4440
        %4528 = vmatprep.subr.bf16.mxu0 0
        %4529 = vmatpush2.bf16.msra.mxu0 0
        %4530 = vmatprep.subr.bf16.mxu0 0
        %4531 = vmatpush2.bf16.msra.mxu0 0
        %4532 = vmatprep.subr.bf16.mxu0 0
        %4533 = vmatpush2.bf16.msra.mxu0 0
        %4534 = vmatprep.subr.bf16.mxu0 0
        %4535 = vmatpush2.bf16.msra.mxu0 0
        %4536 = vmatprep.subr.bf16.mxu0 0
        %4537 = vmatpush2.bf16.msra.mxu0 0
        %4538 = vmatprep.subr.bf16.mxu0 0
        %4539 = vmatpush2.bf16.msra.mxu0 0
        %4540 = vmatprep.subr.bf16.mxu0 0
        %4541 = vmatpush2.bf16.msra.mxu0 0
        %4542 = vmatprep.subr.bf16.mxu0 0
        %4543 = vmatpush2.bf16.msra.mxu0 0
        %4544 = vmatprep.mubr.bf16.mxu0 0
        %4545 = vmatmul.mubr.bf16.gmra.mxu0 %v4279
        %v4546 = vpop.f32.mrf.mxu0
        %v4547 = vadd.f32 %v4507, %v4546
        %v4548 = vpop.f32.mrf.mxu0
        %v4549 = vpop.f32.mrf.mxu0
        %v4550 = vpop.f32.mrf.mxu0
        %4551 = vdwg.mxu0
        %v4600 = vunpack.c.l.b16 %v4226
        %v4601 = vunpack.c.l.b16 %v4227
        %v4602 = vunpack.c.l.b16 %v4228
        %v4603 = vunpack.c.l.b16 %v4229
        %v4604 = vunpack.c.l.b16 %v4230
        %v4605 = vunpack.c.l.b16 %v4231
        %v4606 = vunpack.c.l.b16 %v4232
        %v4607 = vunpack.c.l.b16 %v4233
        %v4608 = vunpack.c.l.b16 %v4234
        %v4609 = vunpack.c.l.b16 %v4235
        %v4610 = vunpack.c.l.b16 %v4236
        %v4611 = vunpack.c.l.b16 %v4237
        %v4612 = vunpack.c.l.b16 %v4238
        %v4613 = vunpack.c.l.b16 %v4239
        %v4614 = vunpack.c.l.b16 %v4240
        %v4615 = vunpack.c.l.b16 %v4241
        %v4616 = vunpack.c.l.b16 %v4242
        %v4617 = vunpack.c.l.b16 %v4243
        %v4618 = vunpack.c.l.b16 %v4244
        %v4619 = vunpack.c.l.b16 %v4245
        %v4620 = vunpack.c.l.b16 %v4246
        %v4621 = vunpack.c.l.b16 %v4247
        %v4622 = vunpack.c.l.b16 %v4248
        %v4623 = vunpack.c.l.b16 %v4249
        %v4624 = vunpack.c.l.b16 %v4250
        %v4625 = vunpack.c.l.b16 %v4251
        %v4626 = vunpack.c.l.b16 %v4252
        %v4627 = vunpack.c.l.b16 %v4253
        %v4628 = vunpack.c.l.b16 %v4254
        %v4629 = vunpack.c.l.b16 %v4255
        %v4630 = vunpack.c.l.b16 %v4256
        %v4631 = vunpack.c.l.b16 %v4257
        %v4632 = vunpack.c.l.b16 %v4258
        %v4633 = vunpack.c.l.b16 %v4259
        %v4634 = vunpack.c.l.b16 %v4260
        %v4635 = vunpack.c.l.b16 %v4261
        %v4636 = vunpack.c.l.b16 %v4262
        %v4637 = vunpack.c.l.b16 %v4263
        %v4638 = vunpack.c.l.b16 %v4264
        %v4639 = vunpack.c.l.b16 %v4265
        %v4640 = vunpack.c.l.b16 %v4266
        %v4641 = vunpack.c.l.b16 %v4267
        %v4642 = vunpack.c.l.b16 %v4268
        %v4643 = vunpack.c.l.b16 %v4269
        %v4644 = vunpack.c.l.b16 %v4270
        %v4645 = vunpack.c.l.b16 %v4271
        %v4646 = vunpack.c.l.b16 %v4272
        %v4647 = vunpack.c.l.b16 %v4273
        %v4648 = vpack.c.b16 %v4601, %v4600
        %v4649 = vpack.c.b16 %v4603, %v4602
        %v4650 = vpack.c.b16 %v4605, %v4604
        %v4651 = vpack.c.b16 %v4607, %v4606
        %v4652 = vpack.c.b16 %v4609, %v4608
        %v4653 = vpack.c.b16 %v4611, %v4610
        %v4654 = vpack.c.b16 %v4613, %v4612
        %v4655 = vpack.c.b16 %v4615, %v4614
        %v4656 = vpack.c.b16 %v4617, %v4616
        %v4657 = vpack.c.b16 %v4619, %v4618
        %v4658 = vpack.c.b16 %v4621, %v4620
        %v4659 = vpack.c.b16 %v4623, %v4622
        %v4660 = vpack.c.b16 %v4625, %v4624
        %v4661 = vpack.c.b16 %v4627, %v4626
        %v4662 = vpack.c.b16 %v4629, %v4628
        %v4663 = vpack.c.b16 %v4631, %v4630
        %v4664 = vpack.c.b16 %v4633, %v4632
        %v4665 = vpack.c.b16 %v4635, %v4634
        %v4666 = vpack.c.b16 %v4637, %v4636
        %v4667 = vpack.c.b16 %v4639, %v4638
        %v4668 = vpack.c.b16 %v4641, %v4640
        %v4669 = vpack.c.b16 %v4643, %v4642
        %v4670 = vpack.c.b16 %v4645, %v4644
        %v4671 = vpack.c.b16 %v4647, %v4646
        %4696 = vmatprep.subr.bf16.mxu0 0
        %4697 = vmatpush1.bf16.msra.mxu0 %v4655
        %4698 = vmatprep.subr.bf16.mxu0 0
        %4699 = vmatpush1.bf16.msra.mxu0 %v4654
        %4700 = vmatprep.subr.bf16.mxu0 0
        %4701 = vmatpush1.bf16.msra.mxu0 %v4653
        %4702 = vmatprep.subr.bf16.mxu0 0
        %4703 = vmatpush1.bf16.msra.mxu0 %v4652
        %4704 = vmatprep.subr.bf16.mxu0 0
        %4705 = vmatpush1.bf16.msra.mxu0 %v4651
        %4706 = vmatprep.subr.bf16.mxu0 0
        %4707 = vmatpush1.bf16.msra.mxu0 %v4650
        %4708 = vmatprep.subr.bf16.mxu0 0
        %4709 = vmatpush1.bf16.msra.mxu0 %v4649
        %4710 = vmatprep.subr.bf16.mxu0 0
        %4711 = vmatpush1.bf16.msra.mxu0 %v4648
        %4712 = vmatprep.subr.bf16.mxu0 0
        %4713 = vmatpush2.bf16.msra.mxu0 %v4663
        %4714 = vmatprep.subr.bf16.mxu0 0
        %4715 = vmatpush2.bf16.msra.mxu0 %v4662
        %4716 = vmatprep.subr.bf16.mxu0 0
        %4717 = vmatpush2.bf16.msra.mxu0 %v4661
        %4718 = vmatprep.subr.bf16.mxu0 0
        %4719 = vmatpush2.bf16.msra.mxu0 %v4660
        %4720 = vmatprep.subr.bf16.mxu0 0
        %4721 = vmatpush2.bf16.msra.mxu0 %v4659
        %4722 = vmatprep.subr.bf16.mxu0 0
        %4723 = vmatpush2.bf16.msra.mxu0 %v4658
        %4724 = vmatprep.subr.bf16.mxu0 0
        %4725 = vmatpush2.bf16.msra.mxu0 %v4657
        %4726 = vmatprep.subr.bf16.mxu0 0
        %4727 = vmatpush2.bf16.msra.mxu0 %v4656
        %4728 = vmatprep.mubr.bf16.mxu0 %v4224
        %4729 = vmatmul.mubr.bf16.gmra.mxu0 %v4223
        %v4730 = vpop.f32.mrf.mxu0
        %v4731 = vadd.f32 %v4547, %v4730
        %v4732 = vpop.f32.mrf.mxu0
        %v4733 = vpop.f32.mrf.mxu0
        %v4734 = vpop.f32.mrf.mxu0
        %4735 = vdwg.mxu0
        %4736 = vmatprep.subr.bf16.mxu0 0
        %4737 = vmatpush1.bf16.msra.mxu0 %v4671
        %4738 = vmatprep.subr.bf16.mxu0 0
        %4739 = vmatpush1.bf16.msra.mxu0 %v4670
        %4740 = vmatprep.subr.bf16.mxu0 0
        %4741 = vmatpush1.bf16.msra.mxu0 %v4669
        %4742 = vmatprep.subr.bf16.mxu0 0
        %4743 = vmatpush1.bf16.msra.mxu0 %v4668
        %4744 = vmatprep.subr.bf16.mxu0 0
        %4745 = vmatpush1.bf16.msra.mxu0 %v4667
        %4746 = vmatprep.subr.bf16.mxu0 0
        %4747 = vmatpush1.bf16.msra.mxu0 %v4666
        %4748 = vmatprep.subr.bf16.mxu0 0
        %4749 = vmatpush1.bf16.msra.mxu0 %v4665
        %4750 = vmatprep.subr.bf16.mxu0 0
        %4751 = vmatpush1.bf16.msra.mxu0 %v4664
        %4752 = vmatprep.subr.bf16.mxu0 0
        %4753 = vmatpush2.bf16.msra.mxu0 0
        %4754 = vmatprep.subr.bf16.mxu0 0
        %4755 = vmatpush2.bf16.msra.mxu0 0
        %4756 = vmatprep.subr.bf16.mxu0 0
        %4757 = vmatpush2.bf16.msra.mxu0 0
        %4758 = vmatprep.subr.bf16.mxu0 0
        %4759 = vmatpush2.bf16.msra.mxu0 0
        %4760 = vmatprep.subr.bf16.mxu0 0
        %4761 = vmatpush2.bf16.msra.mxu0 0
        %4762 = vmatprep.subr.bf16.mxu0 0
        %4763 = vmatpush2.bf16.msra.mxu0 0
        %4764 = vmatprep.subr.bf16.mxu0 0
        %4765 = vmatpush2.bf16.msra.mxu0 0
        %4766 = vmatprep.subr.bf16.mxu0 0
        %4767 = vmatpush2.bf16.msra.mxu0 0
        %4768 = vmatprep.mubr.bf16.mxu0 0
        %4769 = vmatmul.mubr.bf16.gmra.mxu0 %v4225
        %v4770 = vpop.f32.mrf.mxu0
        %v4771 = vadd.f32 %v4731, %v4770
        %v4772 = vpop.f32.mrf.mxu0
        %v4773 = vpop.f32.mrf.mxu0
        %v4774 = vpop.f32.mrf.mxu0
        %4775 = vdwg.mxu0
        %v4776 = vmax.f32 %v4159, 0.0
        %v4777 = vmax.f32 %v4160, 0.0
        %v4778 = vmax.f32 %v4161, 0.0
        %v4779 = vpack.c.bf16 %v4776, %v4776
        %v4780 = vpack.c.bf16 %v4777, %v4777
        %v4781 = vpack.c.bf16 %v4778, %v4778
        %v4782 = vld [vmem:[#allocation2 + $0x180] sm:$0xf]
        %v4783 = vld [vmem:[#allocation2 + $0x184] sm:$0xf]
        %v4784 = vld [vmem:[#allocation2 + $0x188] sm:$0xf]
        %v4785 = vld [vmem:[#allocation2 + $0x18c] sm:$0xf]
        %v4786 = vld [vmem:[#allocation2 + $0x190] sm:$0xf]
        %v4787 = vld [vmem:[#allocation2 + $0x194] sm:$0xf]
        %v4788 = vld [vmem:[#allocation2 + $0x198] sm:$0xf]
        %v4789 = vld [vmem:[#allocation2 + $0x19c] sm:$0xf]
        %v4790 = vld [vmem:[#allocation2 + $0x1a0] sm:$0xf]
        %v4791 = vld [vmem:[#allocation2 + $0x1a4] sm:$0xf]
        %v4792 = vld [vmem:[#allocation2 + $0x1a8] sm:$0xf]
        %v4793 = vld [vmem:[#allocation2 + $0x1ac] sm:$0xf]
        %v4794 = vld [vmem:[#allocation2 + $0x1b0] sm:$0xf]
        %v4795 = vld [vmem:[#allocation2 + $0x1b4] sm:$0xf]
        %v4796 = vld [vmem:[#allocation2 + $0x1b8] sm:$0xf]
        %v4797 = vld [vmem:[#allocation2 + $0x1bc] sm:$0xf]
        %v4798 = vld [vmem:[#allocation2 + $0x1c0] sm:$0xf]
        %v4799 = vld [vmem:[#allocation2 + $0x1c4] sm:$0xf]
        %v4800 = vld [vmem:[#allocation2 + $0x1c8] sm:$0xf]
        %v4801 = vld [vmem:[#allocation2 + $0x1cc] sm:$0xf]
        %v4802 = vld [vmem:[#allocation2 + $0x1d0] sm:$0xf]
        %v4803 = vld [vmem:[#allocation2 + $0x1d4] sm:$0xf]
        %v4804 = vld [vmem:[#allocation2 + $0x1d8] sm:$0xf]
        %v4805 = vld [vmem:[#allocation2 + $0x1dc] sm:$0xf]
        %v4806 = vld [vmem:[#allocation2 + $0x1e0] sm:$0xf]
        %v4807 = vld [vmem:[#allocation2 + $0x1e4] sm:$0xf]
        %v4808 = vld [vmem:[#allocation2 + $0x1e8] sm:$0xf]
        %v4809 = vld [vmem:[#allocation2 + $0x1ec] sm:$0xf]
        %v4810 = vld [vmem:[#allocation2 + $0x1f0] sm:$0xf]
        %v4811 = vld [vmem:[#allocation2 + $0x1f4] sm:$0xf]
        %v4812 = vld [vmem:[#allocation2 + $0x1f8] sm:$0xf]
        %v4813 = vld [vmem:[#allocation2 + $0x1fc] sm:$0xf]
        %v4814 = vld [vmem:[#allocation2 + $0x200] sm:$0xf]
        %v4815 = vld [vmem:[#allocation2 + $0x204] sm:$0xf]
        %v4816 = vld [vmem:[#allocation2 + $0x208] sm:$0xf]
        %v4817 = vld [vmem:[#allocation2 + $0x20c] sm:$0xf]
        %v4818 = vld [vmem:[#allocation2 + $0x210] sm:$0xf]
        %v4819 = vld [vmem:[#allocation2 + $0x214] sm:$0xf]
        %v4820 = vld [vmem:[#allocation2 + $0x218] sm:$0xf]
        %v4821 = vld [vmem:[#allocation2 + $0x21c] sm:$0xf]
        %v4822 = vld [vmem:[#allocation2 + $0x220] sm:$0xf]
        %v4823 = vld [vmem:[#allocation2 + $0x224] sm:$0xf]
        %v4824 = vld [vmem:[#allocation2 + $0x228] sm:$0xf]
        %v4825 = vld [vmem:[#allocation2 + $0x22c] sm:$0xf]
        %v4826 = vld [vmem:[#allocation2 + $0x230] sm:$0xf]
        %v4827 = vld [vmem:[#allocation2 + $0x234] sm:$0xf]
        %v4828 = vld [vmem:[#allocation2 + $0x238] sm:$0xf]
        %v4829 = vld [vmem:[#allocation2 + $0x23c] sm:$0xf]
        %v4878 = vunpack.c.l.b16 %v4782
        %v4879 = vunpack.c.l.b16 %v4783
        %v4880 = vunpack.c.l.b16 %v4784
        %v4881 = vunpack.c.l.b16 %v4785
        %v4882 = vunpack.c.l.b16 %v4786
        %v4883 = vunpack.c.l.b16 %v4787
        %v4884 = vunpack.c.l.b16 %v4788
        %v4885 = vunpack.c.l.b16 %v4789
        %v4886 = vunpack.c.l.b16 %v4790
        %v4887 = vunpack.c.l.b16 %v4791
        %v4888 = vunpack.c.l.b16 %v4792
        %v4889 = vunpack.c.l.b16 %v4793
        %v4890 = vunpack.c.l.b16 %v4794
        %v4891 = vunpack.c.l.b16 %v4795
        %v4892 = vunpack.c.l.b16 %v4796
        %v4893 = vunpack.c.l.b16 %v4797
        %v4894 = vunpack.c.l.b16 %v4798
        %v4895 = vunpack.c.l.b16 %v4799
        %v4896 = vunpack.c.l.b16 %v4800
        %v4897 = vunpack.c.l.b16 %v4801
        %v4898 = vunpack.c.l.b16 %v4802
        %v4899 = vunpack.c.l.b16 %v4803
        %v4900 = vunpack.c.l.b16 %v4804
        %v4901 = vunpack.c.l.b16 %v4805
        %v4902 = vunpack.c.l.b16 %v4806
        %v4903 = vunpack.c.l.b16 %v4807
        %v4904 = vunpack.c.l.b16 %v4808
        %v4905 = vunpack.c.l.b16 %v4809
        %v4906 = vunpack.c.l.b16 %v4810
        %v4907 = vunpack.c.l.b16 %v4811
        %v4908 = vunpack.c.l.b16 %v4812
        %v4909 = vunpack.c.l.b16 %v4813
        %v4910 = vunpack.c.l.b16 %v4814
        %v4911 = vunpack.c.l.b16 %v4815
        %v4912 = vunpack.c.l.b16 %v4816
        %v4913 = vunpack.c.l.b16 %v4817
        %v4914 = vunpack.c.l.b16 %v4818
        %v4915 = vunpack.c.l.b16 %v4819
        %v4916 = vunpack.c.l.b16 %v4820
        %v4917 = vunpack.c.l.b16 %v4821
        %v4918 = vunpack.c.l.b16 %v4822
        %v4919 = vunpack.c.l.b16 %v4823
        %v4920 = vunpack.c.l.b16 %v4824
        %v4921 = vunpack.c.l.b16 %v4825
        %v4922 = vunpack.c.l.b16 %v4826
        %v4923 = vunpack.c.l.b16 %v4827
        %v4924 = vunpack.c.l.b16 %v4828
        %v4925 = vunpack.c.l.b16 %v4829
        %v4926 = vpack.c.b16 %v4879, %v4878
        %v4927 = vpack.c.b16 %v4881, %v4880
        %v4928 = vpack.c.b16 %v4883, %v4882
        %v4929 = vpack.c.b16 %v4885, %v4884
        %v4930 = vpack.c.b16 %v4887, %v4886
        %v4931 = vpack.c.b16 %v4889, %v4888
        %v4932 = vpack.c.b16 %v4891, %v4890
        %v4933 = vpack.c.b16 %v4893, %v4892
        %v4934 = vpack.c.b16 %v4895, %v4894
        %v4935 = vpack.c.b16 %v4897, %v4896
        %v4936 = vpack.c.b16 %v4899, %v4898
        %v4937 = vpack.c.b16 %v4901, %v4900
        %v4938 = vpack.c.b16 %v4903, %v4902
        %v4939 = vpack.c.b16 %v4905, %v4904
        %v4940 = vpack.c.b16 %v4907, %v4906
        %v4941 = vpack.c.b16 %v4909, %v4908
        %v4942 = vpack.c.b16 %v4911, %v4910
        %v4943 = vpack.c.b16 %v4913, %v4912
        %v4944 = vpack.c.b16 %v4915, %v4914
        %v4945 = vpack.c.b16 %v4917, %v4916
        %v4946 = vpack.c.b16 %v4919, %v4918
        %v4947 = vpack.c.b16 %v4921, %v4920
        %v4948 = vpack.c.b16 %v4923, %v4922
        %v4949 = vpack.c.b16 %v4925, %v4924
        %4974 = vmatprep.subr.bf16.mxu0 0
        %4975 = vmatpush1.bf16.msra.mxu0 %v4933
        %4976 = vmatprep.subr.bf16.mxu0 0
        %4977 = vmatpush1.bf16.msra.mxu0 %v4932
        %4978 = vmatprep.subr.bf16.mxu0 0
        %4979 = vmatpush1.bf16.msra.mxu0 %v4931
        %4980 = vmatprep.subr.bf16.mxu0 0
        %4981 = vmatpush1.bf16.msra.mxu0 %v4930
        %4982 = vmatprep.subr.bf16.mxu0 0
        %4983 = vmatpush1.bf16.msra.mxu0 %v4929
        %4984 = vmatprep.subr.bf16.mxu0 0
        %4985 = vmatpush1.bf16.msra.mxu0 %v4928
        %4986 = vmatprep.subr.bf16.mxu0 0
        %4987 = vmatpush1.bf16.msra.mxu0 %v4927
        %4988 = vmatprep.subr.bf16.mxu0 0
        %4989 = vmatpush1.bf16.msra.mxu0 %v4926
        %4990 = vmatprep.subr.bf16.mxu0 0
        %4991 = vmatpush2.bf16.msra.mxu0 %v4941
        %4992 = vmatprep.subr.bf16.mxu0 0
        %4993 = vmatpush2.bf16.msra.mxu0 %v4940
        %4994 = vmatprep.subr.bf16.mxu0 0
        %4995 = vmatpush2.bf16.msra.mxu0 %v4939
        %4996 = vmatprep.subr.bf16.mxu0 0
        %4997 = vmatpush2.bf16.msra.mxu0 %v4938
        %4998 = vmatprep.subr.bf16.mxu0 0
        %4999 = vmatpush2.bf16.msra.mxu0 %v4937
        %5000 = vmatprep.subr.bf16.mxu0 0
        %5001 = vmatpush2.bf16.msra.mxu0 %v4936
        %5002 = vmatprep.subr.bf16.mxu0 0
        %5003 = vmatpush2.bf16.msra.mxu0 %v4935
        %5004 = vmatprep.subr.bf16.mxu0 0
        %5005 = vmatpush2.bf16.msra.mxu0 %v4934
        %5006 = vmatprep.mubr.bf16.mxu0 %v4780
        %5007 = vmatmul.mubr.bf16.gmra.mxu0 %v4779
        %v5008 = vpop.f32.mrf.mxu0
        %v5009 = vadd.f32 0.0, %v5008
        %v5010 = vpop.f32.mrf.mxu0
        %v5011 = vpop.f32.mrf.mxu0
        %v5012 = vpop.f32.mrf.mxu0
        %5013 = vdwg.mxu0
        %5014 = vmatprep.subr.bf16.mxu0 0
        %5015 = vmatpush1.bf16.msra.mxu0 %v4949
        %5016 = vmatprep.subr.bf16.mxu0 0
        %5017 = vmatpush1.bf16.msra.mxu0 %v4948
        %5018 = vmatprep.subr.bf16.mxu0 0
        %5019 = vmatpush1.bf16.msra.mxu0 %v4947
        %5020 = vmatprep.subr.bf16.mxu0 0
        %5021 = vmatpush1.bf16.msra.mxu0 %v4946
        %5022 = vmatprep.subr.bf16.mxu0 0
        %5023 = vmatpush1.bf16.msra.mxu0 %v4945
        %5024 = vmatprep.subr.bf16.mxu0 0
        %5025 = vmatpush1.bf16.msra.mxu0 %v4944
        %5026 = vmatprep.subr.bf16.mxu0 0
        %5027 = vmatpush1.bf16.msra.mxu0 %v4943
        %5028 = vmatprep.subr.bf16.mxu0 0
        %5029 = vmatpush1.bf16.msra.mxu0 %v4942
        %5030 = vmatprep.subr.bf16.mxu0 0
        %5031 = vmatpush2.bf16.msra.mxu0 0
        %5032 = vmatprep.subr.bf16.mxu0 0
        %5033 = vmatpush2.bf16.msra.mxu0 0
        %5034 = vmatprep.subr.bf16.mxu0 0
        %5035 = vmatpush2.bf16.msra.mxu0 0
        %5036 = vmatprep.subr.bf16.mxu0 0
        %5037 = vmatpush2.bf16.msra.mxu0 0
        %5038 = vmatprep.subr.bf16.mxu0 0
        %5039 = vmatpush2.bf16.msra.mxu0 0
        %5040 = vmatprep.subr.bf16.mxu0 0
        %5041 = vmatpush2.bf16.msra.mxu0 0
        %5042 = vmatprep.subr.bf16.mxu0 0
        %5043 = vmatpush2.bf16.msra.mxu0 0
        %5044 = vmatprep.subr.bf16.mxu0 0
        %5045 = vmatpush2.bf16.msra.mxu0 0
        %5046 = vmatprep.mubr.bf16.mxu0 0
        %5047 = vmatmul.mubr.bf16.gmra.mxu0 %v4781
        %v5048 = vpop.f32.mrf.mxu0
        %v5049 = vadd.f32 %v5009, %v5048
        %v5050 = vpop.f32.mrf.mxu0
        %v5051 = vpop.f32.mrf.mxu0
        %v5052 = vpop.f32.mrf.mxu0
        %5053 = vdwg.mxu0
        %v5054 = vadd.f32 %v4771, %v5049
        %v5055 = vmax.f32 %v4177, 0.0
        %v5056 = vmax.f32 %v4178, 0.0
        %v5057 = vmax.f32 %v4179, 0.0
        %v5058 = vpack.c.bf16 %v5055, %v5055
        %v5059 = vpack.c.bf16 %v5056, %v5056
        %v5060 = vpack.c.bf16 %v5057, %v5057
        %v5061 = vld [vmem:[#allocation2 + $0x240] sm:$0xf]
        %v5062 = vld [vmem:[#allocation2 + $0x244] sm:$0xf]
        %v5063 = vld [vmem:[#allocation2 + $0x248] sm:$0xf]
        %v5064 = vld [vmem:[#allocation2 + $0x24c] sm:$0xf]
        %v5065 = vld [vmem:[#allocation2 + $0x250] sm:$0xf]
        %v5066 = vld [vmem:[#allocation2 + $0x254] sm:$0xf]
        %v5067 = vld [vmem:[#allocation2 + $0x258] sm:$0xf]
        %v5068 = vld [vmem:[#allocation2 + $0x25c] sm:$0xf]
        %v5069 = vld [vmem:[#allocation2 + $0x260] sm:$0xf]
        %v5070 = vld [vmem:[#allocation2 + $0x264] sm:$0xf]
        %v5071 = vld [vmem:[#allocation2 + $0x268] sm:$0xf]
        %v5072 = vld [vmem:[#allocation2 + $0x26c] sm:$0xf]
        %v5073 = vld [vmem:[#allocation2 + $0x270] sm:$0xf]
        %v5074 = vld [vmem:[#allocation2 + $0x274] sm:$0xf]
        %v5075 = vld [vmem:[#allocation2 + $0x278] sm:$0xf]
        %v5076 = vld [vmem:[#allocation2 + $0x27c] sm:$0xf]
        %v5077 = vld [vmem:[#allocation2 + $0x280] sm:$0xf]
        %v5078 = vld [vmem:[#allocation2 + $0x284] sm:$0xf]
        %v5079 = vld [vmem:[#allocation2 + $0x288] sm:$0xf]
        %v5080 = vld [vmem:[#allocation2 + $0x28c] sm:$0xf]
        %v5081 = vld [vmem:[#allocation2 + $0x290] sm:$0xf]
        %v5082 = vld [vmem:[#allocation2 + $0x294] sm:$0xf]
        %v5083 = vld [vmem:[#allocation2 + $0x298] sm:$0xf]
        %v5084 = vld [vmem:[#allocation2 + $0x29c] sm:$0xf]
        %v5085 = vld [vmem:[#allocation2 + $0x2a0] sm:$0xf]
        %v5086 = vld [vmem:[#allocation2 + $0x2a4] sm:$0xf]
        %v5087 = vld [vmem:[#allocation2 + $0x2a8] sm:$0xf]
        %v5088 = vld [vmem:[#allocation2 + $0x2ac] sm:$0xf]
        %v5089 = vld [vmem:[#allocation2 + $0x2b0] sm:$0xf]
        %v5090 = vld [vmem:[#allocation2 + $0x2b4] sm:$0xf]
        %v5091 = vld [vmem:[#allocation2 + $0x2b8] sm:$0xf]
        %v5092 = vld [vmem:[#allocation2 + $0x2bc] sm:$0xf]
        %v5093 = vld [vmem:[#allocation2 + $0x2c0] sm:$0xf]
        %v5094 = vld [vmem:[#allocation2 + $0x2c4] sm:$0xf]
        %v5095 = vld [vmem:[#allocation2 + $0x2c8] sm:$0xf]
        %v5096 = vld [vmem:[#allocation2 + $0x2cc] sm:$0xf]
        %v5097 = vld [vmem:[#allocation2 + $0x2d0] sm:$0xf]
        %v5098 = vld [vmem:[#allocation2 + $0x2d4] sm:$0xf]
        %v5099 = vld [vmem:[#allocation2 + $0x2d8] sm:$0xf]
        %v5100 = vld [vmem:[#allocation2 + $0x2dc] sm:$0xf]
        %v5101 = vld [vmem:[#allocation2 + $0x2e0] sm:$0xf]
        %v5102 = vld [vmem:[#allocation2 + $0x2e4] sm:$0xf]
        %v5103 = vld [vmem:[#allocation2 + $0x2e8] sm:$0xf]
        %v5104 = vld [vmem:[#allocation2 + $0x2ec] sm:$0xf]
        %v5105 = vld [vmem:[#allocation2 + $0x2f0] sm:$0xf]
        %v5106 = vld [vmem:[#allocation2 + $0x2f4] sm:$0xf]
        %v5107 = vld [vmem:[#allocation2 + $0x2f8] sm:$0xf]
        %v5108 = vld [vmem:[#allocation2 + $0x2fc] sm:$0xf]
        %v5157 = vunpack.c.l.b16 %v5061
        %v5158 = vunpack.c.l.b16 %v5062
        %v5159 = vunpack.c.l.b16 %v5063
        %v5160 = vunpack.c.l.b16 %v5064
        %v5161 = vunpack.c.l.b16 %v5065
        %v5162 = vunpack.c.l.b16 %v5066
        %v5163 = vunpack.c.l.b16 %v5067
        %v5164 = vunpack.c.l.b16 %v5068
        %v5165 = vunpack.c.l.b16 %v5069
        %v5166 = vunpack.c.l.b16 %v5070
        %v5167 = vunpack.c.l.b16 %v5071
        %v5168 = vunpack.c.l.b16 %v5072
        %v5169 = vunpack.c.l.b16 %v5073
        %v5170 = vunpack.c.l.b16 %v5074
        %v5171 = vunpack.c.l.b16 %v5075
        %v5172 = vunpack.c.l.b16 %v5076
        %v5173 = vunpack.c.l.b16 %v5077
        %v5174 = vunpack.c.l.b16 %v5078
        %v5175 = vunpack.c.l.b16 %v5079
        %v5176 = vunpack.c.l.b16 %v5080
        %v5177 = vunpack.c.l.b16 %v5081
        %v5178 = vunpack.c.l.b16 %v5082
        %v5179 = vunpack.c.l.b16 %v5083
        %v5180 = vunpack.c.l.b16 %v5084
        %v5181 = vunpack.c.l.b16 %v5085
        %v5182 = vunpack.c.l.b16 %v5086
        %v5183 = vunpack.c.l.b16 %v5087
        %v5184 = vunpack.c.l.b16 %v5088
        %v5185 = vunpack.c.l.b16 %v5089
        %v5186 = vunpack.c.l.b16 %v5090
        %v5187 = vunpack.c.l.b16 %v5091
        %v5188 = vunpack.c.l.b16 %v5092
        %v5189 = vunpack.c.l.b16 %v5093
        %v5190 = vunpack.c.l.b16 %v5094
        %v5191 = vunpack.c.l.b16 %v5095
        %v5192 = vunpack.c.l.b16 %v5096
        %v5193 = vunpack.c.l.b16 %v5097
        %v5194 = vunpack.c.l.b16 %v5098
        %v5195 = vunpack.c.l.b16 %v5099
        %v5196 = vunpack.c.l.b16 %v5100
        %v5197 = vunpack.c.l.b16 %v5101
        %v5198 = vunpack.c.l.b16 %v5102
        %v5199 = vunpack.c.l.b16 %v5103
        %v5200 = vunpack.c.l.b16 %v5104
        %v5201 = vunpack.c.l.b16 %v5105
        %v5202 = vunpack.c.l.b16 %v5106
        %v5203 = vunpack.c.l.b16 %v5107
        %v5204 = vunpack.c.l.b16 %v5108
        %v5205 = vpack.c.b16 %v5158, %v5157
        %v5206 = vpack.c.b16 %v5160, %v5159
        %v5207 = vpack.c.b16 %v5162, %v5161
        %v5208 = vpack.c.b16 %v5164, %v5163
        %v5209 = vpack.c.b16 %v5166, %v5165
        %v5210 = vpack.c.b16 %v5168, %v5167
        %v5211 = vpack.c.b16 %v5170, %v5169
        %v5212 = vpack.c.b16 %v5172, %v5171
        %v5213 = vpack.c.b16 %v5174, %v5173
        %v5214 = vpack.c.b16 %v5176, %v5175
        %v5215 = vpack.c.b16 %v5178, %v5177
        %v5216 = vpack.c.b16 %v5180, %v5179
        %v5217 = vpack.c.b16 %v5182, %v5181
        %v5218 = vpack.c.b16 %v5184, %v5183
        %v5219 = vpack.c.b16 %v5186, %v5185
        %v5220 = vpack.c.b16 %v5188, %v5187
        %v5221 = vpack.c.b16 %v5190, %v5189
        %v5222 = vpack.c.b16 %v5192, %v5191
        %v5223 = vpack.c.b16 %v5194, %v5193
        %v5224 = vpack.c.b16 %v5196, %v5195
        %v5225 = vpack.c.b16 %v5198, %v5197
        %v5226 = vpack.c.b16 %v5200, %v5199
        %v5227 = vpack.c.b16 %v5202, %v5201
        %v5228 = vpack.c.b16 %v5204, %v5203
        %5253 = vmatprep.subr.bf16.mxu0 0
        %5254 = vmatpush1.bf16.msra.mxu0 %v5212
        %5255 = vmatprep.subr.bf16.mxu0 0
        %5256 = vmatpush1.bf16.msra.mxu0 %v5211
        %5257 = vmatprep.subr.bf16.mxu0 0
        %5258 = vmatpush1.bf16.msra.mxu0 %v5210
        %5259 = vmatprep.subr.bf16.mxu0 0
        %5260 = vmatpush1.bf16.msra.mxu0 %v5209
        %5261 = vmatprep.subr.bf16.mxu0 0
        %5262 = vmatpush1.bf16.msra.mxu0 %v5208
        %5263 = vmatprep.subr.bf16.mxu0 0
        %5264 = vmatpush1.bf16.msra.mxu0 %v5207
        %5265 = vmatprep.subr.bf16.mxu0 0
        %5266 = vmatpush1.bf16.msra.mxu0 %v5206
        %5267 = vmatprep.subr.bf16.mxu0 0
        %5268 = vmatpush1.bf16.msra.mxu0 %v5205
        %5269 = vmatprep.subr.bf16.mxu0 0
        %5270 = vmatpush2.bf16.msra.mxu0 %v5220
        %5271 = vmatprep.subr.bf16.mxu0 0
        %5272 = vmatpush2.bf16.msra.mxu0 %v5219
        %5273 = vmatprep.subr.bf16.mxu0 0
        %5274 = vmatpush2.bf16.msra.mxu0 %v5218
        %5275 = vmatprep.subr.bf16.mxu0 0
        %5276 = vmatpush2.bf16.msra.mxu0 %v5217
        %5277 = vmatprep.subr.bf16.mxu0 0
        %5278 = vmatpush2.bf16.msra.mxu0 %v5216
        %5279 = vmatprep.subr.bf16.mxu0 0
        %5280 = vmatpush2.bf16.msra.mxu0 %v5215
        %5281 = vmatprep.subr.bf16.mxu0 0
        %5282 = vmatpush2.bf16.msra.mxu0 %v5214
        %5283 = vmatprep.subr.bf16.mxu0 0
        %5284 = vmatpush2.bf16.msra.mxu0 %v5213
        %5285 = vmatprep.mubr.bf16.mxu0 %v5059
        %5286 = vmatmul.mubr.bf16.gmra.mxu0 %v5058
        %v5287 = vpop.f32.mrf.mxu0
        %v5288 = vadd.f32 0.0, %v5287
        %v5289 = vpop.f32.mrf.mxu0
        %v5290 = vpop.f32.mrf.mxu0
        %v5291 = vpop.f32.mrf.mxu0
        %5292 = vdwg.mxu0
        %5293 = vmatprep.subr.bf16.mxu0 0
        %5294 = vmatpush1.bf16.msra.mxu0 %v5228
        %5295 = vmatprep.subr.bf16.mxu0 0
        %5296 = vmatpush1.bf16.msra.mxu0 %v5227
        %5297 = vmatprep.subr.bf16.mxu0 0
        %5298 = vmatpush1.bf16.msra.mxu0 %v5226
        %5299 = vmatprep.subr.bf16.mxu0 0
        %5300 = vmatpush1.bf16.msra.mxu0 %v5225
        %5301 = vmatprep.subr.bf16.mxu0 0
        %5302 = vmatpush1.bf16.msra.mxu0 %v5224
        %5303 = vmatprep.subr.bf16.mxu0 0
        %5304 = vmatpush1.bf16.msra.mxu0 %v5223
        %5305 = vmatprep.subr.bf16.mxu0 0
        %5306 = vmatpush1.bf16.msra.mxu0 %v5222
        %5307 = vmatprep.subr.bf16.mxu0 0
        %5308 = vmatpush1.bf16.msra.mxu0 %v5221
        %5309 = vmatprep.subr.bf16.mxu0 0
        %5310 = vmatpush2.bf16.msra.mxu0 0
        %5311 = vmatprep.subr.bf16.mxu0 0
        %5312 = vmatpush2.bf16.msra.mxu0 0
        %5313 = vmatprep.subr.bf16.mxu0 0
        %5314 = vmatpush2.bf16.msra.mxu0 0
        %5315 = vmatprep.subr.bf16.mxu0 0
        %5316 = vmatpush2.bf16.msra.mxu0 0
        %5317 = vmatprep.subr.bf16.mxu0 0
        %5318 = vmatpush2.bf16.msra.mxu0 0
        %5319 = vmatprep.subr.bf16.mxu0 0
        %5320 = vmatpush2.bf16.msra.mxu0 0
        %5321 = vmatprep.subr.bf16.mxu0 0
        %5322 = vmatpush2.bf16.msra.mxu0 0
        %5323 = vmatprep.subr.bf16.mxu0 0
        %5324 = vmatpush2.bf16.msra.mxu0 0
        %5325 = vmatprep.mubr.bf16.mxu0 0
        %5326 = vmatmul.mubr.bf16.gmra.mxu0 %v5060
        %v5327 = vpop.f32.mrf.mxu0
        %v5328 = vadd.f32 %v5288, %v5327
        %v5329 = vpop.f32.mrf.mxu0
        %v5330 = vpop.f32.mrf.mxu0
        %v5331 = vpop.f32.mrf.mxu0
        %5332 = vdwg.mxu0
        %v5333 = vadd.f32 %v5054, %v5328
        %v5334 = vmax.f32 %v4195, 0.0
        %v5335 = vmax.f32 %v4196, 0.0
        %v5336 = vmax.f32 %v4197, 0.0
        %v5337 = vpack.c.bf16 %v5334, %v5334
        %v5338 = vpack.c.bf16 %v5335, %v5335
        %v5339 = vpack.c.bf16 %v5336, %v5336
        %v5340 = vld [vmem:[#allocation2 + $0x300] sm:$0xf]
        %v5341 = vld [vmem:[#allocation2 + $0x304] sm:$0xf]
        %v5342 = vld [vmem:[#allocation2 + $0x308] sm:$0xf]
        %v5343 = vld [vmem:[#allocation2 + $0x30c] sm:$0xf]
        %v5344 = vld [vmem:[#allocation2 + $0x310] sm:$0xf]
        %v5345 = vld [vmem:[#allocation2 + $0x314] sm:$0xf]
        %v5346 = vld [vmem:[#allocation2 + $0x318] sm:$0xf]
        %v5347 = vld [vmem:[#allocation2 + $0x31c] sm:$0xf]
        %v5348 = vld [vmem:[#allocation2 + $0x320] sm:$0xf]
        %v5349 = vld [vmem:[#allocation2 + $0x324] sm:$0xf]
        %v5350 = vld [vmem:[#allocation2 + $0x328] sm:$0xf]
        %v5351 = vld [vmem:[#allocation2 + $0x32c] sm:$0xf]
        %v5352 = vld [vmem:[#allocation2 + $0x330] sm:$0xf]
        %v5353 = vld [vmem:[#allocation2 + $0x334] sm:$0xf]
        %v5354 = vld [vmem:[#allocation2 + $0x338] sm:$0xf]
        %v5355 = vld [vmem:[#allocation2 + $0x33c] sm:$0xf]
        %v5356 = vld [vmem:[#allocation2 + $0x340] sm:$0xf]
        %v5357 = vld [vmem:[#allocation2 + $0x344] sm:$0xf]
        %v5358 = vld [vmem:[#allocation2 + $0x348] sm:$0xf]
        %v5359 = vld [vmem:[#allocation2 + $0x34c] sm:$0xf]
        %v5360 = vld [vmem:[#allocation2 + $0x350] sm:$0xf]
        %v5361 = vld [vmem:[#allocation2 + $0x354] sm:$0xf]
        %v5362 = vld [vmem:[#allocation2 + $0x358] sm:$0xf]
        %v5363 = vld [vmem:[#allocation2 + $0x35c] sm:$0xf]
        %v5364 = vld [vmem:[#allocation2 + $0x360] sm:$0xf]
        %v5365 = vld [vmem:[#allocation2 + $0x364] sm:$0xf]
        %v5366 = vld [vmem:[#allocation2 + $0x368] sm:$0xf]
        %v5367 = vld [vmem:[#allocation2 + $0x36c] sm:$0xf]
        %v5368 = vld [vmem:[#allocation2 + $0x370] sm:$0xf]
        %v5369 = vld [vmem:[#allocation2 + $0x374] sm:$0xf]
        %v5370 = vld [vmem:[#allocation2 + $0x378] sm:$0xf]
        %v5371 = vld [vmem:[#allocation2 + $0x37c] sm:$0xf]
        %v5372 = vld [vmem:[#allocation2 + $0x380] sm:$0xf]
        %v5373 = vld [vmem:[#allocation2 + $0x384] sm:$0xf]
        %v5374 = vld [vmem:[#allocation2 + $0x388] sm:$0xf]
        %v5375 = vld [vmem:[#allocation2 + $0x38c] sm:$0xf]
        %v5376 = vld [vmem:[#allocation2 + $0x390] sm:$0xf]
        %v5377 = vld [vmem:[#allocation2 + $0x394] sm:$0xf]
        %v5378 = vld [vmem:[#allocation2 + $0x398] sm:$0xf]
        %v5379 = vld [vmem:[#allocation2 + $0x39c] sm:$0xf]
        %v5380 = vld [vmem:[#allocation2 + $0x3a0] sm:$0xf]
        %v5381 = vld [vmem:[#allocation2 + $0x3a4] sm:$0xf]
        %v5382 = vld [vmem:[#allocation2 + $0x3a8] sm:$0xf]
        %v5383 = vld [vmem:[#allocation2 + $0x3ac] sm:$0xf]
        %v5384 = vld [vmem:[#allocation2 + $0x3b0] sm:$0xf]
        %v5385 = vld [vmem:[#allocation2 + $0x3b4] sm:$0xf]
        %v5386 = vld [vmem:[#allocation2 + $0x3b8] sm:$0xf]
        %v5387 = vld [vmem:[#allocation2 + $0x3bc] sm:$0xf]
        %v5436 = vunpack.c.l.b16 %v5340
        %v5437 = vunpack.c.l.b16 %v5341
        %v5438 = vunpack.c.l.b16 %v5342
        %v5439 = vunpack.c.l.b16 %v5343
        %v5440 = vunpack.c.l.b16 %v5344
        %v5441 = vunpack.c.l.b16 %v5345
        %v5442 = vunpack.c.l.b16 %v5346
        %v5443 = vunpack.c.l.b16 %v5347
        %v5444 = vunpack.c.l.b16 %v5348
        %v5445 = vunpack.c.l.b16 %v5349
        %v5446 = vunpack.c.l.b16 %v5350
        %v5447 = vunpack.c.l.b16 %v5351
        %v5448 = vunpack.c.l.b16 %v5352
        %v5449 = vunpack.c.l.b16 %v5353
        %v5450 = vunpack.c.l.b16 %v5354
        %v5451 = vunpack.c.l.b16 %v5355
        %v5452 = vunpack.c.l.b16 %v5356
        %v5453 = vunpack.c.l.b16 %v5357
        %v5454 = vunpack.c.l.b16 %v5358
        %v5455 = vunpack.c.l.b16 %v5359
        %v5456 = vunpack.c.l.b16 %v5360
        %v5457 = vunpack.c.l.b16 %v5361
        %v5458 = vunpack.c.l.b16 %v5362
        %v5459 = vunpack.c.l.b16 %v5363
        %v5460 = vunpack.c.l.b16 %v5364
        %v5461 = vunpack.c.l.b16 %v5365
        %v5462 = vunpack.c.l.b16 %v5366
        %v5463 = vunpack.c.l.b16 %v5367
        %v5464 = vunpack.c.l.b16 %v5368
        %v5465 = vunpack.c.l.b16 %v5369
        %v5466 = vunpack.c.l.b16 %v5370
        %v5467 = vunpack.c.l.b16 %v5371
        %v5468 = vunpack.c.l.b16 %v5372
        %v5469 = vunpack.c.l.b16 %v5373
        %v5470 = vunpack.c.l.b16 %v5374
        %v5471 = vunpack.c.l.b16 %v5375
        %v5472 = vunpack.c.l.b16 %v5376
        %v5473 = vunpack.c.l.b16 %v5377
        %v5474 = vunpack.c.l.b16 %v5378
        %v5475 = vunpack.c.l.b16 %v5379
        %v5476 = vunpack.c.l.b16 %v5380
        %v5477 = vunpack.c.l.b16 %v5381
        %v5478 = vunpack.c.l.b16 %v5382
        %v5479 = vunpack.c.l.b16 %v5383
        %v5480 = vunpack.c.l.b16 %v5384
        %v5481 = vunpack.c.l.b16 %v5385
        %v5482 = vunpack.c.l.b16 %v5386
        %v5483 = vunpack.c.l.b16 %v5387
        %v5484 = vpack.c.b16 %v5437, %v5436
        %v5485 = vpack.c.b16 %v5439, %v5438
        %v5486 = vpack.c.b16 %v5441, %v5440
        %v5487 = vpack.c.b16 %v5443, %v5442
        %v5488 = vpack.c.b16 %v5445, %v5444
        %v5489 = vpack.c.b16 %v5447, %v5446
        %v5490 = vpack.c.b16 %v5449, %v5448
        %v5491 = vpack.c.b16 %v5451, %v5450
        %v5492 = vpack.c.b16 %v5453, %v5452
        %v5493 = vpack.c.b16 %v5455, %v5454
        %v5494 = vpack.c.b16 %v5457, %v5456
        %v5495 = vpack.c.b16 %v5459, %v5458
        %v5496 = vpack.c.b16 %v5461, %v5460
        %v5497 = vpack.c.b16 %v5463, %v5462
        %v5498 = vpack.c.b16 %v5465, %v5464
        %v5499 = vpack.c.b16 %v5467, %v5466
        %v5500 = vpack.c.b16 %v5469, %v5468
        %v5501 = vpack.c.b16 %v5471, %v5470
        %v5502 = vpack.c.b16 %v5473, %v5472
        %v5503 = vpack.c.b16 %v5475, %v5474
        %v5504 = vpack.c.b16 %v5477, %v5476
        %v5505 = vpack.c.b16 %v5479, %v5478
        %v5506 = vpack.c.b16 %v5481, %v5480
        %v5507 = vpack.c.b16 %v5483, %v5482
        %5532 = vmatprep.subr.bf16.mxu0 0
        %5533 = vmatpush1.bf16.msra.mxu0 %v5491
        %5534 = vmatprep.subr.bf16.mxu0 0
        %5535 = vmatpush1.bf16.msra.mxu0 %v5490
        %5536 = vmatprep.subr.bf16.mxu0 0
        %5537 = vmatpush1.bf16.msra.mxu0 %v5489
        %5538 = vmatprep.subr.bf16.mxu0 0
        %5539 = vmatpush1.bf16.msra.mxu0 %v5488
        %5540 = vmatprep.subr.bf16.mxu0 0
        %5541 = vmatpush1.bf16.msra.mxu0 %v5487
        %5542 = vmatprep.subr.bf16.mxu0 0
        %5543 = vmatpush1.bf16.msra.mxu0 %v5486
        %5544 = vmatprep.subr.bf16.mxu0 0
        %5545 = vmatpush1.bf16.msra.mxu0 %v5485
        %5546 = vmatprep.subr.bf16.mxu0 0
        %5547 = vmatpush1.bf16.msra.mxu0 %v5484
        %5548 = vmatprep.subr.bf16.mxu0 0
        %5549 = vmatpush2.bf16.msra.mxu0 %v5499
        %5550 = vmatprep.subr.bf16.mxu0 0
        %5551 = vmatpush2.bf16.msra.mxu0 %v5498
        %5552 = vmatprep.subr.bf16.mxu0 0
        %5553 = vmatpush2.bf16.msra.mxu0 %v5497
        %5554 = vmatprep.subr.bf16.mxu0 0
        %5555 = vmatpush2.bf16.msra.mxu0 %v5496
        %5556 = vmatprep.subr.bf16.mxu0 0
        %5557 = vmatpush2.bf16.msra.mxu0 %v5495
        %5558 = vmatprep.subr.bf16.mxu0 0
        %5559 = vmatpush2.bf16.msra.mxu0 %v5494
        %5560 = vmatprep.subr.bf16.mxu0 0
        %5561 = vmatpush2.bf16.msra.mxu0 %v5493
        %5562 = vmatprep.subr.bf16.mxu0 0
        %5563 = vmatpush2.bf16.msra.mxu0 %v5492
        %5564 = vmatprep.mubr.bf16.mxu0 %v5338
        %5565 = vmatmul.mubr.bf16.gmra.mxu0 %v5337
        %v5566 = vpop.f32.mrf.mxu0
        %v5567 = vadd.f32 0.0, %v5566
        %v5568 = vpop.f32.mrf.mxu0
        %v5569 = vpop.f32.mrf.mxu0
        %v5570 = vpop.f32.mrf.mxu0
        %5571 = vdwg.mxu0
        %5572 = vmatprep.subr.bf16.mxu0 0
        %5573 = vmatpush1.bf16.msra.mxu0 %v5507
        %5574 = vmatprep.subr.bf16.mxu0 0
        %5575 = vmatpush1.bf16.msra.mxu0 %v5506
        %5576 = vmatprep.subr.bf16.mxu0 0
        %5577 = vmatpush1.bf16.msra.mxu0 %v5505
        %5578 = vmatprep.subr.bf16.mxu0 0
        %5579 = vmatpush1.bf16.msra.mxu0 %v5504
        %5580 = vmatprep.subr.bf16.mxu0 0
        %5581 = vmatpush1.bf16.msra.mxu0 %v5503
        %5582 = vmatprep.subr.bf16.mxu0 0
        %5583 = vmatpush1.bf16.msra.mxu0 %v5502
        %5584 = vmatprep.subr.bf16.mxu0 0
        %5585 = vmatpush1.bf16.msra.mxu0 %v5501
        %5586 = vmatprep.subr.bf16.mxu0 0
        %5587 = vmatpush1.bf16.msra.mxu0 %v5500
        %5588 = vmatprep.subr.bf16.mxu0 0
        %5589 = vmatpush2.bf16.msra.mxu0 0
        %5590 = vmatprep.subr.bf16.mxu0 0
        %5591 = vmatpush2.bf16.msra.mxu0 0
        %5592 = vmatprep.subr.bf16.mxu0 0
        %5593 = vmatpush2.bf16.msra.mxu0 0
        %5594 = vmatprep.subr.bf16.mxu0 0
        %5595 = vmatpush2.bf16.msra.mxu0 0
        %5596 = vmatprep.subr.bf16.mxu0 0
        %5597 = vmatpush2.bf16.msra.mxu0 0
        %5598 = vmatprep.subr.bf16.mxu0 0
        %5599 = vmatpush2.bf16.msra.mxu0 0
        %5600 = vmatprep.subr.bf16.mxu0 0
        %5601 = vmatpush2.bf16.msra.mxu0 0
        %5602 = vmatprep.subr.bf16.mxu0 0
        %5603 = vmatpush2.bf16.msra.mxu0 0
        %5604 = vmatprep.mubr.bf16.mxu0 0
        %5605 = vmatmul.mubr.bf16.gmra.mxu0 %v5339
        %v5606 = vpop.f32.mrf.mxu0
        %v5607 = vadd.f32 %v5567, %v5606
        %v5608 = vpop.f32.mrf.mxu0
        %v5609 = vpop.f32.mrf.mxu0
        %v5610 = vpop.f32.mrf.mxu0
        %5611 = vdwg.mxu0
        %v5612 = vadd.f32 %v5333, %v5607
        %v5613 = vmax.f32 %v4213, 0.0
        %v5614 = vmax.f32 %v4214, 0.0
        %v5615 = vmax.f32 %v4215, 0.0
        %v5616 = vpack.c.bf16 %v5613, %v5613
        %v5617 = vpack.c.bf16 %v5614, %v5614
        %v5618 = vpack.c.bf16 %v5615, %v5615
        %v5619 = vld [vmem:[#allocation2 + $0x3c0] sm:$0xf]
        %v5620 = vld [vmem:[#allocation2 + $0x3c4] sm:$0xf]
        %v5621 = vld [vmem:[#allocation2 + $0x3c8] sm:$0xf]
        %v5622 = vld [vmem:[#allocation2 + $0x3cc] sm:$0xf]
        %v5623 = vld [vmem:[#allocation2 + $0x3d0] sm:$0xf]
        %v5624 = vld [vmem:[#allocation2 + $0x3d4] sm:$0xf]
        %v5625 = vld [vmem:[#allocation2 + $0x3d8] sm:$0xf]
        %v5626 = vld [vmem:[#allocation2 + $0x3dc] sm:$0xf]
        %v5627 = vld [vmem:[#allocation2 + $0x3e0] sm:$0xf]
        %v5628 = vld [vmem:[#allocation2 + $0x3e4] sm:$0xf]
        %v5629 = vld [vmem:[#allocation2 + $0x3e8] sm:$0xf]
        %v5630 = vld [vmem:[#allocation2 + $0x3ec] sm:$0xf]
        %v5631 = vld [vmem:[#allocation2 + $0x3f0] sm:$0xf]
        %v5632 = vld [vmem:[#allocation2 + $0x3f4] sm:$0xf]
        %v5633 = vld [vmem:[#allocation2 + $0x3f8] sm:$0xf]
        %v5634 = vld [vmem:[#allocation2 + $0x3fc] sm:$0xf]
        %v5635 = vld [vmem:[#allocation2 + $0x400] sm:$0xf]
        %v5636 = vld [vmem:[#allocation2 + $0x404] sm:$0xf]
        %v5637 = vld [vmem:[#allocation2 + $0x408] sm:$0xf]
        %v5638 = vld [vmem:[#allocation2 + $0x40c] sm:$0xf]
        %v5639 = vld [vmem:[#allocation2 + $0x410] sm:$0xf]
        %v5640 = vld [vmem:[#allocation2 + $0x414] sm:$0xf]
        %v5641 = vld [vmem:[#allocation2 + $0x418] sm:$0xf]
        %v5642 = vld [vmem:[#allocation2 + $0x41c] sm:$0xf]
        %v5643 = vld [vmem:[#allocation2 + $0x420] sm:$0xf]
        %v5644 = vld [vmem:[#allocation2 + $0x424] sm:$0xf]
        %v5645 = vld [vmem:[#allocation2 + $0x428] sm:$0xf]
        %v5646 = vld [vmem:[#allocation2 + $0x42c] sm:$0xf]
        %v5647 = vld [vmem:[#allocation2 + $0x430] sm:$0xf]
        %v5648 = vld [vmem:[#allocation2 + $0x434] sm:$0xf]
        %v5649 = vld [vmem:[#allocation2 + $0x438] sm:$0xf]
        %v5650 = vld [vmem:[#allocation2 + $0x43c] sm:$0xf]
        %v5651 = vld [vmem:[#allocation2 + $0x440] sm:$0xf]
        %v5652 = vld [vmem:[#allocation2 + $0x444] sm:$0xf]
        %v5653 = vld [vmem:[#allocation2 + $0x448] sm:$0xf]
        %v5654 = vld [vmem:[#allocation2 + $0x44c] sm:$0xf]
        %v5655 = vld [vmem:[#allocation2 + $0x450] sm:$0xf]
        %v5656 = vld [vmem:[#allocation2 + $0x454] sm:$0xf]
        %v5657 = vld [vmem:[#allocation2 + $0x458] sm:$0xf]
        %v5658 = vld [vmem:[#allocation2 + $0x45c] sm:$0xf]
        %v5659 = vld [vmem:[#allocation2 + $0x460] sm:$0xf]
        %v5660 = vld [vmem:[#allocation2 + $0x464] sm:$0xf]
        %v5661 = vld [vmem:[#allocation2 + $0x468] sm:$0xf]
        %v5662 = vld [vmem:[#allocation2 + $0x46c] sm:$0xf]
        %v5663 = vld [vmem:[#allocation2 + $0x470] sm:$0xf]
        %v5664 = vld [vmem:[#allocation2 + $0x474] sm:$0xf]
        %v5665 = vld [vmem:[#allocation2 + $0x478] sm:$0xf]
        %v5666 = vld [vmem:[#allocation2 + $0x47c] sm:$0xf]
        %v5715 = vunpack.c.l.b16 %v5619
        %v5716 = vunpack.c.l.b16 %v5620
        %v5717 = vunpack.c.l.b16 %v5621
        %v5718 = vunpack.c.l.b16 %v5622
        %v5719 = vunpack.c.l.b16 %v5623
        %v5720 = vunpack.c.l.b16 %v5624
        %v5721 = vunpack.c.l.b16 %v5625
        %v5722 = vunpack.c.l.b16 %v5626
        %v5723 = vunpack.c.l.b16 %v5627
        %v5724 = vunpack.c.l.b16 %v5628
        %v5725 = vunpack.c.l.b16 %v5629
        %v5726 = vunpack.c.l.b16 %v5630
        %v5727 = vunpack.c.l.b16 %v5631
        %v5728 = vunpack.c.l.b16 %v5632
        %v5729 = vunpack.c.l.b16 %v5633
        %v5730 = vunpack.c.l.b16 %v5634
        %v5731 = vunpack.c.l.b16 %v5635
        %v5732 = vunpack.c.l.b16 %v5636
        %v5733 = vunpack.c.l.b16 %v5637
        %v5734 = vunpack.c.l.b16 %v5638
        %v5735 = vunpack.c.l.b16 %v5639
        %v5736 = vunpack.c.l.b16 %v5640
        %v5737 = vunpack.c.l.b16 %v5641
        %v5738 = vunpack.c.l.b16 %v5642
        %v5739 = vunpack.c.l.b16 %v5643
        %v5740 = vunpack.c.l.b16 %v5644
        %v5741 = vunpack.c.l.b16 %v5645
        %v5742 = vunpack.c.l.b16 %v5646
        %v5743 = vunpack.c.l.b16 %v5647
        %v5744 = vunpack.c.l.b16 %v5648
        %v5745 = vunpack.c.l.b16 %v5649
        %v5746 = vunpack.c.l.b16 %v5650
        %v5747 = vunpack.c.l.b16 %v5651
        %v5748 = vunpack.c.l.b16 %v5652
        %v5749 = vunpack.c.l.b16 %v5653
        %v5750 = vunpack.c.l.b16 %v5654
        %v5751 = vunpack.c.l.b16 %v5655
        %v5752 = vunpack.c.l.b16 %v5656
        %v5753 = vunpack.c.l.b16 %v5657
        %v5754 = vunpack.c.l.b16 %v5658
        %v5755 = vunpack.c.l.b16 %v5659
        %v5756 = vunpack.c.l.b16 %v5660
        %v5757 = vunpack.c.l.b16 %v5661
        %v5758 = vunpack.c.l.b16 %v5662
        %v5759 = vunpack.c.l.b16 %v5663
        %v5760 = vunpack.c.l.b16 %v5664
        %v5761 = vunpack.c.l.b16 %v5665
        %v5762 = vunpack.c.l.b16 %v5666
        %v5763 = vpack.c.b16 %v5716, %v5715
        %v5764 = vpack.c.b16 %v5718, %v5717
        %v5765 = vpack.c.b16 %v5720, %v5719
        %v5766 = vpack.c.b16 %v5722, %v5721
        %v5767 = vpack.c.b16 %v5724, %v5723
        %v5768 = vpack.c.b16 %v5726, %v5725
        %v5769 = vpack.c.b16 %v5728, %v5727
        %v5770 = vpack.c.b16 %v5730, %v5729
        %v5771 = vpack.c.b16 %v5732, %v5731
        %v5772 = vpack.c.b16 %v5734, %v5733
        %v5773 = vpack.c.b16 %v5736, %v5735
        %v5774 = vpack.c.b16 %v5738, %v5737
        %v5775 = vpack.c.b16 %v5740, %v5739
        %v5776 = vpack.c.b16 %v5742, %v5741
        %v5777 = vpack.c.b16 %v5744, %v5743
        %v5778 = vpack.c.b16 %v5746, %v5745
        %v5779 = vpack.c.b16 %v5748, %v5747
        %v5780 = vpack.c.b16 %v5750, %v5749
        %v5781 = vpack.c.b16 %v5752, %v5751
        %v5782 = vpack.c.b16 %v5754, %v5753
        %v5783 = vpack.c.b16 %v5756, %v5755
        %v5784 = vpack.c.b16 %v5758, %v5757
        %v5785 = vpack.c.b16 %v5760, %v5759
        %v5786 = vpack.c.b16 %v5762, %v5761
        %5811 = vmatprep.subr.bf16.mxu0 0
        %5812 = vmatpush1.bf16.msra.mxu0 %v5770
        %5813 = vmatprep.subr.bf16.mxu0 0
        %5814 = vmatpush1.bf16.msra.mxu0 %v5769
        %5815 = vmatprep.subr.bf16.mxu0 0
        %5816 = vmatpush1.bf16.msra.mxu0 %v5768
        %5817 = vmatprep.subr.bf16.mxu0 0
        %5818 = vmatpush1.bf16.msra.mxu0 %v5767
        %5819 = vmatprep.subr.bf16.mxu0 0
        %5820 = vmatpush1.bf16.msra.mxu0 %v5766
        %5821 = vmatprep.subr.bf16.mxu0 0
        %5822 = vmatpush1.bf16.msra.mxu0 %v5765
        %5823 = vmatprep.subr.bf16.mxu0 0
        %5824 = vmatpush1.bf16.msra.mxu0 %v5764
        %5825 = vmatprep.subr.bf16.mxu0 0
        %5826 = vmatpush1.bf16.msra.mxu0 %v5763
        %5827 = vmatprep.subr.bf16.mxu0 0
        %5828 = vmatpush2.bf16.msra.mxu0 %v5778
        %5829 = vmatprep.subr.bf16.mxu0 0
        %5830 = vmatpush2.bf16.msra.mxu0 %v5777
        %5831 = vmatprep.subr.bf16.mxu0 0
        %5832 = vmatpush2.bf16.msra.mxu0 %v5776
        %5833 = vmatprep.subr.bf16.mxu0 0
        %5834 = vmatpush2.bf16.msra.mxu0 %v5775
        %5835 = vmatprep.subr.bf16.mxu0 0
        %5836 = vmatpush2.bf16.msra.mxu0 %v5774
        %5837 = vmatprep.subr.bf16.mxu0 0
        %5838 = vmatpush2.bf16.msra.mxu0 %v5773
        %5839 = vmatprep.subr.bf16.mxu0 0
        %5840 = vmatpush2.bf16.msra.mxu0 %v5772
        %5841 = vmatprep.subr.bf16.mxu0 0
        %5842 = vmatpush2.bf16.msra.mxu0 %v5771
        %5843 = vmatprep.mubr.bf16.mxu0 %v5617
        %5844 = vmatmul.mubr.bf16.gmra.mxu0 %v5616
        %v5845 = vpop.f32.mrf.mxu0
        %v5846 = vadd.f32 0.0, %v5845
        %v5847 = vpop.f32.mrf.mxu0
        %v5848 = vpop.f32.mrf.mxu0
        %v5849 = vpop.f32.mrf.mxu0
        %5850 = vdwg.mxu0
        %5851 = vmatprep.subr.bf16.mxu0 0
        %5852 = vmatpush1.bf16.msra.mxu0 %v5786
        %5853 = vmatprep.subr.bf16.mxu0 0
        %5854 = vmatpush1.bf16.msra.mxu0 %v5785
        %5855 = vmatprep.subr.bf16.mxu0 0
        %5856 = vmatpush1.bf16.msra.mxu0 %v5784
        %5857 = vmatprep.subr.bf16.mxu0 0
        %5858 = vmatpush1.bf16.msra.mxu0 %v5783
        %5859 = vmatprep.subr.bf16.mxu0 0
        %5860 = vmatpush1.bf16.msra.mxu0 %v5782
        %5861 = vmatprep.subr.bf16.mxu0 0
        %5862 = vmatpush1.bf16.msra.mxu0 %v5781
        %5863 = vmatprep.subr.bf16.mxu0 0
        %5864 = vmatpush1.bf16.msra.mxu0 %v5780
        %5865 = vmatprep.subr.bf16.mxu0 0
        %5866 = vmatpush1.bf16.msra.mxu0 %v5779
        %5867 = vmatprep.subr.bf16.mxu0 0
        %5868 = vmatpush2.bf16.msra.mxu0 0
        %5869 = vmatprep.subr.bf16.mxu0 0
        %5870 = vmatpush2.bf16.msra.mxu0 0
        %5871 = vmatprep.subr.bf16.mxu0 0
        %5872 = vmatpush2.bf16.msra.mxu0 0
        %5873 = vmatprep.subr.bf16.mxu0 0
        %5874 = vmatpush2.bf16.msra.mxu0 0
        %5875 = vmatprep.subr.bf16.mxu0 0
        %5876 = vmatpush2.bf16.msra.mxu0 0
        %5877 = vmatprep.subr.bf16.mxu0 0
        %5878 = vmatpush2.bf16.msra.mxu0 0
        %5879 = vmatprep.subr.bf16.mxu0 0
        %5880 = vmatpush2.bf16.msra.mxu0 0
        %5881 = vmatprep.subr.bf16.mxu0 0
        %5882 = vmatpush2.bf16.msra.mxu0 0
        %5883 = vmatprep.mubr.bf16.mxu0 0
        %5884 = vmatmul.mubr.bf16.gmra.mxu0 %v5618
        %v5885 = vpop.f32.mrf.mxu0
        %v5886 = vadd.f32 %v5846, %v5885
        %v5887 = vpop.f32.mrf.mxu0
        %v5888 = vpop.f32.mrf.mxu0
        %v5889 = vpop.f32.mrf.mxu0
        %5890 = vdwg.mxu0
        %v5891 = vadd.f32 %v5612, %v5886
        %v5892 = vld [vmem:[%s372] sm:$0x1]
        %v5894 = vlaneseq
        %v5895 = vshrl.u32 %v5894, 7
        %v5896 = vsub.s32 0, %v5895
        %v5897 = vrot.slane %v5892, %v5896
        %v5899 = vadd.f32 %v5891, %v5897
        %v5900 = vmax.f32 %v5899, 0.0
        %v5901 = vpack.c.bf16 %v5900, %v5900
        %v5902 = vld [vmem:[%s377] sm:$0xf]
        %v5903 = vld [vmem:[%s377 + $0x4] sm:$0xf]
        %v5904 = vld [vmem:[%s377 + $0x8] sm:$0xf]
        %v5905 = vld [vmem:[%s377 + $0xc] sm:$0xf]
        %v5906 = vld [vmem:[%s377 + $0x10] sm:$0xf]
        %v5907 = vld [vmem:[%s377 + $0x14] sm:$0xf]
        %v5908 = vld [vmem:[%s377 + $0x18] sm:$0xf]
        %v5909 = vld [vmem:[%s377 + $0x1c] sm:$0xf]
        %v5910 = vld [vmem:[%s377 + $0x20] sm:$0xf]
        %v5911 = vld [vmem:[%s377 + $0x24] sm:$0xf]
        %v5912 = vld [vmem:[%s377 + $0x28] sm:$0xf]
        %v5913 = vld [vmem:[%s377 + $0x2c] sm:$0xf]
        %v5914 = vld [vmem:[%s377 + $0x30] sm:$0xf]
        %v5915 = vld [vmem:[%s377 + $0x34] sm:$0xf]
        %v5916 = vld [vmem:[%s377 + $0x38] sm:$0xf]
        %v5917 = vld [vmem:[%s377 + $0x3c] sm:$0xf]
        %v5918 = vld [vmem:[%s380] sm:$0x1]
        %v5920 = vlaneseq
        %v5921 = vshrl.u32 %v5920, 7
        %v5922 = vsub.s32 0, %v5921
        %v5923 = vrot.slane %v5918, %v5922
        %v5941 = vunpack.c.l.b16 %v5902
        %v5942 = vunpack.c.l.b16 %v5903
        %v5943 = vunpack.c.l.b16 %v5904
        %v5944 = vunpack.c.l.b16 %v5905
        %v5945 = vunpack.c.l.b16 %v5906
        %v5946 = vunpack.c.l.b16 %v5907
        %v5947 = vunpack.c.l.b16 %v5908
        %v5948 = vunpack.c.l.b16 %v5909
        %v5949 = vunpack.c.l.b16 %v5910
        %v5950 = vunpack.c.l.b16 %v5911
        %v5951 = vunpack.c.l.b16 %v5912
        %v5952 = vunpack.c.l.b16 %v5913
        %v5953 = vunpack.c.l.b16 %v5914
        %v5954 = vunpack.c.l.b16 %v5915
        %v5955 = vunpack.c.l.b16 %v5916
        %v5956 = vunpack.c.l.b16 %v5917
        %v5957 = vpack.c.b16 %v5942, %v5941
        %v5958 = vpack.c.b16 %v5944, %v5943
        %v5959 = vpack.c.b16 %v5946, %v5945
        %v5960 = vpack.c.b16 %v5948, %v5947
        %v5961 = vpack.c.b16 %v5950, %v5949
        %v5962 = vpack.c.b16 %v5952, %v5951
        %v5963 = vpack.c.b16 %v5954, %v5953
        %v5964 = vpack.c.b16 %v5956, %v5955
        %5973 = vmatprep.subr.bf16.mxu0 0
        %5974 = vmatpush1.bf16.msra.mxu0 %v5964
        %5975 = vmatprep.subr.bf16.mxu0 0
        %5976 = vmatpush1.bf16.msra.mxu0 %v5963
        %5977 = vmatprep.subr.bf16.mxu0 0
        %5978 = vmatpush1.bf16.msra.mxu0 %v5962
        %5979 = vmatprep.subr.bf16.mxu0 0
        %5980 = vmatpush1.bf16.msra.mxu0 %v5961
        %5981 = vmatprep.subr.bf16.mxu0 0
        %5982 = vmatpush1.bf16.msra.mxu0 %v5960
        %5983 = vmatprep.subr.bf16.mxu0 0
        %5984 = vmatpush1.bf16.msra.mxu0 %v5959
        %5985 = vmatprep.subr.bf16.mxu0 0
        %5986 = vmatpush1.bf16.msra.mxu0 %v5958
        %5987 = vmatprep.subr.bf16.mxu0 0
        %5988 = vmatpush1.bf16.msra.mxu0 %v5957
        %5989 = vmatprep.subr.bf16.mxu0 0
        %5990 = vmatpush2.bf16.msra.mxu0 0
        %5991 = vmatprep.subr.bf16.mxu0 0
        %5992 = vmatpush2.bf16.msra.mxu0 0
        %5993 = vmatprep.subr.bf16.mxu0 0
        %5994 = vmatpush2.bf16.msra.mxu0 0
        %5995 = vmatprep.subr.bf16.mxu0 0
        %5996 = vmatpush2.bf16.msra.mxu0 0
        %5997 = vmatprep.subr.bf16.mxu0 0
        %5998 = vmatpush2.bf16.msra.mxu0 0
        %5999 = vmatprep.subr.bf16.mxu0 0
        %6000 = vmatpush2.bf16.msra.mxu0 0
        %6001 = vmatprep.subr.bf16.mxu0 0
        %6002 = vmatpush2.bf16.msra.mxu0 0
        %6003 = vmatprep.subr.bf16.mxu0 0
        %6004 = vmatpush2.bf16.msra.mxu0 0
        %6005 = vmatprep.mubr.bf16.mxu0 0
        %6006 = vmatmul.mubr.bf16.gmra.mxu0 %v5901
        %v6007 = vpop.f32.mrf.mxu0
        %v6008 = vadd.f32 %v5923, %v6007
        %v6009 = vpop.f32.mrf.mxu0
        %v6010 = vpop.f32.mrf.mxu0
        %v6011 = vpop.f32.mrf.mxu0
        %6012 = vdwg.mxu0
        %6013 = vst [vmem:[%s384] sm:$0x3] %v6008
        %p6014 = scmp.lt.s32.totalorder %s23, 1
        %s6015 = scalar_select %p6014, %s23, 1
        %s6016 = smul.addr %s6015, 8
        %s6017 = scalar_lea.vmem %s9, %s6016
        // Predicated region
        $region103: #{a3c_forward.1} parent=51 // pred_check
          %p6018 = pneg %p224
        $region104: #{a3c_forward.1} parent=51 // pred_check_branch
          %6020 = sbr.rel (%p6018) target = $region106
        $region105: #{a3c_forward.1} parent=51 // pred_region
          _
        $region106: #{a3c_forward.1} parent=51 // pred_fallthru
          _
      $region52: #{a3c_forward.1} parent=5 // pred_fallthru
        _
      %p6021 = scmp.le.s32.totalorder 2, %s18
      // Predicated region
      $region107: #{a3c_forward.1} parent=5 // pred_check
        %p6022 = pneg %p6021
      $region108: #{a3c_forward.1} parent=5 // pred_check_branch
        %6024 = sbr.rel (%p6022) target = $region110
      $region109: #{a3c_forward.1} parent=5 // pred_region
        %s6025 = ssub.s32 %s18, 2
        // Predicated region
        $region111: #{a3c_forward.1} parent=109 // pred_check
          %p6026 = pneg %p230
        $region112: #{a3c_forward.1} parent=109 // pred_check_branch
          %6028 = sbr.rel (%p6026) target = $region114
        $region113: #{a3c_forward.1} parent=109 // pred_region
          %p6029 = scmp.lt.s32.totalorder %s24, 1
          %s6030 = scalar_select %p6029, %s24, 1
          %s6031 = smul.addr %s6030, 8
          %s6032 = scalar_lea.vmem %s9, %s6031
        $region114: #{a3c_forward.1} parent=109 // pred_fallthru
          _
      $region110: #{a3c_forward.1} parent=5 // pred_fallthru
        _
    $region6: #{a3c_forward.1} parent=1 // loop_footer
      %s22 = sadd.s32 1, %s18
    $region7: #{a3c_forward.1} parent=1 // loop_footer_branch
      %17 = sbr.rel target = $region3
    $region8: #{a3c_forward.1} parent=1 // loop_exit
      _
    %6033 = vsyncpa [#allocation5], 1
    %s6034 = scalar_lea.sflag [#allocation5], 1
    %6035 = vsyncpa %s6034, 1
    %6036 = vsyncpa [#allocation7], 1
    %6037 = vsyncpa [#allocation10], 1
  %6038 = vsyncmov [#allocation3]
  %s6039 = vpop.sfrf %6038
  %p6040 = scmp.eq.s32.totalorder %s6039, 0
  %p6041 = pneg %p6040
  %6043 = shalt.err (%p6041)

</llo_original>
